<compile_context>
chip_gen: v7x
topology: tpu7x:2x2x1
jax: 0.10.0
libtpu: 0.0.40
codegen_flags: <defaults>
</compile_context>

<pallas_src>
import functools

import jax
import jax.numpy as jnp
from jax import lax
from jax.experimental import pallas as pl
from jax.experimental.pallas import tpu as pltpu

EPS = 1e-5                      # nn.BatchNorm2d default
VMEM_LIMIT_BYTES = 32 * 1024 * 1024


def _round_up(x, m):
    return (x + m - 1) // m * m


def _cparams(semantics):
    return pltpu.CompilerParams(dimension_semantics=semantics,
                                vmem_limit_bytes=VMEM_LIMIT_BYTES)


# --------------------- BN stats of the block input (tiled reduction) ---------------
# Only the raw input x has no producing kernel, so it keeps a standalone stats pass.
def _bn_stats_kernel(tm, M):
    def kernel(x_ref, s_ref, sq_ref):
        i = pl.program_id(0)

        @pl.when(i == 0)
        def _():
            s_ref[...] = jnp.zeros_like(s_ref)
            sq_ref[...] = jnp.zeros_like(sq_ref)

        rid = i * tm + lax.broadcasted_iota(jnp.int32, (tm, 1), 0)
        x = jnp.where(rid < M, x_ref[...].astype(jnp.float32), 0.0)
        s_ref[...] += jnp.sum(x, axis=0, keepdims=True)
        sq_ref[...] += jnp.sum(x * x, axis=0, keepdims=True)
    return kernel


def bn_input_stats(x, tm=512):
    M, C = x.shape
    tm = min(tm, _round_up(M, 8))
    nt = pl.cdiv(M, tm)
    return pl.pallas_call(
        _bn_stats_kernel(tm, M),
        out_shape=(jax.ShapeDtypeStruct((1, C), jnp.float32),
                   jax.ShapeDtypeStruct((1, C), jnp.float32)),
        grid=(nt,),
        in_specs=[pl.BlockSpec((tm, C), lambda i: (i, 0))],
        out_specs=(pl.BlockSpec((1, C), lambda i: (0, 0)),
                   pl.BlockSpec((1, C), lambda i: (0, 0))),
        compiler_params=_cparams(("arbitrary",)),
    )(x)


def _finish_stats(psum, psq, count):
    """Partial (.., 1, C) sums -> (bias = -mean, inv_std) for training-mode BN
    (batch statistics, biased variance, gamma=1, beta=0)."""
    C = psum.shape[-1]
    s = jnp.sum(psum.reshape(-1, C), axis=0, keepdims=True)
    sq = jnp.sum(psq.reshape(-1, C), axis=0, keepdims=True)
    mean = s / count
    # NOTE: E[x^2]-E[x]^2 in f32 can cancel for huge M; fine at the tolerances here.
    var = jnp.maximum(sq / count - mean * mean, 0.0)
    inv_std = lax.rsqrt(var + EPS)
    return -mean, inv_std          # inv_std (>0) gets folded into the next conv weights


# --------------------- 1x1 conv (row-tiled matmul), fused bias+ReLU / residual / stats ----
def _pointwise_kernel(apply_bn, add_residual, compute_stats, tm, M):
    def kernel(*refs):
        it = iter(refs)
        x_ref = next(it)
        bias_ref = next(it) if apply_bn else None
        w_ref = next(it)
        res_ref = next(it) if add_residual else None
        o_ref = next(it)
        ps_ref = next(it) if compute_stats else None
        psq_ref = next(it) if compute_stats else None

        x = x_ref[...]
        if apply_bn:
            # BN scale already folded into w; only shift (= -mean) + ReLU here.
            z = jnp.maximum(x.astype(jnp.float32) + bias_ref[...], 0.0).astype(jnp.bfloat16)
        else:
            z = x
        out = jnp.dot(z, w_ref[...], preferred_element_type=jnp.float32)
        if add_residual:
            out = out + res_ref[...].astype(jnp.float32)
        o_ref[...] = out.astype(o_ref.dtype)

        if compute_stats:
            # Per-tile partial BN sums of the *output*, masking the partial last tile.
            rid = pl.program_id(0) * tm + lax.broadcasted_iota(jnp.int32, (tm, 1), 0)
            om = jnp.where(rid < M, out, 0.0)
            ps_ref[0] = jnp.sum(om, axis=0, keepdims=True)
            psq_ref[0] = jnp.sum(om * om, axis=0, keepdims=True)
    return kernel


def pointwise_conv(x, w, bias=None, residual=None, compute_stats=False,
                   out_dtype=jnp.float32, tm=256):
    """1x1 conv as (M, Cin) @ (Cin, Cout) in bf16 with f32 accumulation.
    Optionally fused (bias+ReLU) on the input, residual add on the output, and
    per-tile BN partial sums of the output."""
    M, Cin = x.shape
    Cout = w.shape[1]
    tm = min(tm, _round_up(M, 8))
    nt = pl.cdiv(M, tm)

    in_arrays = [x]
    in_specs = [pl.BlockSpec((tm, Cin), lambda i: (i, 0))]
    if bias is not None:
        in_arrays.append(bias)
        in_specs.append(pl.BlockSpec((1, Cin), lambda i: (0, 0)))
    in_arrays.append(w)
    in_specs.append(pl.BlockSpec((Cin, Cout), lambda i: (0, 0)))
    if residual is not None:
        in_arrays.append(residual)
        in_specs.append(pl.BlockSpec((tm, Cout), lambda i: (i, 0)))

    out_shape = (jax.ShapeDtypeStruct((M, Cout), out_dtype),)
    out_specs = (pl.BlockSpec((tm, Cout), lambda i: (i, 0)),)
    if compute_stats:
        out_shape += (jax.ShapeDtypeStruct((nt, 1, Cout), jnp.float32),
                      jax.ShapeDtypeStruct((nt, 1, Cout), jnp.float32))
        out_specs += (pl.BlockSpec((1, 1, Cout), lambda i: (i, 0, 0)),
                      pl.BlockSpec((1, 1, Cout), lambda i: (i, 0, 0)))

    outs = pl.pallas_call(
        _pointwise_kernel(bias is not None, residual is not None, compute_stats, tm, M),
        out_shape=out_shape,
        grid=(nt,),
        in_specs=in_specs,
        out_specs=out_specs,
        compiler_params=_cparams(("parallel",)),
    )(*in_arrays)
    return outs if compute_stats else outs[0]


# --------------------- fused bias+ReLU + 3x3 conv (stride 1, pad 1) + stats ---------
def _conv3x3_kernel(H, W, Cin, Cout, F):
    HW = H * W

    def kernel(x_ref, ml_ref, mr_ref, bias_ref, w_ref, o_ref, ps_ref, psq_ref, zp_ref):
        # Fused BN shift + ReLU; zero padding happens in the post-ReLU domain (pad == 0).
        z = jnp.maximum(x_ref[0].astype(jnp.float32) + bias_ref[...], 0.0).astype(jnp.bfloat16)

        # Build the vertically padded flat image in VMEM: pixel (y, x) -> row (y+1)*W + x + F.
        zp_ref[...] = jnp.zeros_like(zp_ref)
        zp_ref[W + F:W + F + HW, :] = z
        zf = zp_ref[...]

        ml = ml_ref[...]          # (HW, 1): zero where output x == 0   (kills left wrap)
        mr = mr_ref[...]          # (HW, 1): zero where output x == W-1 (kills right wrap)

        acc = jnp.zeros((HW, Cout), jnp.float32)
        for ky in range(3):
            for kx in range(3):
                start = ky * W + kx + F - 1
                tap = zf[start:start + HW, :]
                if kx == 0:
                    tap = tap * ml
                elif kx == 2:
                    tap = tap * mr
                wk = w_ref[(ky * 3 + kx) * Cin:(ky * 3 + kx + 1) * Cin, :]
                acc = acc + jnp.dot(tap, wk, preferred_element_type=jnp.float32)

        o_ref[0] = acc.astype(o_ref.dtype)
        ps_ref[0] = jnp.sum(acc, axis=0, keepdims=True)
        psq_ref[0] = jnp.sum(acc * acc, axis=0, keepdims=True)
    return kernel


def conv3x3_bn_relu(y2d, bias, w9, N, H, W):
    """y2d: (N*H*W, Cin) bf16 pre-BN activations; w9: (9*Cin, Cout) bf16 taps in
    (ky, kx, Cin) row order with the BN scale folded in.  Returns
    (conv output (N*H*W, Cout) bf16, per-image BN partial sums)."""
    Cin = y2d.shape[-1]
    Cout = w9.shape[1]
    HW = H * W
    F = ((-W) % 8) or 8                          # front pad so the interior write is sublane-aligned
    R_pad = _round_up((H + 2) * W + F + 1, 8)

    x3 = y2d.reshape(N, HW, Cin)
    xc = jnp.arange(HW, dtype=jnp.int32) % W
    mask_l = (xc != 0).astype(jnp.bfloat16).reshape(HW, 1)
    mask_r = (xc != W - 1).astype(jnp.bfloat16).reshape(HW, 1)

    y3, ps, psq = pl.pallas_call(
        _conv3x3_kernel(H, W, Cin, Cout, F),
        out_shape=(jax.ShapeDtypeStruct((N, HW, Cout), jnp.bfloat16),
                   jax.ShapeDtypeStruct((N, 1, Cout), jnp.float32),
                   jax.ShapeDtypeStruct((N, 1, Cout), jnp.float32)),
        grid=(N,),
        in_specs=[
            pl.BlockSpec((1, HW, Cin), lambda n: (n, 0, 0)),
            pl.BlockSpec((HW, 1), lambda n: (0, 0)),
            pl.BlockSpec((HW, 1), lambda n: (0, 0)),
            pl.BlockSpec((1, Cin), lambda n: (0, 0)),
            pl.BlockSpec((9 * Cin, Cout), lambda n: (0, 0)),
        ],
        out_specs=(pl.BlockSpec((1, HW, Cout), lambda n: (n, 0, 0)),
                   pl.BlockSpec((1, 1, Cout), lambda n: (n, 0, 0)),
                   pl.BlockSpec((1, 1, Cout), lambda n: (n, 0, 0))),
        scratch_shapes=[pltpu.VMEM((R_pad, Cin), jnp.bfloat16)],
        compiler_params=_cparams(("parallel",)),
    )(x3, mask_l, mask_r, bias, w9)
    return y3.reshape(N * HW, Cout), ps, psq


# --------------------- Bottleneck module ------------------------------------------
def init_bottleneck_params(key, inplanes, planes, stride=1):
    expansion = 4

    def kaiming_uniform(k, cout, cin, kh, kw):
        fan_in = cin * kh * kw
        bound = (6.0 / fan_in) ** 0.5
        return jax.random.uniform(k, (cout, cin, kh, kw), jnp.float32, -bound, bound)

    k1, k2, k3, k4 = jax.random.split(key, 4)
    params = {
        "conv1": kaiming_uniform(k1, planes, inplanes, 1, 1),
        "conv2": kaiming_uniform(k2, planes, planes, 3, 3),
        "conv3": kaiming_uniform(k3, planes * expansion, planes, 1, 1),
    }
    if stride != 1 or inplanes != planes * expansion:
        params["downsample"] = kaiming_uniform(k4, planes * expansion, inplanes, 1, 1)
    return params


@functools.partial(jax.jit, static_argnames=("stride",))
def bottleneck_forward(params, x_nchw, stride=1):
    """Pallas Bottleneck forward.  x_nchw: (N, Cin, H, W) f32 -> (N, 4*planes, H, W) f32."""
    assert stride == 1  # TODO(synk): stride != 1 not implemented
    N, Cin, H, W = x_nchw.shape
    M = N * H * W
    x2d = jnp.transpose(x_nchw, (0, 2, 3, 1)).reshape(M, Cin)
    x_bf = x2d.astype(jnp.bfloat16)

    w1 = jnp.transpose(params["conv1"][:, :, 0, 0], (1, 0))                        # (Cin, planes)
    planes = w1.shape[1]
    w2 = jnp.transpose(params["conv2"], (2, 3, 1, 0)).reshape(9 * planes, planes)  # (9*planes, planes)
    w3 = jnp.transpose(params["conv3"][:, :, 0, 0], (1, 0))                        # (planes, 4*planes)
    has_downsample = "downsample" in params

    if has_downsample:
        # conv1 on raw x (no bn1/relu1); y1 stats emitted by the producing kernel.
        y1, ps1, psq1 = pointwise_conv(x_bf, w1.astype(jnp.bfloat16),
                                       compute_stats=True, out_dtype=jnp.bfloat16)
        wd = jnp.transpose(params["downsample"][:, :, 0, 0], (1, 0))
        residual = pointwise_conv(x_bf, wd.astype(jnp.bfloat16), out_dtype=jnp.float32)
    else:
        s, sq = bn_input_stats(x_bf)
        bias1, inv1 = _finish_stats(s, sq, M)
        w1f = (inv1.reshape(-1, 1) * w1).astype(jnp.bfloat16)                      # fold BN scale
        y1, ps1, psq1 = pointwise_conv(x_bf, w1f, bias=bias1,
                                       compute_stats=True, out_dtype=jnp.bfloat16)
        residual = x2d                                                             # f32

    # bn2 + relu2 + conv2 (3x3, pad 1); BN scale folded into every spatial tap.
    bias2, inv2 = _finish_stats(ps1, psq1, M)
    w2f = (jnp.tile(inv2.reshape(-1), 9)[:, None] * w2).astype(jnp.bfloat16)
    y3, ps2, psq2 = conv3x3_bn_relu(y1, bias2, w2f, N, H, W)

    # bn3 + relu3 + conv3 (+ residual add), BN scale folded into w3.
    bias3, inv3 = _finish_stats(ps2, psq2, M)
    w3f = (inv3.reshape(-1, 1) * w3).astype(jnp.bfloat16)
    out2d = pointwise_conv(y3, w3f, bias=bias3, residual=residual, out_dtype=jnp.float32)

    C_out = out2d.shape[1]
    return jnp.transpose(out2d.reshape(N, H, W, C_out), (0, 3, 1, 2))


# --------------------- pure-JAX reference (numerical sanity check) -----------------
def _bn_relu_ref(x):
    mean = jnp.mean(x, axis=(0, 2, 3), keepdims=True)
    var = jnp.var(x, axis=(0, 2, 3), keepdims=True)
    return jnp.maximum((x - mean) / jnp.sqrt(var + EPS), 0.0)


def _conv_ref(x, w, padding):
    return lax.conv_general_dilated(
        x, w, window_strides=(1, 1), padding=[(padding, padding)] * 2,
        dimension_numbers=("NCHW", "OIHW", "NCHW"))


def bottleneck_ref(params, x):
    if "downsample" in params:
        out = _conv_ref(x, params["conv1"], 0)
        residual = _conv_ref(x, params["downsample"], 0)
    else:
        out = _conv_ref(_bn_relu_ref(x), params["conv1"], 0)
        residual = x
    out = _conv_ref(_bn_relu_ref(out), params["conv2"], 1)
    out = _conv_ref(_bn_relu_ref(out), params["conv3"], 0)
    return out + residual


if __name__ == "__main__":
    key = jax.random.PRNGKey(0)
    N, H, W = 2, 16, 16
    configs = [
        dict(inplanes=16, planes=4),   # inplanes == 4*planes -> no downsample branch
        dict(inplanes=8, planes=4),    # inplanes != 4*planes -> 1x1 downsample branch
    ]
    for i, cfg in enumerate(configs):
        kp, kx = jax.random.split(jax.random.fold_in(key, i))
        params = init_bottleneck_params(kp, cfg["inplanes"], cfg["planes"], stride=1)
        x = jax.random.normal(kx, (N, cfg["inplanes"], H, W), jnp.float32)

        out = jax.block_until_ready(bottleneck_forward(params, x, stride=1))
        ref = jax.block_until_ready(bottleneck_ref(params, x))

        assert out.shape == (N, 4 * cfg["planes"], H, W)
        err = float(jnp.max(jnp.abs(out - ref)) / (jnp.max(jnp.abs(ref)) + 1e-6))
        assert err < 2e-2, f"config {i}: relative error too large: {err}"
    print("KERNEL_OK")
</pallas_src>

<mosaic_0001>
module attributes {stable_mosaic.version = 11 : i64} {
  func.func @kernel(%arg0: i32, %arg1: memref<512x16xbf16, #tpu.memory_space<vmem>>, %arg2: memref<1x16xf32, #tpu.memory_space<vmem>>, %arg3: memref<1x16xf32, #tpu.memory_space<vmem>>) attributes {dimension_semantics = [#tpu.dimension_semantics<arbitrary>], iteration_bounds = array<i64: 1>, scalar_prefetch = 0 : i64, scratch_operands = 0 : i64, tpu.core_type = #tpu.core_type<tc>, window_params = [{transform_indices = @transform_0, window_bounds = array<i64: 512, 16>}, {pipeline_mode = #tpu.pipeline_mode<synchronous>, transform_indices = @transform_1, window_bounds = array<i64: 1, 16>}, {pipeline_mode = #tpu.pipeline_mode<synchronous>, transform_indices = @transform_2, window_bounds = array<i64: 1, 16>}]} {
    %c0_i32 = arith.constant 0 : i32
    %0 = arith.cmpi eq, %arg0, %c0_i32 : i32
    %1 = arith.extui %0 : i1 to i32
    %c0_i32_0 = arith.constant 0 : i32
    %2 = arith.cmpi ne, %1, %c0_i32_0 : i32
    scf.if %2 {
      %cst_13 = arith.constant 0.000000e+00 : f32
      %26 = vector.broadcast %cst_13 : f32 to vector<1x16xf32>
      %c0_14 = arith.constant 0 : index
      %c0_15 = arith.constant 0 : index
      %27 = vector.load %arg2[%c0_14, %c0_15] : memref<1x16xf32, #tpu.memory_space<vmem>>, vector<1x16xf32>
      tpu.vector_store %arg2[%c0_14, %c0_15], %26 {strides = array<i32>} : memref<1x16xf32, #tpu.memory_space<vmem>>, vector<1x16xf32>,
      %cst_16 = arith.constant 0.000000e+00 : f32
      %28 = vector.broadcast %cst_16 : f32 to vector<1x16xf32>
      %c0_17 = arith.constant 0 : index
      %c0_18 = arith.constant 0 : index
      %29 = vector.load %arg3[%c0_17, %c0_18] : memref<1x16xf32, #tpu.memory_space<vmem>>, vector<1x16xf32>
      tpu.vector_store %arg3[%c0_17, %c0_18], %28 {strides = array<i32>} : memref<1x16xf32, #tpu.memory_space<vmem>>, vector<1x16xf32>,
    } else {
    }
    %c512_i32 = arith.constant 512 : i32
    %3 = arith.muli %arg0, %c512_i32 : i32
    %4 = tpu.iota {dimensions = array<i32: 0>} : vector<512x1xi32>
    %5 = vector.broadcast %3 : i32 to vector<512x1xi32>
    %6 = arith.addi %5, %4 : vector<512x1xi32>
    %c512_i32_1 = arith.constant 512 : i32
    %7 = vector.broadcast %c512_i32_1 : i32 to vector<512x1xi32>
    %8 = arith.cmpi slt, %6, %7 : vector<512x1xi32>
    %c0 = arith.constant 0 : index
    %c0_2 = arith.constant 0 : index
    %9 = vector.load %arg1[%c0, %c0_2] : memref<512x16xbf16, #tpu.memory_space<vmem>>, vector<512x16xbf16>
    %10 = arith.extf %9 : vector<512x16xbf16> to vector<512x16xf32>
    %cst = arith.constant 0.000000e+00 : f32
    %11 = vector.shape_cast %8 : vector<512x1xi1> to vector<512x1xi1>
    %12 = vector.broadcast %11 : vector<512x1xi1> to vector<512x16xi1>
    %13 = vector.broadcast %cst : f32 to vector<512x16xf32>
    %14 = arith.select %12, %10, %13 : vector<512x16xi1>, vector<512x16xf32>
    %c0_3 = arith.constant 0 : index
    %c0_4 = arith.constant 0 : index
    %15 = vector.load %arg2[%c0_3, %c0_4] : memref<1x16xf32, #tpu.memory_space<vmem>>, vector<1x16xf32>
    %cst_5 = arith.constant dense<0.000000e+00> : vector<16xf32>
    %16 = vector.multi_reduction <add>, %14, %cst_5 [0] : vector<512x16xf32> to vector<16xf32>
    %17 = vector.shape_cast %16 : vector<16xf32> to vector<1x16xf32>
    %18 = arith.addf %15, %17 : vector<1x16xf32>
    %c0_6 = arith.constant 0 : index
    %c0_7 = arith.constant 0 : index
    %19 = vector.load %arg2[%c0_6, %c0_7] : memref<1x16xf32, #tpu.memory_space<vmem>>, vector<1x16xf32>
    tpu.vector_store %arg2[%c0_6, %c0_7], %18 {strides = array<i32>} : memref<1x16xf32, #tpu.memory_space<vmem>>, vector<1x16xf32>,
    %c0_8 = arith.constant 0 : index
    %c0_9 = arith.constant 0 : index
    %20 = vector.load %arg3[%c0_8, %c0_9] : memref<1x16xf32, #tpu.memory_space<vmem>>, vector<1x16xf32>
    %21 = arith.mulf %14, %14 : vector<512x16xf32>
    %cst_10 = arith.constant dense<0.000000e+00> : vector<16xf32>
    %22 = vector.multi_reduction <add>, %21, %cst_10 [0] : vector<512x16xf32> to vector<16xf32>
    %23 = vector.shape_cast %22 : vector<16xf32> to vector<1x16xf32>
    %24 = arith.addf %20, %23 : vector<1x16xf32>
    %c0_11 = arith.constant 0 : index
    %c0_12 = arith.constant 0 : index
    %25 = vector.load %arg3[%c0_11, %c0_12] : memref<1x16xf32, #tpu.memory_space<vmem>>, vector<1x16xf32>
    tpu.vector_store %arg3[%c0_11, %c0_12], %24 {strides = array<i32>} : memref<1x16xf32, #tpu.memory_space<vmem>>, vector<1x16xf32>,
    return
  }
  func.func @transform_0(%arg0: i32) -> (i32, i32) {
    %c0_i32 = arith.constant 0 : i32
    %c0_i32_0 = arith.constant 0 : i32
    return %arg0, %c0_i32 : i32, i32
  }
  func.func @transform_1(%arg0: i32) -> (i32, i32) {
    %c0_i32 = arith.constant 0 : i32
    %c0_i32_0 = arith.constant 0 : i32
    %c0_i32_1 = arith.constant 0 : i32
    return %c0_i32, %c0_i32_0 : i32, i32
  }
  func.func @transform_2(%arg0: i32) -> (i32, i32) {
    %c0_i32 = arith.constant 0 : i32
    %c0_i32_0 = arith.constant 0 : i32
    %c0_i32_1 = arith.constant 0 : i32
    return %c0_i32, %c0_i32_0 : i32, i32
  }
}

module attributes {stable_mosaic.version = 11 : i64} {
  func.func @kernel(%arg0: i32, %arg1: memref<256x16xbf16, #tpu.memory_space<vmem>>, %arg2: memref<1x16xf32, #tpu.memory_space<vmem>>, %arg3: memref<16x4xbf16, #tpu.memory_space<vmem>>, %arg4: memref<256x4xbf16, #tpu.memory_space<vmem>>, %arg5: memref<1x1x4xf32, #tpu.memory_space<vmem>>, %arg6: memref<1x1x4xf32, #tpu.memory_space<vmem>>) attributes {dimension_semantics = [#tpu.dimension_semantics<parallel>], iteration_bounds = array<i64: 2>, scalar_prefetch = 0 : i64, scratch_operands = 0 : i64, tpu.core_type = #tpu.core_type<tc>, window_params = [{transform_indices = @transform_0, window_bounds = array<i64: 256, 16>}, {pipeline_mode = #tpu.pipeline_mode<synchronous>, transform_indices = @transform_1, window_bounds = array<i64: 1, 16>}, {pipeline_mode = #tpu.pipeline_mode<synchronous>, transform_indices = @transform_2, window_bounds = array<i64: 16, 4>}, {transform_indices = @transform_3, window_bounds = array<i64: 256, 4>}, {transform_indices = @transform_4, window_bounds = array<i64: 1, 1, 4>}, {transform_indices = @transform_5, window_bounds = array<i64: 1, 1, 4>}]} {
    %c0 = arith.constant 0 : index
    %c0_0 = arith.constant 0 : index
    %0 = vector.load %arg1[%c0, %c0_0] : memref<256x16xbf16, #tpu.memory_space<vmem>>, vector<256x16xbf16>
    %1 = arith.extf %0 : vector<256x16xbf16> to vector<256x16xf32>
    %c0_1 = arith.constant 0 : index
    %c0_2 = arith.constant 0 : index
    %2 = vector.load %arg2[%c0_1, %c0_2] : memref<1x16xf32, #tpu.memory_space<vmem>>, vector<1x16xf32>
    %3 = vector.broadcast %2 : vector<1x16xf32> to vector<256x16xf32>
    %4 = arith.addf %1, %3 : vector<256x16xf32>
    %cst = arith.constant 0.000000e+00 : f32
    %5 = vector.broadcast %cst : f32 to vector<256x16xf32>
    %6 = arith.maximumf %4, %5 : vector<256x16xf32>
    %7 = arith.truncf %6 : vector<256x16xf32> to vector<256x16xbf16>
    %c0_3 = arith.constant 0 : index
    %c0_4 = arith.constant 0 : index
    %8 = vector.load %arg3[%c0_3, %c0_4] : memref<16x4xbf16, #tpu.memory_space<vmem>>, vector<16x4xbf16>
    %cst_5 = arith.constant dense<0.000000e+00> : vector<256x4xf32>
    %9 = tpu.matmul %7, %8, %cst_5 {dimension_numbers = #tpu.dot_dimension_numbers<[1], [0], [0], [1], [0, 0, 1, 1], [], []>} : vector<256x16xbf16>, vector<16x4xbf16>, vector<256x4xf32> -> vector<256x4xf32>
    %10 = arith.truncf %9 : vector<256x4xf32> to vector<256x4xbf16>
    %c0_6 = arith.constant 0 : index
    %c0_7 = arith.constant 0 : index
    %11 = vector.load %arg4[%c0_6, %c0_7] : memref<256x4xbf16, #tpu.memory_space<vmem>>, vector<256x4xbf16>
    tpu.vector_store %arg4[%c0_6, %c0_7], %10 {strides = array<i32>} : memref<256x4xbf16, #tpu.memory_space<vmem>>, vector<256x4xbf16>,
    %c256_i32 = arith.constant 256 : i32
    %12 = arith.muli %arg0, %c256_i32 : i32
    %13 = tpu.iota {dimensions = array<i32: 0>} : vector<256x1xi32>
    %14 = vector.broadcast %12 : i32 to vector<256x1xi32>
    %15 = arith.addi %14, %13 : vector<256x1xi32>
    %c512_i32 = arith.constant 512 : i32
    %16 = vector.broadcast %c512_i32 : i32 to vector<256x1xi32>
    %17 = arith.cmpi slt, %15, %16 : vector<256x1xi32>
    %cst_8 = arith.constant 0.000000e+00 : f32
    %18 = vector.shape_cast %17 : vector<256x1xi1> to vector<256x1xi1>
    %19 = vector.broadcast %18 : vector<256x1xi1> to vector<256x4xi1>
    %20 = vector.broadcast %cst_8 : f32 to vector<256x4xf32>
    %21 = arith.select %19, %9, %20 : vector<256x4xi1>, vector<256x4xf32>
    %cst_9 = arith.constant dense<0.000000e+00> : vector<4xf32>
    %22 = vector.multi_reduction <add>, %21, %cst_9 [0] : vector<256x4xf32> to vector<4xf32>
    %23 = vector.shape_cast %22 : vector<4xf32> to vector<1x4xf32>
    %c0_10 = arith.constant 0 : index
    %c0_11 = arith.constant 0 : index
    %c0_12 = arith.constant 0 : index
    %24 = vector.load %arg5[%c0_10, %c0_11, %c0_12] : memref<1x1x4xf32, #tpu.memory_space<vmem>>, vector<1x1x4xf32>
    %25 = vector.shape_cast %24 : vector<1x1x4xf32> to vector<1x4xf32>
    %26 = vector.shape_cast %23 : vector<1x4xf32> to vector<1x1x4xf32>
    tpu.vector_store %arg5[%c0_10, %c0_11, %c0_12], %26 {strides = array<i32>} : memref<1x1x4xf32, #tpu.memory_space<vmem>>, vector<1x1x4xf32>,
    %27 = arith.mulf %21, %21 : vector<256x4xf32>
    %cst_13 = arith.constant dense<0.000000e+00> : vector<4xf32>
    %28 = vector.multi_reduction <add>, %27, %cst_13 [0] : vector<256x4xf32> to vector<4xf32>
    %29 = vector.shape_cast %28 : vector<4xf32> to vector<1x4xf32>
    %c0_14 = arith.constant 0 : index
    %c0_15 = arith.constant 0 : index
    %c0_16 = arith.constant 0 : index
    %30 = vector.load %arg6[%c0_14, %c0_15, %c0_16] : memref<1x1x4xf32, #tpu.memory_space<vmem>>, vector<1x1x4xf32>
    %31 = vector.shape_cast %30 : vector<1x1x4xf32> to vector<1x4xf32>
    %32 = vector.shape_cast %29 : vector<1x4xf32> to vector<1x1x4xf32>
    tpu.vector_store %arg6[%c0_14, %c0_15, %c0_16], %32 {strides = array<i32>} : memref<1x1x4xf32, #tpu.memory_space<vmem>>, vector<1x1x4xf32>,
    return
  }
  func.func @transform_0(%arg0: i32) -> (i32, i32) {
    %c0_i32 = arith.constant 0 : i32
    %c0_i32_0 = arith.constant 0 : i32
    return %arg0, %c0_i32 : i32, i32
  }
  func.func @transform_1(%arg0: i32) -> (i32, i32) {
    %c0_i32 = arith.constant 0 : i32
    %c0_i32_0 = arith.constant 0 : i32
    %c0_i32_1 = arith.constant 0 : i32
    return %c0_i32, %c0_i32_0 : i32, i32
  }
  func.func @transform_2(%arg0: i32) -> (i32, i32) {
    %c0_i32 = arith.constant 0 : i32
    %c0_i32_0 = arith.constant 0 : i32
    %c0_i32_1 = arith.constant 0 : i32
    return %c0_i32, %c0_i32_0 : i32, i32
  }
  func.func @transform_3(%arg0: i32) -> (i32, i32) {
    %c0_i32 = arith.constant 0 : i32
    %c0_i32_0 = arith.constant 0 : i32
    return %arg0, %c0_i32 : i32, i32
  }
  func.func @transform_4(%arg0: i32) -> (i32, i32, i32) {
    %c0_i32 = arith.constant 0 : i32
    %c0_i32_0 = arith.constant 0 : i32
    %c0_i32_1 = arith.constant 0 : i32
    return %arg0, %c0_i32, %c0_i32_0 : i32, i32, i32
  }
  func.func @transform_5(%arg0: i32) -> (i32, i32, i32) {
    %c0_i32 = arith.constant 0 : i32
    %c0_i32_0 = arith.constant 0 : i32
    %c0_i32_1 = arith.constant 0 : i32
    return %arg0, %c0_i32, %c0_i32_0 : i32, i32, i32
  }
}

module attributes {stable_mosaic.version = 11 : i64} {
  func.func @kernel(%arg0: i32, %arg1: memref<1x256x4xbf16, #tpu.memory_space<vmem>>, %arg2: memref<256x1xbf16, #tpu.memory_space<vmem>>, %arg3: memref<256x1xbf16, #tpu.memory_space<vmem>>, %arg4: memref<1x4xf32, #tpu.memory_space<vmem>>, %arg5: memref<36x4xbf16, #tpu.memory_space<vmem>>, %arg6: memref<1x256x4xbf16, #tpu.memory_space<vmem>>, %arg7: memref<1x1x4xf32, #tpu.memory_space<vmem>>, %arg8: memref<1x1x4xf32, #tpu.memory_space<vmem>>, %arg9: memref<304x4xbf16, #tpu.memory_space<vmem>>) attributes {dimension_semantics = [#tpu.dimension_semantics<parallel>], iteration_bounds = array<i64: 2>, scalar_prefetch = 0 : i64, scratch_operands = 1 : i64, tpu.core_type = #tpu.core_type<tc>, window_params = [{transform_indices = @transform_0, window_bounds = array<i64: 1, 256, 4>}, {pipeline_mode = #tpu.pipeline_mode<synchronous>, transform_indices = @transform_1, window_bounds = array<i64: 256, 1>}, {pipeline_mode = #tpu.pipeline_mode<synchronous>, transform_indices = @transform_2, window_bounds = array<i64: 256, 1>}, {pipeline_mode = #tpu.pipeline_mode<synchronous>, transform_indices = @transform_3, window_bounds = array<i64: 1, 4>}, {pipeline_mode = #tpu.pipeline_mode<synchronous>, transform_indices = @transform_4, window_bounds = array<i64: 36, 4>}, {transform_indices = @transform_5, window_bounds = array<i64: 1, 256, 4>}, {transform_indices = @transform_6, window_bounds = array<i64: 1, 1, 4>}, {transform_indices = @transform_7, window_bounds = array<i64: 1, 1, 4>}]} {
    %c0 = arith.constant 0 : index
    %c0_0 = arith.constant 0 : index
    %c0_1 = arith.constant 0 : index
    %0 = vector.load %arg1[%c0, %c0_0, %c0_1] : memref<1x256x4xbf16, #tpu.memory_space<vmem>>, vector<1x256x4xbf16>
    %1 = vector.shape_cast %0 : vector<1x256x4xbf16> to vector<256x4xbf16>
    %2 = arith.extf %1 : vector<256x4xbf16> to vector<256x4xf32>
    %c0_2 = arith.constant 0 : index
    %c0_3 = arith.constant 0 : index
    %3 = vector.load %arg4[%c0_2, %c0_3] : memref<1x4xf32, #tpu.memory_space<vmem>>, vector<1x4xf32>
    %4 = vector.broadcast %3 : vector<1x4xf32> to vector<256x4xf32>
    %5 = arith.addf %2, %4 : vector<256x4xf32>
    %cst = arith.constant 0.000000e+00 : f32
    %6 = vector.broadcast %cst : f32 to vector<256x4xf32>
    %7 = arith.maximumf %5, %6 : vector<256x4xf32>
    %8 = arith.truncf %7 : vector<256x4xf32> to vector<256x4xbf16>
    %cst_4 = arith.constant 0.000000e+00 : bf16
    %9 = vector.broadcast %cst_4 : bf16 to vector<304x4xbf16>
    %c0_5 = arith.constant 0 : index
    %c0_6 = arith.constant 0 : index
    %10 = vector.load %arg9[%c0_5, %c0_6] : memref<304x4xbf16, #tpu.memory_space<vmem>>, vector<304x4xbf16>
    tpu.vector_store %arg9[%c0_5, %c0_6], %9 {strides = array<i32>} : memref<304x4xbf16, #tpu.memory_space<vmem>>, vector<304x4xbf16>,
    %c24 = arith.constant 24 : index
    %c0_7 = arith.constant 0 : index
    %11 = vector.load %arg9[%c24, %c0_7] : memref<304x4xbf16, #tpu.memory_space<vmem>>, vector<256x4xbf16>
    tpu.vector_store %arg9[%c24, %c0_7], %8 {strides = array<i32>} : memref<304x4xbf16, #tpu.memory_space<vmem>>, vector<256x4xbf16>,
    %c0_8 = arith.constant 0 : index
    %c0_9 = arith.constant 0 : index
    %12 = vector.load %arg9[%c0_8, %c0_9] : memref<304x4xbf16, #tpu.memory_space<vmem>>, vector<304x4xbf16>
    %c0_10 = arith.constant 0 : index
    %c0_11 = arith.constant 0 : index
    %13 = vector.load %arg2[%c0_10, %c0_11] : memref<256x1xbf16, #tpu.memory_space<vmem>>, vector<256x1xbf16>
    %c0_12 = arith.constant 0 : index
    %c0_13 = arith.constant 0 : index
    %14 = vector.load %arg3[%c0_12, %c0_13] : memref<256x1xbf16, #tpu.memory_space<vmem>>, vector<256x1xbf16>
    %cst_14 = arith.constant 0.000000e+00 : f32
    %15 = vector.broadcast %cst_14 : f32 to vector<256x4xf32>
    %16 = vector.extract_strided_slice %12 {offsets = [7, 0], sizes = [256, 4], strides = [1, 1]} : vector<304x4xbf16> to vector<256x4xbf16>
    %17 = vector.broadcast %13 : vector<256x1xbf16> to vector<256x4xbf16>
    %18 = arith.mulf %16, %17 : vector<256x4xbf16>
    %c0_15 = arith.constant 0 : index
    %c0_16 = arith.constant 0 : index
    %19 = vector.load %arg5[%c0_15, %c0_16] : memref<36x4xbf16, #tpu.memory_space<vmem>>, vector<4x4xbf16>
    %cst_17 = arith.constant dense<0.000000e+00> : vector<256x4xf32>
    %20 = tpu.matmul %18, %19, %cst_17 {dimension_numbers = #tpu.dot_dimension_numbers<[1], [0], [0], [1], [0, 0, 1, 1], [], []>} : vector<256x4xbf16>, vector<4x4xbf16>, vector<256x4xf32> -> vector<256x4xf32>
    %21 = arith.addf %15, %20 : vector<256x4xf32>
    %22 = vector.extract_strided_slice %12 {offsets = [8, 0], sizes = [256, 4], strides = [1, 1]} : vector<304x4xbf16> to vector<256x4xbf16>
    %c4 = arith.constant 4 : index
    %c0_18 = arith.constant 0 : index
    %23 = vector.load %arg5[%c4, %c0_18] : memref<36x4xbf16, #tpu.memory_space<vmem>>, vector<4x4xbf16>
    %cst_19 = arith.constant dense<0.000000e+00> : vector<256x4xf32>
    %24 = tpu.matmul %22, %23, %cst_19 {dimension_numbers = #tpu.dot_dimension_numbers<[1], [0], [0], [1], [0, 0, 1, 1], [], []>} : vector<256x4xbf16>, vector<4x4xbf16>, vector<256x4xf32> -> vector<256x4xf32>
    %25 = arith.addf %21, %24 : vector<256x4xf32>
    %26 = vector.extract_strided_slice %12 {offsets = [9, 0], sizes = [256, 4], strides = [1, 1]} : vector<304x4xbf16> to vector<256x4xbf16>
    %27 = vector.broadcast %14 : vector<256x1xbf16> to vector<256x4xbf16>
    %28 = arith.mulf %26, %27 : vector<256x4xbf16>
    %c8 = arith.constant 8 : index
    %c0_20 = arith.constant 0 : index
    %29 = vector.load %arg5[%c8, %c0_20] : memref<36x4xbf16, #tpu.memory_space<vmem>>, vector<4x4xbf16>
    %cst_21 = arith.constant dense<0.000000e+00> : vector<256x4xf32>
    %30 = tpu.matmul %28, %29, %cst_21 {dimension_numbers = #tpu.dot_dimension_numbers<[1], [0], [0], [1], [0, 0, 1, 1], [], []>} : vector<256x4xbf16>, vector<4x4xbf16>, vector<256x4xf32> -> vector<256x4xf32>
    %31 = arith.addf %25, %30 : vector<256x4xf32>
    %32 = vector.extract_strided_slice %12 {offsets = [23, 0], sizes = [256, 4], strides = [1, 1]} : vector<304x4xbf16> to vector<256x4xbf16>
    %33 = vector.broadcast %13 : vector<256x1xbf16> to vector<256x4xbf16>
    %34 = arith.mulf %32, %33 : vector<256x4xbf16>
    %c12 = arith.constant 12 : index
    %c0_22 = arith.constant 0 : index
    %35 = vector.load %arg5[%c12, %c0_22] : memref<36x4xbf16, #tpu.memory_space<vmem>>, vector<4x4xbf16>
    %cst_23 = arith.constant dense<0.000000e+00> : vector<256x4xf32>
    %36 = tpu.matmul %34, %35, %cst_23 {dimension_numbers = #tpu.dot_dimension_numbers<[1], [0], [0], [1], [0, 0, 1, 1], [], []>} : vector<256x4xbf16>, vector<4x4xbf16>, vector<256x4xf32> -> vector<256x4xf32>
    %37 = arith.addf %31, %36 : vector<256x4xf32>
    %38 = vector.extract_strided_slice %12 {offsets = [24, 0], sizes = [256, 4], strides = [1, 1]} : vector<304x4xbf16> to vector<256x4xbf16>
    %c16 = arith.constant 16 : index
    %c0_24 = arith.constant 0 : index
    %39 = vector.load %arg5[%c16, %c0_24] : memref<36x4xbf16, #tpu.memory_space<vmem>>, vector<4x4xbf16>
    %cst_25 = arith.constant dense<0.000000e+00> : vector<256x4xf32>
    %40 = tpu.matmul %38, %39, %cst_25 {dimension_numbers = #tpu.dot_dimension_numbers<[1], [0], [0], [1], [0, 0, 1, 1], [], []>} : vector<256x4xbf16>, vector<4x4xbf16>, vector<256x4xf32> -> vector<256x4xf32>
    %41 = arith.addf %37, %40 : vector<256x4xf32>
    %42 = vector.extract_strided_slice %12 {offsets = [25, 0], sizes = [256, 4], strides = [1, 1]} : vector<304x4xbf16> to vector<256x4xbf16>
    %43 = vector.broadcast %14 : vector<256x1xbf16> to vector<256x4xbf16>
    %44 = arith.mulf %42, %43 : vector<256x4xbf16>
    %c20 = arith.constant 20 : index
    %c0_26 = arith.constant 0 : index
    %45 = vector.load %arg5[%c20, %c0_26] : memref<36x4xbf16, #tpu.memory_space<vmem>>, vector<4x4xbf16>
    %cst_27 = arith.constant dense<0.000000e+00> : vector<256x4xf32>
    %46 = tpu.matmul %44, %45, %cst_27 {dimension_numbers = #tpu.dot_dimension_numbers<[1], [0], [0], [1], [0, 0, 1, 1], [], []>} : vector<256x4xbf16>, vector<4x4xbf16>, vector<256x4xf32> -> vector<256x4xf32>
    %47 = arith.addf %41, %46 : vector<256x4xf32>
    %48 = vector.extract_strided_slice %12 {offsets = [39, 0], sizes = [256, 4], strides = [1, 1]} : vector<304x4xbf16> to vector<256x4xbf16>
    %49 = vector.broadcast %13 : vector<256x1xbf16> to vector<256x4xbf16>
    %50 = arith.mulf %48, %49 : vector<256x4xbf16>
    %c24_28 = arith.constant 24 : index
    %c0_29 = arith.constant 0 : index
    %51 = vector.load %arg5[%c24_28, %c0_29] : memref<36x4xbf16, #tpu.memory_space<vmem>>, vector<4x4xbf16>
    %cst_30 = arith.constant dense<0.000000e+00> : vector<256x4xf32>
    %52 = tpu.matmul %50, %51, %cst_30 {dimension_numbers = #tpu.dot_dimension_numbers<[1], [0], [0], [1], [0, 0, 1, 1], [], []>} : vector<256x4xbf16>, vector<4x4xbf16>, vector<256x4xf32> -> vector<256x4xf32>
    %53 = arith.addf %47, %52 : vector<256x4xf32>
    %54 = vector.extract_strided_slice %12 {offsets = [40, 0], sizes = [256, 4], strides = [1, 1]} : vector<304x4xbf16> to vector<256x4xbf16>
    %c28 = arith.constant 28 : index
    %c0_31 = arith.constant 0 : index
    %55 = vector.load %arg5[%c28, %c0_31] : memref<36x4xbf16, #tpu.memory_space<vmem>>, vector<4x4xbf16>
    %cst_32 = arith.constant dense<0.000000e+00> : vector<256x4xf32>
    %56 = tpu.matmul %54, %55, %cst_32 {dimension_numbers = #tpu.dot_dimension_numbers<[1], [0], [0], [1], [0, 0, 1, 1], [], []>} : vector<256x4xbf16>, vector<4x4xbf16>, vector<256x4xf32> -> vector<256x4xf32>
    %57 = arith.addf %53, %56 : vector<256x4xf32>
    %58 = vector.extract_strided_slice %12 {offsets = [41, 0], sizes = [256, 4], strides = [1, 1]} : vector<304x4xbf16> to vector<256x4xbf16>
    %59 = vector.broadcast %14 : vector<256x1xbf16> to vector<256x4xbf16>
    %60 = arith.mulf %58, %59 : vector<256x4xbf16>
    %c32 = arith.constant 32 : index
    %c0_33 = arith.constant 0 : index
    %61 = vector.load %arg5[%c32, %c0_33] : memref<36x4xbf16, #tpu.memory_space<vmem>>, vector<4x4xbf16>
    %cst_34 = arith.constant dense<0.000000e+00> : vector<256x4xf32>
    %62 = tpu.matmul %60, %61, %cst_34 {dimension_numbers = #tpu.dot_dimension_numbers<[1], [0], [0], [1], [0, 0, 1, 1], [], []>} : vector<256x4xbf16>, vector<4x4xbf16>, vector<256x4xf32> -> vector<256x4xf32>
    %63 = arith.addf %57, %62 : vector<256x4xf32>
    %64 = arith.truncf %63 : vector<256x4xf32> to vector<256x4xbf16>
    %c0_35 = arith.constant 0 : index
    %c0_36 = arith.constant 0 : index
    %c0_37 = arith.constant 0 : index
    %65 = vector.load %arg6[%c0_35, %c0_36, %c0_37] : memref<1x256x4xbf16, #tpu.memory_space<vmem>>, vector<1x256x4xbf16>
    %66 = vector.shape_cast %65 : vector<1x256x4xbf16> to vector<256x4xbf16>
    %67 = vector.shape_cast %64 : vector<256x4xbf16> to vector<1x256x4xbf16>
    tpu.vector_store %arg6[%c0_35, %c0_36, %c0_37], %67 {strides = array<i32>} : memref<1x256x4xbf16, #tpu.memory_space<vmem>>, vector<1x256x4xbf16>,
    %cst_38 = arith.constant dense<0.000000e+00> : vector<4xf32>
    %68 = vector.multi_reduction <add>, %63, %cst_38 [0] : vector<256x4xf32> to vector<4xf32>
    %69 = vector.shape_cast %68 : vector<4xf32> to vector<1x4xf32>
    %c0_39 = arith.constant 0 : index
    %c0_40 = arith.constant 0 : index
    %c0_41 = arith.constant 0 : index
    %70 = vector.load %arg7[%c0_39, %c0_40, %c0_41] : memref<1x1x4xf32, #tpu.memory_space<vmem>>, vector<1x1x4xf32>
    %71 = vector.shape_cast %70 : vector<1x1x4xf32> to vector<1x4xf32>
    %72 = vector.shape_cast %69 : vector<1x4xf32> to vector<1x1x4xf32>
    tpu.vector_store %arg7[%c0_39, %c0_40, %c0_41], %72 {strides = array<i32>} : memref<1x1x4xf32, #tpu.memory_space<vmem>>, vector<1x1x4xf32>,
    %73 = arith.mulf %63, %63 : vector<256x4xf32>
    %cst_42 = arith.constant dense<0.000000e+00> : vector<4xf32>
    %74 = vector.multi_reduction <add>, %73, %cst_42 [0] : vector<256x4xf32> to vector<4xf32>
    %75 = vector.shape_cast %74 : vector<4xf32> to vector<1x4xf32>
    %c0_43 = arith.constant 0 : index
    %c0_44 = arith.constant 0 : index
    %c0_45 = arith.constant 0 : index
    %76 = vector.load %arg8[%c0_43, %c0_44, %c0_45] : memref<1x1x4xf32, #tpu.memory_space<vmem>>, vector<1x1x4xf32>
    %77 = vector.shape_cast %76 : vector<1x1x4xf32> to vector<1x4xf32>
    %78 = vector.shape_cast %75 : vector<1x4xf32> to vector<1x1x4xf32>
    tpu.vector_store %arg8[%c0_43, %c0_44, %c0_45], %78 {strides = array<i32>} : memref<1x1x4xf32, #tpu.memory_space<vmem>>, vector<1x1x4xf32>,
    return
  }
  func.func @transform_0(%arg0: i32) -> (i32, i32, i32) {
    %c0_i32 = arith.constant 0 : i32
    %c0_i32_0 = arith.constant 0 : i32
    %c0_i32_1 = arith.constant 0 : i32
    return %arg0, %c0_i32, %c0_i32_0 : i32, i32, i32
  }
  func.func @transform_1(%arg0: i32) -> (i32, i32) {
    %c0_i32 = arith.constant 0 : i32
    %c0_i32_0 = arith.constant 0 : i32
    %c0_i32_1 = arith.constant 0 : i32
    return %c0_i32, %c0_i32_0 : i32, i32
  }
  func.func @transform_2(%arg0: i32) -> (i32, i32) {
    %c0_i32 = arith.constant 0 : i32
    %c0_i32_0 = arith.constant 0 : i32
    %c0_i32_1 = arith.constant 0 : i32
    return %c0_i32, %c0_i32_0 : i32, i32
  }
  func.func @transform_3(%arg0: i32) -> (i32, i32) {
    %c0_i32 = arith.constant 0 : i32
    %c0_i32_0 = arith.constant 0 : i32
    %c0_i32_1 = arith.constant 0 : i32
    return %c0_i32, %c0_i32_0 : i32, i32
  }
  func.func @transform_4(%arg0: i32) -> (i32, i32) {
    %c0_i32 = arith.constant 0 : i32
    %c0_i32_0 = arith.constant 0 : i32
    %c0_i32_1 = arith.constant 0 : i32
    return %c0_i32, %c0_i32_0 : i32, i32
  }
  func.func @transform_5(%arg0: i32) -> (i32, i32, i32) {
    %c0_i32 = arith.constant 0 : i32
    %c0_i32_0 = arith.constant 0 : i32
    %c0_i32_1 = arith.constant 0 : i32
    return %arg0, %c0_i32, %c0_i32_0 : i32, i32, i32
  }
  func.func @transform_6(%arg0: i32) -> (i32, i32, i32) {
    %c0_i32 = arith.constant 0 : i32
    %c0_i32_0 = arith.constant 0 : i32
    %c0_i32_1 = arith.constant 0 : i32
    return %arg0, %c0_i32, %c0_i32_0 : i32, i32, i32
  }
  func.func @transform_7(%arg0: i32) -> (i32, i32, i32) {
    %c0_i32 = arith.constant 0 : i32
    %c0_i32_0 = arith.constant 0 : i32
    %c0_i32_1 = arith.constant 0 : i32
    return %arg0, %c0_i32, %c0_i32_0 : i32, i32, i32
  }
}

module attributes {stable_mosaic.version = 11 : i64} {
  func.func @kernel(%arg0: i32, %arg1: memref<256x4xbf16, #tpu.memory_space<vmem>>, %arg2: memref<1x4xf32, #tpu.memory_space<vmem>>, %arg3: memref<4x16xbf16, #tpu.memory_space<vmem>>, %arg4: memref<256x16xf32, #tpu.memory_space<vmem>>, %arg5: memref<256x16xf32, #tpu.memory_space<vmem>>) attributes {dimension_semantics = [#tpu.dimension_semantics<parallel>], iteration_bounds = array<i64: 2>, scalar_prefetch = 0 : i64, scratch_operands = 0 : i64, tpu.core_type = #tpu.core_type<tc>, window_params = [{transform_indices = @transform_0, window_bounds = array<i64: 256, 4>}, {pipeline_mode = #tpu.pipeline_mode<synchronous>, transform_indices = @transform_1, window_bounds = array<i64: 1, 4>}, {pipeline_mode = #tpu.pipeline_mode<synchronous>, transform_indices = @transform_2, window_bounds = array<i64: 4, 16>}, {transform_indices = @transform_3, window_bounds = array<i64: 256, 16>}, {transform_indices = @transform_4, window_bounds = array<i64: 256, 16>}]} {
    %c0 = arith.constant 0 : index
    %c0_0 = arith.constant 0 : index
    %0 = vector.load %arg1[%c0, %c0_0] : memref<256x4xbf16, #tpu.memory_space<vmem>>, vector<256x4xbf16>
    %1 = arith.extf %0 : vector<256x4xbf16> to vector<256x4xf32>
    %c0_1 = arith.constant 0 : index
    %c0_2 = arith.constant 0 : index
    %2 = vector.load %arg2[%c0_1, %c0_2] : memref<1x4xf32, #tpu.memory_space<vmem>>, vector<1x4xf32>
    %3 = vector.broadcast %2 : vector<1x4xf32> to vector<256x4xf32>
    %4 = arith.addf %1, %3 : vector<256x4xf32>
    %cst = arith.constant 0.000000e+00 : f32
    %5 = vector.broadcast %cst : f32 to vector<256x4xf32>
    %6 = arith.maximumf %4, %5 : vector<256x4xf32>
    %7 = arith.truncf %6 : vector<256x4xf32> to vector<256x4xbf16>
    %c0_3 = arith.constant 0 : index
    %c0_4 = arith.constant 0 : index
    %8 = vector.load %arg3[%c0_3, %c0_4] : memref<4x16xbf16, #tpu.memory_space<vmem>>, vector<4x16xbf16>
    %cst_5 = arith.constant dense<0.000000e+00> : vector<256x16xf32>
    %9 = tpu.matmul %7, %8, %cst_5 {dimension_numbers = #tpu.dot_dimension_numbers<[1], [0], [0], [1], [0, 0, 1, 1], [], []>} : vector<256x4xbf16>, vector<4x16xbf16>, vector<256x16xf32> -> vector<256x16xf32>
    %c0_6 = arith.constant 0 : index
    %c0_7 = arith.constant 0 : index
    %10 = vector.load %arg4[%c0_6, %c0_7] : memref<256x16xf32, #tpu.memory_space<vmem>>, vector<256x16xf32>
    %11 = arith.addf %9, %10 : vector<256x16xf32>
    %c0_8 = arith.constant 0 : index
    %c0_9 = arith.constant 0 : index
    %12 = vector.load %arg5[%c0_8, %c0_9] : memref<256x16xf32, #tpu.memory_space<vmem>>, vector<256x16xf32>
    tpu.vector_store %arg5[%c0_8, %c0_9], %11 {strides = array<i32>} : memref<256x16xf32, #tpu.memory_space<vmem>>, vector<256x16xf32>,
    return
  }
  func.func @transform_0(%arg0: i32) -> (i32, i32) {
    %c0_i32 = arith.constant 0 : i32
    %c0_i32_0 = arith.constant 0 : i32
    return %arg0, %c0_i32 : i32, i32
  }
  func.func @transform_1(%arg0: i32) -> (i32, i32) {
    %c0_i32 = arith.constant 0 : i32
    %c0_i32_0 = arith.constant 0 : i32
    %c0_i32_1 = arith.constant 0 : i32
    return %c0_i32, %c0_i32_0 : i32, i32
  }
  func.func @transform_2(%arg0: i32) -> (i32, i32) {
    %c0_i32 = arith.constant 0 : i32
    %c0_i32_0 = arith.constant 0 : i32
    %c0_i32_1 = arith.constant 0 : i32
    return %c0_i32, %c0_i32_0 : i32, i32
  }
  func.func @transform_3(%arg0: i32) -> (i32, i32) {
    %c0_i32 = arith.constant 0 : i32
    %c0_i32_0 = arith.constant 0 : i32
    return %arg0, %c0_i32 : i32, i32
  }
  func.func @transform_4(%arg0: i32) -> (i32, i32) {
    %c0_i32 = arith.constant 0 : i32
    %c0_i32_0 = arith.constant 0 : i32
    return %arg0, %c0_i32 : i32, i32
  }
}

</mosaic_0001>

<llo_original>
// kernel: tile.6
$region0: #{tile.6}
  #allocation0 [shape = 's32[1]{0}', space=sflag, size = 0x4, scoped, tag = 'scoped memory for tile.6']
  %s0 = inlined_call_operand.vmem [shape: f32[4], index: 0, kind: input, shape index: {}]
  %s1 = inlined_call_operand.vmem [shape: f32[9,4], index: 1, kind: output, shape index: {}]
  // Predicated region
  $region2: #{tile.6} parent=0 // pred_check
    _
  $region3: #{tile.6} parent=0 // pred_check_branch
    %3 = sbr.rel (0) target = $region5
  $region4: #{tile.6} parent=0 // pred_region
    _
  $region5: #{tile.6} parent=0 // pred_fallthru
    _
  %v4 = vld [vmem:[%s0] ss:$0 sm:$0xff]
  %5 = vst [vmem:[%s1] sm:$0xff] %v4
  %s6 = scalar_lea.vmem %s1, 8
  %7 = vst [vmem:[%s6] sm:$0xff] %v4

// kernel: mul.22
$region0: #{mul.22}
  %s0 = inlined_call_operand.vmem [shape: f32[9,4], index: 0, kind: input, shape index: {}]
  %s1 = inlined_call_operand.vmem [shape: f32[36], index: 1, kind: output, shape index: {}]
  $region1: #{mul.22} parent=0
    #allocation0 [shape = 'u8[4096]{0}', space=vmem, size = 0x1000, scoped, tag = 'scoped mem for output reshape']
    %v2 = vld [vmem:[%s0] sm:$0x1]
    %vm3 = vcmask 31744
    %4 = vst.msk [vmem:[#allocation0] sm:$0x1] %vm3, %v2
    %s5 = scalar_lea.vmem %s0, 8
    %v6 = vld [vmem:[%s5] sm:$0x1]
    %7 = vrot.lane.b32.xlu0 %v6, 32
    %v8 = vpop.permute.xlu0 %7
    %vm9 = vcmask 294144
    %10 = vst.msk [vmem:[#allocation0] sm:$0x1] %vm9, %v8
    %s11 = scalar_lea.vmem %s0, 7
    %v12 = vld [vmem:[%s11] sm:$0x1]
    %13 = vrot.lane.b32.xlu0 %v12, 28
    %v14 = vpop.permute.xlu0 %13
    %vm15 = vcmask 261344
    %16 = vst.msk [vmem:[#allocation0] sm:$0x1] %vm15, %v14
    %s17 = scalar_lea.vmem %s0, 6
    %v18 = vld [vmem:[%s17] sm:$0x1]
    %19 = vrot.lane.b32.xlu0 %v18, 24
    %v20 = vpop.permute.xlu0 %19
    %vm21 = vcmask 228544
    %22 = vst.msk [vmem:[#allocation0] sm:$0x1] %vm21, %v20
    %s23 = scalar_lea.vmem %s0, 5
    %v24 = vld [vmem:[%s23] sm:$0x1]
    %25 = vrot.lane.b32.xlu0 %v24, 20
    %v26 = vpop.permute.xlu0 %25
    %vm27 = vcmask 195744
    %28 = vst.msk [vmem:[#allocation0] sm:$0x1] %vm27, %v26
    %s29 = scalar_lea.vmem %s0, 4
    %v30 = vld [vmem:[%s29] sm:$0x1]
    %31 = vrot.lane.b32.xlu0 %v30, 16
    %v32 = vpop.permute.xlu0 %31
    %vm33 = vcmask 162944
    %34 = vst.msk [vmem:[#allocation0] sm:$0x1] %vm33, %v32
    %s35 = scalar_lea.vmem %s0, 3
    %v36 = vld [vmem:[%s35] sm:$0x1]
    %37 = vrot.lane.b32.xlu0 %v36, 12
    %v38 = vpop.permute.xlu0 %37
    %vm39 = vcmask 130144
    %40 = vst.msk [vmem:[#allocation0] sm:$0x1] %vm39, %v38
    %s41 = scalar_lea.vmem %s0, 2
    %v42 = vld [vmem:[%s41] sm:$0x1]
    %43 = vrot.lane.b32.xlu0 %v42, 8
    %v44 = vpop.permute.xlu0 %43
    %vm45 = vcmask 97344
    %46 = vst.msk [vmem:[#allocation0] sm:$0x1] %vm45, %v44
    %s47 = scalar_lea.vmem %s0, 1
    %v48 = vld [vmem:[%s47] sm:$0x1]
    %49 = vrot.lane.b32.xlu0 %v48, 4
    %v50 = vpop.permute.xlu0 %49
    %vm51 = vcmask 64544
    %52 = vst.msk [vmem:[#allocation0] sm:$0x1] %vm51, %v50
    %s54 = sshllo.u32 0, 1
    %v56 = vld [vmem:[#allocation0] sm:%s54]
    %s57 = sshllo.u32 0, 1
    %58 = vst [vmem:[%s1] sm:%s57] %v56

// kernel: bottleneck_forward.4
$region0: #{bottleneck_forward.4}
  #allocation0 [shape = 'u32[]', space=smem, size = 0x4, offset = 0x4, fixed_abs, tag = 'smem constant byte address 0x4 - core index']
  #allocation1 [shape = 'u32[144,128]{1,0:T(1,128)}', space=vmem, size = 0x12000, scoped, tag = 'internal scratch']
  %s0 = inlined_call_operand.vmem [shape: bf16[512,16], index: 0, kind: input, shape index: {}]
  %s1 = inlined_call_operand.vmem [shape: f32[1,16], index: 1, kind: output, shape index: {0}]
  %s2 = inlined_call_operand.vmem [shape: f32[1,16], index: 2, kind: output, shape index: {1}]
  %3 = xla_tuple %s1, %s2
  %s4 = sld [smem:[#allocation0]]
  $region26: #{bottleneck_forward.4} parent=0
    _
  %s6 = ssub.s32 1, %s4
  %s7 = scalar_select 0, %s6, %s4
  // Predicated region
  $region2: #{bottleneck_forward.4} parent=0 // pred_check
    _
  $region3: #{bottleneck_forward.4} parent=0 // pred_check_branch
    %9 = sbr.rel (0) target = $region5
  $region4: #{bottleneck_forward.4} parent=0 // pred_region
    _
  $region5: #{bottleneck_forward.4} parent=0 // pred_fallthru
    _
  %p10 = scmp.eq.s32.totalorder 0, 0
  // Predicated region
  $region6: #{bottleneck_forward.4} parent=0 // pred_check
    %p11 = pneg %p10
  $region7: #{bottleneck_forward.4} parent=0 // pred_check_branch
    %13 = sbr.rel (%p11) target = $region9
  $region8: #{bottleneck_forward.4} parent=0 // pred_region
    %vm14 = vcmask 122880
    %15 = vst.msk [vmem:[%s1] sm:$0x1] %vm14, 0.0
    %16 = vst.msk [vmem:[%s2] sm:$0x1] %vm14, 0.0
  $region9: #{bottleneck_forward.4} parent=0 // pred_fallthru
    _
  %s17 = smul.u32 0, 512
  %v18 = vlaneseq
  %v19 = vshrl.u32 %v18, 7
  %v20 = vadd.s32 %v19, 8
  %v21 = vadd.s32 %v19, 16
  %v22 = vadd.s32 %v19, 24
  %v23 = vadd.s32 %v19, 32
  %v24 = vadd.s32 %v19, 40
  %v25 = vadd.s32 %v19, 48
  %v26 = vadd.s32 %v19, 56
  %v27 = vadd.s32 %v19, 64
  %v28 = vadd.s32 %v19, 72
  %v29 = vadd.s32 %v19, 80
  %v30 = vadd.s32 %v19, 88
  %v31 = vadd.s32 %v19, 96
  %v32 = vadd.s32 %v19, 104
  %v33 = vadd.s32 %v19, 112
  %v34 = vadd.s32 %v19, 120
  %v35 = vadd.s32 %v19, 128
  %v36 = vadd.s32 %v19, 136
  %v37 = vadd.s32 %v19, 144
  %v38 = vadd.s32 %v19, 152
  %v39 = vadd.s32 %v19, 160
  %v40 = vadd.s32 %v19, 168
  %v41 = vadd.s32 %v19, 176
  %v42 = vadd.s32 %v19, 184
  %v43 = vadd.s32 %v19, 192
  %v44 = vadd.s32 %v19, 200
  %v45 = vadd.s32 %v19, 208
  %v46 = vadd.s32 %v19, 216
  %v47 = vadd.s32 %v19, 224
  %v48 = vadd.s32 %v19, 232
  %v49 = vadd.s32 %v19, 240
  %v50 = vadd.s32 %v19, 248
  %v51 = vadd.s32 %v19, 256
  %v52 = vadd.s32 %v19, 264
  %v53 = vadd.s32 %v19, 272
  %v54 = vadd.s32 %v19, 280
  %v55 = vadd.s32 %v19, 288
  %v56 = vadd.s32 %v19, 296
  %v57 = vadd.s32 %v19, 304
  %v58 = vadd.s32 %v19, 312
  %v59 = vadd.s32 %v19, 320
  %v60 = vadd.s32 %v19, 328
  %v61 = vadd.s32 %v19, 336
  %v62 = vadd.s32 %v19, 344
  %v63 = vadd.s32 %v19, 352
  %v64 = vadd.s32 %v19, 360
  %v65 = vadd.s32 %v19, 368
  %v66 = vadd.s32 %v19, 376
  %v67 = vadd.s32 %v19, 384
  %v68 = vadd.s32 %v19, 392
  %v69 = vadd.s32 %v19, 400
  %v70 = vadd.s32 %v19, 408
  %v71 = vadd.s32 %v19, 416
  %v72 = vadd.s32 %v19, 424
  %v73 = vadd.s32 %v19, 432
  %v74 = vadd.s32 %v19, 440
  %v75 = vadd.s32 %v19, 448
  %v76 = vadd.s32 %v19, 456
  %v77 = vadd.s32 %v19, 464
  %v78 = vadd.s32 %v19, 472
  %v79 = vadd.s32 %v19, 480
  %v80 = vadd.s32 %v19, 488
  %v81 = vadd.s32 %v19, 496
  %v82 = vadd.s32 %v19, 504
  %v83 = vstv %s17
  %v84 = vadd.s32 %v83, %v19
  %v85 = vadd.s32 %v83, %v20
  %v86 = vadd.s32 %v83, %v21
  %v87 = vadd.s32 %v83, %v22
  %v88 = vadd.s32 %v83, %v23
  %v89 = vadd.s32 %v83, %v24
  %v90 = vadd.s32 %v83, %v25
  %v91 = vadd.s32 %v83, %v26
  %v92 = vadd.s32 %v83, %v27
  %v93 = vadd.s32 %v83, %v28
  %v94 = vadd.s32 %v83, %v29
  %v95 = vadd.s32 %v83, %v30
  %v96 = vadd.s32 %v83, %v31
  %v97 = vadd.s32 %v83, %v32
  %v98 = vadd.s32 %v83, %v33
  %v99 = vadd.s32 %v83, %v34
  %v100 = vadd.s32 %v83, %v35
  %v101 = vadd.s32 %v83, %v36
  %v102 = vadd.s32 %v83, %v37
  %v103 = vadd.s32 %v83, %v38
  %v104 = vadd.s32 %v83, %v39
  %v105 = vadd.s32 %v83, %v40
  %v106 = vadd.s32 %v83, %v41
  %v107 = vadd.s32 %v83, %v42
  %v108 = vadd.s32 %v83, %v43
  %v109 = vadd.s32 %v83, %v44
  %v110 = vadd.s32 %v83, %v45
  %v111 = vadd.s32 %v83, %v46
  %v112 = vadd.s32 %v83, %v47
  %v113 = vadd.s32 %v83, %v48
  %v114 = vadd.s32 %v83, %v49
  %v115 = vadd.s32 %v83, %v50
  %v116 = vadd.s32 %v83, %v51
  %v117 = vadd.s32 %v83, %v52
  %v118 = vadd.s32 %v83, %v53
  %v119 = vadd.s32 %v83, %v54
  %v120 = vadd.s32 %v83, %v55
  %v121 = vadd.s32 %v83, %v56
  %v122 = vadd.s32 %v83, %v57
  %v123 = vadd.s32 %v83, %v58
  %v124 = vadd.s32 %v83, %v59
  %v125 = vadd.s32 %v83, %v60
  %v126 = vadd.s32 %v83, %v61
  %v127 = vadd.s32 %v83, %v62
  %v128 = vadd.s32 %v83, %v63
  %v129 = vadd.s32 %v83, %v64
  %v130 = vadd.s32 %v83, %v65
  %v131 = vadd.s32 %v83, %v66
  %v132 = vadd.s32 %v83, %v67
  %v133 = vadd.s32 %v83, %v68
  %v134 = vadd.s32 %v83, %v69
  %v135 = vadd.s32 %v83, %v70
  %v136 = vadd.s32 %v83, %v71
  %v137 = vadd.s32 %v83, %v72
  %v138 = vadd.s32 %v83, %v73
  %v139 = vadd.s32 %v83, %v74
  %v140 = vadd.s32 %v83, %v75
  %v141 = vadd.s32 %v83, %v76
  %v142 = vadd.s32 %v83, %v77
  %v143 = vadd.s32 %v83, %v78
  %v144 = vadd.s32 %v83, %v79
  %v145 = vadd.s32 %v83, %v80
  %v146 = vadd.s32 %v83, %v81
  %v147 = vadd.s32 %v83, %v82
  %vm148 = vcmp.lt.s32.totalorder %v84, 512
  %vm149 = vcmp.lt.s32.totalorder %v85, 512
  %vm150 = vcmp.lt.s32.totalorder %v86, 512
  %vm151 = vcmp.lt.s32.totalorder %v87, 512
  %vm152 = vcmp.lt.s32.totalorder %v88, 512
  %vm153 = vcmp.lt.s32.totalorder %v89, 512
  %vm154 = vcmp.lt.s32.totalorder %v90, 512
  %vm155 = vcmp.lt.s32.totalorder %v91, 512
  %vm156 = vcmp.lt.s32.totalorder %v92, 512
  %vm157 = vcmp.lt.s32.totalorder %v93, 512
  %vm158 = vcmp.lt.s32.totalorder %v94, 512
  %vm159 = vcmp.lt.s32.totalorder %v95, 512
  %vm160 = vcmp.lt.s32.totalorder %v96, 512
  %vm161 = vcmp.lt.s32.totalorder %v97, 512
  %vm162 = vcmp.lt.s32.totalorder %v98, 512
  %vm163 = vcmp.lt.s32.totalorder %v99, 512
  %vm164 = vcmp.lt.s32.totalorder %v100, 512
  %vm165 = vcmp.lt.s32.totalorder %v101, 512
  %vm166 = vcmp.lt.s32.totalorder %v102, 512
  %vm167 = vcmp.lt.s32.totalorder %v103, 512
  %vm168 = vcmp.lt.s32.totalorder %v104, 512
  %vm169 = vcmp.lt.s32.totalorder %v105, 512
  %vm170 = vcmp.lt.s32.totalorder %v106, 512
  %vm171 = vcmp.lt.s32.totalorder %v107, 512
  %vm172 = vcmp.lt.s32.totalorder %v108, 512
  %vm173 = vcmp.lt.s32.totalorder %v109, 512
  %vm174 = vcmp.lt.s32.totalorder %v110, 512
  %vm175 = vcmp.lt.s32.totalorder %v111, 512
  %vm176 = vcmp.lt.s32.totalorder %v112, 512
  %vm177 = vcmp.lt.s32.totalorder %v113, 512
  %vm178 = vcmp.lt.s32.totalorder %v114, 512
  %vm179 = vcmp.lt.s32.totalorder %v115, 512
  %vm180 = vcmp.lt.s32.totalorder %v116, 512
  %vm181 = vcmp.lt.s32.totalorder %v117, 512
  %vm182 = vcmp.lt.s32.totalorder %v118, 512
  %vm183 = vcmp.lt.s32.totalorder %v119, 512
  %vm184 = vcmp.lt.s32.totalorder %v120, 512
  %vm185 = vcmp.lt.s32.totalorder %v121, 512
  %vm186 = vcmp.lt.s32.totalorder %v122, 512
  %vm187 = vcmp.lt.s32.totalorder %v123, 512
  %vm188 = vcmp.lt.s32.totalorder %v124, 512
  %vm189 = vcmp.lt.s32.totalorder %v125, 512
  %vm190 = vcmp.lt.s32.totalorder %v126, 512
  %vm191 = vcmp.lt.s32.totalorder %v127, 512
  %vm192 = vcmp.lt.s32.totalorder %v128, 512
  %vm193 = vcmp.lt.s32.totalorder %v129, 512
  %vm194 = vcmp.lt.s32.totalorder %v130, 512
  %vm195 = vcmp.lt.s32.totalorder %v131, 512
  %vm196 = vcmp.lt.s32.totalorder %v132, 512
  %vm197 = vcmp.lt.s32.totalorder %v133, 512
  %vm198 = vcmp.lt.s32.totalorder %v134, 512
  %vm199 = vcmp.lt.s32.totalorder %v135, 512
  %vm200 = vcmp.lt.s32.totalorder %v136, 512
  %vm201 = vcmp.lt.s32.totalorder %v137, 512
  %vm202 = vcmp.lt.s32.totalorder %v138, 512
  %vm203 = vcmp.lt.s32.totalorder %v139, 512
  %vm204 = vcmp.lt.s32.totalorder %v140, 512
  %vm205 = vcmp.lt.s32.totalorder %v141, 512
  %vm206 = vcmp.lt.s32.totalorder %v142, 512
  %vm207 = vcmp.lt.s32.totalorder %v143, 512
  %vm208 = vcmp.lt.s32.totalorder %v144, 512
  %vm209 = vcmp.lt.s32.totalorder %v145, 512
  %vm210 = vcmp.lt.s32.totalorder %v146, 512
  %vm211 = vcmp.lt.s32.totalorder %v147, 512
  %v212 = vld [vmem:[%s0] sm:$0xf]
  %v213 = vld [vmem:[%s0 + $0x4] sm:$0xf]
  %v214 = vld [vmem:[%s0 + $0x8] sm:$0xf]
  %v215 = vld [vmem:[%s0 + $0xc] sm:$0xf]
  %v216 = vld [vmem:[%s0 + $0x10] sm:$0xf]
  %v217 = vld [vmem:[%s0 + $0x14] sm:$0xf]
  %v218 = vld [vmem:[%s0 + $0x18] sm:$0xf]
  %v219 = vld [vmem:[%s0 + $0x1c] sm:$0xf]
  %v220 = vld [vmem:[%s0 + $0x20] sm:$0xf]
  %v221 = vld [vmem:[%s0 + $0x24] sm:$0xf]
  %v222 = vld [vmem:[%s0 + $0x28] sm:$0xf]
  %v223 = vld [vmem:[%s0 + $0x2c] sm:$0xf]
  %v224 = vld [vmem:[%s0 + $0x30] sm:$0xf]
  %v225 = vld [vmem:[%s0 + $0x34] sm:$0xf]
  %v226 = vld [vmem:[%s0 + $0x38] sm:$0xf]
  %v227 = vld [vmem:[%s0 + $0x3c] sm:$0xf]
  %v228 = vld [vmem:[%s0 + $0x40] sm:$0xf]
  %v229 = vld [vmem:[%s0 + $0x44] sm:$0xf]
  %v230 = vld [vmem:[%s0 + $0x48] sm:$0xf]
  %v231 = vld [vmem:[%s0 + $0x4c] sm:$0xf]
  %v232 = vld [vmem:[%s0 + $0x50] sm:$0xf]
  %v233 = vld [vmem:[%s0 + $0x54] sm:$0xf]
  %v234 = vld [vmem:[%s0 + $0x58] sm:$0xf]
  %v235 = vld [vmem:[%s0 + $0x5c] sm:$0xf]
  %v236 = vld [vmem:[%s0 + $0x60] sm:$0xf]
  %v237 = vld [vmem:[%s0 + $0x64] sm:$0xf]
  %v238 = vld [vmem:[%s0 + $0x68] sm:$0xf]
  %v239 = vld [vmem:[%s0 + $0x6c] sm:$0xf]
  %v240 = vld [vmem:[%s0 + $0x70] sm:$0xf]
  %v241 = vld [vmem:[%s0 + $0x74] sm:$0xf]
  %v242 = vld [vmem:[%s0 + $0x78] sm:$0xf]
  %v243 = vld [vmem:[%s0 + $0x7c] sm:$0xf]
  %v244 = vld [vmem:[%s0 + $0x80] sm:$0xf]
  %v245 = vld [vmem:[%s0 + $0x84] sm:$0xf]
  %v246 = vld [vmem:[%s0 + $0x88] sm:$0xf]
  %v247 = vld [vmem:[%s0 + $0x8c] sm:$0xf]
  %v248 = vld [vmem:[%s0 + $0x90] sm:$0xf]
  %v249 = vld [vmem:[%s0 + $0x94] sm:$0xf]
  %v250 = vld [vmem:[%s0 + $0x98] sm:$0xf]
  %v251 = vld [vmem:[%s0 + $0x9c] sm:$0xf]
  %v252 = vld [vmem:[%s0 + $0xa0] sm:$0xf]
  %v253 = vld [vmem:[%s0 + $0xa4] sm:$0xf]
  %v254 = vld [vmem:[%s0 + $0xa8] sm:$0xf]
  %v255 = vld [vmem:[%s0 + $0xac] sm:$0xf]
  %v256 = vld [vmem:[%s0 + $0xb0] sm:$0xf]
  %v257 = vld [vmem:[%s0 + $0xb4] sm:$0xf]
  %v258 = vld [vmem:[%s0 + $0xb8] sm:$0xf]
  %v259 = vld [vmem:[%s0 + $0xbc] sm:$0xf]
  %v260 = vld [vmem:[%s0 + $0xc0] sm:$0xf]
  %v261 = vld [vmem:[%s0 + $0xc4] sm:$0xf]
  %v262 = vld [vmem:[%s0 + $0xc8] sm:$0xf]
  %v263 = vld [vmem:[%s0 + $0xcc] sm:$0xf]
  %v264 = vld [vmem:[%s0 + $0xd0] sm:$0xf]
  %v265 = vld [vmem:[%s0 + $0xd4] sm:$0xf]
  %v266 = vld [vmem:[%s0 + $0xd8] sm:$0xf]
  %v267 = vld [vmem:[%s0 + $0xdc] sm:$0xf]
  %v268 = vld [vmem:[%s0 + $0xe0] sm:$0xf]
  %v269 = vld [vmem:[%s0 + $0xe4] sm:$0xf]
  %v270 = vld [vmem:[%s0 + $0xe8] sm:$0xf]
  %v271 = vld [vmem:[%s0 + $0xec] sm:$0xf]
  %v272 = vld [vmem:[%s0 + $0xf0] sm:$0xf]
  %v273 = vld [vmem:[%s0 + $0xf4] sm:$0xf]
  %v274 = vld [vmem:[%s0 + $0xf8] sm:$0xf]
  %v275 = vld [vmem:[%s0 + $0xfc] sm:$0xf]
  %v276 = vunpack.c.l.bf16 %v212
  %v277 = vunpack.c.l.bf16 %v213
  %v278 = vunpack.c.l.bf16 %v214
  %v279 = vunpack.c.l.bf16 %v215
  %v280 = vunpack.c.l.bf16 %v216
  %v281 = vunpack.c.l.bf16 %v217
  %v282 = vunpack.c.l.bf16 %v218
  %v283 = vunpack.c.l.bf16 %v219
  %v284 = vunpack.c.l.bf16 %v220
  %v285 = vunpack.c.l.bf16 %v221
  %v286 = vunpack.c.l.bf16 %v222
  %v287 = vunpack.c.l.bf16 %v223
  %v288 = vunpack.c.l.bf16 %v224
  %v289 = vunpack.c.l.bf16 %v225
  %v290 = vunpack.c.l.bf16 %v226
  %v291 = vunpack.c.l.bf16 %v227
  %v292 = vunpack.c.l.bf16 %v228
  %v293 = vunpack.c.l.bf16 %v229
  %v294 = vunpack.c.l.bf16 %v230
  %v295 = vunpack.c.l.bf16 %v231
  %v296 = vunpack.c.l.bf16 %v232
  %v297 = vunpack.c.l.bf16 %v233
  %v298 = vunpack.c.l.bf16 %v234
  %v299 = vunpack.c.l.bf16 %v235
  %v300 = vunpack.c.l.bf16 %v236
  %v301 = vunpack.c.l.bf16 %v237
  %v302 = vunpack.c.l.bf16 %v238
  %v303 = vunpack.c.l.bf16 %v239
  %v304 = vunpack.c.l.bf16 %v240
  %v305 = vunpack.c.l.bf16 %v241
  %v306 = vunpack.c.l.bf16 %v242
  %v307 = vunpack.c.l.bf16 %v243
  %v308 = vunpack.c.l.bf16 %v244
  %v309 = vunpack.c.l.bf16 %v245
  %v310 = vunpack.c.l.bf16 %v246
  %v311 = vunpack.c.l.bf16 %v247
  %v312 = vunpack.c.l.bf16 %v248
  %v313 = vunpack.c.l.bf16 %v249
  %v314 = vunpack.c.l.bf16 %v250
  %v315 = vunpack.c.l.bf16 %v251
  %v316 = vunpack.c.l.bf16 %v252
  %v317 = vunpack.c.l.bf16 %v253
  %v318 = vunpack.c.l.bf16 %v254
  %v319 = vunpack.c.l.bf16 %v255
  %v320 = vunpack.c.l.bf16 %v256
  %v321 = vunpack.c.l.bf16 %v257
  %v322 = vunpack.c.l.bf16 %v258
  %v323 = vunpack.c.l.bf16 %v259
  %v324 = vunpack.c.l.bf16 %v260
  %v325 = vunpack.c.l.bf16 %v261
  %v326 = vunpack.c.l.bf16 %v262
  %v327 = vunpack.c.l.bf16 %v263
  %v328 = vunpack.c.l.bf16 %v264
  %v329 = vunpack.c.l.bf16 %v265
  %v330 = vunpack.c.l.bf16 %v266
  %v331 = vunpack.c.l.bf16 %v267
  %v332 = vunpack.c.l.bf16 %v268
  %v333 = vunpack.c.l.bf16 %v269
  %v334 = vunpack.c.l.bf16 %v270
  %v335 = vunpack.c.l.bf16 %v271
  %v336 = vunpack.c.l.bf16 %v272
  %v337 = vunpack.c.l.bf16 %v273
  %v338 = vunpack.c.l.bf16 %v274
  %v339 = vunpack.c.l.bf16 %v275
  %v340 = vsel %vm148, 1, 0
  %v341 = vsel %vm149, 1, 0
  %v342 = vsel %vm150, 1, 0
  %v343 = vsel %vm151, 1, 0
  %v344 = vsel %vm152, 1, 0
  %v345 = vsel %vm153, 1, 0
  %v346 = vsel %vm154, 1, 0
  %v347 = vsel %vm155, 1, 0
  %v348 = vsel %vm156, 1, 0
  %v349 = vsel %vm157, 1, 0
  %v350 = vsel %vm158, 1, 0
  %v351 = vsel %vm159, 1, 0
  %v352 = vsel %vm160, 1, 0
  %v353 = vsel %vm161, 1, 0
  %v354 = vsel %vm162, 1, 0
  %v355 = vsel %vm163, 1, 0
  %v356 = vsel %vm164, 1, 0
  %v357 = vsel %vm165, 1, 0
  %v358 = vsel %vm166, 1, 0
  %v359 = vsel %vm167, 1, 0
  %v360 = vsel %vm168, 1, 0
  %v361 = vsel %vm169, 1, 0
  %v362 = vsel %vm170, 1, 0
  %v363 = vsel %vm171, 1, 0
  %v364 = vsel %vm172, 1, 0
  %v365 = vsel %vm173, 1, 0
  %v366 = vsel %vm174, 1, 0
  %v367 = vsel %vm175, 1, 0
  %v368 = vsel %vm176, 1, 0
  %v369 = vsel %vm177, 1, 0
  %v370 = vsel %vm178, 1, 0
  %v371 = vsel %vm179, 1, 0
  %v372 = vsel %vm180, 1, 0
  %v373 = vsel %vm181, 1, 0
  %v374 = vsel %vm182, 1, 0
  %v375 = vsel %vm183, 1, 0
  %v376 = vsel %vm184, 1, 0
  %v377 = vsel %vm185, 1, 0
  %v378 = vsel %vm186, 1, 0
  %v379 = vsel %vm187, 1, 0
  %v380 = vsel %vm188, 1, 0
  %v381 = vsel %vm189, 1, 0
  %v382 = vsel %vm190, 1, 0
  %v383 = vsel %vm191, 1, 0
  %v384 = vsel %vm192, 1, 0
  %v385 = vsel %vm193, 1, 0
  %v386 = vsel %vm194, 1, 0
  %v387 = vsel %vm195, 1, 0
  %v388 = vsel %vm196, 1, 0
  %v389 = vsel %vm197, 1, 0
  %v390 = vsel %vm198, 1, 0
  %v391 = vsel %vm199, 1, 0
  %v392 = vsel %vm200, 1, 0
  %v393 = vsel %vm201, 1, 0
  %v394 = vsel %vm202, 1, 0
  %v395 = vsel %vm203, 1, 0
  %v396 = vsel %vm204, 1, 0
  %v397 = vsel %vm205, 1, 0
  %v398 = vsel %vm206, 1, 0
  %v399 = vsel %vm207, 1, 0
  %v400 = vsel %vm208, 1, 0
  %v401 = vsel %vm209, 1, 0
  %v402 = vsel %vm210, 1, 0
  %v403 = vsel %vm211, 1, 0
  %vm404 = vcmp.eq.s32.totalorder %v340, 1
  %vm405 = vcmp.eq.s32.totalorder %v341, 1
  %vm406 = vcmp.eq.s32.totalorder %v342, 1
  %vm407 = vcmp.eq.s32.totalorder %v343, 1
  %vm408 = vcmp.eq.s32.totalorder %v344, 1
  %vm409 = vcmp.eq.s32.totalorder %v345, 1
  %vm410 = vcmp.eq.s32.totalorder %v346, 1
  %vm411 = vcmp.eq.s32.totalorder %v347, 1
  %vm412 = vcmp.eq.s32.totalorder %v348, 1
  %vm413 = vcmp.eq.s32.totalorder %v349, 1
  %vm414 = vcmp.eq.s32.totalorder %v350, 1
  %vm415 = vcmp.eq.s32.totalorder %v351, 1
  %vm416 = vcmp.eq.s32.totalorder %v352, 1
  %vm417 = vcmp.eq.s32.totalorder %v353, 1
  %vm418 = vcmp.eq.s32.totalorder %v354, 1
  %vm419 = vcmp.eq.s32.totalorder %v355, 1
  %vm420 = vcmp.eq.s32.totalorder %v356, 1
  %vm421 = vcmp.eq.s32.totalorder %v357, 1
  %vm422 = vcmp.eq.s32.totalorder %v358, 1
  %vm423 = vcmp.eq.s32.totalorder %v359, 1
  %vm424 = vcmp.eq.s32.totalorder %v360, 1
  %vm425 = vcmp.eq.s32.totalorder %v361, 1
  %vm426 = vcmp.eq.s32.totalorder %v362, 1
  %vm427 = vcmp.eq.s32.totalorder %v363, 1
  %vm428 = vcmp.eq.s32.totalorder %v364, 1
  %vm429 = vcmp.eq.s32.totalorder %v365, 1
  %vm430 = vcmp.eq.s32.totalorder %v366, 1
  %vm431 = vcmp.eq.s32.totalorder %v367, 1
  %vm432 = vcmp.eq.s32.totalorder %v368, 1
  %vm433 = vcmp.eq.s32.totalorder %v369, 1
  %vm434 = vcmp.eq.s32.totalorder %v370, 1
  %vm435 = vcmp.eq.s32.totalorder %v371, 1
  %vm436 = vcmp.eq.s32.totalorder %v372, 1
  %vm437 = vcmp.eq.s32.totalorder %v373, 1
  %vm438 = vcmp.eq.s32.totalorder %v374, 1
  %vm439 = vcmp.eq.s32.totalorder %v375, 1
  %vm440 = vcmp.eq.s32.totalorder %v376, 1
  %vm441 = vcmp.eq.s32.totalorder %v377, 1
  %vm442 = vcmp.eq.s32.totalorder %v378, 1
  %vm443 = vcmp.eq.s32.totalorder %v379, 1
  %vm444 = vcmp.eq.s32.totalorder %v380, 1
  %vm445 = vcmp.eq.s32.totalorder %v381, 1
  %vm446 = vcmp.eq.s32.totalorder %v382, 1
  %vm447 = vcmp.eq.s32.totalorder %v383, 1
  %vm448 = vcmp.eq.s32.totalorder %v384, 1
  %vm449 = vcmp.eq.s32.totalorder %v385, 1
  %vm450 = vcmp.eq.s32.totalorder %v386, 1
  %vm451 = vcmp.eq.s32.totalorder %v387, 1
  %vm452 = vcmp.eq.s32.totalorder %v388, 1
  %vm453 = vcmp.eq.s32.totalorder %v389, 1
  %vm454 = vcmp.eq.s32.totalorder %v390, 1
  %vm455 = vcmp.eq.s32.totalorder %v391, 1
  %vm456 = vcmp.eq.s32.totalorder %v392, 1
  %vm457 = vcmp.eq.s32.totalorder %v393, 1
  %vm458 = vcmp.eq.s32.totalorder %v394, 1
  %vm459 = vcmp.eq.s32.totalorder %v395, 1
  %vm460 = vcmp.eq.s32.totalorder %v396, 1
  %vm461 = vcmp.eq.s32.totalorder %v397, 1
  %vm462 = vcmp.eq.s32.totalorder %v398, 1
  %vm463 = vcmp.eq.s32.totalorder %v399, 1
  %vm464 = vcmp.eq.s32.totalorder %v400, 1
  %vm465 = vcmp.eq.s32.totalorder %v401, 1
  %vm466 = vcmp.eq.s32.totalorder %v402, 1
  %vm467 = vcmp.eq.s32.totalorder %v403, 1
  %v468 = vsel %vm404, %v276, 0.0
  %v469 = vsel %vm405, %v277, 0.0
  %v470 = vsel %vm406, %v278, 0.0
  %v471 = vsel %vm407, %v279, 0.0
  %v472 = vsel %vm408, %v280, 0.0
  %v473 = vsel %vm409, %v281, 0.0
  %v474 = vsel %vm410, %v282, 0.0
  %v475 = vsel %vm411, %v283, 0.0
  %v476 = vsel %vm412, %v284, 0.0
  %v477 = vsel %vm413, %v285, 0.0
  %v478 = vsel %vm414, %v286, 0.0
  %v479 = vsel %vm415, %v287, 0.0
  %v480 = vsel %vm416, %v288, 0.0
  %v481 = vsel %vm417, %v289, 0.0
  %v482 = vsel %vm418, %v290, 0.0
  %v483 = vsel %vm419, %v291, 0.0
  %v484 = vsel %vm420, %v292, 0.0
  %v485 = vsel %vm421, %v293, 0.0
  %v486 = vsel %vm422, %v294, 0.0
  %v487 = vsel %vm423, %v295, 0.0
  %v488 = vsel %vm424, %v296, 0.0
  %v489 = vsel %vm425, %v297, 0.0
  %v490 = vsel %vm426, %v298, 0.0
  %v491 = vsel %vm427, %v299, 0.0
  %v492 = vsel %vm428, %v300, 0.0
  %v493 = vsel %vm429, %v301, 0.0
  %v494 = vsel %vm430, %v302, 0.0
  %v495 = vsel %vm431, %v303, 0.0
  %v496 = vsel %vm432, %v304, 0.0
  %v497 = vsel %vm433, %v305, 0.0
  %v498 = vsel %vm434, %v306, 0.0
  %v499 = vsel %vm435, %v307, 0.0
  %v500 = vsel %vm436, %v308, 0.0
  %v501 = vsel %vm437, %v309, 0.0
  %v502 = vsel %vm438, %v310, 0.0
  %v503 = vsel %vm439, %v311, 0.0
  %v504 = vsel %vm440, %v312, 0.0
  %v505 = vsel %vm441, %v313, 0.0
  %v506 = vsel %vm442, %v314, 0.0
  %v507 = vsel %vm443, %v315, 0.0
  %v508 = vsel %vm444, %v316, 0.0
  %v509 = vsel %vm445, %v317, 0.0
  %v510 = vsel %vm446, %v318, 0.0
  %v511 = vsel %vm447, %v319, 0.0
  %v512 = vsel %vm448, %v320, 0.0
  %v513 = vsel %vm449, %v321, 0.0
  %v514 = vsel %vm450, %v322, 0.0
  %v515 = vsel %vm451, %v323, 0.0
  %v516 = vsel %vm452, %v324, 0.0
  %v517 = vsel %vm453, %v325, 0.0
  %v518 = vsel %vm454, %v326, 0.0
  %v519 = vsel %vm455, %v327, 0.0
  %v520 = vsel %vm456, %v328, 0.0
  %v521 = vsel %vm457, %v329, 0.0
  %v522 = vsel %vm458, %v330, 0.0
  %v523 = vsel %vm459, %v331, 0.0
  %v524 = vsel %vm460, %v332, 0.0
  %v525 = vsel %vm461, %v333, 0.0
  %v526 = vsel %vm462, %v334, 0.0
  %v527 = vsel %vm463, %v335, 0.0
  %v528 = vsel %vm464, %v336, 0.0
  %v529 = vsel %vm465, %v337, 0.0
  %v530 = vsel %vm466, %v338, 0.0
  %v531 = vsel %vm467, %v339, 0.0
  %v532 = vld [vmem:[%s1] sm:$0x1]
  %vm533 = vcmask 130048
  %v534 = vsel %vm533, %v468, 0.0
  %v535 = vsel %vm533, %v469, 0.0
  %v536 = vadd.f32 %v534, %v535
  %v537 = vsel %vm533, %v470, 0.0
  %v538 = vadd.f32 %v536, %v537
  %v539 = vsel %vm533, %v471, 0.0
  %v540 = vadd.f32 %v538, %v539
  %v541 = vsel %vm533, %v472, 0.0
  %v542 = vadd.f32 %v540, %v541
  %v543 = vsel %vm533, %v473, 0.0
  %v544 = vadd.f32 %v542, %v543
  %v545 = vsel %vm533, %v474, 0.0
  %v546 = vadd.f32 %v544, %v545
  %v547 = vsel %vm533, %v475, 0.0
  %v548 = vadd.f32 %v546, %v547
  %v549 = vsel %vm533, %v476, 0.0
  %v550 = vadd.f32 %v548, %v549
  %v551 = vsel %vm533, %v477, 0.0
  %v552 = vadd.f32 %v550, %v551
  %v553 = vsel %vm533, %v478, 0.0
  %v554 = vadd.f32 %v552, %v553
  %v555 = vsel %vm533, %v479, 0.0
  %v556 = vadd.f32 %v554, %v555
  %v557 = vsel %vm533, %v480, 0.0
  %v558 = vadd.f32 %v556, %v557
  %v559 = vsel %vm533, %v481, 0.0
  %v560 = vadd.f32 %v558, %v559
  %v561 = vsel %vm533, %v482, 0.0
  %v562 = vadd.f32 %v560, %v561
  %v563 = vsel %vm533, %v483, 0.0
  %v564 = vadd.f32 %v562, %v563
  %v565 = vsel %vm533, %v484, 0.0
  %v566 = vadd.f32 %v564, %v565
  %v567 = vsel %vm533, %v485, 0.0
  %v568 = vadd.f32 %v566, %v567
  %v569 = vsel %vm533, %v486, 0.0
  %v570 = vadd.f32 %v568, %v569
  %v571 = vsel %vm533, %v487, 0.0
  %v572 = vadd.f32 %v570, %v571
  %v573 = vsel %vm533, %v488, 0.0
  %v574 = vadd.f32 %v572, %v573
  %v575 = vsel %vm533, %v489, 0.0
  %v576 = vadd.f32 %v574, %v575
  %v577 = vsel %vm533, %v490, 0.0
  %v578 = vadd.f32 %v576, %v577
  %v579 = vsel %vm533, %v491, 0.0
  %v580 = vadd.f32 %v578, %v579
  %v581 = vsel %vm533, %v492, 0.0
  %v582 = vadd.f32 %v580, %v581
  %v583 = vsel %vm533, %v493, 0.0
  %v584 = vadd.f32 %v582, %v583
  %v585 = vsel %vm533, %v494, 0.0
  %v586 = vadd.f32 %v584, %v585
  %v587 = vsel %vm533, %v495, 0.0
  %v588 = vadd.f32 %v586, %v587
  %v589 = vsel %vm533, %v496, 0.0
  %v590 = vadd.f32 %v588, %v589
  %v591 = vsel %vm533, %v497, 0.0
  %v592 = vadd.f32 %v590, %v591
  %v593 = vsel %vm533, %v498, 0.0
  %v594 = vadd.f32 %v592, %v593
  %v595 = vsel %vm533, %v499, 0.0
  %v596 = vadd.f32 %v594, %v595
  %v597 = vsel %vm533, %v500, 0.0
  %v598 = vadd.f32 %v596, %v597
  %v599 = vsel %vm533, %v501, 0.0
  %v600 = vadd.f32 %v598, %v599
  %v601 = vsel %vm533, %v502, 0.0
  %v602 = vadd.f32 %v600, %v601
  %v603 = vsel %vm533, %v503, 0.0
  %v604 = vadd.f32 %v602, %v603
  %v605 = vsel %vm533, %v504, 0.0
  %v606 = vadd.f32 %v604, %v605
  %v607 = vsel %vm533, %v505, 0.0
  %v608 = vadd.f32 %v606, %v607
  %v609 = vsel %vm533, %v506, 0.0
  %v610 = vadd.f32 %v608, %v609
  %v611 = vsel %vm533, %v507, 0.0
  %v612 = vadd.f32 %v610, %v611
  %v613 = vsel %vm533, %v508, 0.0
  %v614 = vadd.f32 %v612, %v613
  %v615 = vsel %vm533, %v509, 0.0
  %v616 = vadd.f32 %v614, %v615
  %v617 = vsel %vm533, %v510, 0.0
  %v618 = vadd.f32 %v616, %v617
  %v619 = vsel %vm533, %v511, 0.0
  %v620 = vadd.f32 %v618, %v619
  %v621 = vsel %vm533, %v512, 0.0
  %v622 = vadd.f32 %v620, %v621
  %v623 = vsel %vm533, %v513, 0.0
  %v624 = vadd.f32 %v622, %v623
  %v625 = vsel %vm533, %v514, 0.0
  %v626 = vadd.f32 %v624, %v625
  %v627 = vsel %vm533, %v515, 0.0
  %v628 = vadd.f32 %v626, %v627
  %v629 = vsel %vm533, %v516, 0.0
  %v630 = vadd.f32 %v628, %v629
  %v631 = vsel %vm533, %v517, 0.0
  %v632 = vadd.f32 %v630, %v631
  %v633 = vsel %vm533, %v518, 0.0
  %v634 = vadd.f32 %v632, %v633
  %v635 = vsel %vm533, %v519, 0.0
  %v636 = vadd.f32 %v634, %v635
  %v637 = vsel %vm533, %v520, 0.0
  %v638 = vadd.f32 %v636, %v637
  %v639 = vsel %vm533, %v521, 0.0
  %v640 = vadd.f32 %v638, %v639
  %v641 = vsel %vm533, %v522, 0.0
  %v642 = vadd.f32 %v640, %v641
  %v643 = vsel %vm533, %v523, 0.0
  %v644 = vadd.f32 %v642, %v643
  %v645 = vsel %vm533, %v524, 0.0
  %v646 = vadd.f32 %v644, %v645
  %v647 = vsel %vm533, %v525, 0.0
  %v648 = vadd.f32 %v646, %v647
  %v649 = vsel %vm533, %v526, 0.0
  %v650 = vadd.f32 %v648, %v649
  %v651 = vsel %vm533, %v527, 0.0
  %v652 = vadd.f32 %v650, %v651
  %v653 = vsel %vm533, %v528, 0.0
  %v654 = vadd.f32 %v652, %v653
  %v655 = vsel %vm533, %v529, 0.0
  %v656 = vadd.f32 %v654, %v655
  %v657 = vsel %vm533, %v530, 0.0
  %v658 = vadd.f32 %v656, %v657
  %v659 = vsel %vm533, %v531, 0.0
  %v660 = vadd.f32 %v658, %v659
  %v661 = vrot.slane %v660, 4
  %v662 = vadd.f32 %v660, %v661
  %v663 = vrot.slane %v662, 2
  %v664 = vadd.f32 %v662, %v663
  %v665 = vrot.slane %v664, 1
  %v666 = vadd.f32 %v664, %v665
  %v667 = vadd.f32 %v532, %v666
  %vm668 = vcmask 122880
  %669 = vst.msk [vmem:[%s1] sm:$0x1] %vm668, %v667
  %v670 = vld [vmem:[%s2] sm:$0x1]
  %v671 = vmul.f32 %v468, %v468
  %v672 = vmul.f32 %v469, %v469
  %v673 = vmul.f32 %v470, %v470
  %v674 = vmul.f32 %v471, %v471
  %v675 = vmul.f32 %v472, %v472
  %v676 = vmul.f32 %v473, %v473
  %v677 = vmul.f32 %v474, %v474
  %v678 = vmul.f32 %v475, %v475
  %v679 = vmul.f32 %v476, %v476
  %v680 = vmul.f32 %v477, %v477
  %v681 = vmul.f32 %v478, %v478
  %v682 = vmul.f32 %v479, %v479
  %v683 = vmul.f32 %v480, %v480
  %v684 = vmul.f32 %v481, %v481
  %v685 = vmul.f32 %v482, %v482
  %v686 = vmul.f32 %v483, %v483
  %v687 = vmul.f32 %v484, %v484
  %v688 = vmul.f32 %v485, %v485
  %v689 = vmul.f32 %v486, %v486
  %v690 = vmul.f32 %v487, %v487
  %v691 = vmul.f32 %v488, %v488
  %v692 = vmul.f32 %v489, %v489
  %v693 = vmul.f32 %v490, %v490
  %v694 = vmul.f32 %v491, %v491
  %v695 = vmul.f32 %v492, %v492
  %v696 = vmul.f32 %v493, %v493
  %v697 = vmul.f32 %v494, %v494
  %v698 = vmul.f32 %v495, %v495
  %v699 = vmul.f32 %v496, %v496
  %v700 = vmul.f32 %v497, %v497
  %v701 = vmul.f32 %v498, %v498
  %v702 = vmul.f32 %v499, %v499
  %v703 = vmul.f32 %v500, %v500
  %v704 = vmul.f32 %v501, %v501
  %v705 = vmul.f32 %v502, %v502
  %v706 = vmul.f32 %v503, %v503
  %v707 = vmul.f32 %v504, %v504
  %v708 = vmul.f32 %v505, %v505
  %v709 = vmul.f32 %v506, %v506
  %v710 = vmul.f32 %v507, %v507
  %v711 = vmul.f32 %v508, %v508
  %v712 = vmul.f32 %v509, %v509
  %v713 = vmul.f32 %v510, %v510
  %v714 = vmul.f32 %v511, %v511
  %v715 = vmul.f32 %v512, %v512
  %v716 = vmul.f32 %v513, %v513
  %v717 = vmul.f32 %v514, %v514
  %v718 = vmul.f32 %v515, %v515
  %v719 = vmul.f32 %v516, %v516
  %v720 = vmul.f32 %v517, %v517
  %v721 = vmul.f32 %v518, %v518
  %v722 = vmul.f32 %v519, %v519
  %v723 = vmul.f32 %v520, %v520
  %v724 = vmul.f32 %v521, %v521
  %v725 = vmul.f32 %v522, %v522
  %v726 = vmul.f32 %v523, %v523
  %v727 = vmul.f32 %v524, %v524
  %v728 = vmul.f32 %v525, %v525
  %v729 = vmul.f32 %v526, %v526
  %v730 = vmul.f32 %v527, %v527
  %v731 = vmul.f32 %v528, %v528
  %v732 = vmul.f32 %v529, %v529
  %v733 = vmul.f32 %v530, %v530
  %v734 = vmul.f32 %v531, %v531
  %v735 = vsel %vm533, %v671, 0.0
  %v736 = vsel %vm533, %v672, 0.0
  %v737 = vadd.f32 %v735, %v736
  %v738 = vsel %vm533, %v673, 0.0
  %v739 = vadd.f32 %v737, %v738
  %v740 = vsel %vm533, %v674, 0.0
  %v741 = vadd.f32 %v739, %v740
  %v742 = vsel %vm533, %v675, 0.0
  %v743 = vadd.f32 %v741, %v742
  %v744 = vsel %vm533, %v676, 0.0
  %v745 = vadd.f32 %v743, %v744
  %v746 = vsel %vm533, %v677, 0.0
  %v747 = vadd.f32 %v745, %v746
  %v748 = vsel %vm533, %v678, 0.0
  %v749 = vadd.f32 %v747, %v748
  %v750 = vsel %vm533, %v679, 0.0
  %v751 = vadd.f32 %v749, %v750
  %v752 = vsel %vm533, %v680, 0.0
  %v753 = vadd.f32 %v751, %v752
  %v754 = vsel %vm533, %v681, 0.0
  %v755 = vadd.f32 %v753, %v754
  %v756 = vsel %vm533, %v682, 0.0
  %v757 = vadd.f32 %v755, %v756
  %v758 = vsel %vm533, %v683, 0.0
  %v759 = vadd.f32 %v757, %v758
  %v760 = vsel %vm533, %v684, 0.0
  %v761 = vadd.f32 %v759, %v760
  %v762 = vsel %vm533, %v685, 0.0
  %v763 = vadd.f32 %v761, %v762
  %v764 = vsel %vm533, %v686, 0.0
  %v765 = vadd.f32 %v763, %v764
  %v766 = vsel %vm533, %v687, 0.0
  %v767 = vadd.f32 %v765, %v766
  %v768 = vsel %vm533, %v688, 0.0
  %v769 = vadd.f32 %v767, %v768
  %v770 = vsel %vm533, %v689, 0.0
  %v771 = vadd.f32 %v769, %v770
  %v772 = vsel %vm533, %v690, 0.0
  %v773 = vadd.f32 %v771, %v772
  %v774 = vsel %vm533, %v691, 0.0
  %v775 = vadd.f32 %v773, %v774
  %v776 = vsel %vm533, %v692, 0.0
  %v777 = vadd.f32 %v775, %v776
  %v778 = vsel %vm533, %v693, 0.0
  %v779 = vadd.f32 %v777, %v778
  %v780 = vsel %vm533, %v694, 0.0
  %v781 = vadd.f32 %v779, %v780
  %v782 = vsel %vm533, %v695, 0.0
  %v783 = vadd.f32 %v781, %v782
  %v784 = vsel %vm533, %v696, 0.0
  %v785 = vadd.f32 %v783, %v784
  %v786 = vsel %vm533, %v697, 0.0
  %v787 = vadd.f32 %v785, %v786
  %v788 = vsel %vm533, %v698, 0.0
  %v789 = vadd.f32 %v787, %v788
  %v790 = vsel %vm533, %v699, 0.0
  %v791 = vadd.f32 %v789, %v790
  %v792 = vsel %vm533, %v700, 0.0
  %v793 = vadd.f32 %v791, %v792
  %v794 = vsel %vm533, %v701, 0.0
  %v795 = vadd.f32 %v793, %v794
  %v796 = vsel %vm533, %v702, 0.0
  %v797 = vadd.f32 %v795, %v796
  %v798 = vsel %vm533, %v703, 0.0
  %v799 = vadd.f32 %v797, %v798
  %v800 = vsel %vm533, %v704, 0.0
  %v801 = vadd.f32 %v799, %v800
  %v802 = vsel %vm533, %v705, 0.0
  %v803 = vadd.f32 %v801, %v802
  %v804 = vsel %vm533, %v706, 0.0
  %v805 = vadd.f32 %v803, %v804
  %v806 = vsel %vm533, %v707, 0.0
  %v807 = vadd.f32 %v805, %v806
  %v808 = vsel %vm533, %v708, 0.0
  %v809 = vadd.f32 %v807, %v808
  %v810 = vsel %vm533, %v709, 0.0
  %v811 = vadd.f32 %v809, %v810
  %v812 = vsel %vm533, %v710, 0.0
  %v813 = vadd.f32 %v811, %v812
  %v814 = vsel %vm533, %v711, 0.0
  %v815 = vadd.f32 %v813, %v814
  %v816 = vsel %vm533, %v712, 0.0
  %v817 = vadd.f32 %v815, %v816
  %v818 = vsel %vm533, %v713, 0.0
  %v819 = vadd.f32 %v817, %v818
  %v820 = vsel %vm533, %v714, 0.0
  %v821 = vadd.f32 %v819, %v820
  %v822 = vsel %vm533, %v715, 0.0
  %v823 = vadd.f32 %v821, %v822
  %v824 = vsel %vm533, %v716, 0.0
  %v825 = vadd.f32 %v823, %v824
  %v826 = vsel %vm533, %v717, 0.0
  %v827 = vadd.f32 %v825, %v826
  %v828 = vsel %vm533, %v718, 0.0
  %v829 = vadd.f32 %v827, %v828
  %v830 = vsel %vm533, %v719, 0.0
  %v831 = vadd.f32 %v829, %v830
  %v832 = vsel %vm533, %v720, 0.0
  %v833 = vadd.f32 %v831, %v832
  %v834 = vsel %vm533, %v721, 0.0
  %v835 = vadd.f32 %v833, %v834
  %v836 = vsel %vm533, %v722, 0.0
  %v837 = vadd.f32 %v835, %v836
  %v838 = vsel %vm533, %v723, 0.0
  %v839 = vadd.f32 %v837, %v838
  %v840 = vsel %vm533, %v724, 0.0
  %v841 = vadd.f32 %v839, %v840
  %v842 = vsel %vm533, %v725, 0.0
  %v843 = vadd.f32 %v841, %v842
  %v844 = vsel %vm533, %v726, 0.0
  %v845 = vadd.f32 %v843, %v844
  %v846 = vsel %vm533, %v727, 0.0
  %v847 = vadd.f32 %v845, %v846
  %v848 = vsel %vm533, %v728, 0.0
  %v849 = vadd.f32 %v847, %v848
  %v850 = vsel %vm533, %v729, 0.0
  %v851 = vadd.f32 %v849, %v850
  %v852 = vsel %vm533, %v730, 0.0
  %v853 = vadd.f32 %v851, %v852
  %v854 = vsel %vm533, %v731, 0.0
  %v855 = vadd.f32 %v853, %v854
  %v856 = vsel %vm533, %v732, 0.0
  %v857 = vadd.f32 %v855, %v856
  %v858 = vsel %vm533, %v733, 0.0
  %v859 = vadd.f32 %v857, %v858
  %v860 = vsel %vm533, %v734, 0.0
  %v861 = vadd.f32 %v859, %v860
  %v862 = vrot.slane %v861, 4
  %v863 = vadd.f32 %v861, %v862
  %v864 = vrot.slane %v863, 2
  %v865 = vadd.f32 %v863, %v864
  %v866 = vrot.slane %v865, 1
  %v867 = vadd.f32 %v865, %v866
  %v868 = vadd.f32 %v670, %v867
  %869 = vst.msk [vmem:[%s2] sm:$0x1] %vm668, %v868
  // Predicated region
  $region10: #{bottleneck_forward.4} parent=0 // pred_check
    _
  $region11: #{bottleneck_forward.4} parent=0 // pred_check_branch
    %871 = sbr.rel (0) target = $region13
  $region12: #{bottleneck_forward.4} parent=0 // pred_region
    _
  $region13: #{bottleneck_forward.4} parent=0 // pred_fallthru
    _
  // Predicated region
  $region14: #{bottleneck_forward.4} parent=0 // pred_check
    _
  $region15: #{bottleneck_forward.4} parent=0 // pred_check_branch
    %873 = sbr.rel (0) target = $region17
  $region16: #{bottleneck_forward.4} parent=0 // pred_region
    _
  $region17: #{bottleneck_forward.4} parent=0 // pred_fallthru
    _
  // Predicated region
  $region18: #{bottleneck_forward.4} parent=0 // pred_check
    _
  $region19: #{bottleneck_forward.4} parent=0 // pred_check_branch
    %875 = sbr.rel (0) target = $region21
  $region20: #{bottleneck_forward.4} parent=0 // pred_region
    _
  $region21: #{bottleneck_forward.4} parent=0 // pred_fallthru
    _
  // Predicated region
  $region22: #{bottleneck_forward.4} parent=0 // pred_check
    _
  $region23: #{bottleneck_forward.4} parent=0 // pred_check_branch
    %877 = sbr.rel (0) target = $region25
  $region24: #{bottleneck_forward.4} parent=0 // pred_region
    _
  $region25: #{bottleneck_forward.4} parent=0 // pred_fallthru
    _

// kernel: bottleneck_forward.5
$region0: #{bottleneck_forward.5}
  #allocation0 [shape = 'u32[]', space=smem, size = 0x4, offset = 0x4, fixed_abs, tag = 'smem constant byte address 0x4 - core index']
  #allocation1 [shape = 'u32[144,128]{1,0:T(1,128)}', space=vmem, size = 0x12000, scoped, tag = 'internal scratch']
  %s0 = inlined_call_operand.vmem [shape: bf16[512,16], index: 0, kind: input, shape index: {}]
  %s1 = inlined_call_operand.vmem [shape: f32[1,16], index: 1, kind: input, shape index: {}]
  %s2 = inlined_call_operand.vmem [shape: bf16[16,4], index: 2, kind: input, shape index: {}]
  %s3 = inlined_call_operand.vmem [shape: bf16[512,4], index: 3, kind: output, shape index: {0}]
  %s4 = inlined_call_operand.vmem [shape: f32[2,1,4], index: 4, kind: output, shape index: {1}]
  %s5 = inlined_call_operand.vmem [shape: f32[2,1,4], index: 5, kind: output, shape index: {2}]
  %6 = xla_tuple %s3, %s4, %s5
  %s7 = sld [smem:[#allocation0]]
  $region61: #{bottleneck_forward.5} parent=0
    _
  %s9 = ssub.s32 1, %s7
  %s10 = scalar_select 0, %s9, %s7
  loop: start=0, step=1, limit=4
  $region2: #{bottleneck_forward.5} parent=0 // loop_pre_header
    _
  $region3: #{bottleneck_forward.5} parent=0 // loop_header
    %s12 = sphi 0, %s16
    %p13 = scmp.ge.s32.totalorder %s12, 4
    %s22 = sphi 0, %s24
    %s25 = sphi 0, %s22
    %s26 = sphi 0, %s25
    %s42 = sphi 0, %s26
    %s46 = sphi 0, %s46
    %s48 = sphi 0, %s46
    %s49 = sphi 0, %s48
    %s63 = sphi 0, %s49
    %s67 = sphi 0, %s67
    %s69 = sphi 0, %s67
    %s70 = sphi 0, %s69
    %s84 = sphi 0, %s70
    %s90 = sphi 0, %s92
    %s93 = sphi 0, %s90
    %s94 = sphi 0, %s93
    %s110 = sphi 0, %s94
    %s116 = sphi 0, %s118
    %s119 = sphi 0, %s116
    %s120 = sphi 0, %s119
    %s136 = sphi 0, %s120
    %s142 = sphi 0, %s144
    %s145 = sphi 0, %s142
    %s146 = sphi 0, %s145
    %s162 = sphi 0, %s146
  $region4: #{bottleneck_forward.5} parent=0 // loop_header_branch
    %15 = sbr.rel (%p13) target = $region8
  $region5: #{bottleneck_forward.5} parent=0 // loop_body
    %s17 = ssub.s32 %s12, 1
    %s18 = ssub.s32 %s12, 2
    %s19 = sadd.s32 %s12, 1
    %s20 = ssub.s32 %s12, %s19
    %p21 = scmp.eq.s32.totalorder %s20, 0
    %s23 = sadd.s32 %s22, 1
    %s24 = scalar_select %p21, %s22, %s23
    %p27 = pneg %p21
    %p28 = scmp.eq.s32.totalorder %s12, 1
    %p29 = por %p27, %p28
    %p30 = scmp.ne.s32.totalorder %s22, %s25
    %p31 = scmp.eq.s32.totalorder %s12, 0
    %p32 = por %p30, %p31
    %p33 = scmp.ne.s32.totalorder %s22, %s25
    %p34 = scmp.eq.s32.totalorder %s17, 1
    %p35 = por %p33, %p34
    %p36 = scmp.ne.s32.totalorder %s25, %s26
    %p37 = scmp.eq.s32.totalorder %s17, 0
    %p38 = por %p36, %p37
    %p39 = scmp.ne.s32.totalorder %s25, %s26
    %p40 = scmp.eq.s32.totalorder %s18, 1
    %p41 = por %p39, %p40
    %p43 = scmp.ne.s32.totalorder %s26, %s42
    %p44 = scmp.eq.s32.totalorder %s18, 0
    %p45 = por %p43, %p44
    %s47 = sadd.s32 %s46, 1
    %p50 = scmp.eq.s32.totalorder %s12, 1
    %p51 = scmp.ne.s32.totalorder %s46, %s48
    %p52 = scmp.eq.s32.totalorder %s12, 0
    %p53 = por %p51, %p52
    %p54 = scmp.ne.s32.totalorder %s46, %s48
    %p55 = scmp.eq.s32.totalorder %s17, 1
    %p56 = por %p54, %p55
    %p57 = scmp.ne.s32.totalorder %s48, %s49
    %p58 = scmp.eq.s32.totalorder %s17, 0
    %p59 = por %p57, %p58
    %p60 = scmp.ne.s32.totalorder %s48, %s49
    %p61 = scmp.eq.s32.totalorder %s18, 1
    %p62 = por %p60, %p61
    %p64 = scmp.ne.s32.totalorder %s49, %s63
    %p65 = scmp.eq.s32.totalorder %s18, 0
    %p66 = por %p64, %p65
    %s68 = sadd.s32 %s67, 1
    %p71 = scmp.eq.s32.totalorder %s12, 1
    %p72 = scmp.ne.s32.totalorder %s67, %s69
    %p73 = scmp.eq.s32.totalorder %s12, 0
    %p74 = por %p72, %p73
    %p75 = scmp.ne.s32.totalorder %s67, %s69
    %p76 = scmp.eq.s32.totalorder %s17, 1
    %p77 = por %p75, %p76
    %p78 = scmp.ne.s32.totalorder %s69, %s70
    %p79 = scmp.eq.s32.totalorder %s17, 0
    %p80 = por %p78, %p79
    %p81 = scmp.ne.s32.totalorder %s69, %s70
    %p82 = scmp.eq.s32.totalorder %s18, 1
    %p83 = por %p81, %p82
    %p85 = scmp.ne.s32.totalorder %s70, %s84
    %p86 = scmp.eq.s32.totalorder %s18, 0
    %p87 = por %p85, %p86
    %s88 = ssub.s32 %s12, %s19
    %p89 = scmp.eq.s32.totalorder %s88, 0
    %s91 = sadd.s32 %s90, 1
    %s92 = scalar_select %p89, %s90, %s91
    %p95 = pneg %p89
    %p96 = scmp.eq.s32.totalorder %s12, 1
    %p97 = por %p95, %p96
    %p98 = scmp.ne.s32.totalorder %s90, %s93
    %p99 = scmp.eq.s32.totalorder %s12, 0
    %p100 = por %p98, %p99
    %p101 = scmp.ne.s32.totalorder %s90, %s93
    %p102 = scmp.eq.s32.totalorder %s17, 1
    %p103 = por %p101, %p102
    %p104 = scmp.ne.s32.totalorder %s93, %s94
    %p105 = scmp.eq.s32.totalorder %s17, 0
    %p106 = por %p104, %p105
    %p107 = scmp.ne.s32.totalorder %s93, %s94
    %p108 = scmp.eq.s32.totalorder %s18, 1
    %p109 = por %p107, %p108
    %p111 = scmp.ne.s32.totalorder %s94, %s110
    %p112 = scmp.eq.s32.totalorder %s18, 0
    %p113 = por %p111, %p112
    %s114 = ssub.s32 %s12, %s19
    %p115 = scmp.eq.s32.totalorder %s114, 0
    %s117 = sadd.s32 %s116, 1
    %s118 = scalar_select %p115, %s116, %s117
    %p121 = pneg %p115
    %p122 = scmp.eq.s32.totalorder %s12, 1
    %p123 = por %p121, %p122
    %p124 = scmp.ne.s32.totalorder %s116, %s119
    %p125 = scmp.eq.s32.totalorder %s12, 0
    %p126 = por %p124, %p125
    %p127 = scmp.ne.s32.totalorder %s116, %s119
    %p128 = scmp.eq.s32.totalorder %s17, 1
    %p129 = por %p127, %p128
    %p130 = scmp.ne.s32.totalorder %s119, %s120
    %p131 = scmp.eq.s32.totalorder %s17, 0
    %p132 = por %p130, %p131
    %p133 = scmp.ne.s32.totalorder %s119, %s120
    %p134 = scmp.eq.s32.totalorder %s18, 1
    %p135 = por %p133, %p134
    %p137 = scmp.ne.s32.totalorder %s120, %s136
    %p138 = scmp.eq.s32.totalorder %s18, 0
    %p139 = por %p137, %p138
    %s140 = ssub.s32 %s12, %s19
    %p141 = scmp.eq.s32.totalorder %s140, 0
    %s143 = sadd.s32 %s142, 1
    %s144 = scalar_select %p141, %s142, %s143
    %p147 = pneg %p141
    %p148 = scmp.eq.s32.totalorder %s12, 1
    %p149 = por %p147, %p148
    %p150 = scmp.ne.s32.totalorder %s142, %s145
    %p151 = scmp.eq.s32.totalorder %s12, 0
    %p152 = por %p150, %p151
    %p153 = scmp.ne.s32.totalorder %s142, %s145
    %p154 = scmp.eq.s32.totalorder %s17, 1
    %p155 = por %p153, %p154
    %p156 = scmp.ne.s32.totalorder %s145, %s146
    %p157 = scmp.eq.s32.totalorder %s17, 0
    %p158 = por %p156, %p157
    %p159 = scmp.ne.s32.totalorder %s145, %s146
    %p160 = scmp.eq.s32.totalorder %s18, 1
    %p161 = por %p159, %p160
    %p163 = scmp.ne.s32.totalorder %s146, %s162
    %p164 = scmp.eq.s32.totalorder %s18, 0
    %p165 = por %p163, %p164
    %p166 = scmp.le.s32.totalorder 1, %s12
    %p167 = scmp.lt.s32.totalorder %s12, 3
    %p168 = pnand %p166, %p167
    %p169 = pneg %p168
    // Predicated region
    $region9: #{bottleneck_forward.5} parent=5 // pred_check
      _
    $region10: #{bottleneck_forward.5} parent=5 // pred_check_branch
      %171 = sbr.rel (%p168) target = $region12
    $region11: #{bottleneck_forward.5} parent=5 // pred_region
      %s172 = ssub.s32 %s12, 1
      // Predicated region
      $region13: #{bottleneck_forward.5} parent=11 // pred_check
        %p173 = pneg %p59
      $region14: #{bottleneck_forward.5} parent=11 // pred_check_branch
        %175 = sbr.rel (%p173) target = $region16
      $region15: #{bottleneck_forward.5} parent=11 // pred_region
        _
      $region16: #{bottleneck_forward.5} parent=11 // pred_fallthru
        _
      // Predicated region
      $region17: #{bottleneck_forward.5} parent=11 // pred_check
        %p176 = pneg %p80
      $region18: #{bottleneck_forward.5} parent=11 // pred_check_branch
        %178 = sbr.rel (%p176) target = $region20
      $region19: #{bottleneck_forward.5} parent=11 // pred_region
        _
      $region20: #{bottleneck_forward.5} parent=11 // pred_fallthru
        _
    $region12: #{bottleneck_forward.5} parent=5 // pred_fallthru
      _
    %p179 = scmp.lt.s32.totalorder %s12, 2
    // Predicated region
    $region21: #{bottleneck_forward.5} parent=5 // pred_check
      %p180 = pneg %p179
    $region22: #{bottleneck_forward.5} parent=5 // pred_check_branch
      %182 = sbr.rel (%p180) target = $region24
    $region23: #{bottleneck_forward.5} parent=5 // pred_region
      // Predicated region
      $region25: #{bottleneck_forward.5} parent=23 // pred_check
        %p183 = pneg %p32
      $region26: #{bottleneck_forward.5} parent=23 // pred_check_branch
        %185 = sbr.rel (%p183) target = $region28
      $region27: #{bottleneck_forward.5} parent=23 // pred_region
        %s186 = smul.u32 32, %s12
        %p187 = scmp.lt.s32.totalorder %s186, 63
        %s188 = scalar_select %p187, %s186, 63
        %s189 = smul.addr %s188, 4
        %s190 = scalar_lea.vmem %s0, %s189
        %s191 = smul.u32 32, %s12
      $region28: #{bottleneck_forward.5} parent=23 // pred_fallthru
        _
    $region24: #{bottleneck_forward.5} parent=5 // pred_fallthru
      _
    %p192 = scmp.le.s32.totalorder 1, %s12
    %p193 = scmp.lt.s32.totalorder %s12, 3
    %p194 = pnand %p192, %p193
    %p195 = pneg %p194
    // Predicated region
    $region29: #{bottleneck_forward.5} parent=5 // pred_check
      _
    $region30: #{bottleneck_forward.5} parent=5 // pred_check_branch
      %197 = sbr.rel (%p194) target = $region32
    $region31: #{bottleneck_forward.5} parent=5 // pred_region
      %s198 = ssub.s32 %s12, 1
      %s199 = smul.u32 32, %s17
      %p200 = scmp.lt.s32.totalorder %s199, 63
      %s201 = scalar_select %p200, %s199, 63
      %s202 = smul.addr %s201, 4
      %s203 = scalar_lea.vmem %s0, %s202
      %p204 = pneg %p38
      %p205 = pneg %p35
      %p206 = pneg %p59
      %p207 = pneg %p56
      %p208 = pneg %p80
      %p209 = pneg %p77
      %p210 = pneg %p106
      %p211 = pneg %p103
      %s212 = smul.u32 32, %s17
      %p213 = scmp.lt.s32.totalorder %s212, 63
      %s214 = scalar_select %p213, %s212, 63
      %s215 = smul.addr %s214, 4
      %s216 = scalar_lea.vmem %s3, %s215
      %p217 = pneg %p132
      %p218 = pneg %p129
      %p219 = scmp.lt.s32.totalorder %s17, 1
      %s220 = scalar_select %p219, %s17, 1
      %s221 = scalar_lea.vmem %s4, %s220
      %p222 = pneg %p158
      %p223 = pneg %p155
      %p224 = scmp.lt.s32.totalorder %s17, 1
      %s225 = scalar_select %p224, %s17, 1
      %s226 = scalar_lea.vmem %s5, %s225
      %s227 = smul.u32 32, %s17
      %p228 = scmp.lt.s32.totalorder %s227, 63
      %s229 = scalar_select %p228, %s227, 63
      %s230 = smul.addr %s229, 4
      %s231 = scalar_lea.vmem %s0, %s230
      %s232 = smul.u32 32, %s17
      %s233 = smul.u32 32, %s17
      %p234 = scmp.lt.s32.totalorder %s233, 63
      %s235 = scalar_select %p234, %s233, 63
      %s236 = smul.addr %s235, 4
      %s237 = scalar_lea.vmem %s3, %s236
      %s238 = smul.u32 32, %s17
      %p239 = scmp.lt.s32.totalorder %s17, 1
      %s240 = scalar_select %p239, %s17, 1
      %s241 = scalar_lea.vmem %s4, %s240
      %p242 = scmp.lt.s32.totalorder %s17, 1
      %s243 = scalar_select %p242, %s17, 1
      %s244 = scalar_lea.vmem %s5, %s243
      %v246 = vld [vmem:[%s231] sm:$0xf]
      %v247 = vld [vmem:[%s231 + $0x4] sm:$0xf]
      %v248 = vld [vmem:[%s231 + $0x8] sm:$0xf]
      %v249 = vld [vmem:[%s231 + $0xc] sm:$0xf]
      %v250 = vld [vmem:[%s231 + $0x10] sm:$0xf]
      %v251 = vld [vmem:[%s231 + $0x14] sm:$0xf]
      %v252 = vld [vmem:[%s231 + $0x18] sm:$0xf]
      %v253 = vld [vmem:[%s231 + $0x1c] sm:$0xf]
      %v254 = vld [vmem:[%s231 + $0x20] sm:$0xf]
      %v255 = vld [vmem:[%s231 + $0x24] sm:$0xf]
      %v256 = vld [vmem:[%s231 + $0x28] sm:$0xf]
      %v257 = vld [vmem:[%s231 + $0x2c] sm:$0xf]
      %v258 = vld [vmem:[%s231 + $0x30] sm:$0xf]
      %v259 = vld [vmem:[%s231 + $0x34] sm:$0xf]
      %v260 = vld [vmem:[%s231 + $0x38] sm:$0xf]
      %v261 = vld [vmem:[%s231 + $0x3c] sm:$0xf]
      %v262 = vld [vmem:[%s231 + $0x40] sm:$0xf]
      %v263 = vld [vmem:[%s231 + $0x44] sm:$0xf]
      %v264 = vld [vmem:[%s231 + $0x48] sm:$0xf]
      %v265 = vld [vmem:[%s231 + $0x4c] sm:$0xf]
      %v266 = vld [vmem:[%s231 + $0x50] sm:$0xf]
      %v267 = vld [vmem:[%s231 + $0x54] sm:$0xf]
      %v268 = vld [vmem:[%s231 + $0x58] sm:$0xf]
      %v269 = vld [vmem:[%s231 + $0x5c] sm:$0xf]
      %v270 = vld [vmem:[%s231 + $0x60] sm:$0xf]
      %v271 = vld [vmem:[%s231 + $0x64] sm:$0xf]
      %v272 = vld [vmem:[%s231 + $0x68] sm:$0xf]
      %v273 = vld [vmem:[%s231 + $0x6c] sm:$0xf]
      %v274 = vld [vmem:[%s231 + $0x70] sm:$0xf]
      %v275 = vld [vmem:[%s231 + $0x74] sm:$0xf]
      %v276 = vld [vmem:[%s231 + $0x78] sm:$0xf]
      %v277 = vld [vmem:[%s231 + $0x7c] sm:$0xf]
      %v278 = vunpack.c.l.bf16 %v246
      %v279 = vunpack.c.l.bf16 %v247
      %v280 = vunpack.c.l.bf16 %v248
      %v281 = vunpack.c.l.bf16 %v249
      %v282 = vunpack.c.l.bf16 %v250
      %v283 = vunpack.c.l.bf16 %v251
      %v284 = vunpack.c.l.bf16 %v252
      %v285 = vunpack.c.l.bf16 %v253
      %v286 = vunpack.c.l.bf16 %v254
      %v287 = vunpack.c.l.bf16 %v255
      %v288 = vunpack.c.l.bf16 %v256
      %v289 = vunpack.c.l.bf16 %v257
      %v290 = vunpack.c.l.bf16 %v258
      %v291 = vunpack.c.l.bf16 %v259
      %v292 = vunpack.c.l.bf16 %v260
      %v293 = vunpack.c.l.bf16 %v261
      %v294 = vunpack.c.l.bf16 %v262
      %v295 = vunpack.c.l.bf16 %v263
      %v296 = vunpack.c.l.bf16 %v264
      %v297 = vunpack.c.l.bf16 %v265
      %v298 = vunpack.c.l.bf16 %v266
      %v299 = vunpack.c.l.bf16 %v267
      %v300 = vunpack.c.l.bf16 %v268
      %v301 = vunpack.c.l.bf16 %v269
      %v302 = vunpack.c.l.bf16 %v270
      %v303 = vunpack.c.l.bf16 %v271
      %v304 = vunpack.c.l.bf16 %v272
      %v305 = vunpack.c.l.bf16 %v273
      %v306 = vunpack.c.l.bf16 %v274
      %v307 = vunpack.c.l.bf16 %v275
      %v308 = vunpack.c.l.bf16 %v276
      %v309 = vunpack.c.l.bf16 %v277
      %v310 = vld [vmem:[%s1] sm:$0x1]
      %v312 = vlaneseq
      %v313 = vshrl.u32 %v312, 7
      %v314 = vsub.s32 0, %v313
      %v315 = vrot.slane %v310, %v314
      %v317 = vadd.f32 %v278, %v315
      %v318 = vadd.f32 %v279, %v315
      %v319 = vadd.f32 %v280, %v315
      %v320 = vadd.f32 %v281, %v315
      %v321 = vadd.f32 %v282, %v315
      %v322 = vadd.f32 %v283, %v315
      %v323 = vadd.f32 %v284, %v315
      %v324 = vadd.f32 %v285, %v315
      %v325 = vadd.f32 %v286, %v315
      %v326 = vadd.f32 %v287, %v315
      %v327 = vadd.f32 %v288, %v315
      %v328 = vadd.f32 %v289, %v315
      %v329 = vadd.f32 %v290, %v315
      %v330 = vadd.f32 %v291, %v315
      %v331 = vadd.f32 %v292, %v315
      %v332 = vadd.f32 %v293, %v315
      %v333 = vadd.f32 %v294, %v315
      %v334 = vadd.f32 %v295, %v315
      %v335 = vadd.f32 %v296, %v315
      %v336 = vadd.f32 %v297, %v315
      %v337 = vadd.f32 %v298, %v315
      %v338 = vadd.f32 %v299, %v315
      %v339 = vadd.f32 %v300, %v315
      %v340 = vadd.f32 %v301, %v315
      %v341 = vadd.f32 %v302, %v315
      %v342 = vadd.f32 %v303, %v315
      %v343 = vadd.f32 %v304, %v315
      %v344 = vadd.f32 %v305, %v315
      %v345 = vadd.f32 %v306, %v315
      %v346 = vadd.f32 %v307, %v315
      %v347 = vadd.f32 %v308, %v315
      %v348 = vadd.f32 %v309, %v315
      %v349 = vmax.f32 %v317, 0.0
      %v350 = vmax.f32 %v318, 0.0
      %v351 = vmax.f32 %v319, 0.0
      %v352 = vmax.f32 %v320, 0.0
      %v353 = vmax.f32 %v321, 0.0
      %v354 = vmax.f32 %v322, 0.0
      %v355 = vmax.f32 %v323, 0.0
      %v356 = vmax.f32 %v324, 0.0
      %v357 = vmax.f32 %v325, 0.0
      %v358 = vmax.f32 %v326, 0.0
      %v359 = vmax.f32 %v327, 0.0
      %v360 = vmax.f32 %v328, 0.0
      %v361 = vmax.f32 %v329, 0.0
      %v362 = vmax.f32 %v330, 0.0
      %v363 = vmax.f32 %v331, 0.0
      %v364 = vmax.f32 %v332, 0.0
      %v365 = vmax.f32 %v333, 0.0
      %v366 = vmax.f32 %v334, 0.0
      %v367 = vmax.f32 %v335, 0.0
      %v368 = vmax.f32 %v336, 0.0
      %v369 = vmax.f32 %v337, 0.0
      %v370 = vmax.f32 %v338, 0.0
      %v371 = vmax.f32 %v339, 0.0
      %v372 = vmax.f32 %v340, 0.0
      %v373 = vmax.f32 %v341, 0.0
      %v374 = vmax.f32 %v342, 0.0
      %v375 = vmax.f32 %v343, 0.0
      %v376 = vmax.f32 %v344, 0.0
      %v377 = vmax.f32 %v345, 0.0
      %v378 = vmax.f32 %v346, 0.0
      %v379 = vmax.f32 %v347, 0.0
      %v380 = vmax.f32 %v348, 0.0
      %v381 = vpack.c.bf16 %v350, %v349
      %v382 = vpack.c.bf16 %v352, %v351
      %v383 = vpack.c.bf16 %v354, %v353
      %v384 = vpack.c.bf16 %v356, %v355
      %v385 = vpack.c.bf16 %v358, %v357
      %v386 = vpack.c.bf16 %v360, %v359
      %v387 = vpack.c.bf16 %v362, %v361
      %v388 = vpack.c.bf16 %v364, %v363
      %v389 = vpack.c.bf16 %v366, %v365
      %v390 = vpack.c.bf16 %v368, %v367
      %v391 = vpack.c.bf16 %v370, %v369
      %v392 = vpack.c.bf16 %v372, %v371
      %v393 = vpack.c.bf16 %v374, %v373
      %v394 = vpack.c.bf16 %v376, %v375
      %v395 = vpack.c.bf16 %v378, %v377
      %v396 = vpack.c.bf16 %v380, %v379
      %v397 = vld [vmem:[%s2] sm:$0xf]
      %v398 = vld [vmem:[%s2 + $0x4] sm:$0xf]
      %v401 = vunpack.c.l.b16 %v397
      %v402 = vunpack.c.l.b16 %v398
      %v403 = vpack.c.b16 %v402, %v401
      %vm405 = vcmask 130048
      %v407 = vsel %vm405, %v381, 0
      %v410 = vsel %vm405, %v382, 0
      %v413 = vsel %vm405, %v383, 0
      %v416 = vsel %vm405, %v384, 0
      %v419 = vsel %vm405, %v385, 0
      %v422 = vsel %vm405, %v386, 0
      %v425 = vsel %vm405, %v387, 0
      %v428 = vsel %vm405, %v388, 0
      %v431 = vsel %vm405, %v389, 0
      %v434 = vsel %vm405, %v390, 0
      %v437 = vsel %vm405, %v391, 0
      %v440 = vsel %vm405, %v392, 0
      %v443 = vsel %vm405, %v393, 0
      %v446 = vsel %vm405, %v394, 0
      %v449 = vsel %vm405, %v395, 0
      %v452 = vsel %vm405, %v396, 0
      %454 = vmatprep.subr.bf16.mxu0 0
      %455 = vmatpush1.bf16.msra.mxu0 %v403
      %456 = vmatprep.subr.bf16.mxu0 0
      %457 = vmatpush1.bf16.msra.mxu0 0
      %458 = vmatprep.subr.bf16.mxu0 0
      %459 = vmatpush1.bf16.msra.mxu0 0
      %460 = vmatprep.subr.bf16.mxu0 0
      %461 = vmatpush1.bf16.msra.mxu0 0
      %462 = vmatprep.subr.bf16.mxu0 0
      %463 = vmatpush1.bf16.msra.mxu0 0
      %464 = vmatprep.subr.bf16.mxu0 0
      %465 = vmatpush1.bf16.msra.mxu0 0
      %466 = vmatprep.subr.bf16.mxu0 0
      %467 = vmatpush1.bf16.msra.mxu0 0
      %468 = vmatprep.subr.bf16.mxu0 0
      %469 = vmatpush1.bf16.msra.mxu0 0
      %470 = vmatprep.subr.bf16.mxu0 0
      %471 = vmatpush1.bf16.msra.mxu0 0
      %472 = vmatprep.subr.bf16.mxu0 0
      %473 = vmatpush1.bf16.msra.mxu0 0
      %474 = vmatprep.subr.bf16.mxu0 0
      %475 = vmatpush1.bf16.msra.mxu0 0
      %476 = vmatprep.subr.bf16.mxu0 0
      %477 = vmatpush1.bf16.msra.mxu0 0
      %478 = vmatprep.subr.bf16.mxu0 0
      %479 = vmatpush1.bf16.msra.mxu0 0
      %480 = vmatprep.subr.bf16.mxu0 0
      %481 = vmatpush1.bf16.msra.mxu0 0
      %482 = vmatprep.subr.bf16.mxu0 0
      %483 = vmatpush1.bf16.msra.mxu0 0
      %484 = vmatprep.subr.bf16.mxu0 0
      %485 = vmatpush1.bf16.msra.mxu0 0
      %486 = vmatprep.mubr.bf16.mxu0 0
      %487 = vmatmul.mubr.bf16.gmra.mrb[0].mxu0 %v407
      %v488 = vpop.f32.mrb[0].mxu0
      %v489 = vadd.f32 0.0, %v488
      %v490 = vpop.f32.mrb[0].mxu0
      %v491 = vpop.f32.mrb[0].mxu0
      %v492 = vadd.f32 0.0, %v491
      %v493 = vpop.f32.mrb[0].mxu0
      %494 = vmatprep.mubr.bf16.mxu0 0
      %495 = vmatmul.mubr.bf16.gmra.mrb[0].mxu0 %v410
      %v496 = vpop.f32.mrb[0].mxu0
      %v497 = vadd.f32 0.0, %v496
      %v498 = vpop.f32.mrb[0].mxu0
      %v499 = vpop.f32.mrb[0].mxu0
      %v500 = vadd.f32 0.0, %v499
      %v501 = vpop.f32.mrb[0].mxu0
      %502 = vmatprep.mubr.bf16.mxu0 0
      %503 = vmatmul.mubr.bf16.gmra.mrb[0].mxu0 %v413
      %v504 = vpop.f32.mrb[0].mxu0
      %v505 = vadd.f32 0.0, %v504
      %v506 = vpop.f32.mrb[0].mxu0
      %v507 = vpop.f32.mrb[0].mxu0
      %v508 = vadd.f32 0.0, %v507
      %v509 = vpop.f32.mrb[0].mxu0
      %510 = vmatprep.mubr.bf16.mxu0 0
      %511 = vmatmul.mubr.bf16.gmra.mrb[0].mxu0 %v416
      %v512 = vpop.f32.mrb[0].mxu0
      %v513 = vadd.f32 0.0, %v512
      %v514 = vpop.f32.mrb[0].mxu0
      %v515 = vpop.f32.mrb[0].mxu0
      %v516 = vadd.f32 0.0, %v515
      %v517 = vpop.f32.mrb[0].mxu0
      %518 = vmatprep.mubr.bf16.mxu0 0
      %519 = vmatmul.mubr.bf16.gmra.mrb[0].mxu0 %v419
      %v520 = vpop.f32.mrb[0].mxu0
      %v521 = vadd.f32 0.0, %v520
      %v522 = vpop.f32.mrb[0].mxu0
      %v523 = vpop.f32.mrb[0].mxu0
      %v524 = vadd.f32 0.0, %v523
      %v525 = vpop.f32.mrb[0].mxu0
      %526 = vmatprep.mubr.bf16.mxu0 0
      %527 = vmatmul.mubr.bf16.gmra.mrb[0].mxu0 %v422
      %v528 = vpop.f32.mrb[0].mxu0
      %v529 = vadd.f32 0.0, %v528
      %v530 = vpop.f32.mrb[0].mxu0
      %v531 = vpop.f32.mrb[0].mxu0
      %v532 = vadd.f32 0.0, %v531
      %v533 = vpop.f32.mrb[0].mxu0
      %534 = vmatprep.mubr.bf16.mxu0 0
      %535 = vmatmul.mubr.bf16.gmra.mrb[0].mxu0 %v425
      %v536 = vpop.f32.mrb[0].mxu0
      %v537 = vadd.f32 0.0, %v536
      %v538 = vpop.f32.mrb[0].mxu0
      %v539 = vpop.f32.mrb[0].mxu0
      %v540 = vadd.f32 0.0, %v539
      %v541 = vpop.f32.mrb[0].mxu0
      %542 = vmatprep.mubr.bf16.mxu0 0
      %543 = vmatmul.mubr.bf16.gmra.mrb[0].mxu0 %v428
      %v544 = vpop.f32.mrb[0].mxu0
      %v545 = vadd.f32 0.0, %v544
      %v546 = vpop.f32.mrb[0].mxu0
      %v547 = vpop.f32.mrb[0].mxu0
      %v548 = vadd.f32 0.0, %v547
      %v549 = vpop.f32.mrb[0].mxu0
      %550 = vmatprep.mubr.bf16.mxu0 0
      %551 = vmatmul.mubr.bf16.gmra.mrb[0].mxu0 %v431
      %v552 = vpop.f32.mrb[0].mxu0
      %v553 = vadd.f32 0.0, %v552
      %v554 = vpop.f32.mrb[0].mxu0
      %v555 = vpop.f32.mrb[0].mxu0
      %v556 = vadd.f32 0.0, %v555
      %v557 = vpop.f32.mrb[0].mxu0
      %558 = vmatprep.mubr.bf16.mxu0 0
      %559 = vmatmul.mubr.bf16.gmra.mrb[0].mxu0 %v434
      %v560 = vpop.f32.mrb[0].mxu0
      %v561 = vadd.f32 0.0, %v560
      %v562 = vpop.f32.mrb[0].mxu0
      %v563 = vpop.f32.mrb[0].mxu0
      %v564 = vadd.f32 0.0, %v563
      %v565 = vpop.f32.mrb[0].mxu0
      %566 = vmatprep.mubr.bf16.mxu0 0
      %567 = vmatmul.mubr.bf16.gmra.mrb[0].mxu0 %v437
      %v568 = vpop.f32.mrb[0].mxu0
      %v569 = vadd.f32 0.0, %v568
      %v570 = vpop.f32.mrb[0].mxu0
      %v571 = vpop.f32.mrb[0].mxu0
      %v572 = vadd.f32 0.0, %v571
      %v573 = vpop.f32.mrb[0].mxu0
      %574 = vmatprep.mubr.bf16.mxu0 0
      %575 = vmatmul.mubr.bf16.gmra.mrb[0].mxu0 %v440
      %v576 = vpop.f32.mrb[0].mxu0
      %v577 = vadd.f32 0.0, %v576
      %v578 = vpop.f32.mrb[0].mxu0
      %v579 = vpop.f32.mrb[0].mxu0
      %v580 = vadd.f32 0.0, %v579
      %v581 = vpop.f32.mrb[0].mxu0
      %582 = vmatprep.mubr.bf16.mxu0 0
      %583 = vmatmul.mubr.bf16.gmra.mrb[0].mxu0 %v443
      %v584 = vpop.f32.mrb[0].mxu0
      %v585 = vadd.f32 0.0, %v584
      %v586 = vpop.f32.mrb[0].mxu0
      %v587 = vpop.f32.mrb[0].mxu0
      %v588 = vadd.f32 0.0, %v587
      %v589 = vpop.f32.mrb[0].mxu0
      %590 = vmatprep.mubr.bf16.mxu0 0
      %591 = vmatmul.mubr.bf16.gmra.mrb[0].mxu0 %v446
      %v592 = vpop.f32.mrb[0].mxu0
      %v593 = vadd.f32 0.0, %v592
      %v594 = vpop.f32.mrb[0].mxu0
      %v595 = vpop.f32.mrb[0].mxu0
      %v596 = vadd.f32 0.0, %v595
      %v597 = vpop.f32.mrb[0].mxu0
      %598 = vmatprep.mubr.bf16.mxu0 0
      %599 = vmatmul.mubr.bf16.gmra.mrb[0].mxu0 %v449
      %v600 = vpop.f32.mrb[0].mxu0
      %v601 = vadd.f32 0.0, %v600
      %v602 = vpop.f32.mrb[0].mxu0
      %v603 = vpop.f32.mrb[0].mxu0
      %v604 = vadd.f32 0.0, %v603
      %v605 = vpop.f32.mrb[0].mxu0
      %606 = vmatprep.mubr.bf16.mxu0 0
      %607 = vmatmul.mubr.bf16.gmra.mrb[0].mxu0 %v452
      %v608 = vpop.f32.mrb[0].mxu0
      %v609 = vadd.f32 0.0, %v608
      %v610 = vpop.f32.mrb[0].mxu0
      %v611 = vpop.f32.mrb[0].mxu0
      %v612 = vadd.f32 0.0, %v611
      %v613 = vpop.f32.mrb[0].mxu0
      %614 = vdwg.mxu0
      %v615 = vpack.c.bf16 %v492, %v489
      %v616 = vpack.c.bf16 %v500, %v497
      %v617 = vpack.c.bf16 %v508, %v505
      %v618 = vpack.c.bf16 %v516, %v513
      %v619 = vpack.c.bf16 %v524, %v521
      %v620 = vpack.c.bf16 %v532, %v529
      %v621 = vpack.c.bf16 %v540, %v537
      %v622 = vpack.c.bf16 %v548, %v545
      %v623 = vpack.c.bf16 %v556, %v553
      %v624 = vpack.c.bf16 %v564, %v561
      %v625 = vpack.c.bf16 %v572, %v569
      %v626 = vpack.c.bf16 %v580, %v577
      %v627 = vpack.c.bf16 %v588, %v585
      %v628 = vpack.c.bf16 %v596, %v593
      %v629 = vpack.c.bf16 %v604, %v601
      %v630 = vpack.c.bf16 %v612, %v609
      %v647 = vunpack.c.l.b16 %v615
      %v648 = vunpack.c.h.b16 %v615
      %v649 = vunpack.c.l.b16 %v616
      %v650 = vunpack.c.h.b16 %v616
      %v651 = vunpack.c.l.b16 %v617
      %v652 = vunpack.c.h.b16 %v617
      %v653 = vunpack.c.l.b16 %v618
      %v654 = vunpack.c.h.b16 %v618
      %v655 = vunpack.c.l.b16 %v619
      %v656 = vunpack.c.h.b16 %v619
      %v657 = vunpack.c.l.b16 %v620
      %v658 = vunpack.c.h.b16 %v620
      %v659 = vunpack.c.l.b16 %v621
      %v660 = vunpack.c.h.b16 %v621
      %v661 = vunpack.c.l.b16 %v622
      %v662 = vunpack.c.h.b16 %v622
      %v663 = vunpack.c.l.b16 %v623
      %v664 = vunpack.c.h.b16 %v623
      %v665 = vunpack.c.l.b16 %v624
      %v666 = vunpack.c.h.b16 %v624
      %v667 = vunpack.c.l.b16 %v625
      %v668 = vunpack.c.h.b16 %v625
      %v669 = vunpack.c.l.b16 %v626
      %v670 = vunpack.c.h.b16 %v626
      %v671 = vunpack.c.l.b16 %v627
      %v672 = vunpack.c.h.b16 %v627
      %v673 = vunpack.c.l.b16 %v628
      %v674 = vunpack.c.h.b16 %v628
      %v675 = vunpack.c.l.b16 %v629
      %v676 = vunpack.c.h.b16 %v629
      %v677 = vunpack.c.l.b16 %v630
      %v678 = vunpack.c.h.b16 %v630
      %v679 = vpack.c.b16 %v647, %v647
      %v680 = vpack.c.b16 %v648, %v648
      %v681 = vpack.c.b16 %v649, %v649
      %v682 = vpack.c.b16 %v650, %v650
      %v683 = vpack.c.b16 %v651, %v651
      %v684 = vpack.c.b16 %v652, %v652
      %v685 = vpack.c.b16 %v653, %v653
      %v686 = vpack.c.b16 %v654, %v654
      %v687 = vpack.c.b16 %v655, %v655
      %v688 = vpack.c.b16 %v656, %v656
      %v689 = vpack.c.b16 %v657, %v657
      %v690 = vpack.c.b16 %v658, %v658
      %v691 = vpack.c.b16 %v659, %v659
      %v692 = vpack.c.b16 %v660, %v660
      %v693 = vpack.c.b16 %v661, %v661
      %v694 = vpack.c.b16 %v662, %v662
      %v695 = vpack.c.b16 %v663, %v663
      %v696 = vpack.c.b16 %v664, %v664
      %v697 = vpack.c.b16 %v665, %v665
      %v698 = vpack.c.b16 %v666, %v666
      %v699 = vpack.c.b16 %v667, %v667
      %v700 = vpack.c.b16 %v668, %v668
      %v701 = vpack.c.b16 %v669, %v669
      %v702 = vpack.c.b16 %v670, %v670
      %v703 = vpack.c.b16 %v671, %v671
      %v704 = vpack.c.b16 %v672, %v672
      %v705 = vpack.c.b16 %v673, %v673
      %v706 = vpack.c.b16 %v674, %v674
      %v707 = vpack.c.b16 %v675, %v675
      %v708 = vpack.c.b16 %v676, %v676
      %v709 = vpack.c.b16 %v677, %v677
      %v710 = vpack.c.b16 %v678, %v678
      %vm743 = vcmask 27648
      %744 = vst.msk [vmem:[%s237] sm:$0xf] %vm743, %v679
      %745 = vst.msk [vmem:[%s237 + $0x4] sm:$0xf] %vm743, %v680
      %746 = vst.msk [vmem:[%s237 + $0x8] sm:$0xf] %vm743, %v681
      %747 = vst.msk [vmem:[%s237 + $0xc] sm:$0xf] %vm743, %v682
      %748 = vst.msk [vmem:[%s237 + $0x10] sm:$0xf] %vm743, %v683
      %749 = vst.msk [vmem:[%s237 + $0x14] sm:$0xf] %vm743, %v684
      %750 = vst.msk [vmem:[%s237 + $0x18] sm:$0xf] %vm743, %v685
      %751 = vst.msk [vmem:[%s237 + $0x1c] sm:$0xf] %vm743, %v686
      %752 = vst.msk [vmem:[%s237 + $0x20] sm:$0xf] %vm743, %v687
      %753 = vst.msk [vmem:[%s237 + $0x24] sm:$0xf] %vm743, %v688
      %754 = vst.msk [vmem:[%s237 + $0x28] sm:$0xf] %vm743, %v689
      %755 = vst.msk [vmem:[%s237 + $0x2c] sm:$0xf] %vm743, %v690
      %756 = vst.msk [vmem:[%s237 + $0x30] sm:$0xf] %vm743, %v691
      %757 = vst.msk [vmem:[%s237 + $0x34] sm:$0xf] %vm743, %v692
      %758 = vst.msk [vmem:[%s237 + $0x38] sm:$0xf] %vm743, %v693
      %759 = vst.msk [vmem:[%s237 + $0x3c] sm:$0xf] %vm743, %v694
      %760 = vst.msk [vmem:[%s237 + $0x40] sm:$0xf] %vm743, %v695
      %761 = vst.msk [vmem:[%s237 + $0x44] sm:$0xf] %vm743, %v696
      %762 = vst.msk [vmem:[%s237 + $0x48] sm:$0xf] %vm743, %v697
      %763 = vst.msk [vmem:[%s237 + $0x4c] sm:$0xf] %vm743, %v698
      %764 = vst.msk [vmem:[%s237 + $0x50] sm:$0xf] %vm743, %v699
      %765 = vst.msk [vmem:[%s237 + $0x54] sm:$0xf] %vm743, %v700
      %766 = vst.msk [vmem:[%s237 + $0x58] sm:$0xf] %vm743, %v701
      %767 = vst.msk [vmem:[%s237 + $0x5c] sm:$0xf] %vm743, %v702
      %768 = vst.msk [vmem:[%s237 + $0x60] sm:$0xf] %vm743, %v703
      %769 = vst.msk [vmem:[%s237 + $0x64] sm:$0xf] %vm743, %v704
      %770 = vst.msk [vmem:[%s237 + $0x68] sm:$0xf] %vm743, %v705
      %771 = vst.msk [vmem:[%s237 + $0x6c] sm:$0xf] %vm743, %v706
      %772 = vst.msk [vmem:[%s237 + $0x70] sm:$0xf] %vm743, %v707
      %773 = vst.msk [vmem:[%s237 + $0x74] sm:$0xf] %vm743, %v708
      %774 = vst.msk [vmem:[%s237 + $0x78] sm:$0xf] %vm743, %v709
      %775 = vst.msk [vmem:[%s237 + $0x7c] sm:$0xf] %vm743, %v710
      %s776 = smul.u32 %s17, 256
      %v777 = vlaneseq
      %v778 = vshrl.u32 %v777, 7
      %v779 = vadd.s32 %v778, 8
      %v780 = vadd.s32 %v778, 16
      %v781 = vadd.s32 %v778, 24
      %v782 = vadd.s32 %v778, 32
      %v783 = vadd.s32 %v778, 40
      %v784 = vadd.s32 %v778, 48
      %v785 = vadd.s32 %v778, 56
      %v786 = vadd.s32 %v778, 64
      %v787 = vadd.s32 %v778, 72
      %v788 = vadd.s32 %v778, 80
      %v789 = vadd.s32 %v778, 88
      %v790 = vadd.s32 %v778, 96
      %v791 = vadd.s32 %v778, 104
      %v792 = vadd.s32 %v778, 112
      %v793 = vadd.s32 %v778, 120
      %v794 = vadd.s32 %v778, 128
      %v795 = vadd.s32 %v778, 136
      %v796 = vadd.s32 %v778, 144
      %v797 = vadd.s32 %v778, 152
      %v798 = vadd.s32 %v778, 160
      %v799 = vadd.s32 %v778, 168
      %v800 = vadd.s32 %v778, 176
      %v801 = vadd.s32 %v778, 184
      %v802 = vadd.s32 %v778, 192
      %v803 = vadd.s32 %v778, 200
      %v804 = vadd.s32 %v778, 208
      %v805 = vadd.s32 %v778, 216
      %v806 = vadd.s32 %v778, 224
      %v807 = vadd.s32 %v778, 232
      %v808 = vadd.s32 %v778, 240
      %v809 = vadd.s32 %v778, 248
      %v810 = vstv %s776
      %v811 = vadd.s32 %v810, %v778
      %v812 = vadd.s32 %v810, %v779
      %v813 = vadd.s32 %v810, %v780
      %v814 = vadd.s32 %v810, %v781
      %v815 = vadd.s32 %v810, %v782
      %v816 = vadd.s32 %v810, %v783
      %v817 = vadd.s32 %v810, %v784
      %v818 = vadd.s32 %v810, %v785
      %v819 = vadd.s32 %v810, %v786
      %v820 = vadd.s32 %v810, %v787
      %v821 = vadd.s32 %v810, %v788
      %v822 = vadd.s32 %v810, %v789
      %v823 = vadd.s32 %v810, %v790
      %v824 = vadd.s32 %v810, %v791
      %v825 = vadd.s32 %v810, %v792
      %v826 = vadd.s32 %v810, %v793
      %v827 = vadd.s32 %v810, %v794
      %v828 = vadd.s32 %v810, %v795
      %v829 = vadd.s32 %v810, %v796
      %v830 = vadd.s32 %v810, %v797
      %v831 = vadd.s32 %v810, %v798
      %v832 = vadd.s32 %v810, %v799
      %v833 = vadd.s32 %v810, %v800
      %v834 = vadd.s32 %v810, %v801
      %v835 = vadd.s32 %v810, %v802
      %v836 = vadd.s32 %v810, %v803
      %v837 = vadd.s32 %v810, %v804
      %v838 = vadd.s32 %v810, %v805
      %v839 = vadd.s32 %v810, %v806
      %v840 = vadd.s32 %v810, %v807
      %v841 = vadd.s32 %v810, %v808
      %v842 = vadd.s32 %v810, %v809
      %vm843 = vcmp.lt.s32.totalorder %v811, 512
      %vm844 = vcmp.lt.s32.totalorder %v812, 512
      %vm845 = vcmp.lt.s32.totalorder %v813, 512
      %vm846 = vcmp.lt.s32.totalorder %v814, 512
      %vm847 = vcmp.lt.s32.totalorder %v815, 512
      %vm848 = vcmp.lt.s32.totalorder %v816, 512
      %vm849 = vcmp.lt.s32.totalorder %v817, 512
      %vm850 = vcmp.lt.s32.totalorder %v818, 512
      %vm851 = vcmp.lt.s32.totalorder %v819, 512
      %vm852 = vcmp.lt.s32.totalorder %v820, 512
      %vm853 = vcmp.lt.s32.totalorder %v821, 512
      %vm854 = vcmp.lt.s32.totalorder %v822, 512
      %vm855 = vcmp.lt.s32.totalorder %v823, 512
      %vm856 = vcmp.lt.s32.totalorder %v824, 512
      %vm857 = vcmp.lt.s32.totalorder %v825, 512
      %vm858 = vcmp.lt.s32.totalorder %v826, 512
      %vm859 = vcmp.lt.s32.totalorder %v827, 512
      %vm860 = vcmp.lt.s32.totalorder %v828, 512
      %vm861 = vcmp.lt.s32.totalorder %v829, 512
      %vm862 = vcmp.lt.s32.totalorder %v830, 512
      %vm863 = vcmp.lt.s32.totalorder %v831, 512
      %vm864 = vcmp.lt.s32.totalorder %v832, 512
      %vm865 = vcmp.lt.s32.totalorder %v833, 512
      %vm866 = vcmp.lt.s32.totalorder %v834, 512
      %vm867 = vcmp.lt.s32.totalorder %v835, 512
      %vm868 = vcmp.lt.s32.totalorder %v836, 512
      %vm869 = vcmp.lt.s32.totalorder %v837, 512
      %vm870 = vcmp.lt.s32.totalorder %v838, 512
      %vm871 = vcmp.lt.s32.totalorder %v839, 512
      %vm872 = vcmp.lt.s32.totalorder %v840, 512
      %vm873 = vcmp.lt.s32.totalorder %v841, 512
      %vm874 = vcmp.lt.s32.totalorder %v842, 512
      %v875 = vsel %vm843, 1, 0
      %v876 = vsel %vm844, 1, 0
      %v877 = vsel %vm845, 1, 0
      %v878 = vsel %vm846, 1, 0
      %v879 = vsel %vm847, 1, 0
      %v880 = vsel %vm848, 1, 0
      %v881 = vsel %vm849, 1, 0
      %v882 = vsel %vm850, 1, 0
      %v883 = vsel %vm851, 1, 0
      %v884 = vsel %vm852, 1, 0
      %v885 = vsel %vm853, 1, 0
      %v886 = vsel %vm854, 1, 0
      %v887 = vsel %vm855, 1, 0
      %v888 = vsel %vm856, 1, 0
      %v889 = vsel %vm857, 1, 0
      %v890 = vsel %vm858, 1, 0
      %v891 = vsel %vm859, 1, 0
      %v892 = vsel %vm860, 1, 0
      %v893 = vsel %vm861, 1, 0
      %v894 = vsel %vm862, 1, 0
      %v895 = vsel %vm863, 1, 0
      %v896 = vsel %vm864, 1, 0
      %v897 = vsel %vm865, 1, 0
      %v898 = vsel %vm866, 1, 0
      %v899 = vsel %vm867, 1, 0
      %v900 = vsel %vm868, 1, 0
      %v901 = vsel %vm869, 1, 0
      %v902 = vsel %vm870, 1, 0
      %v903 = vsel %vm871, 1, 0
      %v904 = vsel %vm872, 1, 0
      %v905 = vsel %vm873, 1, 0
      %v906 = vsel %vm874, 1, 0
      %vm907 = vcmp.eq.s32.totalorder %v875, 1
      %vm908 = vcmp.eq.s32.totalorder %v876, 1
      %vm909 = vcmp.eq.s32.totalorder %v877, 1
      %vm910 = vcmp.eq.s32.totalorder %v878, 1
      %vm911 = vcmp.eq.s32.totalorder %v879, 1
      %vm912 = vcmp.eq.s32.totalorder %v880, 1
      %vm913 = vcmp.eq.s32.totalorder %v881, 1
      %vm914 = vcmp.eq.s32.totalorder %v882, 1
      %vm915 = vcmp.eq.s32.totalorder %v883, 1
      %vm916 = vcmp.eq.s32.totalorder %v884, 1
      %vm917 = vcmp.eq.s32.totalorder %v885, 1
      %vm918 = vcmp.eq.s32.totalorder %v886, 1
      %vm919 = vcmp.eq.s32.totalorder %v887, 1
      %vm920 = vcmp.eq.s32.totalorder %v888, 1
      %vm921 = vcmp.eq.s32.totalorder %v889, 1
      %vm922 = vcmp.eq.s32.totalorder %v890, 1
      %vm923 = vcmp.eq.s32.totalorder %v891, 1
      %vm924 = vcmp.eq.s32.totalorder %v892, 1
      %vm925 = vcmp.eq.s32.totalorder %v893, 1
      %vm926 = vcmp.eq.s32.totalorder %v894, 1
      %vm927 = vcmp.eq.s32.totalorder %v895, 1
      %vm928 = vcmp.eq.s32.totalorder %v896, 1
      %vm929 = vcmp.eq.s32.totalorder %v897, 1
      %vm930 = vcmp.eq.s32.totalorder %v898, 1
      %vm931 = vcmp.eq.s32.totalorder %v899, 1
      %vm932 = vcmp.eq.s32.totalorder %v900, 1
      %vm933 = vcmp.eq.s32.totalorder %v901, 1
      %vm934 = vcmp.eq.s32.totalorder %v902, 1
      %vm935 = vcmp.eq.s32.totalorder %v903, 1
      %vm936 = vcmp.eq.s32.totalorder %v904, 1
      %vm937 = vcmp.eq.s32.totalorder %v905, 1
      %vm938 = vcmp.eq.s32.totalorder %v906, 1
      %v939 = vsel %vm907, %v489, 0.0
      %v940 = vsel %vm908, %v492, 0.0
      %v941 = vsel %vm909, %v497, 0.0
      %v942 = vsel %vm910, %v500, 0.0
      %v943 = vsel %vm911, %v505, 0.0
      %v944 = vsel %vm912, %v508, 0.0
      %v945 = vsel %vm913, %v513, 0.0
      %v946 = vsel %vm914, %v516, 0.0
      %v947 = vsel %vm915, %v521, 0.0
      %v948 = vsel %vm916, %v524, 0.0
      %v949 = vsel %vm917, %v529, 0.0
      %v950 = vsel %vm918, %v532, 0.0
      %v951 = vsel %vm919, %v537, 0.0
      %v952 = vsel %vm920, %v540, 0.0
      %v953 = vsel %vm921, %v545, 0.0
      %v954 = vsel %vm922, %v548, 0.0
      %v955 = vsel %vm923, %v553, 0.0
      %v956 = vsel %vm924, %v556, 0.0
      %v957 = vsel %vm925, %v561, 0.0
      %v958 = vsel %vm926, %v564, 0.0
      %v959 = vsel %vm927, %v569, 0.0
      %v960 = vsel %vm928, %v572, 0.0
      %v961 = vsel %vm929, %v577, 0.0
      %v962 = vsel %vm930, %v580, 0.0
      %v963 = vsel %vm931, %v585, 0.0
      %v964 = vsel %vm932, %v588, 0.0
      %v965 = vsel %vm933, %v593, 0.0
      %v966 = vsel %vm934, %v596, 0.0
      %v967 = vsel %vm935, %v601, 0.0
      %v968 = vsel %vm936, %v604, 0.0
      %v969 = vsel %vm937, %v609, 0.0
      %v970 = vsel %vm938, %v612, 0.0
      %vm971 = vcmask 31744
      %v972 = vsel %vm971, %v939, 0.0
      %v973 = vsel %vm971, %v940, 0.0
      %v974 = vadd.f32 %v972, %v973
      %v975 = vsel %vm971, %v941, 0.0
      %v976 = vadd.f32 %v974, %v975
      %v977 = vsel %vm971, %v942, 0.0
      %v978 = vadd.f32 %v976, %v977
      %v979 = vsel %vm971, %v943, 0.0
      %v980 = vadd.f32 %v978, %v979
      %v981 = vsel %vm971, %v944, 0.0
      %v982 = vadd.f32 %v980, %v981
      %v983 = vsel %vm971, %v945, 0.0
      %v984 = vadd.f32 %v982, %v983
      %v985 = vsel %vm971, %v946, 0.0
      %v986 = vadd.f32 %v984, %v985
      %v987 = vsel %vm971, %v947, 0.0
      %v988 = vadd.f32 %v986, %v987
      %v989 = vsel %vm971, %v948, 0.0
      %v990 = vadd.f32 %v988, %v989
      %v991 = vsel %vm971, %v949, 0.0
      %v992 = vadd.f32 %v990, %v991
      %v993 = vsel %vm971, %v950, 0.0
      %v994 = vadd.f32 %v992, %v993
      %v995 = vsel %vm971, %v951, 0.0
      %v996 = vadd.f32 %v994, %v995
      %v997 = vsel %vm971, %v952, 0.0
      %v998 = vadd.f32 %v996, %v997
      %v999 = vsel %vm971, %v953, 0.0
      %v1000 = vadd.f32 %v998, %v999
      %v1001 = vsel %vm971, %v954, 0.0
      %v1002 = vadd.f32 %v1000, %v1001
      %v1003 = vsel %vm971, %v955, 0.0
      %v1004 = vadd.f32 %v1002, %v1003
      %v1005 = vsel %vm971, %v956, 0.0
      %v1006 = vadd.f32 %v1004, %v1005
      %v1007 = vsel %vm971, %v957, 0.0
      %v1008 = vadd.f32 %v1006, %v1007
      %v1009 = vsel %vm971, %v958, 0.0
      %v1010 = vadd.f32 %v1008, %v1009
      %v1011 = vsel %vm971, %v959, 0.0
      %v1012 = vadd.f32 %v1010, %v1011
      %v1013 = vsel %vm971, %v960, 0.0
      %v1014 = vadd.f32 %v1012, %v1013
      %v1015 = vsel %vm971, %v961, 0.0
      %v1016 = vadd.f32 %v1014, %v1015
      %v1017 = vsel %vm971, %v962, 0.0
      %v1018 = vadd.f32 %v1016, %v1017
      %v1019 = vsel %vm971, %v963, 0.0
      %v1020 = vadd.f32 %v1018, %v1019
      %v1021 = vsel %vm971, %v964, 0.0
      %v1022 = vadd.f32 %v1020, %v1021
      %v1023 = vsel %vm971, %v965, 0.0
      %v1024 = vadd.f32 %v1022, %v1023
      %v1025 = vsel %vm971, %v966, 0.0
      %v1026 = vadd.f32 %v1024, %v1025
      %v1027 = vsel %vm971, %v967, 0.0
      %v1028 = vadd.f32 %v1026, %v1027
      %v1029 = vsel %vm971, %v968, 0.0
      %v1030 = vadd.f32 %v1028, %v1029
      %v1031 = vsel %vm971, %v969, 0.0
      %v1032 = vadd.f32 %v1030, %v1031
      %v1033 = vsel %vm971, %v970, 0.0
      %v1034 = vadd.f32 %v1032, %v1033
      %v1035 = vrot.slane %v1034, 4
      %v1036 = vadd.f32 %v1034, %v1035
      %v1037 = vrot.slane %v1036, 2
      %v1038 = vadd.f32 %v1036, %v1037
      %v1039 = vrot.slane %v1038, 1
      %v1040 = vadd.f32 %v1038, %v1039
      %vm1041 = vcmask 24576
      %1042 = vst.msk [vmem:[%s241] sm:$0x1] %vm1041, %v1040
      %v1043 = vmul.f32 %v939, %v939
      %v1044 = vmul.f32 %v940, %v940
      %v1045 = vmul.f32 %v941, %v941
      %v1046 = vmul.f32 %v942, %v942
      %v1047 = vmul.f32 %v943, %v943
      %v1048 = vmul.f32 %v944, %v944
      %v1049 = vmul.f32 %v945, %v945
      %v1050 = vmul.f32 %v946, %v946
      %v1051 = vmul.f32 %v947, %v947
      %v1052 = vmul.f32 %v948, %v948
      %v1053 = vmul.f32 %v949, %v949
      %v1054 = vmul.f32 %v950, %v950
      %v1055 = vmul.f32 %v951, %v951
      %v1056 = vmul.f32 %v952, %v952
      %v1057 = vmul.f32 %v953, %v953
      %v1058 = vmul.f32 %v954, %v954
      %v1059 = vmul.f32 %v955, %v955
      %v1060 = vmul.f32 %v956, %v956
      %v1061 = vmul.f32 %v957, %v957
      %v1062 = vmul.f32 %v958, %v958
      %v1063 = vmul.f32 %v959, %v959
      %v1064 = vmul.f32 %v960, %v960
      %v1065 = vmul.f32 %v961, %v961
      %v1066 = vmul.f32 %v962, %v962
      %v1067 = vmul.f32 %v963, %v963
      %v1068 = vmul.f32 %v964, %v964
      %v1069 = vmul.f32 %v965, %v965
      %v1070 = vmul.f32 %v966, %v966
      %v1071 = vmul.f32 %v967, %v967
      %v1072 = vmul.f32 %v968, %v968
      %v1073 = vmul.f32 %v969, %v969
      %v1074 = vmul.f32 %v970, %v970
      %v1075 = vsel %vm971, %v1043, 0.0
      %v1076 = vsel %vm971, %v1044, 0.0
      %v1077 = vadd.f32 %v1075, %v1076
      %v1078 = vsel %vm971, %v1045, 0.0
      %v1079 = vadd.f32 %v1077, %v1078
      %v1080 = vsel %vm971, %v1046, 0.0
      %v1081 = vadd.f32 %v1079, %v1080
      %v1082 = vsel %vm971, %v1047, 0.0
      %v1083 = vadd.f32 %v1081, %v1082
      %v1084 = vsel %vm971, %v1048, 0.0
      %v1085 = vadd.f32 %v1083, %v1084
      %v1086 = vsel %vm971, %v1049, 0.0
      %v1087 = vadd.f32 %v1085, %v1086
      %v1088 = vsel %vm971, %v1050, 0.0
      %v1089 = vadd.f32 %v1087, %v1088
      %v1090 = vsel %vm971, %v1051, 0.0
      %v1091 = vadd.f32 %v1089, %v1090
      %v1092 = vsel %vm971, %v1052, 0.0
      %v1093 = vadd.f32 %v1091, %v1092
      %v1094 = vsel %vm971, %v1053, 0.0
      %v1095 = vadd.f32 %v1093, %v1094
      %v1096 = vsel %vm971, %v1054, 0.0
      %v1097 = vadd.f32 %v1095, %v1096
      %v1098 = vsel %vm971, %v1055, 0.0
      %v1099 = vadd.f32 %v1097, %v1098
      %v1100 = vsel %vm971, %v1056, 0.0
      %v1101 = vadd.f32 %v1099, %v1100
      %v1102 = vsel %vm971, %v1057, 0.0
      %v1103 = vadd.f32 %v1101, %v1102
      %v1104 = vsel %vm971, %v1058, 0.0
      %v1105 = vadd.f32 %v1103, %v1104
      %v1106 = vsel %vm971, %v1059, 0.0
      %v1107 = vadd.f32 %v1105, %v1106
      %v1108 = vsel %vm971, %v1060, 0.0
      %v1109 = vadd.f32 %v1107, %v1108
      %v1110 = vsel %vm971, %v1061, 0.0
      %v1111 = vadd.f32 %v1109, %v1110
      %v1112 = vsel %vm971, %v1062, 0.0
      %v1113 = vadd.f32 %v1111, %v1112
      %v1114 = vsel %vm971, %v1063, 0.0
      %v1115 = vadd.f32 %v1113, %v1114
      %v1116 = vsel %vm971, %v1064, 0.0
      %v1117 = vadd.f32 %v1115, %v1116
      %v1118 = vsel %vm971, %v1065, 0.0
      %v1119 = vadd.f32 %v1117, %v1118
      %v1120 = vsel %vm971, %v1066, 0.0
      %v1121 = vadd.f32 %v1119, %v1120
      %v1122 = vsel %vm971, %v1067, 0.0
      %v1123 = vadd.f32 %v1121, %v1122
      %v1124 = vsel %vm971, %v1068, 0.0
      %v1125 = vadd.f32 %v1123, %v1124
      %v1126 = vsel %vm971, %v1069, 0.0
      %v1127 = vadd.f32 %v1125, %v1126
      %v1128 = vsel %vm971, %v1070, 0.0
      %v1129 = vadd.f32 %v1127, %v1128
      %v1130 = vsel %vm971, %v1071, 0.0
      %v1131 = vadd.f32 %v1129, %v1130
      %v1132 = vsel %vm971, %v1072, 0.0
      %v1133 = vadd.f32 %v1131, %v1132
      %v1134 = vsel %vm971, %v1073, 0.0
      %v1135 = vadd.f32 %v1133, %v1134
      %v1136 = vsel %vm971, %v1074, 0.0
      %v1137 = vadd.f32 %v1135, %v1136
      %v1138 = vrot.slane %v1137, 4
      %v1139 = vadd.f32 %v1137, %v1138
      %v1140 = vrot.slane %v1139, 2
      %v1141 = vadd.f32 %v1139, %v1140
      %v1142 = vrot.slane %v1141, 1
      %v1143 = vadd.f32 %v1141, %v1142
      %1144 = vst.msk [vmem:[%s244] sm:$0x1] %vm1041, %v1143
      %s1145 = smul.u32 32, %s17
      %p1146 = scmp.lt.s32.totalorder %s1145, 63
      %s1147 = scalar_select %p1146, %s1145, 63
      %s1148 = smul.addr %s1147, 4
      %s1149 = scalar_lea.vmem %s3, %s1148
      %p1150 = scmp.lt.s32.totalorder %s17, 1
      %s1151 = scalar_select %p1150, %s17, 1
      %s1152 = scalar_lea.vmem %s4, %s1151
      %p1153 = scmp.lt.s32.totalorder %s17, 1
      %s1154 = scalar_select %p1153, %s17, 1
      %s1155 = scalar_lea.vmem %s5, %s1154
      // Predicated region
      $region33: #{bottleneck_forward.5} parent=31 // pred_check
        %p1156 = pneg %p103
      $region34: #{bottleneck_forward.5} parent=31 // pred_check_branch
        %1158 = sbr.rel (%p1156) target = $region36
      $region35: #{bottleneck_forward.5} parent=31 // pred_region
        %s1159 = smul.u32 32, %s17
      $region36: #{bottleneck_forward.5} parent=31 // pred_fallthru
        _
      // Predicated region
      $region37: #{bottleneck_forward.5} parent=31 // pred_check
        %p1160 = pneg %p129
      $region38: #{bottleneck_forward.5} parent=31 // pred_check_branch
        %1162 = sbr.rel (%p1160) target = $region40
      $region39: #{bottleneck_forward.5} parent=31 // pred_region
        _
      $region40: #{bottleneck_forward.5} parent=31 // pred_fallthru
        _
      // Predicated region
      $region41: #{bottleneck_forward.5} parent=31 // pred_check
        %p1163 = pneg %p155
      $region42: #{bottleneck_forward.5} parent=31 // pred_check_branch
        %1165 = sbr.rel (%p1163) target = $region44
      $region43: #{bottleneck_forward.5} parent=31 // pred_region
        _
      $region44: #{bottleneck_forward.5} parent=31 // pred_fallthru
        _
    $region32: #{bottleneck_forward.5} parent=5 // pred_fallthru
      _
    %p1166 = scmp.le.s32.totalorder 2, %s12
    // Predicated region
    $region45: #{bottleneck_forward.5} parent=5 // pred_check
      %p1167 = pneg %p1166
    $region46: #{bottleneck_forward.5} parent=5 // pred_check_branch
      %1169 = sbr.rel (%p1167) target = $region48
    $region47: #{bottleneck_forward.5} parent=5 // pred_region
      %s1170 = ssub.s32 %s12, 2
      // Predicated region
      $region49: #{bottleneck_forward.5} parent=47 // pred_check
        %p1171 = pneg %p109
      $region50: #{bottleneck_forward.5} parent=47 // pred_check_branch
        %1173 = sbr.rel (%p1171) target = $region52
      $region51: #{bottleneck_forward.5} parent=47 // pred_region
        %s1174 = smul.u32 32, %s18
        %p1175 = scmp.lt.s32.totalorder %s1174, 63
        %s1176 = scalar_select %p1175, %s1174, 63
        %s1177 = smul.addr %s1176, 4
        %s1178 = scalar_lea.vmem %s3, %s1177
      $region52: #{bottleneck_forward.5} parent=47 // pred_fallthru
        _
      // Predicated region
      $region53: #{bottleneck_forward.5} parent=47 // pred_check
        %p1179 = pneg %p135
      $region54: #{bottleneck_forward.5} parent=47 // pred_check_branch
        %1181 = sbr.rel (%p1179) target = $region56
      $region55: #{bottleneck_forward.5} parent=47 // pred_region
        %p1182 = scmp.lt.s32.totalorder %s18, 1
        %s1183 = scalar_select %p1182, %s18, 1
        %s1184 = scalar_lea.vmem %s4, %s1183
      $region56: #{bottleneck_forward.5} parent=47 // pred_fallthru
        _
      // Predicated region
      $region57: #{bottleneck_forward.5} parent=47 // pred_check
        %p1185 = pneg %p161
      $region58: #{bottleneck_forward.5} parent=47 // pred_check_branch
        %1187 = sbr.rel (%p1185) target = $region60
      $region59: #{bottleneck_forward.5} parent=47 // pred_region
        %p1188 = scmp.lt.s32.totalorder %s18, 1
        %s1189 = scalar_select %p1188, %s18, 1
        %s1190 = scalar_lea.vmem %s5, %s1189
      $region60: #{bottleneck_forward.5} parent=47 // pred_fallthru
        _
    $region48: #{bottleneck_forward.5} parent=5 // pred_fallthru
      _
  $region6: #{bottleneck_forward.5} parent=0 // loop_footer
    %s16 = sadd.s32 1, %s12
  $region7: #{bottleneck_forward.5} parent=0 // loop_footer_branch
    %11 = sbr.rel target = $region3
  $region8: #{bottleneck_forward.5} parent=0 // loop_exit
    _

// kernel: bottleneck_forward.7
$region0: #{bottleneck_forward.7}
  #allocation0 [shape = 'u32[]', space=smem, size = 0x4, offset = 0x4, fixed_abs, tag = 'smem constant byte address 0x4 - core index']
  #allocation1 [shape = 'u32[144,128]{1,0:T(1,128)}', space=vmem, size = 0x12000, scoped, tag = 'internal scratch']
  %s0 = inlined_call_operand.vmem [shape: bf16[512,4], index: 0, kind: input, shape index: {}]
  %s1 = inlined_call_operand.vmem [shape: f32[1,4], index: 1, kind: input, shape index: {}]
  %s2 = inlined_call_operand.vmem [shape: bf16[4,16], index: 2, kind: input, shape index: {}]
  %s3 = inlined_call_operand.vmem [shape: f32[512,16], index: 3, kind: input, shape index: {}]
  %s4 = inlined_call_operand.vmem [shape: f32[512,16], index: 4, kind: output, shape index: {}]
  %s5 = sld [smem:[#allocation0]]
  $region49: #{bottleneck_forward.7} parent=0
    _
  %s7 = ssub.s32 1, %s5
  %s8 = scalar_select 0, %s7, %s5
  loop: start=0, step=1, limit=4
  $region2: #{bottleneck_forward.7} parent=0 // loop_pre_header
    _
  $region3: #{bottleneck_forward.7} parent=0 // loop_header
    %s10 = sphi 0, %s14
    %p11 = scmp.ge.s32.totalorder %s10, 4
    %s20 = sphi 0, %s22
    %s23 = sphi 0, %s20
    %s24 = sphi 0, %s23
    %s40 = sphi 0, %s24
    %s44 = sphi 0, %s44
    %s46 = sphi 0, %s44
    %s47 = sphi 0, %s46
    %s61 = sphi 0, %s47
    %s65 = sphi 0, %s65
    %s67 = sphi 0, %s65
    %s68 = sphi 0, %s67
    %s82 = sphi 0, %s68
    %s88 = sphi 0, %s90
    %s91 = sphi 0, %s88
    %s92 = sphi 0, %s91
    %s108 = sphi 0, %s92
    %s114 = sphi 0, %s116
    %s117 = sphi 0, %s114
    %s118 = sphi 0, %s117
    %s134 = sphi 0, %s118
  $region4: #{bottleneck_forward.7} parent=0 // loop_header_branch
    %13 = sbr.rel (%p11) target = $region8
  $region5: #{bottleneck_forward.7} parent=0 // loop_body
    %s15 = ssub.s32 %s10, 1
    %s16 = ssub.s32 %s10, 2
    %s17 = sadd.s32 %s10, 1
    %s18 = ssub.s32 %s10, %s17
    %p19 = scmp.eq.s32.totalorder %s18, 0
    %s21 = sadd.s32 %s20, 1
    %s22 = scalar_select %p19, %s20, %s21
    %p25 = pneg %p19
    %p26 = scmp.eq.s32.totalorder %s10, 1
    %p27 = por %p25, %p26
    %p28 = scmp.ne.s32.totalorder %s20, %s23
    %p29 = scmp.eq.s32.totalorder %s10, 0
    %p30 = por %p28, %p29
    %p31 = scmp.ne.s32.totalorder %s20, %s23
    %p32 = scmp.eq.s32.totalorder %s15, 1
    %p33 = por %p31, %p32
    %p34 = scmp.ne.s32.totalorder %s23, %s24
    %p35 = scmp.eq.s32.totalorder %s15, 0
    %p36 = por %p34, %p35
    %p37 = scmp.ne.s32.totalorder %s23, %s24
    %p38 = scmp.eq.s32.totalorder %s16, 1
    %p39 = por %p37, %p38
    %p41 = scmp.ne.s32.totalorder %s24, %s40
    %p42 = scmp.eq.s32.totalorder %s16, 0
    %p43 = por %p41, %p42
    %s45 = sadd.s32 %s44, 1
    %p48 = scmp.eq.s32.totalorder %s10, 1
    %p49 = scmp.ne.s32.totalorder %s44, %s46
    %p50 = scmp.eq.s32.totalorder %s10, 0
    %p51 = por %p49, %p50
    %p52 = scmp.ne.s32.totalorder %s44, %s46
    %p53 = scmp.eq.s32.totalorder %s15, 1
    %p54 = por %p52, %p53
    %p55 = scmp.ne.s32.totalorder %s46, %s47
    %p56 = scmp.eq.s32.totalorder %s15, 0
    %p57 = por %p55, %p56
    %p58 = scmp.ne.s32.totalorder %s46, %s47
    %p59 = scmp.eq.s32.totalorder %s16, 1
    %p60 = por %p58, %p59
    %p62 = scmp.ne.s32.totalorder %s47, %s61
    %p63 = scmp.eq.s32.totalorder %s16, 0
    %p64 = por %p62, %p63
    %s66 = sadd.s32 %s65, 1
    %p69 = scmp.eq.s32.totalorder %s10, 1
    %p70 = scmp.ne.s32.totalorder %s65, %s67
    %p71 = scmp.eq.s32.totalorder %s10, 0
    %p72 = por %p70, %p71
    %p73 = scmp.ne.s32.totalorder %s65, %s67
    %p74 = scmp.eq.s32.totalorder %s15, 1
    %p75 = por %p73, %p74
    %p76 = scmp.ne.s32.totalorder %s67, %s68
    %p77 = scmp.eq.s32.totalorder %s15, 0
    %p78 = por %p76, %p77
    %p79 = scmp.ne.s32.totalorder %s67, %s68
    %p80 = scmp.eq.s32.totalorder %s16, 1
    %p81 = por %p79, %p80
    %p83 = scmp.ne.s32.totalorder %s68, %s82
    %p84 = scmp.eq.s32.totalorder %s16, 0
    %p85 = por %p83, %p84
    %s86 = ssub.s32 %s10, %s17
    %p87 = scmp.eq.s32.totalorder %s86, 0
    %s89 = sadd.s32 %s88, 1
    %s90 = scalar_select %p87, %s88, %s89
    %p93 = pneg %p87
    %p94 = scmp.eq.s32.totalorder %s10, 1
    %p95 = por %p93, %p94
    %p96 = scmp.ne.s32.totalorder %s88, %s91
    %p97 = scmp.eq.s32.totalorder %s10, 0
    %p98 = por %p96, %p97
    %p99 = scmp.ne.s32.totalorder %s88, %s91
    %p100 = scmp.eq.s32.totalorder %s15, 1
    %p101 = por %p99, %p100
    %p102 = scmp.ne.s32.totalorder %s91, %s92
    %p103 = scmp.eq.s32.totalorder %s15, 0
    %p104 = por %p102, %p103
    %p105 = scmp.ne.s32.totalorder %s91, %s92
    %p106 = scmp.eq.s32.totalorder %s16, 1
    %p107 = por %p105, %p106
    %p109 = scmp.ne.s32.totalorder %s92, %s108
    %p110 = scmp.eq.s32.totalorder %s16, 0
    %p111 = por %p109, %p110
    %s112 = ssub.s32 %s10, %s17
    %p113 = scmp.eq.s32.totalorder %s112, 0
    %s115 = sadd.s32 %s114, 1
    %s116 = scalar_select %p113, %s114, %s115
    %p119 = pneg %p113
    %p120 = scmp.eq.s32.totalorder %s10, 1
    %p121 = por %p119, %p120
    %p122 = scmp.ne.s32.totalorder %s114, %s117
    %p123 = scmp.eq.s32.totalorder %s10, 0
    %p124 = por %p122, %p123
    %p125 = scmp.ne.s32.totalorder %s114, %s117
    %p126 = scmp.eq.s32.totalorder %s15, 1
    %p127 = por %p125, %p126
    %p128 = scmp.ne.s32.totalorder %s117, %s118
    %p129 = scmp.eq.s32.totalorder %s15, 0
    %p130 = por %p128, %p129
    %p131 = scmp.ne.s32.totalorder %s117, %s118
    %p132 = scmp.eq.s32.totalorder %s16, 1
    %p133 = por %p131, %p132
    %p135 = scmp.ne.s32.totalorder %s118, %s134
    %p136 = scmp.eq.s32.totalorder %s16, 0
    %p137 = por %p135, %p136
    %p138 = scmp.le.s32.totalorder 1, %s10
    %p139 = scmp.lt.s32.totalorder %s10, 3
    %p140 = pnand %p138, %p139
    %p141 = pneg %p140
    // Predicated region
    $region9: #{bottleneck_forward.7} parent=5 // pred_check
      _
    $region10: #{bottleneck_forward.7} parent=5 // pred_check_branch
      %143 = sbr.rel (%p140) target = $region12
    $region11: #{bottleneck_forward.7} parent=5 // pred_region
      %s144 = ssub.s32 %s10, 1
      // Predicated region
      $region13: #{bottleneck_forward.7} parent=11 // pred_check
        %p145 = pneg %p57
      $region14: #{bottleneck_forward.7} parent=11 // pred_check_branch
        %147 = sbr.rel (%p145) target = $region16
      $region15: #{bottleneck_forward.7} parent=11 // pred_region
        _
      $region16: #{bottleneck_forward.7} parent=11 // pred_fallthru
        _
      // Predicated region
      $region17: #{bottleneck_forward.7} parent=11 // pred_check
        %p148 = pneg %p78
      $region18: #{bottleneck_forward.7} parent=11 // pred_check_branch
        %150 = sbr.rel (%p148) target = $region20
      $region19: #{bottleneck_forward.7} parent=11 // pred_region
        _
      $region20: #{bottleneck_forward.7} parent=11 // pred_fallthru
        _
    $region12: #{bottleneck_forward.7} parent=5 // pred_fallthru
      _
    %p151 = scmp.lt.s32.totalorder %s10, 2
    // Predicated region
    $region21: #{bottleneck_forward.7} parent=5 // pred_check
      %p152 = pneg %p151
    $region22: #{bottleneck_forward.7} parent=5 // pred_check_branch
      %154 = sbr.rel (%p152) target = $region24
    $region23: #{bottleneck_forward.7} parent=5 // pred_region
      // Predicated region
      $region25: #{bottleneck_forward.7} parent=23 // pred_check
        %p155 = pneg %p30
      $region26: #{bottleneck_forward.7} parent=23 // pred_check_branch
        %157 = sbr.rel (%p155) target = $region28
      $region27: #{bottleneck_forward.7} parent=23 // pred_region
        %s158 = smul.u32 32, %s10
        %p159 = scmp.lt.s32.totalorder %s158, 63
        %s160 = scalar_select %p159, %s158, 63
        %s161 = smul.addr %s160, 4
        %s162 = scalar_lea.vmem %s0, %s161
        %s163 = smul.u32 32, %s10
      $region28: #{bottleneck_forward.7} parent=23 // pred_fallthru
        _
      // Predicated region
      $region29: #{bottleneck_forward.7} parent=23 // pred_check
        %p164 = pneg %p98
      $region30: #{bottleneck_forward.7} parent=23 // pred_check_branch
        %166 = sbr.rel (%p164) target = $region32
      $region31: #{bottleneck_forward.7} parent=23 // pred_region
        %s167 = smul.u32 32, %s10
        %p168 = scmp.lt.s32.totalorder %s167, 63
        %s169 = scalar_select %p168, %s167, 63
        %s170 = smul.addr %s169, 8
        %s171 = scalar_lea.vmem %s3, %s170
        %s172 = smul.u32 32, %s10
      $region32: #{bottleneck_forward.7} parent=23 // pred_fallthru
        _
    $region24: #{bottleneck_forward.7} parent=5 // pred_fallthru
      _
    %p173 = scmp.le.s32.totalorder 1, %s10
    %p174 = scmp.lt.s32.totalorder %s10, 3
    %p175 = pnand %p173, %p174
    %p176 = pneg %p175
    // Predicated region
    $region33: #{bottleneck_forward.7} parent=5 // pred_check
      _
    $region34: #{bottleneck_forward.7} parent=5 // pred_check_branch
      %178 = sbr.rel (%p175) target = $region36
    $region35: #{bottleneck_forward.7} parent=5 // pred_region
      %s179 = ssub.s32 %s10, 1
      %s180 = smul.u32 32, %s15
      %p181 = scmp.lt.s32.totalorder %s180, 63
      %s182 = scalar_select %p181, %s180, 63
      %s183 = smul.addr %s182, 4
      %s184 = scalar_lea.vmem %s0, %s183
      %p185 = pneg %p36
      %p186 = pneg %p33
      %p187 = pneg %p57
      %p188 = pneg %p54
      %p189 = pneg %p78
      %p190 = pneg %p75
      %s191 = smul.u32 32, %s15
      %p192 = scmp.lt.s32.totalorder %s191, 63
      %s193 = scalar_select %p192, %s191, 63
      %s194 = smul.addr %s193, 8
      %s195 = scalar_lea.vmem %s3, %s194
      %p196 = pneg %p104
      %p197 = pneg %p101
      %p198 = pneg %p130
      %p199 = pneg %p127
      %s200 = smul.u32 32, %s15
      %p201 = scmp.lt.s32.totalorder %s200, 63
      %s202 = scalar_select %p201, %s200, 63
      %s203 = smul.addr %s202, 8
      %s204 = scalar_lea.vmem %s4, %s203
      %s205 = smul.u32 32, %s15
      %p206 = scmp.lt.s32.totalorder %s205, 63
      %s207 = scalar_select %p206, %s205, 63
      %s208 = smul.addr %s207, 4
      %s209 = scalar_lea.vmem %s0, %s208
      %s210 = smul.u32 32, %s15
      %s211 = smul.u32 32, %s15
      %p212 = scmp.lt.s32.totalorder %s211, 63
      %s213 = scalar_select %p212, %s211, 63
      %s214 = smul.addr %s213, 8
      %s215 = scalar_lea.vmem %s3, %s214
      %s216 = smul.u32 32, %s15
      %s217 = smul.u32 32, %s15
      %p218 = scmp.lt.s32.totalorder %s217, 63
      %s219 = scalar_select %p218, %s217, 63
      %s220 = smul.addr %s219, 8
      %s221 = scalar_lea.vmem %s4, %s220
      %s222 = smul.u32 32, %s15
      %v224 = vld [vmem:[%s209] sm:$0xf]
      %v225 = vld [vmem:[%s209 + $0x4] sm:$0xf]
      %v226 = vld [vmem:[%s209 + $0x8] sm:$0xf]
      %v227 = vld [vmem:[%s209 + $0xc] sm:$0xf]
      %v228 = vld [vmem:[%s209 + $0x10] sm:$0xf]
      %v229 = vld [vmem:[%s209 + $0x14] sm:$0xf]
      %v230 = vld [vmem:[%s209 + $0x18] sm:$0xf]
      %v231 = vld [vmem:[%s209 + $0x1c] sm:$0xf]
      %v232 = vld [vmem:[%s209 + $0x20] sm:$0xf]
      %v233 = vld [vmem:[%s209 + $0x24] sm:$0xf]
      %v234 = vld [vmem:[%s209 + $0x28] sm:$0xf]
      %v235 = vld [vmem:[%s209 + $0x2c] sm:$0xf]
      %v236 = vld [vmem:[%s209 + $0x30] sm:$0xf]
      %v237 = vld [vmem:[%s209 + $0x34] sm:$0xf]
      %v238 = vld [vmem:[%s209 + $0x38] sm:$0xf]
      %v239 = vld [vmem:[%s209 + $0x3c] sm:$0xf]
      %v240 = vld [vmem:[%s209 + $0x40] sm:$0xf]
      %v241 = vld [vmem:[%s209 + $0x44] sm:$0xf]
      %v242 = vld [vmem:[%s209 + $0x48] sm:$0xf]
      %v243 = vld [vmem:[%s209 + $0x4c] sm:$0xf]
      %v244 = vld [vmem:[%s209 + $0x50] sm:$0xf]
      %v245 = vld [vmem:[%s209 + $0x54] sm:$0xf]
      %v246 = vld [vmem:[%s209 + $0x58] sm:$0xf]
      %v247 = vld [vmem:[%s209 + $0x5c] sm:$0xf]
      %v248 = vld [vmem:[%s209 + $0x60] sm:$0xf]
      %v249 = vld [vmem:[%s209 + $0x64] sm:$0xf]
      %v250 = vld [vmem:[%s209 + $0x68] sm:$0xf]
      %v251 = vld [vmem:[%s209 + $0x6c] sm:$0xf]
      %v252 = vld [vmem:[%s209 + $0x70] sm:$0xf]
      %v253 = vld [vmem:[%s209 + $0x74] sm:$0xf]
      %v254 = vld [vmem:[%s209 + $0x78] sm:$0xf]
      %v255 = vld [vmem:[%s209 + $0x7c] sm:$0xf]
      %v256 = vunpack.c.l.bf16 %v224
      %v257 = vunpack.c.l.bf16 %v225
      %v258 = vunpack.c.l.bf16 %v226
      %v259 = vunpack.c.l.bf16 %v227
      %v260 = vunpack.c.l.bf16 %v228
      %v261 = vunpack.c.l.bf16 %v229
      %v262 = vunpack.c.l.bf16 %v230
      %v263 = vunpack.c.l.bf16 %v231
      %v264 = vunpack.c.l.bf16 %v232
      %v265 = vunpack.c.l.bf16 %v233
      %v266 = vunpack.c.l.bf16 %v234
      %v267 = vunpack.c.l.bf16 %v235
      %v268 = vunpack.c.l.bf16 %v236
      %v269 = vunpack.c.l.bf16 %v237
      %v270 = vunpack.c.l.bf16 %v238
      %v271 = vunpack.c.l.bf16 %v239
      %v272 = vunpack.c.l.bf16 %v240
      %v273 = vunpack.c.l.bf16 %v241
      %v274 = vunpack.c.l.bf16 %v242
      %v275 = vunpack.c.l.bf16 %v243
      %v276 = vunpack.c.l.bf16 %v244
      %v277 = vunpack.c.l.bf16 %v245
      %v278 = vunpack.c.l.bf16 %v246
      %v279 = vunpack.c.l.bf16 %v247
      %v280 = vunpack.c.l.bf16 %v248
      %v281 = vunpack.c.l.bf16 %v249
      %v282 = vunpack.c.l.bf16 %v250
      %v283 = vunpack.c.l.bf16 %v251
      %v284 = vunpack.c.l.bf16 %v252
      %v285 = vunpack.c.l.bf16 %v253
      %v286 = vunpack.c.l.bf16 %v254
      %v287 = vunpack.c.l.bf16 %v255
      %v288 = vld [vmem:[%s1] sm:$0x1]
      %v290 = vlaneseq
      %v291 = vshrl.u32 %v290, 7
      %v292 = vsub.s32 0, %v291
      %v293 = vrot.slane %v288, %v292
      %v295 = vadd.f32 %v256, %v293
      %v296 = vadd.f32 %v257, %v293
      %v297 = vadd.f32 %v258, %v293
      %v298 = vadd.f32 %v259, %v293
      %v299 = vadd.f32 %v260, %v293
      %v300 = vadd.f32 %v261, %v293
      %v301 = vadd.f32 %v262, %v293
      %v302 = vadd.f32 %v263, %v293
      %v303 = vadd.f32 %v264, %v293
      %v304 = vadd.f32 %v265, %v293
      %v305 = vadd.f32 %v266, %v293
      %v306 = vadd.f32 %v267, %v293
      %v307 = vadd.f32 %v268, %v293
      %v308 = vadd.f32 %v269, %v293
      %v309 = vadd.f32 %v270, %v293
      %v310 = vadd.f32 %v271, %v293
      %v311 = vadd.f32 %v272, %v293
      %v312 = vadd.f32 %v273, %v293
      %v313 = vadd.f32 %v274, %v293
      %v314 = vadd.f32 %v275, %v293
      %v315 = vadd.f32 %v276, %v293
      %v316 = vadd.f32 %v277, %v293
      %v317 = vadd.f32 %v278, %v293
      %v318 = vadd.f32 %v279, %v293
      %v319 = vadd.f32 %v280, %v293
      %v320 = vadd.f32 %v281, %v293
      %v321 = vadd.f32 %v282, %v293
      %v322 = vadd.f32 %v283, %v293
      %v323 = vadd.f32 %v284, %v293
      %v324 = vadd.f32 %v285, %v293
      %v325 = vadd.f32 %v286, %v293
      %v326 = vadd.f32 %v287, %v293
      %v327 = vmax.f32 %v295, 0.0
      %v328 = vmax.f32 %v296, 0.0
      %v329 = vmax.f32 %v297, 0.0
      %v330 = vmax.f32 %v298, 0.0
      %v331 = vmax.f32 %v299, 0.0
      %v332 = vmax.f32 %v300, 0.0
      %v333 = vmax.f32 %v301, 0.0
      %v334 = vmax.f32 %v302, 0.0
      %v335 = vmax.f32 %v303, 0.0
      %v336 = vmax.f32 %v304, 0.0
      %v337 = vmax.f32 %v305, 0.0
      %v338 = vmax.f32 %v306, 0.0
      %v339 = vmax.f32 %v307, 0.0
      %v340 = vmax.f32 %v308, 0.0
      %v341 = vmax.f32 %v309, 0.0
      %v342 = vmax.f32 %v310, 0.0
      %v343 = vmax.f32 %v311, 0.0
      %v344 = vmax.f32 %v312, 0.0
      %v345 = vmax.f32 %v313, 0.0
      %v346 = vmax.f32 %v314, 0.0
      %v347 = vmax.f32 %v315, 0.0
      %v348 = vmax.f32 %v316, 0.0
      %v349 = vmax.f32 %v317, 0.0
      %v350 = vmax.f32 %v318, 0.0
      %v351 = vmax.f32 %v319, 0.0
      %v352 = vmax.f32 %v320, 0.0
      %v353 = vmax.f32 %v321, 0.0
      %v354 = vmax.f32 %v322, 0.0
      %v355 = vmax.f32 %v323, 0.0
      %v356 = vmax.f32 %v324, 0.0
      %v357 = vmax.f32 %v325, 0.0
      %v358 = vmax.f32 %v326, 0.0
      %v359 = vpack.c.bf16 %v328, %v327
      %v360 = vpack.c.bf16 %v330, %v329
      %v361 = vpack.c.bf16 %v332, %v331
      %v362 = vpack.c.bf16 %v334, %v333
      %v363 = vpack.c.bf16 %v336, %v335
      %v364 = vpack.c.bf16 %v338, %v337
      %v365 = vpack.c.bf16 %v340, %v339
      %v366 = vpack.c.bf16 %v342, %v341
      %v367 = vpack.c.bf16 %v344, %v343
      %v368 = vpack.c.bf16 %v346, %v345
      %v369 = vpack.c.bf16 %v348, %v347
      %v370 = vpack.c.bf16 %v350, %v349
      %v371 = vpack.c.bf16 %v352, %v351
      %v372 = vpack.c.bf16 %v354, %v353
      %v373 = vpack.c.bf16 %v356, %v355
      %v374 = vpack.c.bf16 %v358, %v357
      %v375 = vld [vmem:[%s2] sm:$0x3]
      %v376 = vld [vmem:[%s215] sm:$0xff]
      %v377 = vld [vmem:[%s215 + $0x8] sm:$0xff]
      %v378 = vld [vmem:[%s215 + $0x10] sm:$0xff]
      %v379 = vld [vmem:[%s215 + $0x18] sm:$0xff]
      %v380 = vld [vmem:[%s215 + $0x20] sm:$0xff]
      %v381 = vld [vmem:[%s215 + $0x28] sm:$0xff]
      %v382 = vld [vmem:[%s215 + $0x30] sm:$0xff]
      %v383 = vld [vmem:[%s215 + $0x38] sm:$0xff]
      %v384 = vld [vmem:[%s215 + $0x40] sm:$0xff]
      %v385 = vld [vmem:[%s215 + $0x48] sm:$0xff]
      %v386 = vld [vmem:[%s215 + $0x50] sm:$0xff]
      %v387 = vld [vmem:[%s215 + $0x58] sm:$0xff]
      %v388 = vld [vmem:[%s215 + $0x60] sm:$0xff]
      %v389 = vld [vmem:[%s215 + $0x68] sm:$0xff]
      %v390 = vld [vmem:[%s215 + $0x70] sm:$0xff]
      %v391 = vld [vmem:[%s215 + $0x78] sm:$0xff]
      %v392 = vld [vmem:[%s215 + $0x80] sm:$0xff]
      %v393 = vld [vmem:[%s215 + $0x88] sm:$0xff]
      %v394 = vld [vmem:[%s215 + $0x90] sm:$0xff]
      %v395 = vld [vmem:[%s215 + $0x98] sm:$0xff]
      %v396 = vld [vmem:[%s215 + $0xa0] sm:$0xff]
      %v397 = vld [vmem:[%s215 + $0xa8] sm:$0xff]
      %v398 = vld [vmem:[%s215 + $0xb0] sm:$0xff]
      %v399 = vld [vmem:[%s215 + $0xb8] sm:$0xff]
      %v400 = vld [vmem:[%s215 + $0xc0] sm:$0xff]
      %v401 = vld [vmem:[%s215 + $0xc8] sm:$0xff]
      %v402 = vld [vmem:[%s215 + $0xd0] sm:$0xff]
      %v403 = vld [vmem:[%s215 + $0xd8] sm:$0xff]
      %v404 = vld [vmem:[%s215 + $0xe0] sm:$0xff]
      %v405 = vld [vmem:[%s215 + $0xe8] sm:$0xff]
      %v406 = vld [vmem:[%s215 + $0xf0] sm:$0xff]
      %v407 = vld [vmem:[%s215 + $0xf8] sm:$0xff]
      %vm408 = vcmask 31744
      %v410 = vsel %vm408, %v359, 0
      %v413 = vsel %vm408, %v360, 0
      %v416 = vsel %vm408, %v361, 0
      %v419 = vsel %vm408, %v362, 0
      %v422 = vsel %vm408, %v363, 0
      %v425 = vsel %vm408, %v364, 0
      %v428 = vsel %vm408, %v365, 0
      %v431 = vsel %vm408, %v366, 0
      %v434 = vsel %vm408, %v367, 0
      %v437 = vsel %vm408, %v368, 0
      %v440 = vsel %vm408, %v369, 0
      %v443 = vsel %vm408, %v370, 0
      %v446 = vsel %vm408, %v371, 0
      %v449 = vsel %vm408, %v372, 0
      %v452 = vsel %vm408, %v373, 0
      %v455 = vsel %vm408, %v374, 0
      %vm457 = vcmask 1041408
      %v459 = vsel %vm457, %v375, 0
      %461 = vmatprep.subr.bf16.mxu0 0
      %462 = vmatpush1.bf16.msra.mxu0 %v459
      %463 = vmatprep.subr.bf16.mxu0 0
      %464 = vmatpush1.bf16.msra.mxu0 0
      %465 = vmatprep.subr.bf16.mxu0 0
      %466 = vmatpush1.bf16.msra.mxu0 0
      %467 = vmatprep.subr.bf16.mxu0 0
      %468 = vmatpush1.bf16.msra.mxu0 0
      %469 = vmatprep.subr.bf16.mxu0 0
      %470 = vmatpush1.bf16.msra.mxu0 0
      %471 = vmatprep.subr.bf16.mxu0 0
      %472 = vmatpush1.bf16.msra.mxu0 0
      %473 = vmatprep.subr.bf16.mxu0 0
      %474 = vmatpush1.bf16.msra.mxu0 0
      %475 = vmatprep.subr.bf16.mxu0 0
      %476 = vmatpush1.bf16.msra.mxu0 0
      %477 = vmatprep.subr.bf16.mxu0 0
      %478 = vmatpush1.bf16.msra.mxu0 0
      %479 = vmatprep.subr.bf16.mxu0 0
      %480 = vmatpush1.bf16.msra.mxu0 0
      %481 = vmatprep.subr.bf16.mxu0 0
      %482 = vmatpush1.bf16.msra.mxu0 0
      %483 = vmatprep.subr.bf16.mxu0 0
      %484 = vmatpush1.bf16.msra.mxu0 0
      %485 = vmatprep.subr.bf16.mxu0 0
      %486 = vmatpush1.bf16.msra.mxu0 0
      %487 = vmatprep.subr.bf16.mxu0 0
      %488 = vmatpush1.bf16.msra.mxu0 0
      %489 = vmatprep.subr.bf16.mxu0 0
      %490 = vmatpush1.bf16.msra.mxu0 0
      %491 = vmatprep.subr.bf16.mxu0 0
      %492 = vmatpush1.bf16.msra.mxu0 0
      %493 = vmatprep.mubr.bf16.mxu0 0
      %494 = vmatmul.mubr.bf16.gmra.mrb[0].mxu0 %v410
      %v495 = vpop.f32.mrb[0].mxu0
      %v496 = vadd.f32 %v376, %v495
      %v497 = vpop.f32.mrb[0].mxu0
      %v498 = vpop.f32.mrb[0].mxu0
      %v499 = vadd.f32 %v377, %v498
      %v500 = vpop.f32.mrb[0].mxu0
      %501 = vmatprep.mubr.bf16.mxu0 0
      %502 = vmatmul.mubr.bf16.gmra.mrb[0].mxu0 %v413
      %v503 = vpop.f32.mrb[0].mxu0
      %v504 = vadd.f32 %v378, %v503
      %v505 = vpop.f32.mrb[0].mxu0
      %v506 = vpop.f32.mrb[0].mxu0
      %v507 = vadd.f32 %v379, %v506
      %v508 = vpop.f32.mrb[0].mxu0
      %509 = vmatprep.mubr.bf16.mxu0 0
      %510 = vmatmul.mubr.bf16.gmra.mrb[0].mxu0 %v416
      %v511 = vpop.f32.mrb[0].mxu0
      %v512 = vadd.f32 %v380, %v511
      %v513 = vpop.f32.mrb[0].mxu0
      %v514 = vpop.f32.mrb[0].mxu0
      %v515 = vadd.f32 %v381, %v514
      %v516 = vpop.f32.mrb[0].mxu0
      %517 = vmatprep.mubr.bf16.mxu0 0
      %518 = vmatmul.mubr.bf16.gmra.mrb[0].mxu0 %v419
      %v519 = vpop.f32.mrb[0].mxu0
      %v520 = vadd.f32 %v382, %v519
      %v521 = vpop.f32.mrb[0].mxu0
      %v522 = vpop.f32.mrb[0].mxu0
      %v523 = vadd.f32 %v383, %v522
      %v524 = vpop.f32.mrb[0].mxu0
      %525 = vmatprep.mubr.bf16.mxu0 0
      %526 = vmatmul.mubr.bf16.gmra.mrb[0].mxu0 %v422
      %v527 = vpop.f32.mrb[0].mxu0
      %v528 = vadd.f32 %v384, %v527
      %v529 = vpop.f32.mrb[0].mxu0
      %v530 = vpop.f32.mrb[0].mxu0
      %v531 = vadd.f32 %v385, %v530
      %v532 = vpop.f32.mrb[0].mxu0
      %533 = vmatprep.mubr.bf16.mxu0 0
      %534 = vmatmul.mubr.bf16.gmra.mrb[0].mxu0 %v425
      %v535 = vpop.f32.mrb[0].mxu0
      %v536 = vadd.f32 %v386, %v535
      %v537 = vpop.f32.mrb[0].mxu0
      %v538 = vpop.f32.mrb[0].mxu0
      %v539 = vadd.f32 %v387, %v538
      %v540 = vpop.f32.mrb[0].mxu0
      %541 = vmatprep.mubr.bf16.mxu0 0
      %542 = vmatmul.mubr.bf16.gmra.mrb[0].mxu0 %v428
      %v543 = vpop.f32.mrb[0].mxu0
      %v544 = vadd.f32 %v388, %v543
      %v545 = vpop.f32.mrb[0].mxu0
      %v546 = vpop.f32.mrb[0].mxu0
      %v547 = vadd.f32 %v389, %v546
      %v548 = vpop.f32.mrb[0].mxu0
      %549 = vmatprep.mubr.bf16.mxu0 0
      %550 = vmatmul.mubr.bf16.gmra.mrb[0].mxu0 %v431
      %v551 = vpop.f32.mrb[0].mxu0
      %v552 = vadd.f32 %v390, %v551
      %v553 = vpop.f32.mrb[0].mxu0
      %v554 = vpop.f32.mrb[0].mxu0
      %v555 = vadd.f32 %v391, %v554
      %v556 = vpop.f32.mrb[0].mxu0
      %557 = vmatprep.mubr.bf16.mxu0 0
      %558 = vmatmul.mubr.bf16.gmra.mrb[0].mxu0 %v434
      %v559 = vpop.f32.mrb[0].mxu0
      %v560 = vadd.f32 %v392, %v559
      %v561 = vpop.f32.mrb[0].mxu0
      %v562 = vpop.f32.mrb[0].mxu0
      %v563 = vadd.f32 %v393, %v562
      %v564 = vpop.f32.mrb[0].mxu0
      %565 = vmatprep.mubr.bf16.mxu0 0
      %566 = vmatmul.mubr.bf16.gmra.mrb[0].mxu0 %v437
      %v567 = vpop.f32.mrb[0].mxu0
      %v568 = vadd.f32 %v394, %v567
      %v569 = vpop.f32.mrb[0].mxu0
      %v570 = vpop.f32.mrb[0].mxu0
      %v571 = vadd.f32 %v395, %v570
      %v572 = vpop.f32.mrb[0].mxu0
      %573 = vmatprep.mubr.bf16.mxu0 0
      %574 = vmatmul.mubr.bf16.gmra.mrb[0].mxu0 %v440
      %v575 = vpop.f32.mrb[0].mxu0
      %v576 = vadd.f32 %v396, %v575
      %v577 = vpop.f32.mrb[0].mxu0
      %v578 = vpop.f32.mrb[0].mxu0
      %v579 = vadd.f32 %v397, %v578
      %v580 = vpop.f32.mrb[0].mxu0
      %581 = vmatprep.mubr.bf16.mxu0 0
      %582 = vmatmul.mubr.bf16.gmra.mrb[0].mxu0 %v443
      %v583 = vpop.f32.mrb[0].mxu0
      %v584 = vadd.f32 %v398, %v583
      %v585 = vpop.f32.mrb[0].mxu0
      %v586 = vpop.f32.mrb[0].mxu0
      %v587 = vadd.f32 %v399, %v586
      %v588 = vpop.f32.mrb[0].mxu0
      %589 = vmatprep.mubr.bf16.mxu0 0
      %590 = vmatmul.mubr.bf16.gmra.mrb[0].mxu0 %v446
      %v591 = vpop.f32.mrb[0].mxu0
      %v592 = vadd.f32 %v400, %v591
      %v593 = vpop.f32.mrb[0].mxu0
      %v594 = vpop.f32.mrb[0].mxu0
      %v595 = vadd.f32 %v401, %v594
      %v596 = vpop.f32.mrb[0].mxu0
      %597 = vmatprep.mubr.bf16.mxu0 0
      %598 = vmatmul.mubr.bf16.gmra.mrb[0].mxu0 %v449
      %v599 = vpop.f32.mrb[0].mxu0
      %v600 = vadd.f32 %v402, %v599
      %v601 = vpop.f32.mrb[0].mxu0
      %v602 = vpop.f32.mrb[0].mxu0
      %v603 = vadd.f32 %v403, %v602
      %v604 = vpop.f32.mrb[0].mxu0
      %605 = vmatprep.mubr.bf16.mxu0 0
      %606 = vmatmul.mubr.bf16.gmra.mrb[0].mxu0 %v452
      %v607 = vpop.f32.mrb[0].mxu0
      %v608 = vadd.f32 %v404, %v607
      %v609 = vpop.f32.mrb[0].mxu0
      %v610 = vpop.f32.mrb[0].mxu0
      %v611 = vadd.f32 %v405, %v610
      %v612 = vpop.f32.mrb[0].mxu0
      %613 = vmatprep.mubr.bf16.mxu0 0
      %614 = vmatmul.mubr.bf16.gmra.mrb[0].mxu0 %v455
      %v615 = vpop.f32.mrb[0].mxu0
      %v616 = vadd.f32 %v406, %v615
      %v617 = vpop.f32.mrb[0].mxu0
      %v618 = vpop.f32.mrb[0].mxu0
      %v619 = vadd.f32 %v407, %v618
      %v620 = vpop.f32.mrb[0].mxu0
      %621 = vdwg.mxu0
      %vm622 = vcmask 130048
      %623 = vst.msk [vmem:[%s221] sm:$0xff] %vm622, %v496
      %624 = vst.msk [vmem:[%s221 + $0x8] sm:$0xff] %vm622, %v499
      %625 = vst.msk [vmem:[%s221 + $0x10] sm:$0xff] %vm622, %v504
      %626 = vst.msk [vmem:[%s221 + $0x18] sm:$0xff] %vm622, %v507
      %627 = vst.msk [vmem:[%s221 + $0x20] sm:$0xff] %vm622, %v512
      %628 = vst.msk [vmem:[%s221 + $0x28] sm:$0xff] %vm622, %v515
      %629 = vst.msk [vmem:[%s221 + $0x30] sm:$0xff] %vm622, %v520
      %630 = vst.msk [vmem:[%s221 + $0x38] sm:$0xff] %vm622, %v523
      %631 = vst.msk [vmem:[%s221 + $0x40] sm:$0xff] %vm622, %v528
      %632 = vst.msk [vmem:[%s221 + $0x48] sm:$0xff] %vm622, %v531
      %633 = vst.msk [vmem:[%s221 + $0x50] sm:$0xff] %vm622, %v536
      %634 = vst.msk [vmem:[%s221 + $0x58] sm:$0xff] %vm622, %v539
      %635 = vst.msk [vmem:[%s221 + $0x60] sm:$0xff] %vm622, %v544
      %636 = vst.msk [vmem:[%s221 + $0x68] sm:$0xff] %vm622, %v547
      %637 = vst.msk [vmem:[%s221 + $0x70] sm:$0xff] %vm622, %v552
      %638 = vst.msk [vmem:[%s221 + $0x78] sm:$0xff] %vm622, %v555
      %639 = vst.msk [vmem:[%s221 + $0x80] sm:$0xff] %vm622, %v560
      %640 = vst.msk [vmem:[%s221 + $0x88] sm:$0xff] %vm622, %v563
      %641 = vst.msk [vmem:[%s221 + $0x90] sm:$0xff] %vm622, %v568
      %642 = vst.msk [vmem:[%s221 + $0x98] sm:$0xff] %vm622, %v571
      %643 = vst.msk [vmem:[%s221 + $0xa0] sm:$0xff] %vm622, %v576
      %644 = vst.msk [vmem:[%s221 + $0xa8] sm:$0xff] %vm622, %v579
      %645 = vst.msk [vmem:[%s221 + $0xb0] sm:$0xff] %vm622, %v584
      %646 = vst.msk [vmem:[%s221 + $0xb8] sm:$0xff] %vm622, %v587
      %647 = vst.msk [vmem:[%s221 + $0xc0] sm:$0xff] %vm622, %v592
      %648 = vst.msk [vmem:[%s221 + $0xc8] sm:$0xff] %vm622, %v595
      %649 = vst.msk [vmem:[%s221 + $0xd0] sm:$0xff] %vm622, %v600
      %650 = vst.msk [vmem:[%s221 + $0xd8] sm:$0xff] %vm622, %v603
      %651 = vst.msk [vmem:[%s221 + $0xe0] sm:$0xff] %vm622, %v608
      %652 = vst.msk [vmem:[%s221 + $0xe8] sm:$0xff] %vm622, %v611
      %653 = vst.msk [vmem:[%s221 + $0xf0] sm:$0xff] %vm622, %v616
      %654 = vst.msk [vmem:[%s221 + $0xf8] sm:$0xff] %vm622, %v619
      %s655 = smul.u32 32, %s15
      %p656 = scmp.lt.s32.totalorder %s655, 63
      %s657 = scalar_select %p656, %s655, 63
      %s658 = smul.addr %s657, 8
      %s659 = scalar_lea.vmem %s4, %s658
      // Predicated region
      $region37: #{bottleneck_forward.7} parent=35 // pred_check
        %p660 = pneg %p127
      $region38: #{bottleneck_forward.7} parent=35 // pred_check_branch
        %662 = sbr.rel (%p660) target = $region40
      $region39: #{bottleneck_forward.7} parent=35 // pred_region
        %s663 = smul.u32 32, %s15
      $region40: #{bottleneck_forward.7} parent=35 // pred_fallthru
        _
    $region36: #{bottleneck_forward.7} parent=5 // pred_fallthru
      _
    %p664 = scmp.le.s32.totalorder 2, %s10
    // Predicated region
    $region41: #{bottleneck_forward.7} parent=5 // pred_check
      %p665 = pneg %p664
    $region42: #{bottleneck_forward.7} parent=5 // pred_check_branch
      %667 = sbr.rel (%p665) target = $region44
    $region43: #{bottleneck_forward.7} parent=5 // pred_region
      %s668 = ssub.s32 %s10, 2
      // Predicated region
      $region45: #{bottleneck_forward.7} parent=43 // pred_check
        %p669 = pneg %p133
      $region46: #{bottleneck_forward.7} parent=43 // pred_check_branch
        %671 = sbr.rel (%p669) target = $region48
      $region47: #{bottleneck_forward.7} parent=43 // pred_region
        %s672 = smul.u32 32, %s16
        %p673 = scmp.lt.s32.totalorder %s672, 63
        %s674 = scalar_select %p673, %s672, 63
        %s675 = smul.addr %s674, 8
        %s676 = scalar_lea.vmem %s4, %s675
      $region48: #{bottleneck_forward.7} parent=43 // pred_fallthru
        _
    $region44: #{bottleneck_forward.7} parent=5 // pred_fallthru
      _
  $region6: #{bottleneck_forward.7} parent=0 // loop_footer
    %s14 = sadd.s32 1, %s10
  $region7: #{bottleneck_forward.7} parent=0 // loop_footer_branch
    %9 = sbr.rel target = $region3
  $region8: #{bottleneck_forward.7} parent=0 // loop_exit
    _

// kernel: bottleneck_forward.6
$region0: #{bottleneck_forward.6}
  #allocation0 [shape = 'u32[]', space=smem, size = 0x4, offset = 0x4, fixed_abs, tag = 'smem constant byte address 0x4 - core index']
  #allocation1 [shape = 'u32[144,128]{1,0:T(1,128)}', space=vmem, size = 0x12000, scoped, tag = 'internal scratch']
  #allocation2 [shape = 'bf16[304,4]{1,0:T(16,128)(2,1)}', space=vmem, size = 0x13000, scoped, tag = 'scratch operand']
  %s0 = inlined_call_operand.vmem [shape: bf16[2,256,4], index: 0, kind: input, shape index: {}]
  %s1 = inlined_call_operand.vmem [shape: bf16[256,1], index: 1, kind: input, shape index: {}]
  %s2 = inlined_call_operand.vmem [shape: bf16[256,1], index: 2, kind: input, shape index: {}]
  %s3 = inlined_call_operand.vmem [shape: f32[1,4], index: 3, kind: input, shape index: {}]
  %s4 = inlined_call_operand.vmem [shape: bf16[36,4], index: 4, kind: input, shape index: {}]
  %s5 = inlined_call_operand.vmem [shape: bf16[2,256,4], index: 5, kind: output, shape index: {0}]
  %s6 = inlined_call_operand.vmem [shape: f32[2,1,4], index: 6, kind: output, shape index: {1}]
  %s7 = inlined_call_operand.vmem [shape: f32[2,1,4], index: 7, kind: output, shape index: {2}]
  %8 = xla_tuple %s5, %s6, %s7
  %s9 = sld [smem:[#allocation0]]
  $region69: #{bottleneck_forward.6} parent=0
    _
  %s11 = ssub.s32 1, %s9
  %s12 = scalar_select 0, %s11, %s9
  loop: start=0, step=1, limit=4
  $region2: #{bottleneck_forward.6} parent=0 // loop_pre_header
    _
  $region3: #{bottleneck_forward.6} parent=0 // loop_header
    %s14 = sphi 0, %s18
    %p15 = scmp.ge.s32.totalorder %s14, 4
    %s24 = sphi 0, %s26
    %s27 = sphi 0, %s24
    %s28 = sphi 0, %s27
    %s44 = sphi 0, %s28
    %s48 = sphi 0, %s48
    %s50 = sphi 0, %s48
    %s51 = sphi 0, %s50
    %s65 = sphi 0, %s51
    %s69 = sphi 0, %s69
    %s71 = sphi 0, %s69
    %s72 = sphi 0, %s71
    %s86 = sphi 0, %s72
    %s90 = sphi 0, %s90
    %s92 = sphi 0, %s90
    %s93 = sphi 0, %s92
    %s107 = sphi 0, %s93
    %s111 = sphi 0, %s111
    %s113 = sphi 0, %s111
    %s114 = sphi 0, %s113
    %s128 = sphi 0, %s114
    %s134 = sphi 0, %s136
    %s137 = sphi 0, %s134
    %s138 = sphi 0, %s137
    %s154 = sphi 0, %s138
    %s160 = sphi 0, %s162
    %s163 = sphi 0, %s160
    %s164 = sphi 0, %s163
    %s180 = sphi 0, %s164
    %s186 = sphi 0, %s188
    %s189 = sphi 0, %s186
    %s190 = sphi 0, %s189
    %s206 = sphi 0, %s190
  $region4: #{bottleneck_forward.6} parent=0 // loop_header_branch
    %17 = sbr.rel (%p15) target = $region8
  $region5: #{bottleneck_forward.6} parent=0 // loop_body
    %s19 = ssub.s32 %s14, 1
    %s20 = ssub.s32 %s14, 2
    %s21 = sadd.s32 %s14, 1
    %s22 = ssub.s32 %s14, %s21
    %p23 = scmp.eq.s32.totalorder %s22, 0
    %s25 = sadd.s32 %s24, 1
    %s26 = scalar_select %p23, %s24, %s25
    %p29 = pneg %p23
    %p30 = scmp.eq.s32.totalorder %s14, 1
    %p31 = por %p29, %p30
    %p32 = scmp.ne.s32.totalorder %s24, %s27
    %p33 = scmp.eq.s32.totalorder %s14, 0
    %p34 = por %p32, %p33
    %p35 = scmp.ne.s32.totalorder %s24, %s27
    %p36 = scmp.eq.s32.totalorder %s19, 1
    %p37 = por %p35, %p36
    %p38 = scmp.ne.s32.totalorder %s27, %s28
    %p39 = scmp.eq.s32.totalorder %s19, 0
    %p40 = por %p38, %p39
    %p41 = scmp.ne.s32.totalorder %s27, %s28
    %p42 = scmp.eq.s32.totalorder %s20, 1
    %p43 = por %p41, %p42
    %p45 = scmp.ne.s32.totalorder %s28, %s44
    %p46 = scmp.eq.s32.totalorder %s20, 0
    %p47 = por %p45, %p46
    %s49 = sadd.s32 %s48, 1
    %p52 = scmp.eq.s32.totalorder %s14, 1
    %p53 = scmp.ne.s32.totalorder %s48, %s50
    %p54 = scmp.eq.s32.totalorder %s14, 0
    %p55 = por %p53, %p54
    %p56 = scmp.ne.s32.totalorder %s48, %s50
    %p57 = scmp.eq.s32.totalorder %s19, 1
    %p58 = por %p56, %p57
    %p59 = scmp.ne.s32.totalorder %s50, %s51
    %p60 = scmp.eq.s32.totalorder %s19, 0
    %p61 = por %p59, %p60
    %p62 = scmp.ne.s32.totalorder %s50, %s51
    %p63 = scmp.eq.s32.totalorder %s20, 1
    %p64 = por %p62, %p63
    %p66 = scmp.ne.s32.totalorder %s51, %s65
    %p67 = scmp.eq.s32.totalorder %s20, 0
    %p68 = por %p66, %p67
    %s70 = sadd.s32 %s69, 1
    %p73 = scmp.eq.s32.totalorder %s14, 1
    %p74 = scmp.ne.s32.totalorder %s69, %s71
    %p75 = scmp.eq.s32.totalorder %s14, 0
    %p76 = por %p74, %p75
    %p77 = scmp.ne.s32.totalorder %s69, %s71
    %p78 = scmp.eq.s32.totalorder %s19, 1
    %p79 = por %p77, %p78
    %p80 = scmp.ne.s32.totalorder %s71, %s72
    %p81 = scmp.eq.s32.totalorder %s19, 0
    %p82 = por %p80, %p81
    %p83 = scmp.ne.s32.totalorder %s71, %s72
    %p84 = scmp.eq.s32.totalorder %s20, 1
    %p85 = por %p83, %p84
    %p87 = scmp.ne.s32.totalorder %s72, %s86
    %p88 = scmp.eq.s32.totalorder %s20, 0
    %p89 = por %p87, %p88
    %s91 = sadd.s32 %s90, 1
    %p94 = scmp.eq.s32.totalorder %s14, 1
    %p95 = scmp.ne.s32.totalorder %s90, %s92
    %p96 = scmp.eq.s32.totalorder %s14, 0
    %p97 = por %p95, %p96
    %p98 = scmp.ne.s32.totalorder %s90, %s92
    %p99 = scmp.eq.s32.totalorder %s19, 1
    %p100 = por %p98, %p99
    %p101 = scmp.ne.s32.totalorder %s92, %s93
    %p102 = scmp.eq.s32.totalorder %s19, 0
    %p103 = por %p101, %p102
    %p104 = scmp.ne.s32.totalorder %s92, %s93
    %p105 = scmp.eq.s32.totalorder %s20, 1
    %p106 = por %p104, %p105
    %p108 = scmp.ne.s32.totalorder %s93, %s107
    %p109 = scmp.eq.s32.totalorder %s20, 0
    %p110 = por %p108, %p109
    %s112 = sadd.s32 %s111, 1
    %p115 = scmp.eq.s32.totalorder %s14, 1
    %p116 = scmp.ne.s32.totalorder %s111, %s113
    %p117 = scmp.eq.s32.totalorder %s14, 0
    %p118 = por %p116, %p117
    %p119 = scmp.ne.s32.totalorder %s111, %s113
    %p120 = scmp.eq.s32.totalorder %s19, 1
    %p121 = por %p119, %p120
    %p122 = scmp.ne.s32.totalorder %s113, %s114
    %p123 = scmp.eq.s32.totalorder %s19, 0
    %p124 = por %p122, %p123
    %p125 = scmp.ne.s32.totalorder %s113, %s114
    %p126 = scmp.eq.s32.totalorder %s20, 1
    %p127 = por %p125, %p126
    %p129 = scmp.ne.s32.totalorder %s114, %s128
    %p130 = scmp.eq.s32.totalorder %s20, 0
    %p131 = por %p129, %p130
    %s132 = ssub.s32 %s14, %s21
    %p133 = scmp.eq.s32.totalorder %s132, 0
    %s135 = sadd.s32 %s134, 1
    %s136 = scalar_select %p133, %s134, %s135
    %p139 = pneg %p133
    %p140 = scmp.eq.s32.totalorder %s14, 1
    %p141 = por %p139, %p140
    %p142 = scmp.ne.s32.totalorder %s134, %s137
    %p143 = scmp.eq.s32.totalorder %s14, 0
    %p144 = por %p142, %p143
    %p145 = scmp.ne.s32.totalorder %s134, %s137
    %p146 = scmp.eq.s32.totalorder %s19, 1
    %p147 = por %p145, %p146
    %p148 = scmp.ne.s32.totalorder %s137, %s138
    %p149 = scmp.eq.s32.totalorder %s19, 0
    %p150 = por %p148, %p149
    %p151 = scmp.ne.s32.totalorder %s137, %s138
    %p152 = scmp.eq.s32.totalorder %s20, 1
    %p153 = por %p151, %p152
    %p155 = scmp.ne.s32.totalorder %s138, %s154
    %p156 = scmp.eq.s32.totalorder %s20, 0
    %p157 = por %p155, %p156
    %s158 = ssub.s32 %s14, %s21
    %p159 = scmp.eq.s32.totalorder %s158, 0
    %s161 = sadd.s32 %s160, 1
    %s162 = scalar_select %p159, %s160, %s161
    %p165 = pneg %p159
    %p166 = scmp.eq.s32.totalorder %s14, 1
    %p167 = por %p165, %p166
    %p168 = scmp.ne.s32.totalorder %s160, %s163
    %p169 = scmp.eq.s32.totalorder %s14, 0
    %p170 = por %p168, %p169
    %p171 = scmp.ne.s32.totalorder %s160, %s163
    %p172 = scmp.eq.s32.totalorder %s19, 1
    %p173 = por %p171, %p172
    %p174 = scmp.ne.s32.totalorder %s163, %s164
    %p175 = scmp.eq.s32.totalorder %s19, 0
    %p176 = por %p174, %p175
    %p177 = scmp.ne.s32.totalorder %s163, %s164
    %p178 = scmp.eq.s32.totalorder %s20, 1
    %p179 = por %p177, %p178
    %p181 = scmp.ne.s32.totalorder %s164, %s180
    %p182 = scmp.eq.s32.totalorder %s20, 0
    %p183 = por %p181, %p182
    %s184 = ssub.s32 %s14, %s21
    %p185 = scmp.eq.s32.totalorder %s184, 0
    %s187 = sadd.s32 %s186, 1
    %s188 = scalar_select %p185, %s186, %s187
    %p191 = pneg %p185
    %p192 = scmp.eq.s32.totalorder %s14, 1
    %p193 = por %p191, %p192
    %p194 = scmp.ne.s32.totalorder %s186, %s189
    %p195 = scmp.eq.s32.totalorder %s14, 0
    %p196 = por %p194, %p195
    %p197 = scmp.ne.s32.totalorder %s186, %s189
    %p198 = scmp.eq.s32.totalorder %s19, 1
    %p199 = por %p197, %p198
    %p200 = scmp.ne.s32.totalorder %s189, %s190
    %p201 = scmp.eq.s32.totalorder %s19, 0
    %p202 = por %p200, %p201
    %p203 = scmp.ne.s32.totalorder %s189, %s190
    %p204 = scmp.eq.s32.totalorder %s20, 1
    %p205 = por %p203, %p204
    %p207 = scmp.ne.s32.totalorder %s190, %s206
    %p208 = scmp.eq.s32.totalorder %s20, 0
    %p209 = por %p207, %p208
    %p210 = scmp.le.s32.totalorder 1, %s14
    %p211 = scmp.lt.s32.totalorder %s14, 3
    %p212 = pnand %p210, %p211
    %p213 = pneg %p212
    // Predicated region
    $region9: #{bottleneck_forward.6} parent=5 // pred_check
      _
    $region10: #{bottleneck_forward.6} parent=5 // pred_check_branch
      %215 = sbr.rel (%p212) target = $region12
    $region11: #{bottleneck_forward.6} parent=5 // pred_region
      %s216 = ssub.s32 %s14, 1
      // Predicated region
      $region13: #{bottleneck_forward.6} parent=11 // pred_check
        %p217 = pneg %p61
      $region14: #{bottleneck_forward.6} parent=11 // pred_check_branch
        %219 = sbr.rel (%p217) target = $region16
      $region15: #{bottleneck_forward.6} parent=11 // pred_region
        _
      $region16: #{bottleneck_forward.6} parent=11 // pred_fallthru
        _
      // Predicated region
      $region17: #{bottleneck_forward.6} parent=11 // pred_check
        %p220 = pneg %p82
      $region18: #{bottleneck_forward.6} parent=11 // pred_check_branch
        %222 = sbr.rel (%p220) target = $region20
      $region19: #{bottleneck_forward.6} parent=11 // pred_region
        _
      $region20: #{bottleneck_forward.6} parent=11 // pred_fallthru
        _
      // Predicated region
      $region21: #{bottleneck_forward.6} parent=11 // pred_check
        %p223 = pneg %p103
      $region22: #{bottleneck_forward.6} parent=11 // pred_check_branch
        %225 = sbr.rel (%p223) target = $region24
      $region23: #{bottleneck_forward.6} parent=11 // pred_region
        _
      $region24: #{bottleneck_forward.6} parent=11 // pred_fallthru
        _
      // Predicated region
      $region25: #{bottleneck_forward.6} parent=11 // pred_check
        %p226 = pneg %p124
      $region26: #{bottleneck_forward.6} parent=11 // pred_check_branch
        %228 = sbr.rel (%p226) target = $region28
      $region27: #{bottleneck_forward.6} parent=11 // pred_region
        _
      $region28: #{bottleneck_forward.6} parent=11 // pred_fallthru
        _
    $region12: #{bottleneck_forward.6} parent=5 // pred_fallthru
      _
    %p229 = scmp.lt.s32.totalorder %s14, 2
    // Predicated region
    $region29: #{bottleneck_forward.6} parent=5 // pred_check
      %p230 = pneg %p229
    $region30: #{bottleneck_forward.6} parent=5 // pred_check_branch
      %232 = sbr.rel (%p230) target = $region32
    $region31: #{bottleneck_forward.6} parent=5 // pred_region
      // Predicated region
      $region33: #{bottleneck_forward.6} parent=31 // pred_check
        %p233 = pneg %p34
      $region34: #{bottleneck_forward.6} parent=31 // pred_check_branch
        %235 = sbr.rel (%p233) target = $region36
      $region35: #{bottleneck_forward.6} parent=31 // pred_region
        %p236 = scmp.lt.s32.totalorder %s14, 1
        %s237 = scalar_select %p236, %s14, 1
        %s238 = smul.addr %s237, 32
        %s239 = smul.addr %s238, 4
        %s240 = scalar_lea.vmem %s0, %s239
      $region36: #{bottleneck_forward.6} parent=31 // pred_fallthru
        _
    $region32: #{bottleneck_forward.6} parent=5 // pred_fallthru
      _
    %p241 = scmp.le.s32.totalorder 1, %s14
    %p242 = scmp.lt.s32.totalorder %s14, 3
    %p243 = pnand %p241, %p242
    %p244 = pneg %p243
    // Predicated region
    $region37: #{bottleneck_forward.6} parent=5 // pred_check
      _
    $region38: #{bottleneck_forward.6} parent=5 // pred_check_branch
      %246 = sbr.rel (%p243) target = $region40
    $region39: #{bottleneck_forward.6} parent=5 // pred_region
      %s247 = ssub.s32 %s14, 1
      %p248 = scmp.lt.s32.totalorder %s19, 1
      %s249 = scalar_select %p248, %s19, 1
      %s250 = smul.addr %s249, 32
      %s251 = smul.addr %s250, 4
      %s252 = scalar_lea.vmem %s0, %s251
      %p253 = pneg %p40
      %p254 = pneg %p37
      %p255 = pneg %p61
      %p256 = pneg %p58
      %p257 = pneg %p82
      %p258 = pneg %p79
      %p259 = pneg %p103
      %p260 = pneg %p100
      %p261 = pneg %p124
      %p262 = pneg %p121
      %p263 = pneg %p150
      %p264 = pneg %p147
      %p265 = scmp.lt.s32.totalorder %s19, 1
      %s266 = scalar_select %p265, %s19, 1
      %s267 = smul.addr %s266, 32
      %s268 = smul.addr %s267, 4
      %s269 = scalar_lea.vmem %s5, %s268
      %p270 = pneg %p176
      %p271 = pneg %p173
      %p272 = scmp.lt.s32.totalorder %s19, 1
      %s273 = scalar_select %p272, %s19, 1
      %s274 = scalar_lea.vmem %s6, %s273
      %p275 = pneg %p202
      %p276 = pneg %p199
      %p277 = scmp.lt.s32.totalorder %s19, 1
      %s278 = scalar_select %p277, %s19, 1
      %s279 = scalar_lea.vmem %s7, %s278
      %p280 = scmp.lt.s32.totalorder %s19, 1
      %s281 = scalar_select %p280, %s19, 1
      %s282 = smul.addr %s281, 32
      %s283 = smul.addr %s282, 4
      %s284 = scalar_lea.vmem %s0, %s283
      %p285 = scmp.lt.s32.totalorder %s19, 1
      %s286 = scalar_select %p285, %s19, 1
      %s287 = smul.addr %s286, 32
      %s288 = smul.addr %s287, 4
      %s289 = scalar_lea.vmem %s5, %s288
      %p290 = scmp.lt.s32.totalorder %s19, 1
      %s291 = scalar_select %p290, %s19, 1
      %s292 = scalar_lea.vmem %s6, %s291
      %p293 = scmp.lt.s32.totalorder %s19, 1
      %s294 = scalar_select %p293, %s19, 1
      %s295 = scalar_lea.vmem %s7, %s294
      %v297 = vld [vmem:[%s284] sm:$0xf]
      %v298 = vld [vmem:[%s284 + $0x4] sm:$0xf]
      %v299 = vld [vmem:[%s284 + $0x8] sm:$0xf]
      %v300 = vld [vmem:[%s284 + $0xc] sm:$0xf]
      %v301 = vld [vmem:[%s284 + $0x10] sm:$0xf]
      %v302 = vld [vmem:[%s284 + $0x14] sm:$0xf]
      %v303 = vld [vmem:[%s284 + $0x18] sm:$0xf]
      %v304 = vld [vmem:[%s284 + $0x1c] sm:$0xf]
      %v305 = vld [vmem:[%s284 + $0x20] sm:$0xf]
      %v306 = vld [vmem:[%s284 + $0x24] sm:$0xf]
      %v307 = vld [vmem:[%s284 + $0x28] sm:$0xf]
      %v308 = vld [vmem:[%s284 + $0x2c] sm:$0xf]
      %v309 = vld [vmem:[%s284 + $0x30] sm:$0xf]
      %v310 = vld [vmem:[%s284 + $0x34] sm:$0xf]
      %v311 = vld [vmem:[%s284 + $0x38] sm:$0xf]
      %v312 = vld [vmem:[%s284 + $0x3c] sm:$0xf]
      %v313 = vld [vmem:[%s284 + $0x40] sm:$0xf]
      %v314 = vld [vmem:[%s284 + $0x44] sm:$0xf]
      %v315 = vld [vmem:[%s284 + $0x48] sm:$0xf]
      %v316 = vld [vmem:[%s284 + $0x4c] sm:$0xf]
      %v317 = vld [vmem:[%s284 + $0x50] sm:$0xf]
      %v318 = vld [vmem:[%s284 + $0x54] sm:$0xf]
      %v319 = vld [vmem:[%s284 + $0x58] sm:$0xf]
      %v320 = vld [vmem:[%s284 + $0x5c] sm:$0xf]
      %v321 = vld [vmem:[%s284 + $0x60] sm:$0xf]
      %v322 = vld [vmem:[%s284 + $0x64] sm:$0xf]
      %v323 = vld [vmem:[%s284 + $0x68] sm:$0xf]
      %v324 = vld [vmem:[%s284 + $0x6c] sm:$0xf]
      %v325 = vld [vmem:[%s284 + $0x70] sm:$0xf]
      %v326 = vld [vmem:[%s284 + $0x74] sm:$0xf]
      %v327 = vld [vmem:[%s284 + $0x78] sm:$0xf]
      %v328 = vld [vmem:[%s284 + $0x7c] sm:$0xf]
      %v329 = vunpack.c.l.bf16 %v297
      %v330 = vunpack.c.l.bf16 %v298
      %v331 = vunpack.c.l.bf16 %v299
      %v332 = vunpack.c.l.bf16 %v300
      %v333 = vunpack.c.l.bf16 %v301
      %v334 = vunpack.c.l.bf16 %v302
      %v335 = vunpack.c.l.bf16 %v303
      %v336 = vunpack.c.l.bf16 %v304
      %v337 = vunpack.c.l.bf16 %v305
      %v338 = vunpack.c.l.bf16 %v306
      %v339 = vunpack.c.l.bf16 %v307
      %v340 = vunpack.c.l.bf16 %v308
      %v341 = vunpack.c.l.bf16 %v309
      %v342 = vunpack.c.l.bf16 %v310
      %v343 = vunpack.c.l.bf16 %v311
      %v344 = vunpack.c.l.bf16 %v312
      %v345 = vunpack.c.l.bf16 %v313
      %v346 = vunpack.c.l.bf16 %v314
      %v347 = vunpack.c.l.bf16 %v315
      %v348 = vunpack.c.l.bf16 %v316
      %v349 = vunpack.c.l.bf16 %v317
      %v350 = vunpack.c.l.bf16 %v318
      %v351 = vunpack.c.l.bf16 %v319
      %v352 = vunpack.c.l.bf16 %v320
      %v353 = vunpack.c.l.bf16 %v321
      %v354 = vunpack.c.l.bf16 %v322
      %v355 = vunpack.c.l.bf16 %v323
      %v356 = vunpack.c.l.bf16 %v324
      %v357 = vunpack.c.l.bf16 %v325
      %v358 = vunpack.c.l.bf16 %v326
      %v359 = vunpack.c.l.bf16 %v327
      %v360 = vunpack.c.l.bf16 %v328
      %v361 = vld [vmem:[%s3] sm:$0x1]
      %v363 = vlaneseq
      %v364 = vshrl.u32 %v363, 7
      %v365 = vsub.s32 0, %v364
      %v366 = vrot.slane %v361, %v365
      %v368 = vadd.f32 %v329, %v366
      %v369 = vadd.f32 %v330, %v366
      %v370 = vadd.f32 %v331, %v366
      %v371 = vadd.f32 %v332, %v366
      %v372 = vadd.f32 %v333, %v366
      %v373 = vadd.f32 %v334, %v366
      %v374 = vadd.f32 %v335, %v366
      %v375 = vadd.f32 %v336, %v366
      %v376 = vadd.f32 %v337, %v366
      %v377 = vadd.f32 %v338, %v366
      %v378 = vadd.f32 %v339, %v366
      %v379 = vadd.f32 %v340, %v366
      %v380 = vadd.f32 %v341, %v366
      %v381 = vadd.f32 %v342, %v366
      %v382 = vadd.f32 %v343, %v366
      %v383 = vadd.f32 %v344, %v366
      %v384 = vadd.f32 %v345, %v366
      %v385 = vadd.f32 %v346, %v366
      %v386 = vadd.f32 %v347, %v366
      %v387 = vadd.f32 %v348, %v366
      %v388 = vadd.f32 %v349, %v366
      %v389 = vadd.f32 %v350, %v366
      %v390 = vadd.f32 %v351, %v366
      %v391 = vadd.f32 %v352, %v366
      %v392 = vadd.f32 %v353, %v366
      %v393 = vadd.f32 %v354, %v366
      %v394 = vadd.f32 %v355, %v366
      %v395 = vadd.f32 %v356, %v366
      %v396 = vadd.f32 %v357, %v366
      %v397 = vadd.f32 %v358, %v366
      %v398 = vadd.f32 %v359, %v366
      %v399 = vadd.f32 %v360, %v366
      %v400 = vmax.f32 %v368, 0.0
      %v401 = vmax.f32 %v369, 0.0
      %v402 = vmax.f32 %v370, 0.0
      %v403 = vmax.f32 %v371, 0.0
      %v404 = vmax.f32 %v372, 0.0
      %v405 = vmax.f32 %v373, 0.0
      %v406 = vmax.f32 %v374, 0.0
      %v407 = vmax.f32 %v375, 0.0
      %v408 = vmax.f32 %v376, 0.0
      %v409 = vmax.f32 %v377, 0.0
      %v410 = vmax.f32 %v378, 0.0
      %v411 = vmax.f32 %v379, 0.0
      %v412 = vmax.f32 %v380, 0.0
      %v413 = vmax.f32 %v381, 0.0
      %v414 = vmax.f32 %v382, 0.0
      %v415 = vmax.f32 %v383, 0.0
      %v416 = vmax.f32 %v384, 0.0
      %v417 = vmax.f32 %v385, 0.0
      %v418 = vmax.f32 %v386, 0.0
      %v419 = vmax.f32 %v387, 0.0
      %v420 = vmax.f32 %v388, 0.0
      %v421 = vmax.f32 %v389, 0.0
      %v422 = vmax.f32 %v390, 0.0
      %v423 = vmax.f32 %v391, 0.0
      %v424 = vmax.f32 %v392, 0.0
      %v425 = vmax.f32 %v393, 0.0
      %v426 = vmax.f32 %v394, 0.0
      %v427 = vmax.f32 %v395, 0.0
      %v428 = vmax.f32 %v396, 0.0
      %v429 = vmax.f32 %v397, 0.0
      %v430 = vmax.f32 %v398, 0.0
      %v431 = vmax.f32 %v399, 0.0
      %v432 = vpack.c.bf16 %v401, %v400
      %v433 = vpack.c.bf16 %v403, %v402
      %v434 = vpack.c.bf16 %v405, %v404
      %v435 = vpack.c.bf16 %v407, %v406
      %v436 = vpack.c.bf16 %v409, %v408
      %v437 = vpack.c.bf16 %v411, %v410
      %v438 = vpack.c.bf16 %v413, %v412
      %v439 = vpack.c.bf16 %v415, %v414
      %v440 = vpack.c.bf16 %v417, %v416
      %v441 = vpack.c.bf16 %v419, %v418
      %v442 = vpack.c.bf16 %v421, %v420
      %v443 = vpack.c.bf16 %v423, %v422
      %v444 = vpack.c.bf16 %v425, %v424
      %v445 = vpack.c.bf16 %v427, %v426
      %v446 = vpack.c.bf16 %v429, %v428
      %v447 = vpack.c.bf16 %v431, %v430
      %vm448 = vcmask 31744
      %449 = vst.msk [vmem:[#allocation2] sm:$0xff] %vm448, 0
      %450 = vst.msk [vmem:[#allocation2 + $0x8] sm:$0xff] %vm448, 0
      %451 = vst.msk [vmem:[#allocation2 + $0x10] sm:$0xff] %vm448, 0
      %452 = vst.msk [vmem:[#allocation2 + $0x18] sm:$0xff] %vm448, 0
      %453 = vst.msk [vmem:[#allocation2 + $0x20] sm:$0xff] %vm448, 0
      %454 = vst.msk [vmem:[#allocation2 + $0x28] sm:$0xff] %vm448, 0
      %455 = vst.msk [vmem:[#allocation2 + $0x30] sm:$0xff] %vm448, 0
      %456 = vst.msk [vmem:[#allocation2 + $0x38] sm:$0xff] %vm448, 0
      %457 = vst.msk [vmem:[#allocation2 + $0x40] sm:$0xff] %vm448, 0
      %458 = vst.msk [vmem:[#allocation2 + $0x48] sm:$0xff] %vm448, 0
      %459 = vst.msk [vmem:[#allocation2 + $0x50] sm:$0xff] %vm448, 0
      %460 = vst.msk [vmem:[#allocation2 + $0x58] sm:$0xff] %vm448, 0
      %461 = vst.msk [vmem:[#allocation2 + $0x60] sm:$0xff] %vm448, 0
      %462 = vst.msk [vmem:[#allocation2 + $0x68] sm:$0xff] %vm448, 0
      %463 = vst.msk [vmem:[#allocation2 + $0x70] sm:$0xff] %vm448, 0
      %464 = vst.msk [vmem:[#allocation2 + $0x78] sm:$0xff] %vm448, 0
      %465 = vst.msk [vmem:[#allocation2 + $0x80] sm:$0xff] %vm448, 0
      %466 = vst.msk [vmem:[#allocation2 + $0x88] sm:$0xff] %vm448, 0
      %467 = vst.msk [vmem:[#allocation2 + $0x90] sm:$0xff] %vm448, 0
      %vm484 = vcmask 1043456
      %v485 = vrot.slane %v432, 4
      %v486 = vrot.slane %v433, 4
      %v487 = vsel %vm484, %v485, %v486
      %v488 = vrot.slane %v434, 4
      %v489 = vsel %vm484, %v486, %v488
      %v490 = vrot.slane %v435, 4
      %v491 = vsel %vm484, %v488, %v490
      %v492 = vrot.slane %v436, 4
      %v493 = vsel %vm484, %v490, %v492
      %v494 = vrot.slane %v437, 4
      %v495 = vsel %vm484, %v492, %v494
      %v496 = vrot.slane %v438, 4
      %v497 = vsel %vm484, %v494, %v496
      %v498 = vrot.slane %v439, 4
      %v499 = vsel %vm484, %v496, %v498
      %v500 = vrot.slane %v440, 4
      %v501 = vsel %vm484, %v498, %v500
      %v502 = vrot.slane %v441, 4
      %v503 = vsel %vm484, %v500, %v502
      %v504 = vrot.slane %v442, 4
      %v505 = vsel %vm484, %v502, %v504
      %v506 = vrot.slane %v443, 4
      %v507 = vsel %vm484, %v504, %v506
      %v508 = vrot.slane %v444, 4
      %v509 = vsel %vm484, %v506, %v508
      %v510 = vrot.slane %v445, 4
      %v511 = vsel %vm484, %v508, %v510
      %v512 = vrot.slane %v446, 4
      %v513 = vsel %vm484, %v510, %v512
      %v514 = vrot.slane %v447, 4
      %v515 = vsel %vm484, %v512, %v514
      %vm533 = vcmask 31748
      %534 = vst.msk [vmem:[#allocation2 + $0x8] sm:$0xf0] %vm533, %v485
      %535 = vst.msk [vmem:[#allocation2 + $0x10] sm:$0xff] %vm448, %v487
      %536 = vst.msk [vmem:[#allocation2 + $0x18] sm:$0xff] %vm448, %v489
      %537 = vst.msk [vmem:[#allocation2 + $0x20] sm:$0xff] %vm448, %v491
      %538 = vst.msk [vmem:[#allocation2 + $0x28] sm:$0xff] %vm448, %v493
      %539 = vst.msk [vmem:[#allocation2 + $0x30] sm:$0xff] %vm448, %v495
      %540 = vst.msk [vmem:[#allocation2 + $0x38] sm:$0xff] %vm448, %v497
      %541 = vst.msk [vmem:[#allocation2 + $0x40] sm:$0xff] %vm448, %v499
      %542 = vst.msk [vmem:[#allocation2 + $0x48] sm:$0xff] %vm448, %v501
      %543 = vst.msk [vmem:[#allocation2 + $0x50] sm:$0xff] %vm448, %v503
      %544 = vst.msk [vmem:[#allocation2 + $0x58] sm:$0xff] %vm448, %v505
      %545 = vst.msk [vmem:[#allocation2 + $0x60] sm:$0xff] %vm448, %v507
      %546 = vst.msk [vmem:[#allocation2 + $0x68] sm:$0xff] %vm448, %v509
      %547 = vst.msk [vmem:[#allocation2 + $0x70] sm:$0xff] %vm448, %v511
      %548 = vst.msk [vmem:[#allocation2 + $0x78] sm:$0xff] %vm448, %v513
      %549 = vst.msk [vmem:[#allocation2 + $0x80] sm:$0xff] %vm448, %v515
      %vm550 = vcmask 27648
      %551 = vst.msk [vmem:[#allocation2 + $0x88] sm:$0xf] %vm550, %v514
      %v552 = vld [vmem:[#allocation2] sm:$0xff]
      %v553 = vld [vmem:[#allocation2 + $0x8] sm:$0xff]
      %v554 = vld [vmem:[#allocation2 + $0x10] sm:$0xff]
      %v555 = vld [vmem:[#allocation2 + $0x18] sm:$0xff]
      %v556 = vld [vmem:[#allocation2 + $0x20] sm:$0xff]
      %v557 = vld [vmem:[#allocation2 + $0x28] sm:$0xff]
      %v558 = vld [vmem:[#allocation2 + $0x30] sm:$0xff]
      %v559 = vld [vmem:[#allocation2 + $0x38] sm:$0xff]
      %v560 = vld [vmem:[#allocation2 + $0x40] sm:$0xff]
      %v561 = vld [vmem:[#allocation2 + $0x48] sm:$0xff]
      %v562 = vld [vmem:[#allocation2 + $0x50] sm:$0xff]
      %v563 = vld [vmem:[#allocation2 + $0x58] sm:$0xff]
      %v564 = vld [vmem:[#allocation2 + $0x60] sm:$0xff]
      %v565 = vld [vmem:[#allocation2 + $0x68] sm:$0xff]
      %v566 = vld [vmem:[#allocation2 + $0x70] sm:$0xff]
      %v567 = vld [vmem:[#allocation2 + $0x78] sm:$0xff]
      %v568 = vld [vmem:[#allocation2 + $0x80] sm:$0xff]
      %v569 = vld [vmem:[#allocation2 + $0x88] sm:$0xff]
      %v570 = vld [vmem:[#allocation2 + $0x90] sm:$0xff]
      %v571 = vld [vmem:[%s1] sm:$0xf]
      %v572 = vld [vmem:[%s1 + $0x4] sm:$0xf]
      %v573 = vld [vmem:[%s1 + $0x8] sm:$0xf]
      %v574 = vld [vmem:[%s1 + $0xc] sm:$0xf]
      %v575 = vld [vmem:[%s1 + $0x10] sm:$0xf]
      %v576 = vld [vmem:[%s1 + $0x14] sm:$0xf]
      %v577 = vld [vmem:[%s1 + $0x18] sm:$0xf]
      %v578 = vld [vmem:[%s1 + $0x1c] sm:$0xf]
      %v579 = vld [vmem:[%s1 + $0x20] sm:$0xf]
      %v580 = vld [vmem:[%s1 + $0x24] sm:$0xf]
      %v581 = vld [vmem:[%s1 + $0x28] sm:$0xf]
      %v582 = vld [vmem:[%s1 + $0x2c] sm:$0xf]
      %v583 = vld [vmem:[%s1 + $0x30] sm:$0xf]
      %v584 = vld [vmem:[%s1 + $0x34] sm:$0xf]
      %v585 = vld [vmem:[%s1 + $0x38] sm:$0xf]
      %v586 = vld [vmem:[%s1 + $0x3c] sm:$0xf]
      %v587 = vld [vmem:[%s1 + $0x40] sm:$0xf]
      %v588 = vld [vmem:[%s1 + $0x44] sm:$0xf]
      %v589 = vld [vmem:[%s1 + $0x48] sm:$0xf]
      %v590 = vld [vmem:[%s1 + $0x4c] sm:$0xf]
      %v591 = vld [vmem:[%s1 + $0x50] sm:$0xf]
      %v592 = vld [vmem:[%s1 + $0x54] sm:$0xf]
      %v593 = vld [vmem:[%s1 + $0x58] sm:$0xf]
      %v594 = vld [vmem:[%s1 + $0x5c] sm:$0xf]
      %v595 = vld [vmem:[%s1 + $0x60] sm:$0xf]
      %v596 = vld [vmem:[%s1 + $0x64] sm:$0xf]
      %v597 = vld [vmem:[%s1 + $0x68] sm:$0xf]
      %v598 = vld [vmem:[%s1 + $0x6c] sm:$0xf]
      %v599 = vld [vmem:[%s1 + $0x70] sm:$0xf]
      %v600 = vld [vmem:[%s1 + $0x74] sm:$0xf]
      %v601 = vld [vmem:[%s1 + $0x78] sm:$0xf]
      %v602 = vld [vmem:[%s1 + $0x7c] sm:$0xf]
      %v603 = vld [vmem:[%s2] sm:$0xf]
      %v604 = vld [vmem:[%s2 + $0x4] sm:$0xf]
      %v605 = vld [vmem:[%s2 + $0x8] sm:$0xf]
      %v606 = vld [vmem:[%s2 + $0xc] sm:$0xf]
      %v607 = vld [vmem:[%s2 + $0x10] sm:$0xf]
      %v608 = vld [vmem:[%s2 + $0x14] sm:$0xf]
      %v609 = vld [vmem:[%s2 + $0x18] sm:$0xf]
      %v610 = vld [vmem:[%s2 + $0x1c] sm:$0xf]
      %v611 = vld [vmem:[%s2 + $0x20] sm:$0xf]
      %v612 = vld [vmem:[%s2 + $0x24] sm:$0xf]
      %v613 = vld [vmem:[%s2 + $0x28] sm:$0xf]
      %v614 = vld [vmem:[%s2 + $0x2c] sm:$0xf]
      %v615 = vld [vmem:[%s2 + $0x30] sm:$0xf]
      %v616 = vld [vmem:[%s2 + $0x34] sm:$0xf]
      %v617 = vld [vmem:[%s2 + $0x38] sm:$0xf]
      %v618 = vld [vmem:[%s2 + $0x3c] sm:$0xf]
      %v619 = vld [vmem:[%s2 + $0x40] sm:$0xf]
      %v620 = vld [vmem:[%s2 + $0x44] sm:$0xf]
      %v621 = vld [vmem:[%s2 + $0x48] sm:$0xf]
      %v622 = vld [vmem:[%s2 + $0x4c] sm:$0xf]
      %v623 = vld [vmem:[%s2 + $0x50] sm:$0xf]
      %v624 = vld [vmem:[%s2 + $0x54] sm:$0xf]
      %v625 = vld [vmem:[%s2 + $0x58] sm:$0xf]
      %v626 = vld [vmem:[%s2 + $0x5c] sm:$0xf]
      %v627 = vld [vmem:[%s2 + $0x60] sm:$0xf]
      %v628 = vld [vmem:[%s2 + $0x64] sm:$0xf]
      %v629 = vld [vmem:[%s2 + $0x68] sm:$0xf]
      %v630 = vld [vmem:[%s2 + $0x6c] sm:$0xf]
      %v631 = vld [vmem:[%s2 + $0x70] sm:$0xf]
      %v632 = vld [vmem:[%s2 + $0x74] sm:$0xf]
      %v633 = vld [vmem:[%s2 + $0x78] sm:$0xf]
      %v634 = vld [vmem:[%s2 + $0x7c] sm:$0xf]
      %636 = vset.pattern.permute.xlu0 0
      %637 = vperm.xlu0 %636, %v571
      %v638 = vpop.permute.xlu0 %637
      %v641 = vunpack.c.l.s4 839922192
      %v642 = vunpack.c.0.s8 %v641
      %v643 = vlaneseq
      %v644 = vshrl.u32 %v643, 7
      %v645 = vsub.s32 %v642, %v644
      %v646 = vrot.slane %v638, %v645
      %648 = vset.pattern.permute.xlu0 0
      %649 = vperm.xlu0 %648, %v572
      %v650 = vpop.permute.xlu0 %649
      %v653 = vunpack.c.l.s4 839922192
      %v654 = vunpack.c.0.s8 %v653
      %v655 = vlaneseq
      %v656 = vshrl.u32 %v655, 7
      %v657 = vsub.s32 %v654, %v656
      %v658 = vrot.slane %v650, %v657
      %660 = vset.pattern.permute.xlu0 0
      %661 = vperm.xlu0 %660, %v573
      %v662 = vpop.permute.xlu0 %661
      %v665 = vunpack.c.l.s4 839922192
      %v666 = vunpack.c.0.s8 %v665
      %v667 = vlaneseq
      %v668 = vshrl.u32 %v667, 7
      %v669 = vsub.s32 %v666, %v668
      %v670 = vrot.slane %v662, %v669
      %672 = vset.pattern.permute.xlu0 0
      %673 = vperm.xlu0 %672, %v574
      %v674 = vpop.permute.xlu0 %673
      %v677 = vunpack.c.l.s4 839922192
      %v678 = vunpack.c.0.s8 %v677
      %v679 = vlaneseq
      %v680 = vshrl.u32 %v679, 7
      %v681 = vsub.s32 %v678, %v680
      %v682 = vrot.slane %v674, %v681
      %684 = vset.pattern.permute.xlu0 0
      %685 = vperm.xlu0 %684, %v575
      %v686 = vpop.permute.xlu0 %685
      %v689 = vunpack.c.l.s4 839922192
      %v690 = vunpack.c.0.s8 %v689
      %v691 = vlaneseq
      %v692 = vshrl.u32 %v691, 7
      %v693 = vsub.s32 %v690, %v692
      %v694 = vrot.slane %v686, %v693
      %696 = vset.pattern.permute.xlu0 0
      %697 = vperm.xlu0 %696, %v576
      %v698 = vpop.permute.xlu0 %697
      %v701 = vunpack.c.l.s4 839922192
      %v702 = vunpack.c.0.s8 %v701
      %v703 = vlaneseq
      %v704 = vshrl.u32 %v703, 7
      %v705 = vsub.s32 %v702, %v704
      %v706 = vrot.slane %v698, %v705
      %708 = vset.pattern.permute.xlu0 0
      %709 = vperm.xlu0 %708, %v577
      %v710 = vpop.permute.xlu0 %709
      %v713 = vunpack.c.l.s4 839922192
      %v714 = vunpack.c.0.s8 %v713
      %v715 = vlaneseq
      %v716 = vshrl.u32 %v715, 7
      %v717 = vsub.s32 %v714, %v716
      %v718 = vrot.slane %v710, %v717
      %720 = vset.pattern.permute.xlu0 0
      %721 = vperm.xlu0 %720, %v578
      %v722 = vpop.permute.xlu0 %721
      %v725 = vunpack.c.l.s4 839922192
      %v726 = vunpack.c.0.s8 %v725
      %v727 = vlaneseq
      %v728 = vshrl.u32 %v727, 7
      %v729 = vsub.s32 %v726, %v728
      %v730 = vrot.slane %v722, %v729
      %732 = vset.pattern.permute.xlu0 0
      %733 = vperm.xlu0 %732, %v579
      %v734 = vpop.permute.xlu0 %733
      %v737 = vunpack.c.l.s4 839922192
      %v738 = vunpack.c.0.s8 %v737
      %v739 = vlaneseq
      %v740 = vshrl.u32 %v739, 7
      %v741 = vsub.s32 %v738, %v740
      %v742 = vrot.slane %v734, %v741
      %744 = vset.pattern.permute.xlu0 0
      %745 = vperm.xlu0 %744, %v580
      %v746 = vpop.permute.xlu0 %745
      %v749 = vunpack.c.l.s4 839922192
      %v750 = vunpack.c.0.s8 %v749
      %v751 = vlaneseq
      %v752 = vshrl.u32 %v751, 7
      %v753 = vsub.s32 %v750, %v752
      %v754 = vrot.slane %v746, %v753
      %756 = vset.pattern.permute.xlu0 0
      %757 = vperm.xlu0 %756, %v581
      %v758 = vpop.permute.xlu0 %757
      %v761 = vunpack.c.l.s4 839922192
      %v762 = vunpack.c.0.s8 %v761
      %v763 = vlaneseq
      %v764 = vshrl.u32 %v763, 7
      %v765 = vsub.s32 %v762, %v764
      %v766 = vrot.slane %v758, %v765
      %768 = vset.pattern.permute.xlu0 0
      %769 = vperm.xlu0 %768, %v582
      %v770 = vpop.permute.xlu0 %769
      %v773 = vunpack.c.l.s4 839922192
      %v774 = vunpack.c.0.s8 %v773
      %v775 = vlaneseq
      %v776 = vshrl.u32 %v775, 7
      %v777 = vsub.s32 %v774, %v776
      %v778 = vrot.slane %v770, %v777
      %780 = vset.pattern.permute.xlu0 0
      %781 = vperm.xlu0 %780, %v583
      %v782 = vpop.permute.xlu0 %781
      %v785 = vunpack.c.l.s4 839922192
      %v786 = vunpack.c.0.s8 %v785
      %v787 = vlaneseq
      %v788 = vshrl.u32 %v787, 7
      %v789 = vsub.s32 %v786, %v788
      %v790 = vrot.slane %v782, %v789
      %792 = vset.pattern.permute.xlu0 0
      %793 = vperm.xlu0 %792, %v584
      %v794 = vpop.permute.xlu0 %793
      %v797 = vunpack.c.l.s4 839922192
      %v798 = vunpack.c.0.s8 %v797
      %v799 = vlaneseq
      %v800 = vshrl.u32 %v799, 7
      %v801 = vsub.s32 %v798, %v800
      %v802 = vrot.slane %v794, %v801
      %804 = vset.pattern.permute.xlu0 0
      %805 = vperm.xlu0 %804, %v585
      %v806 = vpop.permute.xlu0 %805
      %v809 = vunpack.c.l.s4 839922192
      %v810 = vunpack.c.0.s8 %v809
      %v811 = vlaneseq
      %v812 = vshrl.u32 %v811, 7
      %v813 = vsub.s32 %v810, %v812
      %v814 = vrot.slane %v806, %v813
      %816 = vset.pattern.permute.xlu0 0
      %817 = vperm.xlu0 %816, %v586
      %v818 = vpop.permute.xlu0 %817
      %v821 = vunpack.c.l.s4 839922192
      %v822 = vunpack.c.0.s8 %v821
      %v823 = vlaneseq
      %v824 = vshrl.u32 %v823, 7
      %v825 = vsub.s32 %v822, %v824
      %v826 = vrot.slane %v818, %v825
      %828 = vset.pattern.permute.xlu0 0
      %829 = vperm.xlu0 %828, %v587
      %v830 = vpop.permute.xlu0 %829
      %v833 = vunpack.c.l.s4 839922192
      %v834 = vunpack.c.0.s8 %v833
      %v835 = vlaneseq
      %v836 = vshrl.u32 %v835, 7
      %v837 = vsub.s32 %v834, %v836
      %v838 = vrot.slane %v830, %v837
      %840 = vset.pattern.permute.xlu0 0
      %841 = vperm.xlu0 %840, %v588
      %v842 = vpop.permute.xlu0 %841
      %v845 = vunpack.c.l.s4 839922192
      %v846 = vunpack.c.0.s8 %v845
      %v847 = vlaneseq
      %v848 = vshrl.u32 %v847, 7
      %v849 = vsub.s32 %v846, %v848
      %v850 = vrot.slane %v842, %v849
      %852 = vset.pattern.permute.xlu0 0
      %853 = vperm.xlu0 %852, %v589
      %v854 = vpop.permute.xlu0 %853
      %v857 = vunpack.c.l.s4 839922192
      %v858 = vunpack.c.0.s8 %v857
      %v859 = vlaneseq
      %v860 = vshrl.u32 %v859, 7
      %v861 = vsub.s32 %v858, %v860
      %v862 = vrot.slane %v854, %v861
      %864 = vset.pattern.permute.xlu0 0
      %865 = vperm.xlu0 %864, %v590
      %v866 = vpop.permute.xlu0 %865
      %v869 = vunpack.c.l.s4 839922192
      %v870 = vunpack.c.0.s8 %v869
      %v871 = vlaneseq
      %v872 = vshrl.u32 %v871, 7
      %v873 = vsub.s32 %v870, %v872
      %v874 = vrot.slane %v866, %v873
      %876 = vset.pattern.permute.xlu0 0
      %877 = vperm.xlu0 %876, %v591
      %v878 = vpop.permute.xlu0 %877
      %v881 = vunpack.c.l.s4 839922192
      %v882 = vunpack.c.0.s8 %v881
      %v883 = vlaneseq
      %v884 = vshrl.u32 %v883, 7
      %v885 = vsub.s32 %v882, %v884
      %v886 = vrot.slane %v878, %v885
      %888 = vset.pattern.permute.xlu0 0
      %889 = vperm.xlu0 %888, %v592
      %v890 = vpop.permute.xlu0 %889
      %v893 = vunpack.c.l.s4 839922192
      %v894 = vunpack.c.0.s8 %v893
      %v895 = vlaneseq
      %v896 = vshrl.u32 %v895, 7
      %v897 = vsub.s32 %v894, %v896
      %v898 = vrot.slane %v890, %v897
      %900 = vset.pattern.permute.xlu0 0
      %901 = vperm.xlu0 %900, %v593
      %v902 = vpop.permute.xlu0 %901
      %v905 = vunpack.c.l.s4 839922192
      %v906 = vunpack.c.0.s8 %v905
      %v907 = vlaneseq
      %v908 = vshrl.u32 %v907, 7
      %v909 = vsub.s32 %v906, %v908
      %v910 = vrot.slane %v902, %v909
      %912 = vset.pattern.permute.xlu0 0
      %913 = vperm.xlu0 %912, %v594
      %v914 = vpop.permute.xlu0 %913
      %v917 = vunpack.c.l.s4 839922192
      %v918 = vunpack.c.0.s8 %v917
      %v919 = vlaneseq
      %v920 = vshrl.u32 %v919, 7
      %v921 = vsub.s32 %v918, %v920
      %v922 = vrot.slane %v914, %v921
      %924 = vset.pattern.permute.xlu0 0
      %925 = vperm.xlu0 %924, %v595
      %v926 = vpop.permute.xlu0 %925
      %v929 = vunpack.c.l.s4 839922192
      %v930 = vunpack.c.0.s8 %v929
      %v931 = vlaneseq
      %v932 = vshrl.u32 %v931, 7
      %v933 = vsub.s32 %v930, %v932
      %v934 = vrot.slane %v926, %v933
      %936 = vset.pattern.permute.xlu0 0
      %937 = vperm.xlu0 %936, %v596
      %v938 = vpop.permute.xlu0 %937
      %v941 = vunpack.c.l.s4 839922192
      %v942 = vunpack.c.0.s8 %v941
      %v943 = vlaneseq
      %v944 = vshrl.u32 %v943, 7
      %v945 = vsub.s32 %v942, %v944
      %v946 = vrot.slane %v938, %v945
      %948 = vset.pattern.permute.xlu0 0
      %949 = vperm.xlu0 %948, %v597
      %v950 = vpop.permute.xlu0 %949
      %v953 = vunpack.c.l.s4 839922192
      %v954 = vunpack.c.0.s8 %v953
      %v955 = vlaneseq
      %v956 = vshrl.u32 %v955, 7
      %v957 = vsub.s32 %v954, %v956
      %v958 = vrot.slane %v950, %v957
      %960 = vset.pattern.permute.xlu0 0
      %961 = vperm.xlu0 %960, %v598
      %v962 = vpop.permute.xlu0 %961
      %v965 = vunpack.c.l.s4 839922192
      %v966 = vunpack.c.0.s8 %v965
      %v967 = vlaneseq
      %v968 = vshrl.u32 %v967, 7
      %v969 = vsub.s32 %v966, %v968
      %v970 = vrot.slane %v962, %v969
      %972 = vset.pattern.permute.xlu0 0
      %973 = vperm.xlu0 %972, %v599
      %v974 = vpop.permute.xlu0 %973
      %v977 = vunpack.c.l.s4 839922192
      %v978 = vunpack.c.0.s8 %v977
      %v979 = vlaneseq
      %v980 = vshrl.u32 %v979, 7
      %v981 = vsub.s32 %v978, %v980
      %v982 = vrot.slane %v974, %v981
      %984 = vset.pattern.permute.xlu0 0
      %985 = vperm.xlu0 %984, %v600
      %v986 = vpop.permute.xlu0 %985
      %v989 = vunpack.c.l.s4 839922192
      %v990 = vunpack.c.0.s8 %v989
      %v991 = vlaneseq
      %v992 = vshrl.u32 %v991, 7
      %v993 = vsub.s32 %v990, %v992
      %v994 = vrot.slane %v986, %v993
      %996 = vset.pattern.permute.xlu0 0
      %997 = vperm.xlu0 %996, %v601
      %v998 = vpop.permute.xlu0 %997
      %v1001 = vunpack.c.l.s4 839922192
      %v1002 = vunpack.c.0.s8 %v1001
      %v1003 = vlaneseq
      %v1004 = vshrl.u32 %v1003, 7
      %v1005 = vsub.s32 %v1002, %v1004
      %v1006 = vrot.slane %v998, %v1005
      %1008 = vset.pattern.permute.xlu0 0
      %1009 = vperm.xlu0 %1008, %v602
      %v1010 = vpop.permute.xlu0 %1009
      %v1013 = vunpack.c.l.s4 839922192
      %v1014 = vunpack.c.0.s8 %v1013
      %v1015 = vlaneseq
      %v1016 = vshrl.u32 %v1015, 7
      %v1017 = vsub.s32 %v1014, %v1016
      %v1018 = vrot.slane %v1010, %v1017
      %v1051 = vunpack.c.l.b16 %v646
      %v1052 = vunpack.c.l.b16 %v658
      %v1053 = vunpack.c.l.b16 %v670
      %v1054 = vunpack.c.l.b16 %v682
      %v1055 = vunpack.c.l.b16 %v694
      %v1056 = vunpack.c.l.b16 %v706
      %v1057 = vunpack.c.l.b16 %v718
      %v1058 = vunpack.c.l.b16 %v730
      %v1059 = vunpack.c.l.b16 %v742
      %v1060 = vunpack.c.l.b16 %v754
      %v1061 = vunpack.c.l.b16 %v766
      %v1062 = vunpack.c.l.b16 %v778
      %v1063 = vunpack.c.l.b16 %v790
      %v1064 = vunpack.c.l.b16 %v802
      %v1065 = vunpack.c.l.b16 %v814
      %v1066 = vunpack.c.l.b16 %v826
      %v1067 = vunpack.c.l.b16 %v838
      %v1068 = vunpack.c.l.b16 %v850
      %v1069 = vunpack.c.l.b16 %v862
      %v1070 = vunpack.c.l.b16 %v874
      %v1071 = vunpack.c.l.b16 %v886
      %v1072 = vunpack.c.l.b16 %v898
      %v1073 = vunpack.c.l.b16 %v910
      %v1074 = vunpack.c.l.b16 %v922
      %v1075 = vunpack.c.l.b16 %v934
      %v1076 = vunpack.c.l.b16 %v946
      %v1077 = vunpack.c.l.b16 %v958
      %v1078 = vunpack.c.l.b16 %v970
      %v1079 = vunpack.c.l.b16 %v982
      %v1080 = vunpack.c.l.b16 %v994
      %v1081 = vunpack.c.l.b16 %v1006
      %v1082 = vunpack.c.l.b16 %v1018
      %v1083 = vpack.c.b16 %v1052, %v1051
      %v1084 = vpack.c.b16 %v1054, %v1053
      %v1085 = vpack.c.b16 %v1056, %v1055
      %v1086 = vpack.c.b16 %v1058, %v1057
      %v1087 = vpack.c.b16 %v1060, %v1059
      %v1088 = vpack.c.b16 %v1062, %v1061
      %v1089 = vpack.c.b16 %v1064, %v1063
      %v1090 = vpack.c.b16 %v1066, %v1065
      %v1091 = vpack.c.b16 %v1068, %v1067
      %v1092 = vpack.c.b16 %v1070, %v1069
      %v1093 = vpack.c.b16 %v1072, %v1071
      %v1094 = vpack.c.b16 %v1074, %v1073
      %v1095 = vpack.c.b16 %v1076, %v1075
      %v1096 = vpack.c.b16 %v1078, %v1077
      %v1097 = vpack.c.b16 %v1080, %v1079
      %v1098 = vpack.c.b16 %v1082, %v1081
      %vm1099 = vsmask.f32 3328
      %v1101 = vshrl.u32 %v1083, 16
      %v1103 = vrot.slane %v1101, 4
      %v1104 = vshll.u32 %v1083, 16
      %v1106 = vrot.slane %v1104, 5
      %v1107 = vor.u32 %v1103, %v1106
      %v1109 = vshrl.u32 %v1084, 16
      %v1111 = vrot.slane %v1109, 4
      %v1112 = vshll.u32 %v1084, 16
      %v1114 = vrot.slane %v1112, 5
      %v1115 = vor.u32 %v1111, %v1114
      %v1116 = vsel %vm1099, %v1107, %v1115
      %v1118 = vshrl.u32 %v1085, 16
      %v1120 = vrot.slane %v1118, 4
      %v1121 = vshll.u32 %v1085, 16
      %v1123 = vrot.slane %v1121, 5
      %v1124 = vor.u32 %v1120, %v1123
      %v1125 = vsel %vm1099, %v1115, %v1124
      %v1127 = vshrl.u32 %v1086, 16
      %v1129 = vrot.slane %v1127, 4
      %v1130 = vshll.u32 %v1086, 16
      %v1132 = vrot.slane %v1130, 5
      %v1133 = vor.u32 %v1129, %v1132
      %v1134 = vsel %vm1099, %v1124, %v1133
      %v1136 = vshrl.u32 %v1087, 16
      %v1138 = vrot.slane %v1136, 4
      %v1139 = vshll.u32 %v1087, 16
      %v1141 = vrot.slane %v1139, 5
      %v1142 = vor.u32 %v1138, %v1141
      %v1143 = vsel %vm1099, %v1133, %v1142
      %v1145 = vshrl.u32 %v1088, 16
      %v1147 = vrot.slane %v1145, 4
      %v1148 = vshll.u32 %v1088, 16
      %v1150 = vrot.slane %v1148, 5
      %v1151 = vor.u32 %v1147, %v1150
      %v1152 = vsel %vm1099, %v1142, %v1151
      %v1154 = vshrl.u32 %v1089, 16
      %v1156 = vrot.slane %v1154, 4
      %v1157 = vshll.u32 %v1089, 16
      %v1159 = vrot.slane %v1157, 5
      %v1160 = vor.u32 %v1156, %v1159
      %v1161 = vsel %vm1099, %v1151, %v1160
      %v1163 = vshrl.u32 %v1090, 16
      %v1165 = vrot.slane %v1163, 4
      %v1166 = vshll.u32 %v1090, 16
      %v1168 = vrot.slane %v1166, 5
      %v1169 = vor.u32 %v1165, %v1168
      %v1170 = vsel %vm1099, %v1160, %v1169
      %v1172 = vshrl.u32 %v1091, 16
      %v1174 = vrot.slane %v1172, 4
      %v1175 = vshll.u32 %v1091, 16
      %v1177 = vrot.slane %v1175, 5
      %v1178 = vor.u32 %v1174, %v1177
      %v1179 = vsel %vm1099, %v1169, %v1178
      %v1181 = vshrl.u32 %v1092, 16
      %v1183 = vrot.slane %v1181, 4
      %v1184 = vshll.u32 %v1092, 16
      %v1186 = vrot.slane %v1184, 5
      %v1187 = vor.u32 %v1183, %v1186
      %v1188 = vsel %vm1099, %v1178, %v1187
      %v1190 = vshrl.u32 %v1093, 16
      %v1192 = vrot.slane %v1190, 4
      %v1193 = vshll.u32 %v1093, 16
      %v1195 = vrot.slane %v1193, 5
      %v1196 = vor.u32 %v1192, %v1195
      %v1197 = vsel %vm1099, %v1187, %v1196
      %v1199 = vshrl.u32 %v1094, 16
      %v1201 = vrot.slane %v1199, 4
      %v1202 = vshll.u32 %v1094, 16
      %v1204 = vrot.slane %v1202, 5
      %v1205 = vor.u32 %v1201, %v1204
      %v1206 = vsel %vm1099, %v1196, %v1205
      %v1208 = vshrl.u32 %v1095, 16
      %v1210 = vrot.slane %v1208, 4
      %v1211 = vshll.u32 %v1095, 16
      %v1213 = vrot.slane %v1211, 5
      %v1214 = vor.u32 %v1210, %v1213
      %v1215 = vsel %vm1099, %v1205, %v1214
      %v1217 = vshrl.u32 %v1096, 16
      %v1219 = vrot.slane %v1217, 4
      %v1220 = vshll.u32 %v1096, 16
      %v1222 = vrot.slane %v1220, 5
      %v1223 = vor.u32 %v1219, %v1222
      %v1224 = vsel %vm1099, %v1214, %v1223
      %v1226 = vshrl.u32 %v1097, 16
      %v1228 = vrot.slane %v1226, 4
      %v1229 = vshll.u32 %v1097, 16
      %v1231 = vrot.slane %v1229, 5
      %v1232 = vor.u32 %v1228, %v1231
      %v1233 = vsel %vm1099, %v1223, %v1232
      %v1235 = vshrl.u32 %v1098, 16
      %v1237 = vrot.slane %v1235, 4
      %v1238 = vshll.u32 %v1098, 16
      %v1240 = vrot.slane %v1238, 5
      %v1241 = vor.u32 %v1237, %v1240
      %v1242 = vsel %vm1099, %v1232, %v1241
      %v1260 = vmul.bf16 %v552, %v1107
      %v1261 = vmul.bf16 %v553, %v1116
      %v1262 = vmul.bf16 %v554, %v1125
      %v1263 = vmul.bf16 %v555, %v1134
      %v1264 = vmul.bf16 %v556, %v1143
      %v1265 = vmul.bf16 %v557, %v1152
      %v1266 = vmul.bf16 %v558, %v1161
      %v1267 = vmul.bf16 %v559, %v1170
      %v1268 = vmul.bf16 %v560, %v1179
      %v1269 = vmul.bf16 %v561, %v1188
      %v1270 = vmul.bf16 %v562, %v1197
      %v1271 = vmul.bf16 %v563, %v1206
      %v1272 = vmul.bf16 %v564, %v1215
      %v1273 = vmul.bf16 %v565, %v1224
      %v1274 = vmul.bf16 %v566, %v1233
      %v1275 = vmul.bf16 %v567, %v1242
      %v1276 = vmul.bf16 %v568, %v1241
      %v1277 = vld [vmem:[%s4] sm:$0x3]
      %v1278 = vld [vmem:[%s4] sm:$0xc]
      %v1296 = vrot.slane %v552, 4
      %v1297 = vrot.slane %v553, 4
      %v1298 = vsel %vm484, %v1296, %v1297
      %v1299 = vrot.slane %v554, 4
      %v1300 = vsel %vm484, %v1297, %v1299
      %v1301 = vrot.slane %v555, 4
      %v1302 = vsel %vm484, %v1299, %v1301
      %v1303 = vrot.slane %v556, 4
      %v1304 = vsel %vm484, %v1301, %v1303
      %v1305 = vrot.slane %v557, 4
      %v1306 = vsel %vm484, %v1303, %v1305
      %v1307 = vrot.slane %v558, 4
      %v1308 = vsel %vm484, %v1305, %v1307
      %v1309 = vrot.slane %v559, 4
      %v1310 = vsel %vm484, %v1307, %v1309
      %v1311 = vrot.slane %v560, 4
      %v1312 = vsel %vm484, %v1309, %v1311
      %v1313 = vrot.slane %v561, 4
      %v1314 = vsel %vm484, %v1311, %v1313
      %v1315 = vrot.slane %v562, 4
      %v1316 = vsel %vm484, %v1313, %v1315
      %v1317 = vrot.slane %v563, 4
      %v1318 = vsel %vm484, %v1315, %v1317
      %v1319 = vrot.slane %v564, 4
      %v1320 = vsel %vm484, %v1317, %v1319
      %v1321 = vrot.slane %v565, 4
      %v1322 = vsel %vm484, %v1319, %v1321
      %v1323 = vrot.slane %v566, 4
      %v1324 = vsel %vm484, %v1321, %v1323
      %v1325 = vrot.slane %v567, 4
      %v1326 = vsel %vm484, %v1323, %v1325
      %v1327 = vrot.slane %v568, 4
      %v1328 = vsel %vm484, %v1325, %v1327
      %v1330 = vunpack.c.l.b16 %v1278
      %v1331 = vpack.c.b16 %v1330, %v1330
      %v1332 = vrot.slane %v1331, 2
      %v1334 = vsel %vm448, %v1298, 0
      %v1337 = vsel %vm448, %v1300, 0
      %v1340 = vsel %vm448, %v1302, 0
      %v1343 = vsel %vm448, %v1304, 0
      %v1346 = vsel %vm448, %v1306, 0
      %v1349 = vsel %vm448, %v1308, 0
      %v1352 = vsel %vm448, %v1310, 0
      %v1355 = vsel %vm448, %v1312, 0
      %v1358 = vsel %vm448, %v1314, 0
      %v1361 = vsel %vm448, %v1316, 0
      %v1364 = vsel %vm448, %v1318, 0
      %v1367 = vsel %vm448, %v1320, 0
      %v1370 = vsel %vm448, %v1322, 0
      %v1373 = vsel %vm448, %v1324, 0
      %v1376 = vsel %vm448, %v1326, 0
      %v1379 = vsel %vm448, %v1328, 0
      %vm1381 = vcmask 1041408
      %v1383 = vsel %vm1381, %v1332, 0
      %1385 = vmatprep.subr.bf16.mxu0 0
      %1386 = vmatpush1.bf16.msra.mxu0 %v1383
      %1387 = vmatprep.subr.bf16.mxu0 0
      %1388 = vmatpush1.bf16.msra.mxu0 0
      %1389 = vmatprep.subr.bf16.mxu0 0
      %1390 = vmatpush1.bf16.msra.mxu0 0
      %1391 = vmatprep.subr.bf16.mxu0 0
      %1392 = vmatpush1.bf16.msra.mxu0 0
      %1393 = vmatprep.subr.bf16.mxu0 0
      %1394 = vmatpush1.bf16.msra.mxu0 0
      %1395 = vmatprep.subr.bf16.mxu0 0
      %1396 = vmatpush1.bf16.msra.mxu0 0
      %1397 = vmatprep.subr.bf16.mxu0 0
      %1398 = vmatpush1.bf16.msra.mxu0 0
      %1399 = vmatprep.subr.bf16.mxu0 0
      %1400 = vmatpush1.bf16.msra.mxu0 0
      %1401 = vmatprep.subr.bf16.mxu0 0
      %1402 = vmatpush1.bf16.msra.mxu0 0
      %1403 = vmatprep.subr.bf16.mxu0 0
      %1404 = vmatpush1.bf16.msra.mxu0 0
      %1405 = vmatprep.subr.bf16.mxu0 0
      %1406 = vmatpush1.bf16.msra.mxu0 0
      %1407 = vmatprep.subr.bf16.mxu0 0
      %1408 = vmatpush1.bf16.msra.mxu0 0
      %1409 = vmatprep.subr.bf16.mxu0 0
      %1410 = vmatpush1.bf16.msra.mxu0 0
      %1411 = vmatprep.subr.bf16.mxu0 0
      %1412 = vmatpush1.bf16.msra.mxu0 0
      %1413 = vmatprep.subr.bf16.mxu0 0
      %1414 = vmatpush1.bf16.msra.mxu0 0
      %1415 = vmatprep.subr.bf16.mxu0 0
      %1416 = vmatpush1.bf16.msra.mxu0 0
      %1417 = vmatprep.mubr.bf16.mxu0 0
      %1418 = vmatmul.mubr.bf16.gmra.mrb[0].mxu0 %v1334
      %v1419 = vpop.f32.mrb[0].mxu0
      %v1420 = vadd.f32 0.0, %v1419
      %v1421 = vpop.f32.mrb[0].mxu0
      %v1422 = vpop.f32.mrb[0].mxu0
      %v1423 = vadd.f32 0.0, %v1422
      %v1424 = vpop.f32.mrb[0].mxu0
      %1425 = vmatprep.mubr.bf16.mxu0 0
      %1426 = vmatmul.mubr.bf16.gmra.mrb[0].mxu0 %v1337
      %v1427 = vpop.f32.mrb[0].mxu0
      %v1428 = vadd.f32 0.0, %v1427
      %v1429 = vpop.f32.mrb[0].mxu0
      %v1430 = vpop.f32.mrb[0].mxu0
      %v1431 = vadd.f32 0.0, %v1430
      %v1432 = vpop.f32.mrb[0].mxu0
      %1433 = vmatprep.mubr.bf16.mxu0 0
      %1434 = vmatmul.mubr.bf16.gmra.mrb[0].mxu0 %v1340
      %v1435 = vpop.f32.mrb[0].mxu0
      %v1436 = vadd.f32 0.0, %v1435
      %v1437 = vpop.f32.mrb[0].mxu0
      %v1438 = vpop.f32.mrb[0].mxu0
      %v1439 = vadd.f32 0.0, %v1438
      %v1440 = vpop.f32.mrb[0].mxu0
      %1441 = vmatprep.mubr.bf16.mxu0 0
      %1442 = vmatmul.mubr.bf16.gmra.mrb[0].mxu0 %v1343
      %v1443 = vpop.f32.mrb[0].mxu0
      %v1444 = vadd.f32 0.0, %v1443
      %v1445 = vpop.f32.mrb[0].mxu0
      %v1446 = vpop.f32.mrb[0].mxu0
      %v1447 = vadd.f32 0.0, %v1446
      %v1448 = vpop.f32.mrb[0].mxu0
      %1449 = vmatprep.mubr.bf16.mxu0 0
      %1450 = vmatmul.mubr.bf16.gmra.mrb[0].mxu0 %v1346
      %v1451 = vpop.f32.mrb[0].mxu0
      %v1452 = vadd.f32 0.0, %v1451
      %v1453 = vpop.f32.mrb[0].mxu0
      %v1454 = vpop.f32.mrb[0].mxu0
      %v1455 = vadd.f32 0.0, %v1454
      %v1456 = vpop.f32.mrb[0].mxu0
      %1457 = vmatprep.mubr.bf16.mxu0 0
      %1458 = vmatmul.mubr.bf16.gmra.mrb[0].mxu0 %v1349
      %v1459 = vpop.f32.mrb[0].mxu0
      %v1460 = vadd.f32 0.0, %v1459
      %v1461 = vpop.f32.mrb[0].mxu0
      %v1462 = vpop.f32.mrb[0].mxu0
      %v1463 = vadd.f32 0.0, %v1462
      %v1464 = vpop.f32.mrb[0].mxu0
      %1465 = vmatprep.mubr.bf16.mxu0 0
      %1466 = vmatmul.mubr.bf16.gmra.mrb[0].mxu0 %v1352
      %v1467 = vpop.f32.mrb[0].mxu0
      %v1468 = vadd.f32 0.0, %v1467
      %v1469 = vpop.f32.mrb[0].mxu0
      %v1470 = vpop.f32.mrb[0].mxu0
      %v1471 = vadd.f32 0.0, %v1470
      %v1472 = vpop.f32.mrb[0].mxu0
      %1473 = vmatprep.mubr.bf16.mxu0 0
      %1474 = vmatmul.mubr.bf16.gmra.mrb[0].mxu0 %v1355
      %v1475 = vpop.f32.mrb[0].mxu0
      %v1476 = vadd.f32 0.0, %v1475
      %v1477 = vpop.f32.mrb[0].mxu0
      %v1478 = vpop.f32.mrb[0].mxu0
      %v1479 = vadd.f32 0.0, %v1478
      %v1480 = vpop.f32.mrb[0].mxu0
      %1481 = vmatprep.mubr.bf16.mxu0 0
      %1482 = vmatmul.mubr.bf16.gmra.mrb[0].mxu0 %v1358
      %v1483 = vpop.f32.mrb[0].mxu0
      %v1484 = vadd.f32 0.0, %v1483
      %v1485 = vpop.f32.mrb[0].mxu0
      %v1486 = vpop.f32.mrb[0].mxu0
      %v1487 = vadd.f32 0.0, %v1486
      %v1488 = vpop.f32.mrb[0].mxu0
      %1489 = vmatprep.mubr.bf16.mxu0 0
      %1490 = vmatmul.mubr.bf16.gmra.mrb[0].mxu0 %v1361
      %v1491 = vpop.f32.mrb[0].mxu0
      %v1492 = vadd.f32 0.0, %v1491
      %v1493 = vpop.f32.mrb[0].mxu0
      %v1494 = vpop.f32.mrb[0].mxu0
      %v1495 = vadd.f32 0.0, %v1494
      %v1496 = vpop.f32.mrb[0].mxu0
      %1497 = vmatprep.mubr.bf16.mxu0 0
      %1498 = vmatmul.mubr.bf16.gmra.mrb[0].mxu0 %v1364
      %v1499 = vpop.f32.mrb[0].mxu0
      %v1500 = vadd.f32 0.0, %v1499
      %v1501 = vpop.f32.mrb[0].mxu0
      %v1502 = vpop.f32.mrb[0].mxu0
      %v1503 = vadd.f32 0.0, %v1502
      %v1504 = vpop.f32.mrb[0].mxu0
      %1505 = vmatprep.mubr.bf16.mxu0 0
      %1506 = vmatmul.mubr.bf16.gmra.mrb[0].mxu0 %v1367
      %v1507 = vpop.f32.mrb[0].mxu0
      %v1508 = vadd.f32 0.0, %v1507
      %v1509 = vpop.f32.mrb[0].mxu0
      %v1510 = vpop.f32.mrb[0].mxu0
      %v1511 = vadd.f32 0.0, %v1510
      %v1512 = vpop.f32.mrb[0].mxu0
      %1513 = vmatprep.mubr.bf16.mxu0 0
      %1514 = vmatmul.mubr.bf16.gmra.mrb[0].mxu0 %v1370
      %v1515 = vpop.f32.mrb[0].mxu0
      %v1516 = vadd.f32 0.0, %v1515
      %v1517 = vpop.f32.mrb[0].mxu0
      %v1518 = vpop.f32.mrb[0].mxu0
      %v1519 = vadd.f32 0.0, %v1518
      %v1520 = vpop.f32.mrb[0].mxu0
      %1521 = vmatprep.mubr.bf16.mxu0 0
      %1522 = vmatmul.mubr.bf16.gmra.mrb[0].mxu0 %v1373
      %v1523 = vpop.f32.mrb[0].mxu0
      %v1524 = vadd.f32 0.0, %v1523
      %v1525 = vpop.f32.mrb[0].mxu0
      %v1526 = vpop.f32.mrb[0].mxu0
      %v1527 = vadd.f32 0.0, %v1526
      %v1528 = vpop.f32.mrb[0].mxu0
      %1529 = vmatprep.mubr.bf16.mxu0 0
      %1530 = vmatmul.mubr.bf16.gmra.mrb[0].mxu0 %v1376
      %v1531 = vpop.f32.mrb[0].mxu0
      %v1532 = vadd.f32 0.0, %v1531
      %v1533 = vpop.f32.mrb[0].mxu0
      %v1534 = vpop.f32.mrb[0].mxu0
      %v1535 = vadd.f32 0.0, %v1534
      %v1536 = vpop.f32.mrb[0].mxu0
      %1537 = vmatprep.mubr.bf16.mxu0 0
      %1538 = vmatmul.mubr.bf16.gmra.mrb[0].mxu0 %v1379
      %v1539 = vpop.f32.mrb[0].mxu0
      %v1540 = vadd.f32 0.0, %v1539
      %v1541 = vpop.f32.mrb[0].mxu0
      %v1542 = vpop.f32.mrb[0].mxu0
      %v1543 = vadd.f32 0.0, %v1542
      %v1544 = vpop.f32.mrb[0].mxu0
      %1545 = vdwg.mxu0
      %vm1546 = vsmask.f32 4352
      %v1548 = vshrl.u32 %v1260, 16
      %v1550 = vrot.slane %v1548, 3
      %v1551 = vshll.u32 %v1260, 16
      %v1553 = vrot.slane %v1551, 4
      %v1554 = vor.u32 %v1550, %v1553
      %v1556 = vshrl.u32 %v1261, 16
      %v1558 = vrot.slane %v1556, 3
      %v1559 = vshll.u32 %v1261, 16
      %v1561 = vrot.slane %v1559, 4
      %v1562 = vor.u32 %v1558, %v1561
      %v1563 = vsel %vm1546, %v1554, %v1562
      %v1565 = vshrl.u32 %v1262, 16
      %v1567 = vrot.slane %v1565, 3
      %v1568 = vshll.u32 %v1262, 16
      %v1570 = vrot.slane %v1568, 4
      %v1571 = vor.u32 %v1567, %v1570
      %v1572 = vsel %vm1546, %v1562, %v1571
      %v1574 = vshrl.u32 %v1263, 16
      %v1576 = vrot.slane %v1574, 3
      %v1577 = vshll.u32 %v1263, 16
      %v1579 = vrot.slane %v1577, 4
      %v1580 = vor.u32 %v1576, %v1579
      %v1581 = vsel %vm1546, %v1571, %v1580
      %v1583 = vshrl.u32 %v1264, 16
      %v1585 = vrot.slane %v1583, 3
      %v1586 = vshll.u32 %v1264, 16
      %v1588 = vrot.slane %v1586, 4
      %v1589 = vor.u32 %v1585, %v1588
      %v1590 = vsel %vm1546, %v1580, %v1589
      %v1592 = vshrl.u32 %v1265, 16
      %v1594 = vrot.slane %v1592, 3
      %v1595 = vshll.u32 %v1265, 16
      %v1597 = vrot.slane %v1595, 4
      %v1598 = vor.u32 %v1594, %v1597
      %v1599 = vsel %vm1546, %v1589, %v1598
      %v1601 = vshrl.u32 %v1266, 16
      %v1603 = vrot.slane %v1601, 3
      %v1604 = vshll.u32 %v1266, 16
      %v1606 = vrot.slane %v1604, 4
      %v1607 = vor.u32 %v1603, %v1606
      %v1608 = vsel %vm1546, %v1598, %v1607
      %v1610 = vshrl.u32 %v1267, 16
      %v1612 = vrot.slane %v1610, 3
      %v1613 = vshll.u32 %v1267, 16
      %v1615 = vrot.slane %v1613, 4
      %v1616 = vor.u32 %v1612, %v1615
      %v1617 = vsel %vm1546, %v1607, %v1616
      %v1619 = vshrl.u32 %v1268, 16
      %v1621 = vrot.slane %v1619, 3
      %v1622 = vshll.u32 %v1268, 16
      %v1624 = vrot.slane %v1622, 4
      %v1625 = vor.u32 %v1621, %v1624
      %v1626 = vsel %vm1546, %v1616, %v1625
      %v1628 = vshrl.u32 %v1269, 16
      %v1630 = vrot.slane %v1628, 3
      %v1631 = vshll.u32 %v1269, 16
      %v1633 = vrot.slane %v1631, 4
      %v1634 = vor.u32 %v1630, %v1633
      %v1635 = vsel %vm1546, %v1625, %v1634
      %v1637 = vshrl.u32 %v1270, 16
      %v1639 = vrot.slane %v1637, 3
      %v1640 = vshll.u32 %v1270, 16
      %v1642 = vrot.slane %v1640, 4
      %v1643 = vor.u32 %v1639, %v1642
      %v1644 = vsel %vm1546, %v1634, %v1643
      %v1646 = vshrl.u32 %v1271, 16
      %v1648 = vrot.slane %v1646, 3
      %v1649 = vshll.u32 %v1271, 16
      %v1651 = vrot.slane %v1649, 4
      %v1652 = vor.u32 %v1648, %v1651
      %v1653 = vsel %vm1546, %v1643, %v1652
      %v1655 = vshrl.u32 %v1272, 16
      %v1657 = vrot.slane %v1655, 3
      %v1658 = vshll.u32 %v1272, 16
      %v1660 = vrot.slane %v1658, 4
      %v1661 = vor.u32 %v1657, %v1660
      %v1662 = vsel %vm1546, %v1652, %v1661
      %v1664 = vshrl.u32 %v1273, 16
      %v1666 = vrot.slane %v1664, 3
      %v1667 = vshll.u32 %v1273, 16
      %v1669 = vrot.slane %v1667, 4
      %v1670 = vor.u32 %v1666, %v1669
      %v1671 = vsel %vm1546, %v1661, %v1670
      %v1673 = vshrl.u32 %v1274, 16
      %v1675 = vrot.slane %v1673, 3
      %v1676 = vshll.u32 %v1274, 16
      %v1678 = vrot.slane %v1676, 4
      %v1679 = vor.u32 %v1675, %v1678
      %v1680 = vsel %vm1546, %v1670, %v1679
      %v1682 = vshrl.u32 %v1275, 16
      %v1684 = vrot.slane %v1682, 3
      %v1685 = vshll.u32 %v1275, 16
      %v1687 = vrot.slane %v1685, 4
      %v1688 = vor.u32 %v1684, %v1687
      %v1689 = vsel %vm1546, %v1679, %v1688
      %v1691 = vshrl.u32 %v1276, 16
      %v1693 = vrot.slane %v1691, 3
      %v1694 = vshll.u32 %v1276, 16
      %v1696 = vrot.slane %v1694, 4
      %v1697 = vor.u32 %v1693, %v1696
      %v1698 = vsel %vm1546, %v1688, %v1697
      %v1700 = vsel %vm448, %v1563, 0
      %v1703 = vsel %vm448, %v1572, 0
      %v1706 = vsel %vm448, %v1581, 0
      %v1709 = vsel %vm448, %v1590, 0
      %v1712 = vsel %vm448, %v1599, 0
      %v1715 = vsel %vm448, %v1608, 0
      %v1718 = vsel %vm448, %v1617, 0
      %v1721 = vsel %vm448, %v1626, 0
      %v1724 = vsel %vm448, %v1635, 0
      %v1727 = vsel %vm448, %v1644, 0
      %v1730 = vsel %vm448, %v1653, 0
      %v1733 = vsel %vm448, %v1662, 0
      %v1736 = vsel %vm448, %v1671, 0
      %v1739 = vsel %vm448, %v1680, 0
      %v1742 = vsel %vm448, %v1689, 0
      %v1745 = vsel %vm448, %v1698, 0
      %v1748 = vsel %vm1381, %v1277, 0
      %1750 = vmatprep.subr.bf16.mxu0 0
      %1751 = vmatpush1.bf16.msra.mxu0 %v1748
      %1752 = vmatprep.subr.bf16.mxu0 0
      %1753 = vmatpush1.bf16.msra.mxu0 0
      %1754 = vmatprep.subr.bf16.mxu0 0
      %1755 = vmatpush1.bf16.msra.mxu0 0
      %1756 = vmatprep.subr.bf16.mxu0 0
      %1757 = vmatpush1.bf16.msra.mxu0 0
      %1758 = vmatprep.subr.bf16.mxu0 0
      %1759 = vmatpush1.bf16.msra.mxu0 0
      %1760 = vmatprep.subr.bf16.mxu0 0
      %1761 = vmatpush1.bf16.msra.mxu0 0
      %1762 = vmatprep.subr.bf16.mxu0 0
      %1763 = vmatpush1.bf16.msra.mxu0 0
      %1764 = vmatprep.subr.bf16.mxu0 0
      %1765 = vmatpush1.bf16.msra.mxu0 0
      %1766 = vmatprep.subr.bf16.mxu0 0
      %1767 = vmatpush1.bf16.msra.mxu0 0
      %1768 = vmatprep.subr.bf16.mxu0 0
      %1769 = vmatpush1.bf16.msra.mxu0 0
      %1770 = vmatprep.subr.bf16.mxu0 0
      %1771 = vmatpush1.bf16.msra.mxu0 0
      %1772 = vmatprep.subr.bf16.mxu0 0
      %1773 = vmatpush1.bf16.msra.mxu0 0
      %1774 = vmatprep.subr.bf16.mxu0 0
      %1775 = vmatpush1.bf16.msra.mxu0 0
      %1776 = vmatprep.subr.bf16.mxu0 0
      %1777 = vmatpush1.bf16.msra.mxu0 0
      %1778 = vmatprep.subr.bf16.mxu0 0
      %1779 = vmatpush1.bf16.msra.mxu0 0
      %1780 = vmatprep.subr.bf16.mxu0 0
      %1781 = vmatpush1.bf16.msra.mxu0 0
      %1782 = vmatprep.mubr.bf16.mxu0 0
      %1783 = vmatmul.mubr.bf16.gmra.mrb[0].mxu0 %v1700
      %v1784 = vpop.f32.mrb[0].mxu0
      %v1785 = vadd.f32 %v1420, %v1784
      %v1786 = vpop.f32.mrb[0].mxu0
      %v1787 = vpop.f32.mrb[0].mxu0
      %v1788 = vadd.f32 %v1423, %v1787
      %v1789 = vpop.f32.mrb[0].mxu0
      %1790 = vmatprep.mubr.bf16.mxu0 0
      %1791 = vmatmul.mubr.bf16.gmra.mrb[0].mxu0 %v1703
      %v1792 = vpop.f32.mrb[0].mxu0
      %v1793 = vadd.f32 %v1428, %v1792
      %v1794 = vpop.f32.mrb[0].mxu0
      %v1795 = vpop.f32.mrb[0].mxu0
      %v1796 = vadd.f32 %v1431, %v1795
      %v1797 = vpop.f32.mrb[0].mxu0
      %1798 = vmatprep.mubr.bf16.mxu0 0
      %1799 = vmatmul.mubr.bf16.gmra.mrb[0].mxu0 %v1706
      %v1800 = vpop.f32.mrb[0].mxu0
      %v1801 = vadd.f32 %v1436, %v1800
      %v1802 = vpop.f32.mrb[0].mxu0
      %v1803 = vpop.f32.mrb[0].mxu0
      %v1804 = vadd.f32 %v1439, %v1803
      %v1805 = vpop.f32.mrb[0].mxu0
      %1806 = vmatprep.mubr.bf16.mxu0 0
      %1807 = vmatmul.mubr.bf16.gmra.mrb[0].mxu0 %v1709
      %v1808 = vpop.f32.mrb[0].mxu0
      %v1809 = vadd.f32 %v1444, %v1808
      %v1810 = vpop.f32.mrb[0].mxu0
      %v1811 = vpop.f32.mrb[0].mxu0
      %v1812 = vadd.f32 %v1447, %v1811
      %v1813 = vpop.f32.mrb[0].mxu0
      %1814 = vmatprep.mubr.bf16.mxu0 0
      %1815 = vmatmul.mubr.bf16.gmra.mrb[0].mxu0 %v1712
      %v1816 = vpop.f32.mrb[0].mxu0
      %v1817 = vadd.f32 %v1452, %v1816
      %v1818 = vpop.f32.mrb[0].mxu0
      %v1819 = vpop.f32.mrb[0].mxu0
      %v1820 = vadd.f32 %v1455, %v1819
      %v1821 = vpop.f32.mrb[0].mxu0
      %1822 = vmatprep.mubr.bf16.mxu0 0
      %1823 = vmatmul.mubr.bf16.gmra.mrb[0].mxu0 %v1715
      %v1824 = vpop.f32.mrb[0].mxu0
      %v1825 = vadd.f32 %v1460, %v1824
      %v1826 = vpop.f32.mrb[0].mxu0
      %v1827 = vpop.f32.mrb[0].mxu0
      %v1828 = vadd.f32 %v1463, %v1827
      %v1829 = vpop.f32.mrb[0].mxu0
      %1830 = vmatprep.mubr.bf16.mxu0 0
      %1831 = vmatmul.mubr.bf16.gmra.mrb[0].mxu0 %v1718
      %v1832 = vpop.f32.mrb[0].mxu0
      %v1833 = vadd.f32 %v1468, %v1832
      %v1834 = vpop.f32.mrb[0].mxu0
      %v1835 = vpop.f32.mrb[0].mxu0
      %v1836 = vadd.f32 %v1471, %v1835
      %v1837 = vpop.f32.mrb[0].mxu0
      %1838 = vmatprep.mubr.bf16.mxu0 0
      %1839 = vmatmul.mubr.bf16.gmra.mrb[0].mxu0 %v1721
      %v1840 = vpop.f32.mrb[0].mxu0
      %v1841 = vadd.f32 %v1476, %v1840
      %v1842 = vpop.f32.mrb[0].mxu0
      %v1843 = vpop.f32.mrb[0].mxu0
      %v1844 = vadd.f32 %v1479, %v1843
      %v1845 = vpop.f32.mrb[0].mxu0
      %1846 = vmatprep.mubr.bf16.mxu0 0
      %1847 = vmatmul.mubr.bf16.gmra.mrb[0].mxu0 %v1724
      %v1848 = vpop.f32.mrb[0].mxu0
      %v1849 = vadd.f32 %v1484, %v1848
      %v1850 = vpop.f32.mrb[0].mxu0
      %v1851 = vpop.f32.mrb[0].mxu0
      %v1852 = vadd.f32 %v1487, %v1851
      %v1853 = vpop.f32.mrb[0].mxu0
      %1854 = vmatprep.mubr.bf16.mxu0 0
      %1855 = vmatmul.mubr.bf16.gmra.mrb[0].mxu0 %v1727
      %v1856 = vpop.f32.mrb[0].mxu0
      %v1857 = vadd.f32 %v1492, %v1856
      %v1858 = vpop.f32.mrb[0].mxu0
      %v1859 = vpop.f32.mrb[0].mxu0
      %v1860 = vadd.f32 %v1495, %v1859
      %v1861 = vpop.f32.mrb[0].mxu0
      %1862 = vmatprep.mubr.bf16.mxu0 0
      %1863 = vmatmul.mubr.bf16.gmra.mrb[0].mxu0 %v1730
      %v1864 = vpop.f32.mrb[0].mxu0
      %v1865 = vadd.f32 %v1500, %v1864
      %v1866 = vpop.f32.mrb[0].mxu0
      %v1867 = vpop.f32.mrb[0].mxu0
      %v1868 = vadd.f32 %v1503, %v1867
      %v1869 = vpop.f32.mrb[0].mxu0
      %1870 = vmatprep.mubr.bf16.mxu0 0
      %1871 = vmatmul.mubr.bf16.gmra.mrb[0].mxu0 %v1733
      %v1872 = vpop.f32.mrb[0].mxu0
      %v1873 = vadd.f32 %v1508, %v1872
      %v1874 = vpop.f32.mrb[0].mxu0
      %v1875 = vpop.f32.mrb[0].mxu0
      %v1876 = vadd.f32 %v1511, %v1875
      %v1877 = vpop.f32.mrb[0].mxu0
      %1878 = vmatprep.mubr.bf16.mxu0 0
      %1879 = vmatmul.mubr.bf16.gmra.mrb[0].mxu0 %v1736
      %v1880 = vpop.f32.mrb[0].mxu0
      %v1881 = vadd.f32 %v1516, %v1880
      %v1882 = vpop.f32.mrb[0].mxu0
      %v1883 = vpop.f32.mrb[0].mxu0
      %v1884 = vadd.f32 %v1519, %v1883
      %v1885 = vpop.f32.mrb[0].mxu0
      %1886 = vmatprep.mubr.bf16.mxu0 0
      %1887 = vmatmul.mubr.bf16.gmra.mrb[0].mxu0 %v1739
      %v1888 = vpop.f32.mrb[0].mxu0
      %v1889 = vadd.f32 %v1524, %v1888
      %v1890 = vpop.f32.mrb[0].mxu0
      %v1891 = vpop.f32.mrb[0].mxu0
      %v1892 = vadd.f32 %v1527, %v1891
      %v1893 = vpop.f32.mrb[0].mxu0
      %1894 = vmatprep.mubr.bf16.mxu0 0
      %1895 = vmatmul.mubr.bf16.gmra.mrb[0].mxu0 %v1742
      %v1896 = vpop.f32.mrb[0].mxu0
      %v1897 = vadd.f32 %v1532, %v1896
      %v1898 = vpop.f32.mrb[0].mxu0
      %v1899 = vpop.f32.mrb[0].mxu0
      %v1900 = vadd.f32 %v1535, %v1899
      %v1901 = vpop.f32.mrb[0].mxu0
      %1902 = vmatprep.mubr.bf16.mxu0 0
      %1903 = vmatmul.mubr.bf16.gmra.mrb[0].mxu0 %v1745
      %v1904 = vpop.f32.mrb[0].mxu0
      %v1905 = vadd.f32 %v1540, %v1904
      %v1906 = vpop.f32.mrb[0].mxu0
      %v1907 = vpop.f32.mrb[0].mxu0
      %v1908 = vadd.f32 %v1543, %v1907
      %v1909 = vpop.f32.mrb[0].mxu0
      %1910 = vdwg.mxu0
      %1912 = vset.pattern.permute.xlu0 0
      %1913 = vperm.xlu0 %1912, %v603
      %v1914 = vpop.permute.xlu0 %1913
      %v1917 = vunpack.c.l.s4 839922192
      %v1918 = vunpack.c.0.s8 %v1917
      %v1919 = vlaneseq
      %v1920 = vshrl.u32 %v1919, 7
      %v1921 = vsub.s32 %v1918, %v1920
      %v1922 = vrot.slane %v1914, %v1921
      %1924 = vset.pattern.permute.xlu0 0
      %1925 = vperm.xlu0 %1924, %v604
      %v1926 = vpop.permute.xlu0 %1925
      %v1929 = vunpack.c.l.s4 839922192
      %v1930 = vunpack.c.0.s8 %v1929
      %v1931 = vlaneseq
      %v1932 = vshrl.u32 %v1931, 7
      %v1933 = vsub.s32 %v1930, %v1932
      %v1934 = vrot.slane %v1926, %v1933
      %1936 = vset.pattern.permute.xlu0 0
      %1937 = vperm.xlu0 %1936, %v605
      %v1938 = vpop.permute.xlu0 %1937
      %v1941 = vunpack.c.l.s4 839922192
      %v1942 = vunpack.c.0.s8 %v1941
      %v1943 = vlaneseq
      %v1944 = vshrl.u32 %v1943, 7
      %v1945 = vsub.s32 %v1942, %v1944
      %v1946 = vrot.slane %v1938, %v1945
      %1948 = vset.pattern.permute.xlu0 0
      %1949 = vperm.xlu0 %1948, %v606
      %v1950 = vpop.permute.xlu0 %1949
      %v1953 = vunpack.c.l.s4 839922192
      %v1954 = vunpack.c.0.s8 %v1953
      %v1955 = vlaneseq
      %v1956 = vshrl.u32 %v1955, 7
      %v1957 = vsub.s32 %v1954, %v1956
      %v1958 = vrot.slane %v1950, %v1957
      %1960 = vset.pattern.permute.xlu0 0
      %1961 = vperm.xlu0 %1960, %v607
      %v1962 = vpop.permute.xlu0 %1961
      %v1965 = vunpack.c.l.s4 839922192
      %v1966 = vunpack.c.0.s8 %v1965
      %v1967 = vlaneseq
      %v1968 = vshrl.u32 %v1967, 7
      %v1969 = vsub.s32 %v1966, %v1968
      %v1970 = vrot.slane %v1962, %v1969
      %1972 = vset.pattern.permute.xlu0 0
      %1973 = vperm.xlu0 %1972, %v608
      %v1974 = vpop.permute.xlu0 %1973
      %v1977 = vunpack.c.l.s4 839922192
      %v1978 = vunpack.c.0.s8 %v1977
      %v1979 = vlaneseq
      %v1980 = vshrl.u32 %v1979, 7
      %v1981 = vsub.s32 %v1978, %v1980
      %v1982 = vrot.slane %v1974, %v1981
      %1984 = vset.pattern.permute.xlu0 0
      %1985 = vperm.xlu0 %1984, %v609
      %v1986 = vpop.permute.xlu0 %1985
      %v1989 = vunpack.c.l.s4 839922192
      %v1990 = vunpack.c.0.s8 %v1989
      %v1991 = vlaneseq
      %v1992 = vshrl.u32 %v1991, 7
      %v1993 = vsub.s32 %v1990, %v1992
      %v1994 = vrot.slane %v1986, %v1993
      %1996 = vset.pattern.permute.xlu0 0
      %1997 = vperm.xlu0 %1996, %v610
      %v1998 = vpop.permute.xlu0 %1997
      %v2001 = vunpack.c.l.s4 839922192
      %v2002 = vunpack.c.0.s8 %v2001
      %v2003 = vlaneseq
      %v2004 = vshrl.u32 %v2003, 7
      %v2005 = vsub.s32 %v2002, %v2004
      %v2006 = vrot.slane %v1998, %v2005
      %2008 = vset.pattern.permute.xlu0 0
      %2009 = vperm.xlu0 %2008, %v611
      %v2010 = vpop.permute.xlu0 %2009
      %v2013 = vunpack.c.l.s4 839922192
      %v2014 = vunpack.c.0.s8 %v2013
      %v2015 = vlaneseq
      %v2016 = vshrl.u32 %v2015, 7
      %v2017 = vsub.s32 %v2014, %v2016
      %v2018 = vrot.slane %v2010, %v2017
      %2020 = vset.pattern.permute.xlu0 0
      %2021 = vperm.xlu0 %2020, %v612
      %v2022 = vpop.permute.xlu0 %2021
      %v2025 = vunpack.c.l.s4 839922192
      %v2026 = vunpack.c.0.s8 %v2025
      %v2027 = vlaneseq
      %v2028 = vshrl.u32 %v2027, 7
      %v2029 = vsub.s32 %v2026, %v2028
      %v2030 = vrot.slane %v2022, %v2029
      %2032 = vset.pattern.permute.xlu0 0
      %2033 = vperm.xlu0 %2032, %v613
      %v2034 = vpop.permute.xlu0 %2033
      %v2037 = vunpack.c.l.s4 839922192
      %v2038 = vunpack.c.0.s8 %v2037
      %v2039 = vlaneseq
      %v2040 = vshrl.u32 %v2039, 7
      %v2041 = vsub.s32 %v2038, %v2040
      %v2042 = vrot.slane %v2034, %v2041
      %2044 = vset.pattern.permute.xlu0 0
      %2045 = vperm.xlu0 %2044, %v614
      %v2046 = vpop.permute.xlu0 %2045
      %v2049 = vunpack.c.l.s4 839922192
      %v2050 = vunpack.c.0.s8 %v2049
      %v2051 = vlaneseq
      %v2052 = vshrl.u32 %v2051, 7
      %v2053 = vsub.s32 %v2050, %v2052
      %v2054 = vrot.slane %v2046, %v2053
      %2056 = vset.pattern.permute.xlu0 0
      %2057 = vperm.xlu0 %2056, %v615
      %v2058 = vpop.permute.xlu0 %2057
      %v2061 = vunpack.c.l.s4 839922192
      %v2062 = vunpack.c.0.s8 %v2061
      %v2063 = vlaneseq
      %v2064 = vshrl.u32 %v2063, 7
      %v2065 = vsub.s32 %v2062, %v2064
      %v2066 = vrot.slane %v2058, %v2065
      %2068 = vset.pattern.permute.xlu0 0
      %2069 = vperm.xlu0 %2068, %v616
      %v2070 = vpop.permute.xlu0 %2069
      %v2073 = vunpack.c.l.s4 839922192
      %v2074 = vunpack.c.0.s8 %v2073
      %v2075 = vlaneseq
      %v2076 = vshrl.u32 %v2075, 7
      %v2077 = vsub.s32 %v2074, %v2076
      %v2078 = vrot.slane %v2070, %v2077
      %2080 = vset.pattern.permute.xlu0 0
      %2081 = vperm.xlu0 %2080, %v617
      %v2082 = vpop.permute.xlu0 %2081
      %v2085 = vunpack.c.l.s4 839922192
      %v2086 = vunpack.c.0.s8 %v2085
      %v2087 = vlaneseq
      %v2088 = vshrl.u32 %v2087, 7
      %v2089 = vsub.s32 %v2086, %v2088
      %v2090 = vrot.slane %v2082, %v2089
      %2092 = vset.pattern.permute.xlu0 0
      %2093 = vperm.xlu0 %2092, %v618
      %v2094 = vpop.permute.xlu0 %2093
      %v2097 = vunpack.c.l.s4 839922192
      %v2098 = vunpack.c.0.s8 %v2097
      %v2099 = vlaneseq
      %v2100 = vshrl.u32 %v2099, 7
      %v2101 = vsub.s32 %v2098, %v2100
      %v2102 = vrot.slane %v2094, %v2101
      %2104 = vset.pattern.permute.xlu0 0
      %2105 = vperm.xlu0 %2104, %v619
      %v2106 = vpop.permute.xlu0 %2105
      %v2109 = vunpack.c.l.s4 839922192
      %v2110 = vunpack.c.0.s8 %v2109
      %v2111 = vlaneseq
      %v2112 = vshrl.u32 %v2111, 7
      %v2113 = vsub.s32 %v2110, %v2112
      %v2114 = vrot.slane %v2106, %v2113
      %2116 = vset.pattern.permute.xlu0 0
      %2117 = vperm.xlu0 %2116, %v620
      %v2118 = vpop.permute.xlu0 %2117
      %v2121 = vunpack.c.l.s4 839922192
      %v2122 = vunpack.c.0.s8 %v2121
      %v2123 = vlaneseq
      %v2124 = vshrl.u32 %v2123, 7
      %v2125 = vsub.s32 %v2122, %v2124
      %v2126 = vrot.slane %v2118, %v2125
      %2128 = vset.pattern.permute.xlu0 0
      %2129 = vperm.xlu0 %2128, %v621
      %v2130 = vpop.permute.xlu0 %2129
      %v2133 = vunpack.c.l.s4 839922192
      %v2134 = vunpack.c.0.s8 %v2133
      %v2135 = vlaneseq
      %v2136 = vshrl.u32 %v2135, 7
      %v2137 = vsub.s32 %v2134, %v2136
      %v2138 = vrot.slane %v2130, %v2137
      %2140 = vset.pattern.permute.xlu0 0
      %2141 = vperm.xlu0 %2140, %v622
      %v2142 = vpop.permute.xlu0 %2141
      %v2145 = vunpack.c.l.s4 839922192
      %v2146 = vunpack.c.0.s8 %v2145
      %v2147 = vlaneseq
      %v2148 = vshrl.u32 %v2147, 7
      %v2149 = vsub.s32 %v2146, %v2148
      %v2150 = vrot.slane %v2142, %v2149
      %2152 = vset.pattern.permute.xlu0 0
      %2153 = vperm.xlu0 %2152, %v623
      %v2154 = vpop.permute.xlu0 %2153
      %v2157 = vunpack.c.l.s4 839922192
      %v2158 = vunpack.c.0.s8 %v2157
      %v2159 = vlaneseq
      %v2160 = vshrl.u32 %v2159, 7
      %v2161 = vsub.s32 %v2158, %v2160
      %v2162 = vrot.slane %v2154, %v2161
      %2164 = vset.pattern.permute.xlu0 0
      %2165 = vperm.xlu0 %2164, %v624
      %v2166 = vpop.permute.xlu0 %2165
      %v2169 = vunpack.c.l.s4 839922192
      %v2170 = vunpack.c.0.s8 %v2169
      %v2171 = vlaneseq
      %v2172 = vshrl.u32 %v2171, 7
      %v2173 = vsub.s32 %v2170, %v2172
      %v2174 = vrot.slane %v2166, %v2173
      %2176 = vset.pattern.permute.xlu0 0
      %2177 = vperm.xlu0 %2176, %v625
      %v2178 = vpop.permute.xlu0 %2177
      %v2181 = vunpack.c.l.s4 839922192
      %v2182 = vunpack.c.0.s8 %v2181
      %v2183 = vlaneseq
      %v2184 = vshrl.u32 %v2183, 7
      %v2185 = vsub.s32 %v2182, %v2184
      %v2186 = vrot.slane %v2178, %v2185
      %2188 = vset.pattern.permute.xlu0 0
      %2189 = vperm.xlu0 %2188, %v626
      %v2190 = vpop.permute.xlu0 %2189
      %v2193 = vunpack.c.l.s4 839922192
      %v2194 = vunpack.c.0.s8 %v2193
      %v2195 = vlaneseq
      %v2196 = vshrl.u32 %v2195, 7
      %v2197 = vsub.s32 %v2194, %v2196
      %v2198 = vrot.slane %v2190, %v2197
      %2200 = vset.pattern.permute.xlu0 0
      %2201 = vperm.xlu0 %2200, %v627
      %v2202 = vpop.permute.xlu0 %2201
      %v2205 = vunpack.c.l.s4 839922192
      %v2206 = vunpack.c.0.s8 %v2205
      %v2207 = vlaneseq
      %v2208 = vshrl.u32 %v2207, 7
      %v2209 = vsub.s32 %v2206, %v2208
      %v2210 = vrot.slane %v2202, %v2209
      %2212 = vset.pattern.permute.xlu0 0
      %2213 = vperm.xlu0 %2212, %v628
      %v2214 = vpop.permute.xlu0 %2213
      %v2217 = vunpack.c.l.s4 839922192
      %v2218 = vunpack.c.0.s8 %v2217
      %v2219 = vlaneseq
      %v2220 = vshrl.u32 %v2219, 7
      %v2221 = vsub.s32 %v2218, %v2220
      %v2222 = vrot.slane %v2214, %v2221
      %2224 = vset.pattern.permute.xlu0 0
      %2225 = vperm.xlu0 %2224, %v629
      %v2226 = vpop.permute.xlu0 %2225
      %v2229 = vunpack.c.l.s4 839922192
      %v2230 = vunpack.c.0.s8 %v2229
      %v2231 = vlaneseq
      %v2232 = vshrl.u32 %v2231, 7
      %v2233 = vsub.s32 %v2230, %v2232
      %v2234 = vrot.slane %v2226, %v2233
      %2236 = vset.pattern.permute.xlu0 0
      %2237 = vperm.xlu0 %2236, %v630
      %v2238 = vpop.permute.xlu0 %2237
      %v2241 = vunpack.c.l.s4 839922192
      %v2242 = vunpack.c.0.s8 %v2241
      %v2243 = vlaneseq
      %v2244 = vshrl.u32 %v2243, 7
      %v2245 = vsub.s32 %v2242, %v2244
      %v2246 = vrot.slane %v2238, %v2245
      %2248 = vset.pattern.permute.xlu0 0
      %2249 = vperm.xlu0 %2248, %v631
      %v2250 = vpop.permute.xlu0 %2249
      %v2253 = vunpack.c.l.s4 839922192
      %v2254 = vunpack.c.0.s8 %v2253
      %v2255 = vlaneseq
      %v2256 = vshrl.u32 %v2255, 7
      %v2257 = vsub.s32 %v2254, %v2256
      %v2258 = vrot.slane %v2250, %v2257
      %2260 = vset.pattern.permute.xlu0 0
      %2261 = vperm.xlu0 %2260, %v632
      %v2262 = vpop.permute.xlu0 %2261
      %v2265 = vunpack.c.l.s4 839922192
      %v2266 = vunpack.c.0.s8 %v2265
      %v2267 = vlaneseq
      %v2268 = vshrl.u32 %v2267, 7
      %v2269 = vsub.s32 %v2266, %v2268
      %v2270 = vrot.slane %v2262, %v2269
      %2272 = vset.pattern.permute.xlu0 0
      %2273 = vperm.xlu0 %2272, %v633
      %v2274 = vpop.permute.xlu0 %2273
      %v2277 = vunpack.c.l.s4 839922192
      %v2278 = vunpack.c.0.s8 %v2277
      %v2279 = vlaneseq
      %v2280 = vshrl.u32 %v2279, 7
      %v2281 = vsub.s32 %v2278, %v2280
      %v2282 = vrot.slane %v2274, %v2281
      %2284 = vset.pattern.permute.xlu0 0
      %2285 = vperm.xlu0 %2284, %v634
      %v2286 = vpop.permute.xlu0 %2285
      %v2289 = vunpack.c.l.s4 839922192
      %v2290 = vunpack.c.0.s8 %v2289
      %v2291 = vlaneseq
      %v2292 = vshrl.u32 %v2291, 7
      %v2293 = vsub.s32 %v2290, %v2292
      %v2294 = vrot.slane %v2286, %v2293
      %v2327 = vunpack.c.l.b16 %v1922
      %v2328 = vunpack.c.l.b16 %v1934
      %v2329 = vunpack.c.l.b16 %v1946
      %v2330 = vunpack.c.l.b16 %v1958
      %v2331 = vunpack.c.l.b16 %v1970
      %v2332 = vunpack.c.l.b16 %v1982
      %v2333 = vunpack.c.l.b16 %v1994
      %v2334 = vunpack.c.l.b16 %v2006
      %v2335 = vunpack.c.l.b16 %v2018
      %v2336 = vunpack.c.l.b16 %v2030
      %v2337 = vunpack.c.l.b16 %v2042
      %v2338 = vunpack.c.l.b16 %v2054
      %v2339 = vunpack.c.l.b16 %v2066
      %v2340 = vunpack.c.l.b16 %v2078
      %v2341 = vunpack.c.l.b16 %v2090
      %v2342 = vunpack.c.l.b16 %v2102
      %v2343 = vunpack.c.l.b16 %v2114
      %v2344 = vunpack.c.l.b16 %v2126
      %v2345 = vunpack.c.l.b16 %v2138
      %v2346 = vunpack.c.l.b16 %v2150
      %v2347 = vunpack.c.l.b16 %v2162
      %v2348 = vunpack.c.l.b16 %v2174
      %v2349 = vunpack.c.l.b16 %v2186
      %v2350 = vunpack.c.l.b16 %v2198
      %v2351 = vunpack.c.l.b16 %v2210
      %v2352 = vunpack.c.l.b16 %v2222
      %v2353 = vunpack.c.l.b16 %v2234
      %v2354 = vunpack.c.l.b16 %v2246
      %v2355 = vunpack.c.l.b16 %v2258
      %v2356 = vunpack.c.l.b16 %v2270
      %v2357 = vunpack.c.l.b16 %v2282
      %v2358 = vunpack.c.l.b16 %v2294
      %v2359 = vpack.c.b16 %v2328, %v2327
      %v2360 = vpack.c.b16 %v2330, %v2329
      %v2361 = vpack.c.b16 %v2332, %v2331
      %v2362 = vpack.c.b16 %v2334, %v2333
      %v2363 = vpack.c.b16 %v2336, %v2335
      %v2364 = vpack.c.b16 %v2338, %v2337
      %v2365 = vpack.c.b16 %v2340, %v2339
      %v2366 = vpack.c.b16 %v2342, %v2341
      %v2367 = vpack.c.b16 %v2344, %v2343
      %v2368 = vpack.c.b16 %v2346, %v2345
      %v2369 = vpack.c.b16 %v2348, %v2347
      %v2370 = vpack.c.b16 %v2350, %v2349
      %v2371 = vpack.c.b16 %v2352, %v2351
      %v2372 = vpack.c.b16 %v2354, %v2353
      %v2373 = vpack.c.b16 %v2356, %v2355
      %v2374 = vpack.c.b16 %v2358, %v2357
      %v2376 = vshrl.u32 %v2359, 16
      %v2378 = vrot.slane %v2376, 3
      %v2379 = vshll.u32 %v2359, 16
      %v2381 = vrot.slane %v2379, 4
      %v2382 = vor.u32 %v2378, %v2381
      %v2384 = vshrl.u32 %v2360, 16
      %v2386 = vrot.slane %v2384, 3
      %v2387 = vshll.u32 %v2360, 16
      %v2389 = vrot.slane %v2387, 4
      %v2390 = vor.u32 %v2386, %v2389
      %v2391 = vsel %vm1546, %v2382, %v2390
      %v2393 = vshrl.u32 %v2361, 16
      %v2395 = vrot.slane %v2393, 3
      %v2396 = vshll.u32 %v2361, 16
      %v2398 = vrot.slane %v2396, 4
      %v2399 = vor.u32 %v2395, %v2398
      %v2400 = vsel %vm1546, %v2390, %v2399
      %v2402 = vshrl.u32 %v2362, 16
      %v2404 = vrot.slane %v2402, 3
      %v2405 = vshll.u32 %v2362, 16
      %v2407 = vrot.slane %v2405, 4
      %v2408 = vor.u32 %v2404, %v2407
      %v2409 = vsel %vm1546, %v2399, %v2408
      %v2411 = vshrl.u32 %v2363, 16
      %v2413 = vrot.slane %v2411, 3
      %v2414 = vshll.u32 %v2363, 16
      %v2416 = vrot.slane %v2414, 4
      %v2417 = vor.u32 %v2413, %v2416
      %v2418 = vsel %vm1546, %v2408, %v2417
      %v2420 = vshrl.u32 %v2364, 16
      %v2422 = vrot.slane %v2420, 3
      %v2423 = vshll.u32 %v2364, 16
      %v2425 = vrot.slane %v2423, 4
      %v2426 = vor.u32 %v2422, %v2425
      %v2427 = vsel %vm1546, %v2417, %v2426
      %v2429 = vshrl.u32 %v2365, 16
      %v2431 = vrot.slane %v2429, 3
      %v2432 = vshll.u32 %v2365, 16
      %v2434 = vrot.slane %v2432, 4
      %v2435 = vor.u32 %v2431, %v2434
      %v2436 = vsel %vm1546, %v2426, %v2435
      %v2438 = vshrl.u32 %v2366, 16
      %v2440 = vrot.slane %v2438, 3
      %v2441 = vshll.u32 %v2366, 16
      %v2443 = vrot.slane %v2441, 4
      %v2444 = vor.u32 %v2440, %v2443
      %v2445 = vsel %vm1546, %v2435, %v2444
      %v2447 = vshrl.u32 %v2367, 16
      %v2449 = vrot.slane %v2447, 3
      %v2450 = vshll.u32 %v2367, 16
      %v2452 = vrot.slane %v2450, 4
      %v2453 = vor.u32 %v2449, %v2452
      %v2454 = vsel %vm1546, %v2444, %v2453
      %v2456 = vshrl.u32 %v2368, 16
      %v2458 = vrot.slane %v2456, 3
      %v2459 = vshll.u32 %v2368, 16
      %v2461 = vrot.slane %v2459, 4
      %v2462 = vor.u32 %v2458, %v2461
      %v2463 = vsel %vm1546, %v2453, %v2462
      %v2465 = vshrl.u32 %v2369, 16
      %v2467 = vrot.slane %v2465, 3
      %v2468 = vshll.u32 %v2369, 16
      %v2470 = vrot.slane %v2468, 4
      %v2471 = vor.u32 %v2467, %v2470
      %v2472 = vsel %vm1546, %v2462, %v2471
      %v2474 = vshrl.u32 %v2370, 16
      %v2476 = vrot.slane %v2474, 3
      %v2477 = vshll.u32 %v2370, 16
      %v2479 = vrot.slane %v2477, 4
      %v2480 = vor.u32 %v2476, %v2479
      %v2481 = vsel %vm1546, %v2471, %v2480
      %v2483 = vshrl.u32 %v2371, 16
      %v2485 = vrot.slane %v2483, 3
      %v2486 = vshll.u32 %v2371, 16
      %v2488 = vrot.slane %v2486, 4
      %v2489 = vor.u32 %v2485, %v2488
      %v2490 = vsel %vm1546, %v2480, %v2489
      %v2492 = vshrl.u32 %v2372, 16
      %v2494 = vrot.slane %v2492, 3
      %v2495 = vshll.u32 %v2372, 16
      %v2497 = vrot.slane %v2495, 4
      %v2498 = vor.u32 %v2494, %v2497
      %v2499 = vsel %vm1546, %v2489, %v2498
      %v2501 = vshrl.u32 %v2373, 16
      %v2503 = vrot.slane %v2501, 3
      %v2504 = vshll.u32 %v2373, 16
      %v2506 = vrot.slane %v2504, 4
      %v2507 = vor.u32 %v2503, %v2506
      %v2508 = vsel %vm1546, %v2498, %v2507
      %v2510 = vshrl.u32 %v2374, 16
      %v2512 = vrot.slane %v2510, 3
      %v2513 = vshll.u32 %v2374, 16
      %v2515 = vrot.slane %v2513, 4
      %v2516 = vor.u32 %v2512, %v2515
      %v2517 = vsel %vm1546, %v2507, %v2516
      %v2535 = vmul.bf16 %v552, %v2382
      %v2536 = vmul.bf16 %v553, %v2391
      %v2537 = vmul.bf16 %v554, %v2400
      %v2538 = vmul.bf16 %v555, %v2409
      %v2539 = vmul.bf16 %v556, %v2418
      %v2540 = vmul.bf16 %v557, %v2427
      %v2541 = vmul.bf16 %v558, %v2436
      %v2542 = vmul.bf16 %v559, %v2445
      %v2543 = vmul.bf16 %v560, %v2454
      %v2544 = vmul.bf16 %v561, %v2463
      %v2545 = vmul.bf16 %v562, %v2472
      %v2546 = vmul.bf16 %v563, %v2481
      %v2547 = vmul.bf16 %v564, %v2490
      %v2548 = vmul.bf16 %v565, %v2499
      %v2549 = vmul.bf16 %v566, %v2508
      %v2550 = vmul.bf16 %v567, %v2517
      %v2551 = vmul.bf16 %v568, %v2516
      %v2552 = vld [vmem:[%s4 + $0x4] sm:$0x3]
      %v2554 = vshrl.u32 %v2535, 16
      %v2556 = vrot.slane %v2554, 4
      %v2557 = vshll.u32 %v2535, 16
      %v2559 = vrot.slane %v2557, 5
      %v2560 = vor.u32 %v2556, %v2559
      %v2562 = vshrl.u32 %v2536, 16
      %v2564 = vrot.slane %v2562, 4
      %v2565 = vshll.u32 %v2536, 16
      %v2567 = vrot.slane %v2565, 5
      %v2568 = vor.u32 %v2564, %v2567
      %v2569 = vsel %vm1099, %v2560, %v2568
      %v2571 = vshrl.u32 %v2537, 16
      %v2573 = vrot.slane %v2571, 4
      %v2574 = vshll.u32 %v2537, 16
      %v2576 = vrot.slane %v2574, 5
      %v2577 = vor.u32 %v2573, %v2576
      %v2578 = vsel %vm1099, %v2568, %v2577
      %v2580 = vshrl.u32 %v2538, 16
      %v2582 = vrot.slane %v2580, 4
      %v2583 = vshll.u32 %v2538, 16
      %v2585 = vrot.slane %v2583, 5
      %v2586 = vor.u32 %v2582, %v2585
      %v2587 = vsel %vm1099, %v2577, %v2586
      %v2589 = vshrl.u32 %v2539, 16
      %v2591 = vrot.slane %v2589, 4
      %v2592 = vshll.u32 %v2539, 16
      %v2594 = vrot.slane %v2592, 5
      %v2595 = vor.u32 %v2591, %v2594
      %v2596 = vsel %vm1099, %v2586, %v2595
      %v2598 = vshrl.u32 %v2540, 16
      %v2600 = vrot.slane %v2598, 4
      %v2601 = vshll.u32 %v2540, 16
      %v2603 = vrot.slane %v2601, 5
      %v2604 = vor.u32 %v2600, %v2603
      %v2605 = vsel %vm1099, %v2595, %v2604
      %v2607 = vshrl.u32 %v2541, 16
      %v2609 = vrot.slane %v2607, 4
      %v2610 = vshll.u32 %v2541, 16
      %v2612 = vrot.slane %v2610, 5
      %v2613 = vor.u32 %v2609, %v2612
      %v2614 = vsel %vm1099, %v2604, %v2613
      %v2616 = vshrl.u32 %v2542, 16
      %v2618 = vrot.slane %v2616, 4
      %v2619 = vshll.u32 %v2542, 16
      %v2621 = vrot.slane %v2619, 5
      %v2622 = vor.u32 %v2618, %v2621
      %v2623 = vsel %vm1099, %v2613, %v2622
      %v2625 = vshrl.u32 %v2543, 16
      %v2627 = vrot.slane %v2625, 4
      %v2628 = vshll.u32 %v2543, 16
      %v2630 = vrot.slane %v2628, 5
      %v2631 = vor.u32 %v2627, %v2630
      %v2632 = vsel %vm1099, %v2622, %v2631
      %v2634 = vshrl.u32 %v2544, 16
      %v2636 = vrot.slane %v2634, 4
      %v2637 = vshll.u32 %v2544, 16
      %v2639 = vrot.slane %v2637, 5
      %v2640 = vor.u32 %v2636, %v2639
      %v2641 = vsel %vm1099, %v2631, %v2640
      %v2643 = vshrl.u32 %v2545, 16
      %v2645 = vrot.slane %v2643, 4
      %v2646 = vshll.u32 %v2545, 16
      %v2648 = vrot.slane %v2646, 5
      %v2649 = vor.u32 %v2645, %v2648
      %v2650 = vsel %vm1099, %v2640, %v2649
      %v2652 = vshrl.u32 %v2546, 16
      %v2654 = vrot.slane %v2652, 4
      %v2655 = vshll.u32 %v2546, 16
      %v2657 = vrot.slane %v2655, 5
      %v2658 = vor.u32 %v2654, %v2657
      %v2659 = vsel %vm1099, %v2649, %v2658
      %v2661 = vshrl.u32 %v2547, 16
      %v2663 = vrot.slane %v2661, 4
      %v2664 = vshll.u32 %v2547, 16
      %v2666 = vrot.slane %v2664, 5
      %v2667 = vor.u32 %v2663, %v2666
      %v2668 = vsel %vm1099, %v2658, %v2667
      %v2670 = vshrl.u32 %v2548, 16
      %v2672 = vrot.slane %v2670, 4
      %v2673 = vshll.u32 %v2548, 16
      %v2675 = vrot.slane %v2673, 5
      %v2676 = vor.u32 %v2672, %v2675
      %v2677 = vsel %vm1099, %v2667, %v2676
      %v2679 = vshrl.u32 %v2549, 16
      %v2681 = vrot.slane %v2679, 4
      %v2682 = vshll.u32 %v2549, 16
      %v2684 = vrot.slane %v2682, 5
      %v2685 = vor.u32 %v2681, %v2684
      %v2686 = vsel %vm1099, %v2676, %v2685
      %v2688 = vshrl.u32 %v2550, 16
      %v2690 = vrot.slane %v2688, 4
      %v2691 = vshll.u32 %v2550, 16
      %v2693 = vrot.slane %v2691, 5
      %v2694 = vor.u32 %v2690, %v2693
      %v2695 = vsel %vm1099, %v2685, %v2694
      %v2697 = vshrl.u32 %v2551, 16
      %v2699 = vrot.slane %v2697, 4
      %v2700 = vshll.u32 %v2551, 16
      %v2702 = vrot.slane %v2700, 5
      %v2703 = vor.u32 %v2699, %v2702
      %v2704 = vsel %vm1099, %v2694, %v2703
      %v2706 = vsel %vm448, %v2569, 0
      %v2709 = vsel %vm448, %v2578, 0
      %v2712 = vsel %vm448, %v2587, 0
      %v2715 = vsel %vm448, %v2596, 0
      %v2718 = vsel %vm448, %v2605, 0
      %v2721 = vsel %vm448, %v2614, 0
      %v2724 = vsel %vm448, %v2623, 0
      %v2727 = vsel %vm448, %v2632, 0
      %v2730 = vsel %vm448, %v2641, 0
      %v2733 = vsel %vm448, %v2650, 0
      %v2736 = vsel %vm448, %v2659, 0
      %v2739 = vsel %vm448, %v2668, 0
      %v2742 = vsel %vm448, %v2677, 0
      %v2745 = vsel %vm448, %v2686, 0
      %v2748 = vsel %vm448, %v2695, 0
      %v2751 = vsel %vm448, %v2704, 0
      %v2754 = vsel %vm1381, %v2552, 0
      %2756 = vmatprep.subr.bf16.mxu0 0
      %2757 = vmatpush1.bf16.msra.mxu0 %v2754
      %2758 = vmatprep.subr.bf16.mxu0 0
      %2759 = vmatpush1.bf16.msra.mxu0 0
      %2760 = vmatprep.subr.bf16.mxu0 0
      %2761 = vmatpush1.bf16.msra.mxu0 0
      %2762 = vmatprep.subr.bf16.mxu0 0
      %2763 = vmatpush1.bf16.msra.mxu0 0
      %2764 = vmatprep.subr.bf16.mxu0 0
      %2765 = vmatpush1.bf16.msra.mxu0 0
      %2766 = vmatprep.subr.bf16.mxu0 0
      %2767 = vmatpush1.bf16.msra.mxu0 0
      %2768 = vmatprep.subr.bf16.mxu0 0
      %2769 = vmatpush1.bf16.msra.mxu0 0
      %2770 = vmatprep.subr.bf16.mxu0 0
      %2771 = vmatpush1.bf16.msra.mxu0 0
      %2772 = vmatprep.subr.bf16.mxu0 0
      %2773 = vmatpush1.bf16.msra.mxu0 0
      %2774 = vmatprep.subr.bf16.mxu0 0
      %2775 = vmatpush1.bf16.msra.mxu0 0
      %2776 = vmatprep.subr.bf16.mxu0 0
      %2777 = vmatpush1.bf16.msra.mxu0 0
      %2778 = vmatprep.subr.bf16.mxu0 0
      %2779 = vmatpush1.bf16.msra.mxu0 0
      %2780 = vmatprep.subr.bf16.mxu0 0
      %2781 = vmatpush1.bf16.msra.mxu0 0
      %2782 = vmatprep.subr.bf16.mxu0 0
      %2783 = vmatpush1.bf16.msra.mxu0 0
      %2784 = vmatprep.subr.bf16.mxu0 0
      %2785 = vmatpush1.bf16.msra.mxu0 0
      %2786 = vmatprep.subr.bf16.mxu0 0
      %2787 = vmatpush1.bf16.msra.mxu0 0
      %2788 = vmatprep.mubr.bf16.mxu0 0
      %2789 = vmatmul.mubr.bf16.gmra.mrb[0].mxu0 %v2706
      %v2790 = vpop.f32.mrb[0].mxu0
      %v2791 = vadd.f32 0.0, %v2790
      %v2792 = vpop.f32.mrb[0].mxu0
      %v2793 = vpop.f32.mrb[0].mxu0
      %v2794 = vadd.f32 0.0, %v2793
      %v2795 = vpop.f32.mrb[0].mxu0
      %2796 = vmatprep.mubr.bf16.mxu0 0
      %2797 = vmatmul.mubr.bf16.gmra.mrb[0].mxu0 %v2709
      %v2798 = vpop.f32.mrb[0].mxu0
      %v2799 = vadd.f32 0.0, %v2798
      %v2800 = vpop.f32.mrb[0].mxu0
      %v2801 = vpop.f32.mrb[0].mxu0
      %v2802 = vadd.f32 0.0, %v2801
      %v2803 = vpop.f32.mrb[0].mxu0
      %2804 = vmatprep.mubr.bf16.mxu0 0
      %2805 = vmatmul.mubr.bf16.gmra.mrb[0].mxu0 %v2712
      %v2806 = vpop.f32.mrb[0].mxu0
      %v2807 = vadd.f32 0.0, %v2806
      %v2808 = vpop.f32.mrb[0].mxu0
      %v2809 = vpop.f32.mrb[0].mxu0
      %v2810 = vadd.f32 0.0, %v2809
      %v2811 = vpop.f32.mrb[0].mxu0
      %2812 = vmatprep.mubr.bf16.mxu0 0
      %2813 = vmatmul.mubr.bf16.gmra.mrb[0].mxu0 %v2715
      %v2814 = vpop.f32.mrb[0].mxu0
      %v2815 = vadd.f32 0.0, %v2814
      %v2816 = vpop.f32.mrb[0].mxu0
      %v2817 = vpop.f32.mrb[0].mxu0
      %v2818 = vadd.f32 0.0, %v2817
      %v2819 = vpop.f32.mrb[0].mxu0
      %2820 = vmatprep.mubr.bf16.mxu0 0
      %2821 = vmatmul.mubr.bf16.gmra.mrb[0].mxu0 %v2718
      %v2822 = vpop.f32.mrb[0].mxu0
      %v2823 = vadd.f32 0.0, %v2822
      %v2824 = vpop.f32.mrb[0].mxu0
      %v2825 = vpop.f32.mrb[0].mxu0
      %v2826 = vadd.f32 0.0, %v2825
      %v2827 = vpop.f32.mrb[0].mxu0
      %2828 = vmatprep.mubr.bf16.mxu0 0
      %2829 = vmatmul.mubr.bf16.gmra.mrb[0].mxu0 %v2721
      %v2830 = vpop.f32.mrb[0].mxu0
      %v2831 = vadd.f32 0.0, %v2830
      %v2832 = vpop.f32.mrb[0].mxu0
      %v2833 = vpop.f32.mrb[0].mxu0
      %v2834 = vadd.f32 0.0, %v2833
      %v2835 = vpop.f32.mrb[0].mxu0
      %2836 = vmatprep.mubr.bf16.mxu0 0
      %2837 = vmatmul.mubr.bf16.gmra.mrb[0].mxu0 %v2724
      %v2838 = vpop.f32.mrb[0].mxu0
      %v2839 = vadd.f32 0.0, %v2838
      %v2840 = vpop.f32.mrb[0].mxu0
      %v2841 = vpop.f32.mrb[0].mxu0
      %v2842 = vadd.f32 0.0, %v2841
      %v2843 = vpop.f32.mrb[0].mxu0
      %2844 = vmatprep.mubr.bf16.mxu0 0
      %2845 = vmatmul.mubr.bf16.gmra.mrb[0].mxu0 %v2727
      %v2846 = vpop.f32.mrb[0].mxu0
      %v2847 = vadd.f32 0.0, %v2846
      %v2848 = vpop.f32.mrb[0].mxu0
      %v2849 = vpop.f32.mrb[0].mxu0
      %v2850 = vadd.f32 0.0, %v2849
      %v2851 = vpop.f32.mrb[0].mxu0
      %2852 = vmatprep.mubr.bf16.mxu0 0
      %2853 = vmatmul.mubr.bf16.gmra.mrb[0].mxu0 %v2730
      %v2854 = vpop.f32.mrb[0].mxu0
      %v2855 = vadd.f32 0.0, %v2854
      %v2856 = vpop.f32.mrb[0].mxu0
      %v2857 = vpop.f32.mrb[0].mxu0
      %v2858 = vadd.f32 0.0, %v2857
      %v2859 = vpop.f32.mrb[0].mxu0
      %2860 = vmatprep.mubr.bf16.mxu0 0
      %2861 = vmatmul.mubr.bf16.gmra.mrb[0].mxu0 %v2733
      %v2862 = vpop.f32.mrb[0].mxu0
      %v2863 = vadd.f32 0.0, %v2862
      %v2864 = vpop.f32.mrb[0].mxu0
      %v2865 = vpop.f32.mrb[0].mxu0
      %v2866 = vadd.f32 0.0, %v2865
      %v2867 = vpop.f32.mrb[0].mxu0
      %2868 = vmatprep.mubr.bf16.mxu0 0
      %2869 = vmatmul.mubr.bf16.gmra.mrb[0].mxu0 %v2736
      %v2870 = vpop.f32.mrb[0].mxu0
      %v2871 = vadd.f32 0.0, %v2870
      %v2872 = vpop.f32.mrb[0].mxu0
      %v2873 = vpop.f32.mrb[0].mxu0
      %v2874 = vadd.f32 0.0, %v2873
      %v2875 = vpop.f32.mrb[0].mxu0
      %2876 = vmatprep.mubr.bf16.mxu0 0
      %2877 = vmatmul.mubr.bf16.gmra.mrb[0].mxu0 %v2739
      %v2878 = vpop.f32.mrb[0].mxu0
      %v2879 = vadd.f32 0.0, %v2878
      %v2880 = vpop.f32.mrb[0].mxu0
      %v2881 = vpop.f32.mrb[0].mxu0
      %v2882 = vadd.f32 0.0, %v2881
      %v2883 = vpop.f32.mrb[0].mxu0
      %2884 = vmatprep.mubr.bf16.mxu0 0
      %2885 = vmatmul.mubr.bf16.gmra.mrb[0].mxu0 %v2742
      %v2886 = vpop.f32.mrb[0].mxu0
      %v2887 = vadd.f32 0.0, %v2886
      %v2888 = vpop.f32.mrb[0].mxu0
      %v2889 = vpop.f32.mrb[0].mxu0
      %v2890 = vadd.f32 0.0, %v2889
      %v2891 = vpop.f32.mrb[0].mxu0
      %2892 = vmatprep.mubr.bf16.mxu0 0
      %2893 = vmatmul.mubr.bf16.gmra.mrb[0].mxu0 %v2745
      %v2894 = vpop.f32.mrb[0].mxu0
      %v2895 = vadd.f32 0.0, %v2894
      %v2896 = vpop.f32.mrb[0].mxu0
      %v2897 = vpop.f32.mrb[0].mxu0
      %v2898 = vadd.f32 0.0, %v2897
      %v2899 = vpop.f32.mrb[0].mxu0
      %2900 = vmatprep.mubr.bf16.mxu0 0
      %2901 = vmatmul.mubr.bf16.gmra.mrb[0].mxu0 %v2748
      %v2902 = vpop.f32.mrb[0].mxu0
      %v2903 = vadd.f32 0.0, %v2902
      %v2904 = vpop.f32.mrb[0].mxu0
      %v2905 = vpop.f32.mrb[0].mxu0
      %v2906 = vadd.f32 0.0, %v2905
      %v2907 = vpop.f32.mrb[0].mxu0
      %2908 = vmatprep.mubr.bf16.mxu0 0
      %2909 = vmatmul.mubr.bf16.gmra.mrb[0].mxu0 %v2751
      %v2910 = vpop.f32.mrb[0].mxu0
      %v2911 = vadd.f32 0.0, %v2910
      %v2912 = vpop.f32.mrb[0].mxu0
      %v2913 = vpop.f32.mrb[0].mxu0
      %v2914 = vadd.f32 0.0, %v2913
      %v2915 = vpop.f32.mrb[0].mxu0
      %2916 = vdwg.mxu0
      %v2917 = vadd.f32 %v1785, %v2791
      %v2918 = vadd.f32 %v1788, %v2794
      %v2919 = vadd.f32 %v1793, %v2799
      %v2920 = vadd.f32 %v1796, %v2802
      %v2921 = vadd.f32 %v1801, %v2807
      %v2922 = vadd.f32 %v1804, %v2810
      %v2923 = vadd.f32 %v1809, %v2815
      %v2924 = vadd.f32 %v1812, %v2818
      %v2925 = vadd.f32 %v1817, %v2823
      %v2926 = vadd.f32 %v1820, %v2826
      %v2927 = vadd.f32 %v1825, %v2831
      %v2928 = vadd.f32 %v1828, %v2834
      %v2929 = vadd.f32 %v1833, %v2839
      %v2930 = vadd.f32 %v1836, %v2842
      %v2931 = vadd.f32 %v1841, %v2847
      %v2932 = vadd.f32 %v1844, %v2850
      %v2933 = vadd.f32 %v1849, %v2855
      %v2934 = vadd.f32 %v1852, %v2858
      %v2935 = vadd.f32 %v1857, %v2863
      %v2936 = vadd.f32 %v1860, %v2866
      %v2937 = vadd.f32 %v1865, %v2871
      %v2938 = vadd.f32 %v1868, %v2874
      %v2939 = vadd.f32 %v1873, %v2879
      %v2940 = vadd.f32 %v1876, %v2882
      %v2941 = vadd.f32 %v1881, %v2887
      %v2942 = vadd.f32 %v1884, %v2890
      %v2943 = vadd.f32 %v1889, %v2895
      %v2944 = vadd.f32 %v1892, %v2898
      %v2945 = vadd.f32 %v1897, %v2903
      %v2946 = vadd.f32 %v1900, %v2906
      %v2947 = vadd.f32 %v1905, %v2911
      %v2948 = vadd.f32 %v1908, %v2914
      %v2949 = vmul.bf16 %v553, %v1107
      %v2950 = vmul.bf16 %v554, %v1116
      %v2951 = vmul.bf16 %v555, %v1125
      %v2952 = vmul.bf16 %v556, %v1134
      %v2953 = vmul.bf16 %v557, %v1143
      %v2954 = vmul.bf16 %v558, %v1152
      %v2955 = vmul.bf16 %v559, %v1161
      %v2956 = vmul.bf16 %v560, %v1170
      %v2957 = vmul.bf16 %v561, %v1179
      %v2958 = vmul.bf16 %v562, %v1188
      %v2959 = vmul.bf16 %v563, %v1197
      %v2960 = vmul.bf16 %v564, %v1206
      %v2961 = vmul.bf16 %v565, %v1215
      %v2962 = vmul.bf16 %v566, %v1224
      %v2963 = vmul.bf16 %v567, %v1233
      %v2964 = vmul.bf16 %v568, %v1242
      %v2965 = vmul.bf16 %v569, %v1241
      %v2966 = vld [vmem:[%s4 + $0x4] sm:$0xc]
      %v2968 = vshrl.u32 %v2949, 16
      %v2970 = vrot.slane %v2968, 3
      %v2971 = vshll.u32 %v2949, 16
      %v2973 = vrot.slane %v2971, 4
      %v2974 = vor.u32 %v2970, %v2973
      %v2976 = vshrl.u32 %v2950, 16
      %v2978 = vrot.slane %v2976, 3
      %v2979 = vshll.u32 %v2950, 16
      %v2981 = vrot.slane %v2979, 4
      %v2982 = vor.u32 %v2978, %v2981
      %v2983 = vsel %vm1546, %v2974, %v2982
      %v2985 = vshrl.u32 %v2951, 16
      %v2987 = vrot.slane %v2985, 3
      %v2988 = vshll.u32 %v2951, 16
      %v2990 = vrot.slane %v2988, 4
      %v2991 = vor.u32 %v2987, %v2990
      %v2992 = vsel %vm1546, %v2982, %v2991
      %v2994 = vshrl.u32 %v2952, 16
      %v2996 = vrot.slane %v2994, 3
      %v2997 = vshll.u32 %v2952, 16
      %v2999 = vrot.slane %v2997, 4
      %v3000 = vor.u32 %v2996, %v2999
      %v3001 = vsel %vm1546, %v2991, %v3000
      %v3003 = vshrl.u32 %v2953, 16
      %v3005 = vrot.slane %v3003, 3
      %v3006 = vshll.u32 %v2953, 16
      %v3008 = vrot.slane %v3006, 4
      %v3009 = vor.u32 %v3005, %v3008
      %v3010 = vsel %vm1546, %v3000, %v3009
      %v3012 = vshrl.u32 %v2954, 16
      %v3014 = vrot.slane %v3012, 3
      %v3015 = vshll.u32 %v2954, 16
      %v3017 = vrot.slane %v3015, 4
      %v3018 = vor.u32 %v3014, %v3017
      %v3019 = vsel %vm1546, %v3009, %v3018
      %v3021 = vshrl.u32 %v2955, 16
      %v3023 = vrot.slane %v3021, 3
      %v3024 = vshll.u32 %v2955, 16
      %v3026 = vrot.slane %v3024, 4
      %v3027 = vor.u32 %v3023, %v3026
      %v3028 = vsel %vm1546, %v3018, %v3027
      %v3030 = vshrl.u32 %v2956, 16
      %v3032 = vrot.slane %v3030, 3
      %v3033 = vshll.u32 %v2956, 16
      %v3035 = vrot.slane %v3033, 4
      %v3036 = vor.u32 %v3032, %v3035
      %v3037 = vsel %vm1546, %v3027, %v3036
      %v3039 = vshrl.u32 %v2957, 16
      %v3041 = vrot.slane %v3039, 3
      %v3042 = vshll.u32 %v2957, 16
      %v3044 = vrot.slane %v3042, 4
      %v3045 = vor.u32 %v3041, %v3044
      %v3046 = vsel %vm1546, %v3036, %v3045
      %v3048 = vshrl.u32 %v2958, 16
      %v3050 = vrot.slane %v3048, 3
      %v3051 = vshll.u32 %v2958, 16
      %v3053 = vrot.slane %v3051, 4
      %v3054 = vor.u32 %v3050, %v3053
      %v3055 = vsel %vm1546, %v3045, %v3054
      %v3057 = vshrl.u32 %v2959, 16
      %v3059 = vrot.slane %v3057, 3
      %v3060 = vshll.u32 %v2959, 16
      %v3062 = vrot.slane %v3060, 4
      %v3063 = vor.u32 %v3059, %v3062
      %v3064 = vsel %vm1546, %v3054, %v3063
      %v3066 = vshrl.u32 %v2960, 16
      %v3068 = vrot.slane %v3066, 3
      %v3069 = vshll.u32 %v2960, 16
      %v3071 = vrot.slane %v3069, 4
      %v3072 = vor.u32 %v3068, %v3071
      %v3073 = vsel %vm1546, %v3063, %v3072
      %v3075 = vshrl.u32 %v2961, 16
      %v3077 = vrot.slane %v3075, 3
      %v3078 = vshll.u32 %v2961, 16
      %v3080 = vrot.slane %v3078, 4
      %v3081 = vor.u32 %v3077, %v3080
      %v3082 = vsel %vm1546, %v3072, %v3081
      %v3084 = vshrl.u32 %v2962, 16
      %v3086 = vrot.slane %v3084, 3
      %v3087 = vshll.u32 %v2962, 16
      %v3089 = vrot.slane %v3087, 4
      %v3090 = vor.u32 %v3086, %v3089
      %v3091 = vsel %vm1546, %v3081, %v3090
      %v3093 = vshrl.u32 %v2963, 16
      %v3095 = vrot.slane %v3093, 3
      %v3096 = vshll.u32 %v2963, 16
      %v3098 = vrot.slane %v3096, 4
      %v3099 = vor.u32 %v3095, %v3098
      %v3100 = vsel %vm1546, %v3090, %v3099
      %v3102 = vshrl.u32 %v2964, 16
      %v3104 = vrot.slane %v3102, 3
      %v3105 = vshll.u32 %v2964, 16
      %v3107 = vrot.slane %v3105, 4
      %v3108 = vor.u32 %v3104, %v3107
      %v3109 = vsel %vm1546, %v3099, %v3108
      %v3111 = vshrl.u32 %v2965, 16
      %v3113 = vrot.slane %v3111, 3
      %v3114 = vshll.u32 %v2965, 16
      %v3116 = vrot.slane %v3114, 4
      %v3117 = vor.u32 %v3113, %v3116
      %v3118 = vsel %vm1546, %v3108, %v3117
      %v3120 = vunpack.c.l.b16 %v2966
      %v3121 = vpack.c.b16 %v3120, %v3120
      %v3122 = vrot.slane %v3121, 2
      %v3124 = vsel %vm448, %v2983, 0
      %v3127 = vsel %vm448, %v2992, 0
      %v3130 = vsel %vm448, %v3001, 0
      %v3133 = vsel %vm448, %v3010, 0
      %v3136 = vsel %vm448, %v3019, 0
      %v3139 = vsel %vm448, %v3028, 0
      %v3142 = vsel %vm448, %v3037, 0
      %v3145 = vsel %vm448, %v3046, 0
      %v3148 = vsel %vm448, %v3055, 0
      %v3151 = vsel %vm448, %v3064, 0
      %v3154 = vsel %vm448, %v3073, 0
      %v3157 = vsel %vm448, %v3082, 0
      %v3160 = vsel %vm448, %v3091, 0
      %v3163 = vsel %vm448, %v3100, 0
      %v3166 = vsel %vm448, %v3109, 0
      %v3169 = vsel %vm448, %v3118, 0
      %v3172 = vsel %vm1381, %v3122, 0
      %3174 = vmatprep.subr.bf16.mxu0 0
      %3175 = vmatpush1.bf16.msra.mxu0 %v3172
      %3176 = vmatprep.subr.bf16.mxu0 0
      %3177 = vmatpush1.bf16.msra.mxu0 0
      %3178 = vmatprep.subr.bf16.mxu0 0
      %3179 = vmatpush1.bf16.msra.mxu0 0
      %3180 = vmatprep.subr.bf16.mxu0 0
      %3181 = vmatpush1.bf16.msra.mxu0 0
      %3182 = vmatprep.subr.bf16.mxu0 0
      %3183 = vmatpush1.bf16.msra.mxu0 0
      %3184 = vmatprep.subr.bf16.mxu0 0
      %3185 = vmatpush1.bf16.msra.mxu0 0
      %3186 = vmatprep.subr.bf16.mxu0 0
      %3187 = vmatpush1.bf16.msra.mxu0 0
      %3188 = vmatprep.subr.bf16.mxu0 0
      %3189 = vmatpush1.bf16.msra.mxu0 0
      %3190 = vmatprep.subr.bf16.mxu0 0
      %3191 = vmatpush1.bf16.msra.mxu0 0
      %3192 = vmatprep.subr.bf16.mxu0 0
      %3193 = vmatpush1.bf16.msra.mxu0 0
      %3194 = vmatprep.subr.bf16.mxu0 0
      %3195 = vmatpush1.bf16.msra.mxu0 0
      %3196 = vmatprep.subr.bf16.mxu0 0
      %3197 = vmatpush1.bf16.msra.mxu0 0
      %3198 = vmatprep.subr.bf16.mxu0 0
      %3199 = vmatpush1.bf16.msra.mxu0 0
      %3200 = vmatprep.subr.bf16.mxu0 0
      %3201 = vmatpush1.bf16.msra.mxu0 0
      %3202 = vmatprep.subr.bf16.mxu0 0
      %3203 = vmatpush1.bf16.msra.mxu0 0
      %3204 = vmatprep.subr.bf16.mxu0 0
      %3205 = vmatpush1.bf16.msra.mxu0 0
      %3206 = vmatprep.mubr.bf16.mxu0 0
      %3207 = vmatmul.mubr.bf16.gmra.mrb[0].mxu0 %v3124
      %v3208 = vpop.f32.mrb[0].mxu0
      %v3209 = vadd.f32 0.0, %v3208
      %v3210 = vpop.f32.mrb[0].mxu0
      %v3211 = vpop.f32.mrb[0].mxu0
      %v3212 = vadd.f32 0.0, %v3211
      %v3213 = vpop.f32.mrb[0].mxu0
      %3214 = vmatprep.mubr.bf16.mxu0 0
      %3215 = vmatmul.mubr.bf16.gmra.mrb[0].mxu0 %v3127
      %v3216 = vpop.f32.mrb[0].mxu0
      %v3217 = vadd.f32 0.0, %v3216
      %v3218 = vpop.f32.mrb[0].mxu0
      %v3219 = vpop.f32.mrb[0].mxu0
      %v3220 = vadd.f32 0.0, %v3219
      %v3221 = vpop.f32.mrb[0].mxu0
      %3222 = vmatprep.mubr.bf16.mxu0 0
      %3223 = vmatmul.mubr.bf16.gmra.mrb[0].mxu0 %v3130
      %v3224 = vpop.f32.mrb[0].mxu0
      %v3225 = vadd.f32 0.0, %v3224
      %v3226 = vpop.f32.mrb[0].mxu0
      %v3227 = vpop.f32.mrb[0].mxu0
      %v3228 = vadd.f32 0.0, %v3227
      %v3229 = vpop.f32.mrb[0].mxu0
      %3230 = vmatprep.mubr.bf16.mxu0 0
      %3231 = vmatmul.mubr.bf16.gmra.mrb[0].mxu0 %v3133
      %v3232 = vpop.f32.mrb[0].mxu0
      %v3233 = vadd.f32 0.0, %v3232
      %v3234 = vpop.f32.mrb[0].mxu0
      %v3235 = vpop.f32.mrb[0].mxu0
      %v3236 = vadd.f32 0.0, %v3235
      %v3237 = vpop.f32.mrb[0].mxu0
      %3238 = vmatprep.mubr.bf16.mxu0 0
      %3239 = vmatmul.mubr.bf16.gmra.mrb[0].mxu0 %v3136
      %v3240 = vpop.f32.mrb[0].mxu0
      %v3241 = vadd.f32 0.0, %v3240
      %v3242 = vpop.f32.mrb[0].mxu0
      %v3243 = vpop.f32.mrb[0].mxu0
      %v3244 = vadd.f32 0.0, %v3243
      %v3245 = vpop.f32.mrb[0].mxu0
      %3246 = vmatprep.mubr.bf16.mxu0 0
      %3247 = vmatmul.mubr.bf16.gmra.mrb[0].mxu0 %v3139
      %v3248 = vpop.f32.mrb[0].mxu0
      %v3249 = vadd.f32 0.0, %v3248
      %v3250 = vpop.f32.mrb[0].mxu0
      %v3251 = vpop.f32.mrb[0].mxu0
      %v3252 = vadd.f32 0.0, %v3251
      %v3253 = vpop.f32.mrb[0].mxu0
      %3254 = vmatprep.mubr.bf16.mxu0 0
      %3255 = vmatmul.mubr.bf16.gmra.mrb[0].mxu0 %v3142
      %v3256 = vpop.f32.mrb[0].mxu0
      %v3257 = vadd.f32 0.0, %v3256
      %v3258 = vpop.f32.mrb[0].mxu0
      %v3259 = vpop.f32.mrb[0].mxu0
      %v3260 = vadd.f32 0.0, %v3259
      %v3261 = vpop.f32.mrb[0].mxu0
      %3262 = vmatprep.mubr.bf16.mxu0 0
      %3263 = vmatmul.mubr.bf16.gmra.mrb[0].mxu0 %v3145
      %v3264 = vpop.f32.mrb[0].mxu0
      %v3265 = vadd.f32 0.0, %v3264
      %v3266 = vpop.f32.mrb[0].mxu0
      %v3267 = vpop.f32.mrb[0].mxu0
      %v3268 = vadd.f32 0.0, %v3267
      %v3269 = vpop.f32.mrb[0].mxu0
      %3270 = vmatprep.mubr.bf16.mxu0 0
      %3271 = vmatmul.mubr.bf16.gmra.mrb[0].mxu0 %v3148
      %v3272 = vpop.f32.mrb[0].mxu0
      %v3273 = vadd.f32 0.0, %v3272
      %v3274 = vpop.f32.mrb[0].mxu0
      %v3275 = vpop.f32.mrb[0].mxu0
      %v3276 = vadd.f32 0.0, %v3275
      %v3277 = vpop.f32.mrb[0].mxu0
      %3278 = vmatprep.mubr.bf16.mxu0 0
      %3279 = vmatmul.mubr.bf16.gmra.mrb[0].mxu0 %v3151
      %v3280 = vpop.f32.mrb[0].mxu0
      %v3281 = vadd.f32 0.0, %v3280
      %v3282 = vpop.f32.mrb[0].mxu0
      %v3283 = vpop.f32.mrb[0].mxu0
      %v3284 = vadd.f32 0.0, %v3283
      %v3285 = vpop.f32.mrb[0].mxu0
      %3286 = vmatprep.mubr.bf16.mxu0 0
      %3287 = vmatmul.mubr.bf16.gmra.mrb[0].mxu0 %v3154
      %v3288 = vpop.f32.mrb[0].mxu0
      %v3289 = vadd.f32 0.0, %v3288
      %v3290 = vpop.f32.mrb[0].mxu0
      %v3291 = vpop.f32.mrb[0].mxu0
      %v3292 = vadd.f32 0.0, %v3291
      %v3293 = vpop.f32.mrb[0].mxu0
      %3294 = vmatprep.mubr.bf16.mxu0 0
      %3295 = vmatmul.mubr.bf16.gmra.mrb[0].mxu0 %v3157
      %v3296 = vpop.f32.mrb[0].mxu0
      %v3297 = vadd.f32 0.0, %v3296
      %v3298 = vpop.f32.mrb[0].mxu0
      %v3299 = vpop.f32.mrb[0].mxu0
      %v3300 = vadd.f32 0.0, %v3299
      %v3301 = vpop.f32.mrb[0].mxu0
      %3302 = vmatprep.mubr.bf16.mxu0 0
      %3303 = vmatmul.mubr.bf16.gmra.mrb[0].mxu0 %v3160
      %v3304 = vpop.f32.mrb[0].mxu0
      %v3305 = vadd.f32 0.0, %v3304
      %v3306 = vpop.f32.mrb[0].mxu0
      %v3307 = vpop.f32.mrb[0].mxu0
      %v3308 = vadd.f32 0.0, %v3307
      %v3309 = vpop.f32.mrb[0].mxu0
      %3310 = vmatprep.mubr.bf16.mxu0 0
      %3311 = vmatmul.mubr.bf16.gmra.mrb[0].mxu0 %v3163
      %v3312 = vpop.f32.mrb[0].mxu0
      %v3313 = vadd.f32 0.0, %v3312
      %v3314 = vpop.f32.mrb[0].mxu0
      %v3315 = vpop.f32.mrb[0].mxu0
      %v3316 = vadd.f32 0.0, %v3315
      %v3317 = vpop.f32.mrb[0].mxu0
      %3318 = vmatprep.mubr.bf16.mxu0 0
      %3319 = vmatmul.mubr.bf16.gmra.mrb[0].mxu0 %v3166
      %v3320 = vpop.f32.mrb[0].mxu0
      %v3321 = vadd.f32 0.0, %v3320
      %v3322 = vpop.f32.mrb[0].mxu0
      %v3323 = vpop.f32.mrb[0].mxu0
      %v3324 = vadd.f32 0.0, %v3323
      %v3325 = vpop.f32.mrb[0].mxu0
      %3326 = vmatprep.mubr.bf16.mxu0 0
      %3327 = vmatmul.mubr.bf16.gmra.mrb[0].mxu0 %v3169
      %v3328 = vpop.f32.mrb[0].mxu0
      %v3329 = vadd.f32 0.0, %v3328
      %v3330 = vpop.f32.mrb[0].mxu0
      %v3331 = vpop.f32.mrb[0].mxu0
      %v3332 = vadd.f32 0.0, %v3331
      %v3333 = vpop.f32.mrb[0].mxu0
      %3334 = vdwg.mxu0
      %v3335 = vadd.f32 %v2917, %v3209
      %v3336 = vadd.f32 %v2918, %v3212
      %v3337 = vadd.f32 %v2919, %v3217
      %v3338 = vadd.f32 %v2920, %v3220
      %v3339 = vadd.f32 %v2921, %v3225
      %v3340 = vadd.f32 %v2922, %v3228
      %v3341 = vadd.f32 %v2923, %v3233
      %v3342 = vadd.f32 %v2924, %v3236
      %v3343 = vadd.f32 %v2925, %v3241
      %v3344 = vadd.f32 %v2926, %v3244
      %v3345 = vadd.f32 %v2927, %v3249
      %v3346 = vadd.f32 %v2928, %v3252
      %v3347 = vadd.f32 %v2929, %v3257
      %v3348 = vadd.f32 %v2930, %v3260
      %v3349 = vadd.f32 %v2931, %v3265
      %v3350 = vadd.f32 %v2932, %v3268
      %v3351 = vadd.f32 %v2933, %v3273
      %v3352 = vadd.f32 %v2934, %v3276
      %v3353 = vadd.f32 %v2935, %v3281
      %v3354 = vadd.f32 %v2936, %v3284
      %v3355 = vadd.f32 %v2937, %v3289
      %v3356 = vadd.f32 %v2938, %v3292
      %v3357 = vadd.f32 %v2939, %v3297
      %v3358 = vadd.f32 %v2940, %v3300
      %v3359 = vadd.f32 %v2941, %v3305
      %v3360 = vadd.f32 %v2942, %v3308
      %v3361 = vadd.f32 %v2943, %v3313
      %v3362 = vadd.f32 %v2944, %v3316
      %v3363 = vadd.f32 %v2945, %v3321
      %v3364 = vadd.f32 %v2946, %v3324
      %v3365 = vadd.f32 %v2947, %v3329
      %v3366 = vadd.f32 %v2948, %v3332
      %v3367 = vld [vmem:[%s4 + $0x8] sm:$0x3]
      %v3369 = vrot.slane %v569, 4
      %v3370 = vsel %vm484, %v1327, %v3369
      %v3372 = vsel %vm448, %v3370, 0
      %v3375 = vsel %vm1381, %v3367, 0
      %3377 = vmatprep.subr.bf16.mxu0 0
      %3378 = vmatpush1.bf16.msra.mxu0 %v3375
      %3379 = vmatprep.subr.bf16.mxu0 0
      %3380 = vmatpush1.bf16.msra.mxu0 0
      %3381 = vmatprep.subr.bf16.mxu0 0
      %3382 = vmatpush1.bf16.msra.mxu0 0
      %3383 = vmatprep.subr.bf16.mxu0 0
      %3384 = vmatpush1.bf16.msra.mxu0 0
      %3385 = vmatprep.subr.bf16.mxu0 0
      %3386 = vmatpush1.bf16.msra.mxu0 0
      %3387 = vmatprep.subr.bf16.mxu0 0
      %3388 = vmatpush1.bf16.msra.mxu0 0
      %3389 = vmatprep.subr.bf16.mxu0 0
      %3390 = vmatpush1.bf16.msra.mxu0 0
      %3391 = vmatprep.subr.bf16.mxu0 0
      %3392 = vmatpush1.bf16.msra.mxu0 0
      %3393 = vmatprep.subr.bf16.mxu0 0
      %3394 = vmatpush1.bf16.msra.mxu0 0
      %3395 = vmatprep.subr.bf16.mxu0 0
      %3396 = vmatpush1.bf16.msra.mxu0 0
      %3397 = vmatprep.subr.bf16.mxu0 0
      %3398 = vmatpush1.bf16.msra.mxu0 0
      %3399 = vmatprep.subr.bf16.mxu0 0
      %3400 = vmatpush1.bf16.msra.mxu0 0
      %3401 = vmatprep.subr.bf16.mxu0 0
      %3402 = vmatpush1.bf16.msra.mxu0 0
      %3403 = vmatprep.subr.bf16.mxu0 0
      %3404 = vmatpush1.bf16.msra.mxu0 0
      %3405 = vmatprep.subr.bf16.mxu0 0
      %3406 = vmatpush1.bf16.msra.mxu0 0
      %3407 = vmatprep.subr.bf16.mxu0 0
      %3408 = vmatpush1.bf16.msra.mxu0 0
      %3409 = vmatprep.mubr.bf16.mxu0 0
      %3410 = vmatmul.mubr.bf16.gmra.mrb[0].mxu0 %v1337
      %v3411 = vpop.f32.mrb[0].mxu0
      %v3412 = vadd.f32 0.0, %v3411
      %v3413 = vpop.f32.mrb[0].mxu0
      %v3414 = vpop.f32.mrb[0].mxu0
      %v3415 = vadd.f32 0.0, %v3414
      %v3416 = vpop.f32.mrb[0].mxu0
      %3417 = vmatprep.mubr.bf16.mxu0 0
      %3418 = vmatmul.mubr.bf16.gmra.mrb[0].mxu0 %v1340
      %v3419 = vpop.f32.mrb[0].mxu0
      %v3420 = vadd.f32 0.0, %v3419
      %v3421 = vpop.f32.mrb[0].mxu0
      %v3422 = vpop.f32.mrb[0].mxu0
      %v3423 = vadd.f32 0.0, %v3422
      %v3424 = vpop.f32.mrb[0].mxu0
      %3425 = vmatprep.mubr.bf16.mxu0 0
      %3426 = vmatmul.mubr.bf16.gmra.mrb[0].mxu0 %v1343
      %v3427 = vpop.f32.mrb[0].mxu0
      %v3428 = vadd.f32 0.0, %v3427
      %v3429 = vpop.f32.mrb[0].mxu0
      %v3430 = vpop.f32.mrb[0].mxu0
      %v3431 = vadd.f32 0.0, %v3430
      %v3432 = vpop.f32.mrb[0].mxu0
      %3433 = vmatprep.mubr.bf16.mxu0 0
      %3434 = vmatmul.mubr.bf16.gmra.mrb[0].mxu0 %v1346
      %v3435 = vpop.f32.mrb[0].mxu0
      %v3436 = vadd.f32 0.0, %v3435
      %v3437 = vpop.f32.mrb[0].mxu0
      %v3438 = vpop.f32.mrb[0].mxu0
      %v3439 = vadd.f32 0.0, %v3438
      %v3440 = vpop.f32.mrb[0].mxu0
      %3441 = vmatprep.mubr.bf16.mxu0 0
      %3442 = vmatmul.mubr.bf16.gmra.mrb[0].mxu0 %v1349
      %v3443 = vpop.f32.mrb[0].mxu0
      %v3444 = vadd.f32 0.0, %v3443
      %v3445 = vpop.f32.mrb[0].mxu0
      %v3446 = vpop.f32.mrb[0].mxu0
      %v3447 = vadd.f32 0.0, %v3446
      %v3448 = vpop.f32.mrb[0].mxu0
      %3449 = vmatprep.mubr.bf16.mxu0 0
      %3450 = vmatmul.mubr.bf16.gmra.mrb[0].mxu0 %v1352
      %v3451 = vpop.f32.mrb[0].mxu0
      %v3452 = vadd.f32 0.0, %v3451
      %v3453 = vpop.f32.mrb[0].mxu0
      %v3454 = vpop.f32.mrb[0].mxu0
      %v3455 = vadd.f32 0.0, %v3454
      %v3456 = vpop.f32.mrb[0].mxu0
      %3457 = vmatprep.mubr.bf16.mxu0 0
      %3458 = vmatmul.mubr.bf16.gmra.mrb[0].mxu0 %v1355
      %v3459 = vpop.f32.mrb[0].mxu0
      %v3460 = vadd.f32 0.0, %v3459
      %v3461 = vpop.f32.mrb[0].mxu0
      %v3462 = vpop.f32.mrb[0].mxu0
      %v3463 = vadd.f32 0.0, %v3462
      %v3464 = vpop.f32.mrb[0].mxu0
      %3465 = vmatprep.mubr.bf16.mxu0 0
      %3466 = vmatmul.mubr.bf16.gmra.mrb[0].mxu0 %v1358
      %v3467 = vpop.f32.mrb[0].mxu0
      %v3468 = vadd.f32 0.0, %v3467
      %v3469 = vpop.f32.mrb[0].mxu0
      %v3470 = vpop.f32.mrb[0].mxu0
      %v3471 = vadd.f32 0.0, %v3470
      %v3472 = vpop.f32.mrb[0].mxu0
      %3473 = vmatprep.mubr.bf16.mxu0 0
      %3474 = vmatmul.mubr.bf16.gmra.mrb[0].mxu0 %v1361
      %v3475 = vpop.f32.mrb[0].mxu0
      %v3476 = vadd.f32 0.0, %v3475
      %v3477 = vpop.f32.mrb[0].mxu0
      %v3478 = vpop.f32.mrb[0].mxu0
      %v3479 = vadd.f32 0.0, %v3478
      %v3480 = vpop.f32.mrb[0].mxu0
      %3481 = vmatprep.mubr.bf16.mxu0 0
      %3482 = vmatmul.mubr.bf16.gmra.mrb[0].mxu0 %v1364
      %v3483 = vpop.f32.mrb[0].mxu0
      %v3484 = vadd.f32 0.0, %v3483
      %v3485 = vpop.f32.mrb[0].mxu0
      %v3486 = vpop.f32.mrb[0].mxu0
      %v3487 = vadd.f32 0.0, %v3486
      %v3488 = vpop.f32.mrb[0].mxu0
      %3489 = vmatprep.mubr.bf16.mxu0 0
      %3490 = vmatmul.mubr.bf16.gmra.mrb[0].mxu0 %v1367
      %v3491 = vpop.f32.mrb[0].mxu0
      %v3492 = vadd.f32 0.0, %v3491
      %v3493 = vpop.f32.mrb[0].mxu0
      %v3494 = vpop.f32.mrb[0].mxu0
      %v3495 = vadd.f32 0.0, %v3494
      %v3496 = vpop.f32.mrb[0].mxu0
      %3497 = vmatprep.mubr.bf16.mxu0 0
      %3498 = vmatmul.mubr.bf16.gmra.mrb[0].mxu0 %v1370
      %v3499 = vpop.f32.mrb[0].mxu0
      %v3500 = vadd.f32 0.0, %v3499
      %v3501 = vpop.f32.mrb[0].mxu0
      %v3502 = vpop.f32.mrb[0].mxu0
      %v3503 = vadd.f32 0.0, %v3502
      %v3504 = vpop.f32.mrb[0].mxu0
      %3505 = vmatprep.mubr.bf16.mxu0 0
      %3506 = vmatmul.mubr.bf16.gmra.mrb[0].mxu0 %v1373
      %v3507 = vpop.f32.mrb[0].mxu0
      %v3508 = vadd.f32 0.0, %v3507
      %v3509 = vpop.f32.mrb[0].mxu0
      %v3510 = vpop.f32.mrb[0].mxu0
      %v3511 = vadd.f32 0.0, %v3510
      %v3512 = vpop.f32.mrb[0].mxu0
      %3513 = vmatprep.mubr.bf16.mxu0 0
      %3514 = vmatmul.mubr.bf16.gmra.mrb[0].mxu0 %v1376
      %v3515 = vpop.f32.mrb[0].mxu0
      %v3516 = vadd.f32 0.0, %v3515
      %v3517 = vpop.f32.mrb[0].mxu0
      %v3518 = vpop.f32.mrb[0].mxu0
      %v3519 = vadd.f32 0.0, %v3518
      %v3520 = vpop.f32.mrb[0].mxu0
      %3521 = vmatprep.mubr.bf16.mxu0 0
      %3522 = vmatmul.mubr.bf16.gmra.mrb[0].mxu0 %v1379
      %v3523 = vpop.f32.mrb[0].mxu0
      %v3524 = vadd.f32 0.0, %v3523
      %v3525 = vpop.f32.mrb[0].mxu0
      %v3526 = vpop.f32.mrb[0].mxu0
      %v3527 = vadd.f32 0.0, %v3526
      %v3528 = vpop.f32.mrb[0].mxu0
      %3529 = vmatprep.mubr.bf16.mxu0 0
      %3530 = vmatmul.mubr.bf16.gmra.mrb[0].mxu0 %v3372
      %v3531 = vpop.f32.mrb[0].mxu0
      %v3532 = vadd.f32 0.0, %v3531
      %v3533 = vpop.f32.mrb[0].mxu0
      %v3534 = vpop.f32.mrb[0].mxu0
      %v3535 = vadd.f32 0.0, %v3534
      %v3536 = vpop.f32.mrb[0].mxu0
      %3537 = vdwg.mxu0
      %v3538 = vadd.f32 %v3335, %v3412
      %v3539 = vadd.f32 %v3336, %v3415
      %v3540 = vadd.f32 %v3337, %v3420
      %v3541 = vadd.f32 %v3338, %v3423
      %v3542 = vadd.f32 %v3339, %v3428
      %v3543 = vadd.f32 %v3340, %v3431
      %v3544 = vadd.f32 %v3341, %v3436
      %v3545 = vadd.f32 %v3342, %v3439
      %v3546 = vadd.f32 %v3343, %v3444
      %v3547 = vadd.f32 %v3344, %v3447
      %v3548 = vadd.f32 %v3345, %v3452
      %v3549 = vadd.f32 %v3346, %v3455
      %v3550 = vadd.f32 %v3347, %v3460
      %v3551 = vadd.f32 %v3348, %v3463
      %v3552 = vadd.f32 %v3349, %v3468
      %v3553 = vadd.f32 %v3350, %v3471
      %v3554 = vadd.f32 %v3351, %v3476
      %v3555 = vadd.f32 %v3352, %v3479
      %v3556 = vadd.f32 %v3353, %v3484
      %v3557 = vadd.f32 %v3354, %v3487
      %v3558 = vadd.f32 %v3355, %v3492
      %v3559 = vadd.f32 %v3356, %v3495
      %v3560 = vadd.f32 %v3357, %v3500
      %v3561 = vadd.f32 %v3358, %v3503
      %v3562 = vadd.f32 %v3359, %v3508
      %v3563 = vadd.f32 %v3360, %v3511
      %v3564 = vadd.f32 %v3361, %v3516
      %v3565 = vadd.f32 %v3362, %v3519
      %v3566 = vadd.f32 %v3363, %v3524
      %v3567 = vadd.f32 %v3364, %v3527
      %v3568 = vadd.f32 %v3365, %v3532
      %v3569 = vadd.f32 %v3366, %v3535
      %v3570 = vmul.bf16 %v553, %v2382
      %v3571 = vmul.bf16 %v554, %v2391
      %v3572 = vmul.bf16 %v555, %v2400
      %v3573 = vmul.bf16 %v556, %v2409
      %v3574 = vmul.bf16 %v557, %v2418
      %v3575 = vmul.bf16 %v558, %v2427
      %v3576 = vmul.bf16 %v559, %v2436
      %v3577 = vmul.bf16 %v560, %v2445
      %v3578 = vmul.bf16 %v561, %v2454
      %v3579 = vmul.bf16 %v562, %v2463
      %v3580 = vmul.bf16 %v563, %v2472
      %v3581 = vmul.bf16 %v564, %v2481
      %v3582 = vmul.bf16 %v565, %v2490
      %v3583 = vmul.bf16 %v566, %v2499
      %v3584 = vmul.bf16 %v567, %v2508
      %v3585 = vmul.bf16 %v568, %v2517
      %v3586 = vmul.bf16 %v569, %v2516
      %v3587 = vld [vmem:[%s4 + $0x8] sm:$0xc]
      %v3589 = vshrl.u32 %v3570, 16
      %v3591 = vrot.slane %v3589, 4
      %v3592 = vshll.u32 %v3570, 16
      %v3594 = vrot.slane %v3592, 5
      %v3595 = vor.u32 %v3591, %v3594
      %v3597 = vshrl.u32 %v3571, 16
      %v3599 = vrot.slane %v3597, 4
      %v3600 = vshll.u32 %v3571, 16
      %v3602 = vrot.slane %v3600, 5
      %v3603 = vor.u32 %v3599, %v3602
      %v3604 = vsel %vm1099, %v3595, %v3603
      %v3606 = vshrl.u32 %v3572, 16
      %v3608 = vrot.slane %v3606, 4
      %v3609 = vshll.u32 %v3572, 16
      %v3611 = vrot.slane %v3609, 5
      %v3612 = vor.u32 %v3608, %v3611
      %v3613 = vsel %vm1099, %v3603, %v3612
      %v3615 = vshrl.u32 %v3573, 16
      %v3617 = vrot.slane %v3615, 4
      %v3618 = vshll.u32 %v3573, 16
      %v3620 = vrot.slane %v3618, 5
      %v3621 = vor.u32 %v3617, %v3620
      %v3622 = vsel %vm1099, %v3612, %v3621
      %v3624 = vshrl.u32 %v3574, 16
      %v3626 = vrot.slane %v3624, 4
      %v3627 = vshll.u32 %v3574, 16
      %v3629 = vrot.slane %v3627, 5
      %v3630 = vor.u32 %v3626, %v3629
      %v3631 = vsel %vm1099, %v3621, %v3630
      %v3633 = vshrl.u32 %v3575, 16
      %v3635 = vrot.slane %v3633, 4
      %v3636 = vshll.u32 %v3575, 16
      %v3638 = vrot.slane %v3636, 5
      %v3639 = vor.u32 %v3635, %v3638
      %v3640 = vsel %vm1099, %v3630, %v3639
      %v3642 = vshrl.u32 %v3576, 16
      %v3644 = vrot.slane %v3642, 4
      %v3645 = vshll.u32 %v3576, 16
      %v3647 = vrot.slane %v3645, 5
      %v3648 = vor.u32 %v3644, %v3647
      %v3649 = vsel %vm1099, %v3639, %v3648
      %v3651 = vshrl.u32 %v3577, 16
      %v3653 = vrot.slane %v3651, 4
      %v3654 = vshll.u32 %v3577, 16
      %v3656 = vrot.slane %v3654, 5
      %v3657 = vor.u32 %v3653, %v3656
      %v3658 = vsel %vm1099, %v3648, %v3657
      %v3660 = vshrl.u32 %v3578, 16
      %v3662 = vrot.slane %v3660, 4
      %v3663 = vshll.u32 %v3578, 16
      %v3665 = vrot.slane %v3663, 5
      %v3666 = vor.u32 %v3662, %v3665
      %v3667 = vsel %vm1099, %v3657, %v3666
      %v3669 = vshrl.u32 %v3579, 16
      %v3671 = vrot.slane %v3669, 4
      %v3672 = vshll.u32 %v3579, 16
      %v3674 = vrot.slane %v3672, 5
      %v3675 = vor.u32 %v3671, %v3674
      %v3676 = vsel %vm1099, %v3666, %v3675
      %v3678 = vshrl.u32 %v3580, 16
      %v3680 = vrot.slane %v3678, 4
      %v3681 = vshll.u32 %v3580, 16
      %v3683 = vrot.slane %v3681, 5
      %v3684 = vor.u32 %v3680, %v3683
      %v3685 = vsel %vm1099, %v3675, %v3684
      %v3687 = vshrl.u32 %v3581, 16
      %v3689 = vrot.slane %v3687, 4
      %v3690 = vshll.u32 %v3581, 16
      %v3692 = vrot.slane %v3690, 5
      %v3693 = vor.u32 %v3689, %v3692
      %v3694 = vsel %vm1099, %v3684, %v3693
      %v3696 = vshrl.u32 %v3582, 16
      %v3698 = vrot.slane %v3696, 4
      %v3699 = vshll.u32 %v3582, 16
      %v3701 = vrot.slane %v3699, 5
      %v3702 = vor.u32 %v3698, %v3701
      %v3703 = vsel %vm1099, %v3693, %v3702
      %v3705 = vshrl.u32 %v3583, 16
      %v3707 = vrot.slane %v3705, 4
      %v3708 = vshll.u32 %v3583, 16
      %v3710 = vrot.slane %v3708, 5
      %v3711 = vor.u32 %v3707, %v3710
      %v3712 = vsel %vm1099, %v3702, %v3711
      %v3714 = vshrl.u32 %v3584, 16
      %v3716 = vrot.slane %v3714, 4
      %v3717 = vshll.u32 %v3584, 16
      %v3719 = vrot.slane %v3717, 5
      %v3720 = vor.u32 %v3716, %v3719
      %v3721 = vsel %vm1099, %v3711, %v3720
      %v3723 = vshrl.u32 %v3585, 16
      %v3725 = vrot.slane %v3723, 4
      %v3726 = vshll.u32 %v3585, 16
      %v3728 = vrot.slane %v3726, 5
      %v3729 = vor.u32 %v3725, %v3728
      %v3730 = vsel %vm1099, %v3720, %v3729
      %v3732 = vshrl.u32 %v3586, 16
      %v3734 = vrot.slane %v3732, 4
      %v3735 = vshll.u32 %v3586, 16
      %v3737 = vrot.slane %v3735, 5
      %v3738 = vor.u32 %v3734, %v3737
      %v3739 = vsel %vm1099, %v3729, %v3738
      %v3741 = vunpack.c.l.b16 %v3587
      %v3742 = vpack.c.b16 %v3741, %v3741
      %v3743 = vrot.slane %v3742, 2
      %v3745 = vsel %vm448, %v3604, 0
      %v3748 = vsel %vm448, %v3613, 0
      %v3751 = vsel %vm448, %v3622, 0
      %v3754 = vsel %vm448, %v3631, 0
      %v3757 = vsel %vm448, %v3640, 0
      %v3760 = vsel %vm448, %v3649, 0
      %v3763 = vsel %vm448, %v3658, 0
      %v3766 = vsel %vm448, %v3667, 0
      %v3769 = vsel %vm448, %v3676, 0
      %v3772 = vsel %vm448, %v3685, 0
      %v3775 = vsel %vm448, %v3694, 0
      %v3778 = vsel %vm448, %v3703, 0
      %v3781 = vsel %vm448, %v3712, 0
      %v3784 = vsel %vm448, %v3721, 0
      %v3787 = vsel %vm448, %v3730, 0
      %v3790 = vsel %vm448, %v3739, 0
      %v3793 = vsel %vm1381, %v3743, 0
      %3795 = vmatprep.subr.bf16.mxu0 0
      %3796 = vmatpush1.bf16.msra.mxu0 %v3793
      %3797 = vmatprep.subr.bf16.mxu0 0
      %3798 = vmatpush1.bf16.msra.mxu0 0
      %3799 = vmatprep.subr.bf16.mxu0 0
      %3800 = vmatpush1.bf16.msra.mxu0 0
      %3801 = vmatprep.subr.bf16.mxu0 0
      %3802 = vmatpush1.bf16.msra.mxu0 0
      %3803 = vmatprep.subr.bf16.mxu0 0
      %3804 = vmatpush1.bf16.msra.mxu0 0
      %3805 = vmatprep.subr.bf16.mxu0 0
      %3806 = vmatpush1.bf16.msra.mxu0 0
      %3807 = vmatprep.subr.bf16.mxu0 0
      %3808 = vmatpush1.bf16.msra.mxu0 0
      %3809 = vmatprep.subr.bf16.mxu0 0
      %3810 = vmatpush1.bf16.msra.mxu0 0
      %3811 = vmatprep.subr.bf16.mxu0 0
      %3812 = vmatpush1.bf16.msra.mxu0 0
      %3813 = vmatprep.subr.bf16.mxu0 0
      %3814 = vmatpush1.bf16.msra.mxu0 0
      %3815 = vmatprep.subr.bf16.mxu0 0
      %3816 = vmatpush1.bf16.msra.mxu0 0
      %3817 = vmatprep.subr.bf16.mxu0 0
      %3818 = vmatpush1.bf16.msra.mxu0 0
      %3819 = vmatprep.subr.bf16.mxu0 0
      %3820 = vmatpush1.bf16.msra.mxu0 0
      %3821 = vmatprep.subr.bf16.mxu0 0
      %3822 = vmatpush1.bf16.msra.mxu0 0
      %3823 = vmatprep.subr.bf16.mxu0 0
      %3824 = vmatpush1.bf16.msra.mxu0 0
      %3825 = vmatprep.subr.bf16.mxu0 0
      %3826 = vmatpush1.bf16.msra.mxu0 0
      %3827 = vmatprep.mubr.bf16.mxu0 0
      %3828 = vmatmul.mubr.bf16.gmra.mrb[0].mxu0 %v3745
      %v3829 = vpop.f32.mrb[0].mxu0
      %v3830 = vadd.f32 0.0, %v3829
      %v3831 = vpop.f32.mrb[0].mxu0
      %v3832 = vpop.f32.mrb[0].mxu0
      %v3833 = vadd.f32 0.0, %v3832
      %v3834 = vpop.f32.mrb[0].mxu0
      %3835 = vmatprep.mubr.bf16.mxu0 0
      %3836 = vmatmul.mubr.bf16.gmra.mrb[0].mxu0 %v3748
      %v3837 = vpop.f32.mrb[0].mxu0
      %v3838 = vadd.f32 0.0, %v3837
      %v3839 = vpop.f32.mrb[0].mxu0
      %v3840 = vpop.f32.mrb[0].mxu0
      %v3841 = vadd.f32 0.0, %v3840
      %v3842 = vpop.f32.mrb[0].mxu0
      %3843 = vmatprep.mubr.bf16.mxu0 0
      %3844 = vmatmul.mubr.bf16.gmra.mrb[0].mxu0 %v3751
      %v3845 = vpop.f32.mrb[0].mxu0
      %v3846 = vadd.f32 0.0, %v3845
      %v3847 = vpop.f32.mrb[0].mxu0
      %v3848 = vpop.f32.mrb[0].mxu0
      %v3849 = vadd.f32 0.0, %v3848
      %v3850 = vpop.f32.mrb[0].mxu0
      %3851 = vmatprep.mubr.bf16.mxu0 0
      %3852 = vmatmul.mubr.bf16.gmra.mrb[0].mxu0 %v3754
      %v3853 = vpop.f32.mrb[0].mxu0
      %v3854 = vadd.f32 0.0, %v3853
      %v3855 = vpop.f32.mrb[0].mxu0
      %v3856 = vpop.f32.mrb[0].mxu0
      %v3857 = vadd.f32 0.0, %v3856
      %v3858 = vpop.f32.mrb[0].mxu0
      %3859 = vmatprep.mubr.bf16.mxu0 0
      %3860 = vmatmul.mubr.bf16.gmra.mrb[0].mxu0 %v3757
      %v3861 = vpop.f32.mrb[0].mxu0
      %v3862 = vadd.f32 0.0, %v3861
      %v3863 = vpop.f32.mrb[0].mxu0
      %v3864 = vpop.f32.mrb[0].mxu0
      %v3865 = vadd.f32 0.0, %v3864
      %v3866 = vpop.f32.mrb[0].mxu0
      %3867 = vmatprep.mubr.bf16.mxu0 0
      %3868 = vmatmul.mubr.bf16.gmra.mrb[0].mxu0 %v3760
      %v3869 = vpop.f32.mrb[0].mxu0
      %v3870 = vadd.f32 0.0, %v3869
      %v3871 = vpop.f32.mrb[0].mxu0
      %v3872 = vpop.f32.mrb[0].mxu0
      %v3873 = vadd.f32 0.0, %v3872
      %v3874 = vpop.f32.mrb[0].mxu0
      %3875 = vmatprep.mubr.bf16.mxu0 0
      %3876 = vmatmul.mubr.bf16.gmra.mrb[0].mxu0 %v3763
      %v3877 = vpop.f32.mrb[0].mxu0
      %v3878 = vadd.f32 0.0, %v3877
      %v3879 = vpop.f32.mrb[0].mxu0
      %v3880 = vpop.f32.mrb[0].mxu0
      %v3881 = vadd.f32 0.0, %v3880
      %v3882 = vpop.f32.mrb[0].mxu0
      %3883 = vmatprep.mubr.bf16.mxu0 0
      %3884 = vmatmul.mubr.bf16.gmra.mrb[0].mxu0 %v3766
      %v3885 = vpop.f32.mrb[0].mxu0
      %v3886 = vadd.f32 0.0, %v3885
      %v3887 = vpop.f32.mrb[0].mxu0
      %v3888 = vpop.f32.mrb[0].mxu0
      %v3889 = vadd.f32 0.0, %v3888
      %v3890 = vpop.f32.mrb[0].mxu0
      %3891 = vmatprep.mubr.bf16.mxu0 0
      %3892 = vmatmul.mubr.bf16.gmra.mrb[0].mxu0 %v3769
      %v3893 = vpop.f32.mrb[0].mxu0
      %v3894 = vadd.f32 0.0, %v3893
      %v3895 = vpop.f32.mrb[0].mxu0
      %v3896 = vpop.f32.mrb[0].mxu0
      %v3897 = vadd.f32 0.0, %v3896
      %v3898 = vpop.f32.mrb[0].mxu0
      %3899 = vmatprep.mubr.bf16.mxu0 0
      %3900 = vmatmul.mubr.bf16.gmra.mrb[0].mxu0 %v3772
      %v3901 = vpop.f32.mrb[0].mxu0
      %v3902 = vadd.f32 0.0, %v3901
      %v3903 = vpop.f32.mrb[0].mxu0
      %v3904 = vpop.f32.mrb[0].mxu0
      %v3905 = vadd.f32 0.0, %v3904
      %v3906 = vpop.f32.mrb[0].mxu0
      %3907 = vmatprep.mubr.bf16.mxu0 0
      %3908 = vmatmul.mubr.bf16.gmra.mrb[0].mxu0 %v3775
      %v3909 = vpop.f32.mrb[0].mxu0
      %v3910 = vadd.f32 0.0, %v3909
      %v3911 = vpop.f32.mrb[0].mxu0
      %v3912 = vpop.f32.mrb[0].mxu0
      %v3913 = vadd.f32 0.0, %v3912
      %v3914 = vpop.f32.mrb[0].mxu0
      %3915 = vmatprep.mubr.bf16.mxu0 0
      %3916 = vmatmul.mubr.bf16.gmra.mrb[0].mxu0 %v3778
      %v3917 = vpop.f32.mrb[0].mxu0
      %v3918 = vadd.f32 0.0, %v3917
      %v3919 = vpop.f32.mrb[0].mxu0
      %v3920 = vpop.f32.mrb[0].mxu0
      %v3921 = vadd.f32 0.0, %v3920
      %v3922 = vpop.f32.mrb[0].mxu0
      %3923 = vmatprep.mubr.bf16.mxu0 0
      %3924 = vmatmul.mubr.bf16.gmra.mrb[0].mxu0 %v3781
      %v3925 = vpop.f32.mrb[0].mxu0
      %v3926 = vadd.f32 0.0, %v3925
      %v3927 = vpop.f32.mrb[0].mxu0
      %v3928 = vpop.f32.mrb[0].mxu0
      %v3929 = vadd.f32 0.0, %v3928
      %v3930 = vpop.f32.mrb[0].mxu0
      %3931 = vmatprep.mubr.bf16.mxu0 0
      %3932 = vmatmul.mubr.bf16.gmra.mrb[0].mxu0 %v3784
      %v3933 = vpop.f32.mrb[0].mxu0
      %v3934 = vadd.f32 0.0, %v3933
      %v3935 = vpop.f32.mrb[0].mxu0
      %v3936 = vpop.f32.mrb[0].mxu0
      %v3937 = vadd.f32 0.0, %v3936
      %v3938 = vpop.f32.mrb[0].mxu0
      %3939 = vmatprep.mubr.bf16.mxu0 0
      %3940 = vmatmul.mubr.bf16.gmra.mrb[0].mxu0 %v3787
      %v3941 = vpop.f32.mrb[0].mxu0
      %v3942 = vadd.f32 0.0, %v3941
      %v3943 = vpop.f32.mrb[0].mxu0
      %v3944 = vpop.f32.mrb[0].mxu0
      %v3945 = vadd.f32 0.0, %v3944
      %v3946 = vpop.f32.mrb[0].mxu0
      %3947 = vmatprep.mubr.bf16.mxu0 0
      %3948 = vmatmul.mubr.bf16.gmra.mrb[0].mxu0 %v3790
      %v3949 = vpop.f32.mrb[0].mxu0
      %v3950 = vadd.f32 0.0, %v3949
      %v3951 = vpop.f32.mrb[0].mxu0
      %v3952 = vpop.f32.mrb[0].mxu0
      %v3953 = vadd.f32 0.0, %v3952
      %v3954 = vpop.f32.mrb[0].mxu0
      %3955 = vdwg.mxu0
      %v3956 = vadd.f32 %v3538, %v3830
      %v3957 = vadd.f32 %v3539, %v3833
      %v3958 = vadd.f32 %v3540, %v3838
      %v3959 = vadd.f32 %v3541, %v3841
      %v3960 = vadd.f32 %v3542, %v3846
      %v3961 = vadd.f32 %v3543, %v3849
      %v3962 = vadd.f32 %v3544, %v3854
      %v3963 = vadd.f32 %v3545, %v3857
      %v3964 = vadd.f32 %v3546, %v3862
      %v3965 = vadd.f32 %v3547, %v3865
      %v3966 = vadd.f32 %v3548, %v3870
      %v3967 = vadd.f32 %v3549, %v3873
      %v3968 = vadd.f32 %v3550, %v3878
      %v3969 = vadd.f32 %v3551, %v3881
      %v3970 = vadd.f32 %v3552, %v3886
      %v3971 = vadd.f32 %v3553, %v3889
      %v3972 = vadd.f32 %v3554, %v3894
      %v3973 = vadd.f32 %v3555, %v3897
      %v3974 = vadd.f32 %v3556, %v3902
      %v3975 = vadd.f32 %v3557, %v3905
      %v3976 = vadd.f32 %v3558, %v3910
      %v3977 = vadd.f32 %v3559, %v3913
      %v3978 = vadd.f32 %v3560, %v3918
      %v3979 = vadd.f32 %v3561, %v3921
      %v3980 = vadd.f32 %v3562, %v3926
      %v3981 = vadd.f32 %v3563, %v3929
      %v3982 = vadd.f32 %v3564, %v3934
      %v3983 = vadd.f32 %v3565, %v3937
      %v3984 = vadd.f32 %v3566, %v3942
      %v3985 = vadd.f32 %v3567, %v3945
      %v3986 = vadd.f32 %v3568, %v3950
      %v3987 = vadd.f32 %v3569, %v3953
      %v3988 = vmul.bf16 %v554, %v1107
      %v3989 = vmul.bf16 %v555, %v1116
      %v3990 = vmul.bf16 %v556, %v1125
      %v3991 = vmul.bf16 %v557, %v1134
      %v3992 = vmul.bf16 %v558, %v1143
      %v3993 = vmul.bf16 %v559, %v1152
      %v3994 = vmul.bf16 %v560, %v1161
      %v3995 = vmul.bf16 %v561, %v1170
      %v3996 = vmul.bf16 %v562, %v1179
      %v3997 = vmul.bf16 %v563, %v1188
      %v3998 = vmul.bf16 %v564, %v1197
      %v3999 = vmul.bf16 %v565, %v1206
      %v4000 = vmul.bf16 %v566, %v1215
      %v4001 = vmul.bf16 %v567, %v1224
      %v4002 = vmul.bf16 %v568, %v1233
      %v4003 = vmul.bf16 %v569, %v1242
      %v4004 = vmul.bf16 %v570, %v1241
      %v4005 = vld [vmem:[%s4 + $0xc] sm:$0x3]
      %v4007 = vshrl.u32 %v3988, 16
      %v4009 = vrot.slane %v4007, 3
      %v4010 = vshll.u32 %v3988, 16
      %v4012 = vrot.slane %v4010, 4
      %v4013 = vor.u32 %v4009, %v4012
      %v4015 = vshrl.u32 %v3989, 16
      %v4017 = vrot.slane %v4015, 3
      %v4018 = vshll.u32 %v3989, 16
      %v4020 = vrot.slane %v4018, 4
      %v4021 = vor.u32 %v4017, %v4020
      %v4022 = vsel %vm1546, %v4013, %v4021
      %v4024 = vshrl.u32 %v3990, 16
      %v4026 = vrot.slane %v4024, 3
      %v4027 = vshll.u32 %v3990, 16
      %v4029 = vrot.slane %v4027, 4
      %v4030 = vor.u32 %v4026, %v4029
      %v4031 = vsel %vm1546, %v4021, %v4030
      %v4033 = vshrl.u32 %v3991, 16
      %v4035 = vrot.slane %v4033, 3
      %v4036 = vshll.u32 %v3991, 16
      %v4038 = vrot.slane %v4036, 4
      %v4039 = vor.u32 %v4035, %v4038
      %v4040 = vsel %vm1546, %v4030, %v4039
      %v4042 = vshrl.u32 %v3992, 16
      %v4044 = vrot.slane %v4042, 3
      %v4045 = vshll.u32 %v3992, 16
      %v4047 = vrot.slane %v4045, 4
      %v4048 = vor.u32 %v4044, %v4047
      %v4049 = vsel %vm1546, %v4039, %v4048
      %v4051 = vshrl.u32 %v3993, 16
      %v4053 = vrot.slane %v4051, 3
      %v4054 = vshll.u32 %v3993, 16
      %v4056 = vrot.slane %v4054, 4
      %v4057 = vor.u32 %v4053, %v4056
      %v4058 = vsel %vm1546, %v4048, %v4057
      %v4060 = vshrl.u32 %v3994, 16
      %v4062 = vrot.slane %v4060, 3
      %v4063 = vshll.u32 %v3994, 16
      %v4065 = vrot.slane %v4063, 4
      %v4066 = vor.u32 %v4062, %v4065
      %v4067 = vsel %vm1546, %v4057, %v4066
      %v4069 = vshrl.u32 %v3995, 16
      %v4071 = vrot.slane %v4069, 3
      %v4072 = vshll.u32 %v3995, 16
      %v4074 = vrot.slane %v4072, 4
      %v4075 = vor.u32 %v4071, %v4074
      %v4076 = vsel %vm1546, %v4066, %v4075
      %v4078 = vshrl.u32 %v3996, 16
      %v4080 = vrot.slane %v4078, 3
      %v4081 = vshll.u32 %v3996, 16
      %v4083 = vrot.slane %v4081, 4
      %v4084 = vor.u32 %v4080, %v4083
      %v4085 = vsel %vm1546, %v4075, %v4084
      %v4087 = vshrl.u32 %v3997, 16
      %v4089 = vrot.slane %v4087, 3
      %v4090 = vshll.u32 %v3997, 16
      %v4092 = vrot.slane %v4090, 4
      %v4093 = vor.u32 %v4089, %v4092
      %v4094 = vsel %vm1546, %v4084, %v4093
      %v4096 = vshrl.u32 %v3998, 16
      %v4098 = vrot.slane %v4096, 3
      %v4099 = vshll.u32 %v3998, 16
      %v4101 = vrot.slane %v4099, 4
      %v4102 = vor.u32 %v4098, %v4101
      %v4103 = vsel %vm1546, %v4093, %v4102
      %v4105 = vshrl.u32 %v3999, 16
      %v4107 = vrot.slane %v4105, 3
      %v4108 = vshll.u32 %v3999, 16
      %v4110 = vrot.slane %v4108, 4
      %v4111 = vor.u32 %v4107, %v4110
      %v4112 = vsel %vm1546, %v4102, %v4111
      %v4114 = vshrl.u32 %v4000, 16
      %v4116 = vrot.slane %v4114, 3
      %v4117 = vshll.u32 %v4000, 16
      %v4119 = vrot.slane %v4117, 4
      %v4120 = vor.u32 %v4116, %v4119
      %v4121 = vsel %vm1546, %v4111, %v4120
      %v4123 = vshrl.u32 %v4001, 16
      %v4125 = vrot.slane %v4123, 3
      %v4126 = vshll.u32 %v4001, 16
      %v4128 = vrot.slane %v4126, 4
      %v4129 = vor.u32 %v4125, %v4128
      %v4130 = vsel %vm1546, %v4120, %v4129
      %v4132 = vshrl.u32 %v4002, 16
      %v4134 = vrot.slane %v4132, 3
      %v4135 = vshll.u32 %v4002, 16
      %v4137 = vrot.slane %v4135, 4
      %v4138 = vor.u32 %v4134, %v4137
      %v4139 = vsel %vm1546, %v4129, %v4138
      %v4141 = vshrl.u32 %v4003, 16
      %v4143 = vrot.slane %v4141, 3
      %v4144 = vshll.u32 %v4003, 16
      %v4146 = vrot.slane %v4144, 4
      %v4147 = vor.u32 %v4143, %v4146
      %v4148 = vsel %vm1546, %v4138, %v4147
      %v4150 = vshrl.u32 %v4004, 16
      %v4152 = vrot.slane %v4150, 3
      %v4153 = vshll.u32 %v4004, 16
      %v4155 = vrot.slane %v4153, 4
      %v4156 = vor.u32 %v4152, %v4155
      %v4157 = vsel %vm1546, %v4147, %v4156
      %v4159 = vsel %vm448, %v4022, 0
      %v4162 = vsel %vm448, %v4031, 0
      %v4165 = vsel %vm448, %v4040, 0
      %v4168 = vsel %vm448, %v4049, 0
      %v4171 = vsel %vm448, %v4058, 0
      %v4174 = vsel %vm448, %v4067, 0
      %v4177 = vsel %vm448, %v4076, 0
      %v4180 = vsel %vm448, %v4085, 0
      %v4183 = vsel %vm448, %v4094, 0
      %v4186 = vsel %vm448, %v4103, 0
      %v4189 = vsel %vm448, %v4112, 0
      %v4192 = vsel %vm448, %v4121, 0
      %v4195 = vsel %vm448, %v4130, 0
      %v4198 = vsel %vm448, %v4139, 0
      %v4201 = vsel %vm448, %v4148, 0
      %v4204 = vsel %vm448, %v4157, 0
      %v4207 = vsel %vm1381, %v4005, 0
      %4209 = vmatprep.subr.bf16.mxu0 0
      %4210 = vmatpush1.bf16.msra.mxu0 %v4207
      %4211 = vmatprep.subr.bf16.mxu0 0
      %4212 = vmatpush1.bf16.msra.mxu0 0
      %4213 = vmatprep.subr.bf16.mxu0 0
      %4214 = vmatpush1.bf16.msra.mxu0 0
      %4215 = vmatprep.subr.bf16.mxu0 0
      %4216 = vmatpush1.bf16.msra.mxu0 0
      %4217 = vmatprep.subr.bf16.mxu0 0
      %4218 = vmatpush1.bf16.msra.mxu0 0
      %4219 = vmatprep.subr.bf16.mxu0 0
      %4220 = vmatpush1.bf16.msra.mxu0 0
      %4221 = vmatprep.subr.bf16.mxu0 0
      %4222 = vmatpush1.bf16.msra.mxu0 0
      %4223 = vmatprep.subr.bf16.mxu0 0
      %4224 = vmatpush1.bf16.msra.mxu0 0
      %4225 = vmatprep.subr.bf16.mxu0 0
      %4226 = vmatpush1.bf16.msra.mxu0 0
      %4227 = vmatprep.subr.bf16.mxu0 0
      %4228 = vmatpush1.bf16.msra.mxu0 0
      %4229 = vmatprep.subr.bf16.mxu0 0
      %4230 = vmatpush1.bf16.msra.mxu0 0
      %4231 = vmatprep.subr.bf16.mxu0 0
      %4232 = vmatpush1.bf16.msra.mxu0 0
      %4233 = vmatprep.subr.bf16.mxu0 0
      %4234 = vmatpush1.bf16.msra.mxu0 0
      %4235 = vmatprep.subr.bf16.mxu0 0
      %4236 = vmatpush1.bf16.msra.mxu0 0
      %4237 = vmatprep.subr.bf16.mxu0 0
      %4238 = vmatpush1.bf16.msra.mxu0 0
      %4239 = vmatprep.subr.bf16.mxu0 0
      %4240 = vmatpush1.bf16.msra.mxu0 0
      %4241 = vmatprep.mubr.bf16.mxu0 0
      %4242 = vmatmul.mubr.bf16.gmra.mrb[0].mxu0 %v4159
      %v4243 = vpop.f32.mrb[0].mxu0
      %v4244 = vadd.f32 0.0, %v4243
      %v4245 = vpop.f32.mrb[0].mxu0
      %v4246 = vpop.f32.mrb[0].mxu0
      %v4247 = vadd.f32 0.0, %v4246
      %v4248 = vpop.f32.mrb[0].mxu0
      %4249 = vmatprep.mubr.bf16.mxu0 0
      %4250 = vmatmul.mubr.bf16.gmra.mrb[0].mxu0 %v4162
      %v4251 = vpop.f32.mrb[0].mxu0
      %v4252 = vadd.f32 0.0, %v4251
      %v4253 = vpop.f32.mrb[0].mxu0
      %v4254 = vpop.f32.mrb[0].mxu0
      %v4255 = vadd.f32 0.0, %v4254
      %v4256 = vpop.f32.mrb[0].mxu0
      %4257 = vmatprep.mubr.bf16.mxu0 0
      %4258 = vmatmul.mubr.bf16.gmra.mrb[0].mxu0 %v4165
      %v4259 = vpop.f32.mrb[0].mxu0
      %v4260 = vadd.f32 0.0, %v4259
      %v4261 = vpop.f32.mrb[0].mxu0
      %v4262 = vpop.f32.mrb[0].mxu0
      %v4263 = vadd.f32 0.0, %v4262
      %v4264 = vpop.f32.mrb[0].mxu0
      %4265 = vmatprep.mubr.bf16.mxu0 0
      %4266 = vmatmul.mubr.bf16.gmra.mrb[0].mxu0 %v4168
      %v4267 = vpop.f32.mrb[0].mxu0
      %v4268 = vadd.f32 0.0, %v4267
      %v4269 = vpop.f32.mrb[0].mxu0
      %v4270 = vpop.f32.mrb[0].mxu0
      %v4271 = vadd.f32 0.0, %v4270
      %v4272 = vpop.f32.mrb[0].mxu0
      %4273 = vmatprep.mubr.bf16.mxu0 0
      %4274 = vmatmul.mubr.bf16.gmra.mrb[0].mxu0 %v4171
      %v4275 = vpop.f32.mrb[0].mxu0
      %v4276 = vadd.f32 0.0, %v4275
      %v4277 = vpop.f32.mrb[0].mxu0
      %v4278 = vpop.f32.mrb[0].mxu0
      %v4279 = vadd.f32 0.0, %v4278
      %v4280 = vpop.f32.mrb[0].mxu0
      %4281 = vmatprep.mubr.bf16.mxu0 0
      %4282 = vmatmul.mubr.bf16.gmra.mrb[0].mxu0 %v4174
      %v4283 = vpop.f32.mrb[0].mxu0
      %v4284 = vadd.f32 0.0, %v4283
      %v4285 = vpop.f32.mrb[0].mxu0
      %v4286 = vpop.f32.mrb[0].mxu0
      %v4287 = vadd.f32 0.0, %v4286
      %v4288 = vpop.f32.mrb[0].mxu0
      %4289 = vmatprep.mubr.bf16.mxu0 0
      %4290 = vmatmul.mubr.bf16.gmra.mrb[0].mxu0 %v4177
      %v4291 = vpop.f32.mrb[0].mxu0
      %v4292 = vadd.f32 0.0, %v4291
      %v4293 = vpop.f32.mrb[0].mxu0
      %v4294 = vpop.f32.mrb[0].mxu0
      %v4295 = vadd.f32 0.0, %v4294
      %v4296 = vpop.f32.mrb[0].mxu0
      %4297 = vmatprep.mubr.bf16.mxu0 0
      %4298 = vmatmul.mubr.bf16.gmra.mrb[0].mxu0 %v4180
      %v4299 = vpop.f32.mrb[0].mxu0
      %v4300 = vadd.f32 0.0, %v4299
      %v4301 = vpop.f32.mrb[0].mxu0
      %v4302 = vpop.f32.mrb[0].mxu0
      %v4303 = vadd.f32 0.0, %v4302
      %v4304 = vpop.f32.mrb[0].mxu0
      %4305 = vmatprep.mubr.bf16.mxu0 0
      %4306 = vmatmul.mubr.bf16.gmra.mrb[0].mxu0 %v4183
      %v4307 = vpop.f32.mrb[0].mxu0
      %v4308 = vadd.f32 0.0, %v4307
      %v4309 = vpop.f32.mrb[0].mxu0
      %v4310 = vpop.f32.mrb[0].mxu0
      %v4311 = vadd.f32 0.0, %v4310
      %v4312 = vpop.f32.mrb[0].mxu0
      %4313 = vmatprep.mubr.bf16.mxu0 0
      %4314 = vmatmul.mubr.bf16.gmra.mrb[0].mxu0 %v4186
      %v4315 = vpop.f32.mrb[0].mxu0
      %v4316 = vadd.f32 0.0, %v4315
      %v4317 = vpop.f32.mrb[0].mxu0
      %v4318 = vpop.f32.mrb[0].mxu0
      %v4319 = vadd.f32 0.0, %v4318
      %v4320 = vpop.f32.mrb[0].mxu0
      %4321 = vmatprep.mubr.bf16.mxu0 0
      %4322 = vmatmul.mubr.bf16.gmra.mrb[0].mxu0 %v4189
      %v4323 = vpop.f32.mrb[0].mxu0
      %v4324 = vadd.f32 0.0, %v4323
      %v4325 = vpop.f32.mrb[0].mxu0
      %v4326 = vpop.f32.mrb[0].mxu0
      %v4327 = vadd.f32 0.0, %v4326
      %v4328 = vpop.f32.mrb[0].mxu0
      %4329 = vmatprep.mubr.bf16.mxu0 0
      %4330 = vmatmul.mubr.bf16.gmra.mrb[0].mxu0 %v4192
      %v4331 = vpop.f32.mrb[0].mxu0
      %v4332 = vadd.f32 0.0, %v4331
      %v4333 = vpop.f32.mrb[0].mxu0
      %v4334 = vpop.f32.mrb[0].mxu0
      %v4335 = vadd.f32 0.0, %v4334
      %v4336 = vpop.f32.mrb[0].mxu0
      %4337 = vmatprep.mubr.bf16.mxu0 0
      %4338 = vmatmul.mubr.bf16.gmra.mrb[0].mxu0 %v4195
      %v4339 = vpop.f32.mrb[0].mxu0
      %v4340 = vadd.f32 0.0, %v4339
      %v4341 = vpop.f32.mrb[0].mxu0
      %v4342 = vpop.f32.mrb[0].mxu0
      %v4343 = vadd.f32 0.0, %v4342
      %v4344 = vpop.f32.mrb[0].mxu0
      %4345 = vmatprep.mubr.bf16.mxu0 0
      %4346 = vmatmul.mubr.bf16.gmra.mrb[0].mxu0 %v4198
      %v4347 = vpop.f32.mrb[0].mxu0
      %v4348 = vadd.f32 0.0, %v4347
      %v4349 = vpop.f32.mrb[0].mxu0
      %v4350 = vpop.f32.mrb[0].mxu0
      %v4351 = vadd.f32 0.0, %v4350
      %v4352 = vpop.f32.mrb[0].mxu0
      %4353 = vmatprep.mubr.bf16.mxu0 0
      %4354 = vmatmul.mubr.bf16.gmra.mrb[0].mxu0 %v4201
      %v4355 = vpop.f32.mrb[0].mxu0
      %v4356 = vadd.f32 0.0, %v4355
      %v4357 = vpop.f32.mrb[0].mxu0
      %v4358 = vpop.f32.mrb[0].mxu0
      %v4359 = vadd.f32 0.0, %v4358
      %v4360 = vpop.f32.mrb[0].mxu0
      %4361 = vmatprep.mubr.bf16.mxu0 0
      %4362 = vmatmul.mubr.bf16.gmra.mrb[0].mxu0 %v4204
      %v4363 = vpop.f32.mrb[0].mxu0
      %v4364 = vadd.f32 0.0, %v4363
      %v4365 = vpop.f32.mrb[0].mxu0
      %v4366 = vpop.f32.mrb[0].mxu0
      %v4367 = vadd.f32 0.0, %v4366
      %v4368 = vpop.f32.mrb[0].mxu0
      %4369 = vdwg.mxu0
      %v4370 = vadd.f32 %v3956, %v4244
      %v4371 = vadd.f32 %v3957, %v4247
      %v4372 = vadd.f32 %v3958, %v4252
      %v4373 = vadd.f32 %v3959, %v4255
      %v4374 = vadd.f32 %v3960, %v4260
      %v4375 = vadd.f32 %v3961, %v4263
      %v4376 = vadd.f32 %v3962, %v4268
      %v4377 = vadd.f32 %v3963, %v4271
      %v4378 = vadd.f32 %v3964, %v4276
      %v4379 = vadd.f32 %v3965, %v4279
      %v4380 = vadd.f32 %v3966, %v4284
      %v4381 = vadd.f32 %v3967, %v4287
      %v4382 = vadd.f32 %v3968, %v4292
      %v4383 = vadd.f32 %v3969, %v4295
      %v4384 = vadd.f32 %v3970, %v4300
      %v4385 = vadd.f32 %v3971, %v4303
      %v4386 = vadd.f32 %v3972, %v4308
      %v4387 = vadd.f32 %v3973, %v4311
      %v4388 = vadd.f32 %v3974, %v4316
      %v4389 = vadd.f32 %v3975, %v4319
      %v4390 = vadd.f32 %v3976, %v4324
      %v4391 = vadd.f32 %v3977, %v4327
      %v4392 = vadd.f32 %v3978, %v4332
      %v4393 = vadd.f32 %v3979, %v4335
      %v4394 = vadd.f32 %v3980, %v4340
      %v4395 = vadd.f32 %v3981, %v4343
      %v4396 = vadd.f32 %v3982, %v4348
      %v4397 = vadd.f32 %v3983, %v4351
      %v4398 = vadd.f32 %v3984, %v4356
      %v4399 = vadd.f32 %v3985, %v4359
      %v4400 = vadd.f32 %v3986, %v4364
      %v4401 = vadd.f32 %v3987, %v4367
      %v4402 = vld [vmem:[%s4 + $0xc] sm:$0xc]
      %v4404 = vrot.slane %v570, 4
      %v4405 = vsel %vm484, %v3369, %v4404
      %v4407 = vunpack.c.l.b16 %v4402
      %v4408 = vpack.c.b16 %v4407, %v4407
      %v4409 = vrot.slane %v4408, 2
      %v4411 = vsel %vm448, %v4405, 0
      %v4414 = vsel %vm1381, %v4409, 0
      %4416 = vmatprep.subr.bf16.mxu0 0
      %4417 = vmatpush1.bf16.msra.mxu0 %v4414
      %4418 = vmatprep.subr.bf16.mxu0 0
      %4419 = vmatpush1.bf16.msra.mxu0 0
      %4420 = vmatprep.subr.bf16.mxu0 0
      %4421 = vmatpush1.bf16.msra.mxu0 0
      %4422 = vmatprep.subr.bf16.mxu0 0
      %4423 = vmatpush1.bf16.msra.mxu0 0
      %4424 = vmatprep.subr.bf16.mxu0 0
      %4425 = vmatpush1.bf16.msra.mxu0 0
      %4426 = vmatprep.subr.bf16.mxu0 0
      %4427 = vmatpush1.bf16.msra.mxu0 0
      %4428 = vmatprep.subr.bf16.mxu0 0
      %4429 = vmatpush1.bf16.msra.mxu0 0
      %4430 = vmatprep.subr.bf16.mxu0 0
      %4431 = vmatpush1.bf16.msra.mxu0 0
      %4432 = vmatprep.subr.bf16.mxu0 0
      %4433 = vmatpush1.bf16.msra.mxu0 0
      %4434 = vmatprep.subr.bf16.mxu0 0
      %4435 = vmatpush1.bf16.msra.mxu0 0
      %4436 = vmatprep.subr.bf16.mxu0 0
      %4437 = vmatpush1.bf16.msra.mxu0 0
      %4438 = vmatprep.subr.bf16.mxu0 0
      %4439 = vmatpush1.bf16.msra.mxu0 0
      %4440 = vmatprep.subr.bf16.mxu0 0
      %4441 = vmatpush1.bf16.msra.mxu0 0
      %4442 = vmatprep.subr.bf16.mxu0 0
      %4443 = vmatpush1.bf16.msra.mxu0 0
      %4444 = vmatprep.subr.bf16.mxu0 0
      %4445 = vmatpush1.bf16.msra.mxu0 0
      %4446 = vmatprep.subr.bf16.mxu0 0
      %4447 = vmatpush1.bf16.msra.mxu0 0
      %4448 = vmatprep.mubr.bf16.mxu0 0
      %4449 = vmatmul.mubr.bf16.gmra.mrb[0].mxu0 %v1340
      %v4450 = vpop.f32.mrb[0].mxu0
      %v4451 = vadd.f32 0.0, %v4450
      %v4452 = vpop.f32.mrb[0].mxu0
      %v4453 = vpop.f32.mrb[0].mxu0
      %v4454 = vadd.f32 0.0, %v4453
      %v4455 = vpop.f32.mrb[0].mxu0
      %4456 = vmatprep.mubr.bf16.mxu0 0
      %4457 = vmatmul.mubr.bf16.gmra.mrb[0].mxu0 %v1343
      %v4458 = vpop.f32.mrb[0].mxu0
      %v4459 = vadd.f32 0.0, %v4458
      %v4460 = vpop.f32.mrb[0].mxu0
      %v4461 = vpop.f32.mrb[0].mxu0
      %v4462 = vadd.f32 0.0, %v4461
      %v4463 = vpop.f32.mrb[0].mxu0
      %4464 = vmatprep.mubr.bf16.mxu0 0
      %4465 = vmatmul.mubr.bf16.gmra.mrb[0].mxu0 %v1346
      %v4466 = vpop.f32.mrb[0].mxu0
      %v4467 = vadd.f32 0.0, %v4466
      %v4468 = vpop.f32.mrb[0].mxu0
      %v4469 = vpop.f32.mrb[0].mxu0
      %v4470 = vadd.f32 0.0, %v4469
      %v4471 = vpop.f32.mrb[0].mxu0
      %4472 = vmatprep.mubr.bf16.mxu0 0
      %4473 = vmatmul.mubr.bf16.gmra.mrb[0].mxu0 %v1349
      %v4474 = vpop.f32.mrb[0].mxu0
      %v4475 = vadd.f32 0.0, %v4474
      %v4476 = vpop.f32.mrb[0].mxu0
      %v4477 = vpop.f32.mrb[0].mxu0
      %v4478 = vadd.f32 0.0, %v4477
      %v4479 = vpop.f32.mrb[0].mxu0
      %4480 = vmatprep.mubr.bf16.mxu0 0
      %4481 = vmatmul.mubr.bf16.gmra.mrb[0].mxu0 %v1352
      %v4482 = vpop.f32.mrb[0].mxu0
      %v4483 = vadd.f32 0.0, %v4482
      %v4484 = vpop.f32.mrb[0].mxu0
      %v4485 = vpop.f32.mrb[0].mxu0
      %v4486 = vadd.f32 0.0, %v4485
      %v4487 = vpop.f32.mrb[0].mxu0
      %4488 = vmatprep.mubr.bf16.mxu0 0
      %4489 = vmatmul.mubr.bf16.gmra.mrb[0].mxu0 %v1355
      %v4490 = vpop.f32.mrb[0].mxu0
      %v4491 = vadd.f32 0.0, %v4490
      %v4492 = vpop.f32.mrb[0].mxu0
      %v4493 = vpop.f32.mrb[0].mxu0
      %v4494 = vadd.f32 0.0, %v4493
      %v4495 = vpop.f32.mrb[0].mxu0
      %4496 = vmatprep.mubr.bf16.mxu0 0
      %4497 = vmatmul.mubr.bf16.gmra.mrb[0].mxu0 %v1358
      %v4498 = vpop.f32.mrb[0].mxu0
      %v4499 = vadd.f32 0.0, %v4498
      %v4500 = vpop.f32.mrb[0].mxu0
      %v4501 = vpop.f32.mrb[0].mxu0
      %v4502 = vadd.f32 0.0, %v4501
      %v4503 = vpop.f32.mrb[0].mxu0
      %4504 = vmatprep.mubr.bf16.mxu0 0
      %4505 = vmatmul.mubr.bf16.gmra.mrb[0].mxu0 %v1361
      %v4506 = vpop.f32.mrb[0].mxu0
      %v4507 = vadd.f32 0.0, %v4506
      %v4508 = vpop.f32.mrb[0].mxu0
      %v4509 = vpop.f32.mrb[0].mxu0
      %v4510 = vadd.f32 0.0, %v4509
      %v4511 = vpop.f32.mrb[0].mxu0
      %4512 = vmatprep.mubr.bf16.mxu0 0
      %4513 = vmatmul.mubr.bf16.gmra.mrb[0].mxu0 %v1364
      %v4514 = vpop.f32.mrb[0].mxu0
      %v4515 = vadd.f32 0.0, %v4514
      %v4516 = vpop.f32.mrb[0].mxu0
      %v4517 = vpop.f32.mrb[0].mxu0
      %v4518 = vadd.f32 0.0, %v4517
      %v4519 = vpop.f32.mrb[0].mxu0
      %4520 = vmatprep.mubr.bf16.mxu0 0
      %4521 = vmatmul.mubr.bf16.gmra.mrb[0].mxu0 %v1367
      %v4522 = vpop.f32.mrb[0].mxu0
      %v4523 = vadd.f32 0.0, %v4522
      %v4524 = vpop.f32.mrb[0].mxu0
      %v4525 = vpop.f32.mrb[0].mxu0
      %v4526 = vadd.f32 0.0, %v4525
      %v4527 = vpop.f32.mrb[0].mxu0
      %4528 = vmatprep.mubr.bf16.mxu0 0
      %4529 = vmatmul.mubr.bf16.gmra.mrb[0].mxu0 %v1370
      %v4530 = vpop.f32.mrb[0].mxu0
      %v4531 = vadd.f32 0.0, %v4530
      %v4532 = vpop.f32.mrb[0].mxu0
      %v4533 = vpop.f32.mrb[0].mxu0
      %v4534 = vadd.f32 0.0, %v4533
      %v4535 = vpop.f32.mrb[0].mxu0
      %4536 = vmatprep.mubr.bf16.mxu0 0
      %4537 = vmatmul.mubr.bf16.gmra.mrb[0].mxu0 %v1373
      %v4538 = vpop.f32.mrb[0].mxu0
      %v4539 = vadd.f32 0.0, %v4538
      %v4540 = vpop.f32.mrb[0].mxu0
      %v4541 = vpop.f32.mrb[0].mxu0
      %v4542 = vadd.f32 0.0, %v4541
      %v4543 = vpop.f32.mrb[0].mxu0
      %4544 = vmatprep.mubr.bf16.mxu0 0
      %4545 = vmatmul.mubr.bf16.gmra.mrb[0].mxu0 %v1376
      %v4546 = vpop.f32.mrb[0].mxu0
      %v4547 = vadd.f32 0.0, %v4546
      %v4548 = vpop.f32.mrb[0].mxu0
      %v4549 = vpop.f32.mrb[0].mxu0
      %v4550 = vadd.f32 0.0, %v4549
      %v4551 = vpop.f32.mrb[0].mxu0
      %4552 = vmatprep.mubr.bf16.mxu0 0
      %4553 = vmatmul.mubr.bf16.gmra.mrb[0].mxu0 %v1379
      %v4554 = vpop.f32.mrb[0].mxu0
      %v4555 = vadd.f32 0.0, %v4554
      %v4556 = vpop.f32.mrb[0].mxu0
      %v4557 = vpop.f32.mrb[0].mxu0
      %v4558 = vadd.f32 0.0, %v4557
      %v4559 = vpop.f32.mrb[0].mxu0
      %4560 = vmatprep.mubr.bf16.mxu0 0
      %4561 = vmatmul.mubr.bf16.gmra.mrb[0].mxu0 %v3372
      %v4562 = vpop.f32.mrb[0].mxu0
      %v4563 = vadd.f32 0.0, %v4562
      %v4564 = vpop.f32.mrb[0].mxu0
      %v4565 = vpop.f32.mrb[0].mxu0
      %v4566 = vadd.f32 0.0, %v4565
      %v4567 = vpop.f32.mrb[0].mxu0
      %4568 = vmatprep.mubr.bf16.mxu0 0
      %4569 = vmatmul.mubr.bf16.gmra.mrb[0].mxu0 %v4411
      %v4570 = vpop.f32.mrb[0].mxu0
      %v4571 = vadd.f32 0.0, %v4570
      %v4572 = vpop.f32.mrb[0].mxu0
      %v4573 = vpop.f32.mrb[0].mxu0
      %v4574 = vadd.f32 0.0, %v4573
      %v4575 = vpop.f32.mrb[0].mxu0
      %4576 = vdwg.mxu0
      %v4577 = vadd.f32 %v4370, %v4451
      %v4578 = vadd.f32 %v4371, %v4454
      %v4579 = vadd.f32 %v4372, %v4459
      %v4580 = vadd.f32 %v4373, %v4462
      %v4581 = vadd.f32 %v4374, %v4467
      %v4582 = vadd.f32 %v4375, %v4470
      %v4583 = vadd.f32 %v4376, %v4475
      %v4584 = vadd.f32 %v4377, %v4478
      %v4585 = vadd.f32 %v4378, %v4483
      %v4586 = vadd.f32 %v4379, %v4486
      %v4587 = vadd.f32 %v4380, %v4491
      %v4588 = vadd.f32 %v4381, %v4494
      %v4589 = vadd.f32 %v4382, %v4499
      %v4590 = vadd.f32 %v4383, %v4502
      %v4591 = vadd.f32 %v4384, %v4507
      %v4592 = vadd.f32 %v4385, %v4510
      %v4593 = vadd.f32 %v4386, %v4515
      %v4594 = vadd.f32 %v4387, %v4518
      %v4595 = vadd.f32 %v4388, %v4523
      %v4596 = vadd.f32 %v4389, %v4526
      %v4597 = vadd.f32 %v4390, %v4531
      %v4598 = vadd.f32 %v4391, %v4534
      %v4599 = vadd.f32 %v4392, %v4539
      %v4600 = vadd.f32 %v4393, %v4542
      %v4601 = vadd.f32 %v4394, %v4547
      %v4602 = vadd.f32 %v4395, %v4550
      %v4603 = vadd.f32 %v4396, %v4555
      %v4604 = vadd.f32 %v4397, %v4558
      %v4605 = vadd.f32 %v4398, %v4563
      %v4606 = vadd.f32 %v4399, %v4566
      %v4607 = vadd.f32 %v4400, %v4571
      %v4608 = vadd.f32 %v4401, %v4574
      %v4609 = vmul.bf16 %v554, %v2382
      %v4610 = vmul.bf16 %v555, %v2391
      %v4611 = vmul.bf16 %v556, %v2400
      %v4612 = vmul.bf16 %v557, %v2409
      %v4613 = vmul.bf16 %v558, %v2418
      %v4614 = vmul.bf16 %v559, %v2427
      %v4615 = vmul.bf16 %v560, %v2436
      %v4616 = vmul.bf16 %v561, %v2445
      %v4617 = vmul.bf16 %v562, %v2454
      %v4618 = vmul.bf16 %v563, %v2463
      %v4619 = vmul.bf16 %v564, %v2472
      %v4620 = vmul.bf16 %v565, %v2481
      %v4621 = vmul.bf16 %v566, %v2490
      %v4622 = vmul.bf16 %v567, %v2499
      %v4623 = vmul.bf16 %v568, %v2508
      %v4624 = vmul.bf16 %v569, %v2517
      %v4625 = vmul.bf16 %v570, %v2516
      %v4626 = vld [vmem:[%s4 + $0x10] sm:$0x3]
      %v4628 = vshrl.u32 %v4609, 16
      %v4630 = vrot.slane %v4628, 4
      %v4631 = vshll.u32 %v4609, 16
      %v4633 = vrot.slane %v4631, 5
      %v4634 = vor.u32 %v4630, %v4633
      %v4636 = vshrl.u32 %v4610, 16
      %v4638 = vrot.slane %v4636, 4
      %v4639 = vshll.u32 %v4610, 16
      %v4641 = vrot.slane %v4639, 5
      %v4642 = vor.u32 %v4638, %v4641
      %v4643 = vsel %vm1099, %v4634, %v4642
      %v4645 = vshrl.u32 %v4611, 16
      %v4647 = vrot.slane %v4645, 4
      %v4648 = vshll.u32 %v4611, 16
      %v4650 = vrot.slane %v4648, 5
      %v4651 = vor.u32 %v4647, %v4650
      %v4652 = vsel %vm1099, %v4642, %v4651
      %v4654 = vshrl.u32 %v4612, 16
      %v4656 = vrot.slane %v4654, 4
      %v4657 = vshll.u32 %v4612, 16
      %v4659 = vrot.slane %v4657, 5
      %v4660 = vor.u32 %v4656, %v4659
      %v4661 = vsel %vm1099, %v4651, %v4660
      %v4663 = vshrl.u32 %v4613, 16
      %v4665 = vrot.slane %v4663, 4
      %v4666 = vshll.u32 %v4613, 16
      %v4668 = vrot.slane %v4666, 5
      %v4669 = vor.u32 %v4665, %v4668
      %v4670 = vsel %vm1099, %v4660, %v4669
      %v4672 = vshrl.u32 %v4614, 16
      %v4674 = vrot.slane %v4672, 4
      %v4675 = vshll.u32 %v4614, 16
      %v4677 = vrot.slane %v4675, 5
      %v4678 = vor.u32 %v4674, %v4677
      %v4679 = vsel %vm1099, %v4669, %v4678
      %v4681 = vshrl.u32 %v4615, 16
      %v4683 = vrot.slane %v4681, 4
      %v4684 = vshll.u32 %v4615, 16
      %v4686 = vrot.slane %v4684, 5
      %v4687 = vor.u32 %v4683, %v4686
      %v4688 = vsel %vm1099, %v4678, %v4687
      %v4690 = vshrl.u32 %v4616, 16
      %v4692 = vrot.slane %v4690, 4
      %v4693 = vshll.u32 %v4616, 16
      %v4695 = vrot.slane %v4693, 5
      %v4696 = vor.u32 %v4692, %v4695
      %v4697 = vsel %vm1099, %v4687, %v4696
      %v4699 = vshrl.u32 %v4617, 16
      %v4701 = vrot.slane %v4699, 4
      %v4702 = vshll.u32 %v4617, 16
      %v4704 = vrot.slane %v4702, 5
      %v4705 = vor.u32 %v4701, %v4704
      %v4706 = vsel %vm1099, %v4696, %v4705
      %v4708 = vshrl.u32 %v4618, 16
      %v4710 = vrot.slane %v4708, 4
      %v4711 = vshll.u32 %v4618, 16
      %v4713 = vrot.slane %v4711, 5
      %v4714 = vor.u32 %v4710, %v4713
      %v4715 = vsel %vm1099, %v4705, %v4714
      %v4717 = vshrl.u32 %v4619, 16
      %v4719 = vrot.slane %v4717, 4
      %v4720 = vshll.u32 %v4619, 16
      %v4722 = vrot.slane %v4720, 5
      %v4723 = vor.u32 %v4719, %v4722
      %v4724 = vsel %vm1099, %v4714, %v4723
      %v4726 = vshrl.u32 %v4620, 16
      %v4728 = vrot.slane %v4726, 4
      %v4729 = vshll.u32 %v4620, 16
      %v4731 = vrot.slane %v4729, 5
      %v4732 = vor.u32 %v4728, %v4731
      %v4733 = vsel %vm1099, %v4723, %v4732
      %v4735 = vshrl.u32 %v4621, 16
      %v4737 = vrot.slane %v4735, 4
      %v4738 = vshll.u32 %v4621, 16
      %v4740 = vrot.slane %v4738, 5
      %v4741 = vor.u32 %v4737, %v4740
      %v4742 = vsel %vm1099, %v4732, %v4741
      %v4744 = vshrl.u32 %v4622, 16
      %v4746 = vrot.slane %v4744, 4
      %v4747 = vshll.u32 %v4622, 16
      %v4749 = vrot.slane %v4747, 5
      %v4750 = vor.u32 %v4746, %v4749
      %v4751 = vsel %vm1099, %v4741, %v4750
      %v4753 = vshrl.u32 %v4623, 16
      %v4755 = vrot.slane %v4753, 4
      %v4756 = vshll.u32 %v4623, 16
      %v4758 = vrot.slane %v4756, 5
      %v4759 = vor.u32 %v4755, %v4758
      %v4760 = vsel %vm1099, %v4750, %v4759
      %v4762 = vshrl.u32 %v4624, 16
      %v4764 = vrot.slane %v4762, 4
      %v4765 = vshll.u32 %v4624, 16
      %v4767 = vrot.slane %v4765, 5
      %v4768 = vor.u32 %v4764, %v4767
      %v4769 = vsel %vm1099, %v4759, %v4768
      %v4771 = vshrl.u32 %v4625, 16
      %v4773 = vrot.slane %v4771, 4
      %v4774 = vshll.u32 %v4625, 16
      %v4776 = vrot.slane %v4774, 5
      %v4777 = vor.u32 %v4773, %v4776
      %v4778 = vsel %vm1099, %v4768, %v4777
      %v4780 = vsel %vm448, %v4643, 0
      %v4783 = vsel %vm448, %v4652, 0
      %v4786 = vsel %vm448, %v4661, 0
      %v4789 = vsel %vm448, %v4670, 0
      %v4792 = vsel %vm448, %v4679, 0
      %v4795 = vsel %vm448, %v4688, 0
      %v4798 = vsel %vm448, %v4697, 0
      %v4801 = vsel %vm448, %v4706, 0
      %v4804 = vsel %vm448, %v4715, 0
      %v4807 = vsel %vm448, %v4724, 0
      %v4810 = vsel %vm448, %v4733, 0
      %v4813 = vsel %vm448, %v4742, 0
      %v4816 = vsel %vm448, %v4751, 0
      %v4819 = vsel %vm448, %v4760, 0
      %v4822 = vsel %vm448, %v4769, 0
      %v4825 = vsel %vm448, %v4778, 0
      %v4828 = vsel %vm1381, %v4626, 0
      %4830 = vmatprep.subr.bf16.mxu0 0
      %4831 = vmatpush1.bf16.msra.mxu0 %v4828
      %4832 = vmatprep.subr.bf16.mxu0 0
      %4833 = vmatpush1.bf16.msra.mxu0 0
      %4834 = vmatprep.subr.bf16.mxu0 0
      %4835 = vmatpush1.bf16.msra.mxu0 0
      %4836 = vmatprep.subr.bf16.mxu0 0
      %4837 = vmatpush1.bf16.msra.mxu0 0
      %4838 = vmatprep.subr.bf16.mxu0 0
      %4839 = vmatpush1.bf16.msra.mxu0 0
      %4840 = vmatprep.subr.bf16.mxu0 0
      %4841 = vmatpush1.bf16.msra.mxu0 0
      %4842 = vmatprep.subr.bf16.mxu0 0
      %4843 = vmatpush1.bf16.msra.mxu0 0
      %4844 = vmatprep.subr.bf16.mxu0 0
      %4845 = vmatpush1.bf16.msra.mxu0 0
      %4846 = vmatprep.subr.bf16.mxu0 0
      %4847 = vmatpush1.bf16.msra.mxu0 0
      %4848 = vmatprep.subr.bf16.mxu0 0
      %4849 = vmatpush1.bf16.msra.mxu0 0
      %4850 = vmatprep.subr.bf16.mxu0 0
      %4851 = vmatpush1.bf16.msra.mxu0 0
      %4852 = vmatprep.subr.bf16.mxu0 0
      %4853 = vmatpush1.bf16.msra.mxu0 0
      %4854 = vmatprep.subr.bf16.mxu0 0
      %4855 = vmatpush1.bf16.msra.mxu0 0
      %4856 = vmatprep.subr.bf16.mxu0 0
      %4857 = vmatpush1.bf16.msra.mxu0 0
      %4858 = vmatprep.subr.bf16.mxu0 0
      %4859 = vmatpush1.bf16.msra.mxu0 0
      %4860 = vmatprep.subr.bf16.mxu0 0
      %4861 = vmatpush1.bf16.msra.mxu0 0
      %4862 = vmatprep.mubr.bf16.mxu0 0
      %4863 = vmatmul.mubr.bf16.gmra.mrb[0].mxu0 %v4780
      %v4864 = vpop.f32.mrb[0].mxu0
      %v4865 = vadd.f32 0.0, %v4864
      %v4866 = vpop.f32.mrb[0].mxu0
      %v4867 = vpop.f32.mrb[0].mxu0
      %v4868 = vadd.f32 0.0, %v4867
      %v4869 = vpop.f32.mrb[0].mxu0
      %4870 = vmatprep.mubr.bf16.mxu0 0
      %4871 = vmatmul.mubr.bf16.gmra.mrb[0].mxu0 %v4783
      %v4872 = vpop.f32.mrb[0].mxu0
      %v4873 = vadd.f32 0.0, %v4872
      %v4874 = vpop.f32.mrb[0].mxu0
      %v4875 = vpop.f32.mrb[0].mxu0
      %v4876 = vadd.f32 0.0, %v4875
      %v4877 = vpop.f32.mrb[0].mxu0
      %4878 = vmatprep.mubr.bf16.mxu0 0
      %4879 = vmatmul.mubr.bf16.gmra.mrb[0].mxu0 %v4786
      %v4880 = vpop.f32.mrb[0].mxu0
      %v4881 = vadd.f32 0.0, %v4880
      %v4882 = vpop.f32.mrb[0].mxu0
      %v4883 = vpop.f32.mrb[0].mxu0
      %v4884 = vadd.f32 0.0, %v4883
      %v4885 = vpop.f32.mrb[0].mxu0
      %4886 = vmatprep.mubr.bf16.mxu0 0
      %4887 = vmatmul.mubr.bf16.gmra.mrb[0].mxu0 %v4789
      %v4888 = vpop.f32.mrb[0].mxu0
      %v4889 = vadd.f32 0.0, %v4888
      %v4890 = vpop.f32.mrb[0].mxu0
      %v4891 = vpop.f32.mrb[0].mxu0
      %v4892 = vadd.f32 0.0, %v4891
      %v4893 = vpop.f32.mrb[0].mxu0
      %4894 = vmatprep.mubr.bf16.mxu0 0
      %4895 = vmatmul.mubr.bf16.gmra.mrb[0].mxu0 %v4792
      %v4896 = vpop.f32.mrb[0].mxu0
      %v4897 = vadd.f32 0.0, %v4896
      %v4898 = vpop.f32.mrb[0].mxu0
      %v4899 = vpop.f32.mrb[0].mxu0
      %v4900 = vadd.f32 0.0, %v4899
      %v4901 = vpop.f32.mrb[0].mxu0
      %4902 = vmatprep.mubr.bf16.mxu0 0
      %4903 = vmatmul.mubr.bf16.gmra.mrb[0].mxu0 %v4795
      %v4904 = vpop.f32.mrb[0].mxu0
      %v4905 = vadd.f32 0.0, %v4904
      %v4906 = vpop.f32.mrb[0].mxu0
      %v4907 = vpop.f32.mrb[0].mxu0
      %v4908 = vadd.f32 0.0, %v4907
      %v4909 = vpop.f32.mrb[0].mxu0
      %4910 = vmatprep.mubr.bf16.mxu0 0
      %4911 = vmatmul.mubr.bf16.gmra.mrb[0].mxu0 %v4798
      %v4912 = vpop.f32.mrb[0].mxu0
      %v4913 = vadd.f32 0.0, %v4912
      %v4914 = vpop.f32.mrb[0].mxu0
      %v4915 = vpop.f32.mrb[0].mxu0
      %v4916 = vadd.f32 0.0, %v4915
      %v4917 = vpop.f32.mrb[0].mxu0
      %4918 = vmatprep.mubr.bf16.mxu0 0
      %4919 = vmatmul.mubr.bf16.gmra.mrb[0].mxu0 %v4801
      %v4920 = vpop.f32.mrb[0].mxu0
      %v4921 = vadd.f32 0.0, %v4920
      %v4922 = vpop.f32.mrb[0].mxu0
      %v4923 = vpop.f32.mrb[0].mxu0
      %v4924 = vadd.f32 0.0, %v4923
      %v4925 = vpop.f32.mrb[0].mxu0
      %4926 = vmatprep.mubr.bf16.mxu0 0
      %4927 = vmatmul.mubr.bf16.gmra.mrb[0].mxu0 %v4804
      %v4928 = vpop.f32.mrb[0].mxu0
      %v4929 = vadd.f32 0.0, %v4928
      %v4930 = vpop.f32.mrb[0].mxu0
      %v4931 = vpop.f32.mrb[0].mxu0
      %v4932 = vadd.f32 0.0, %v4931
      %v4933 = vpop.f32.mrb[0].mxu0
      %4934 = vmatprep.mubr.bf16.mxu0 0
      %4935 = vmatmul.mubr.bf16.gmra.mrb[0].mxu0 %v4807
      %v4936 = vpop.f32.mrb[0].mxu0
      %v4937 = vadd.f32 0.0, %v4936
      %v4938 = vpop.f32.mrb[0].mxu0
      %v4939 = vpop.f32.mrb[0].mxu0
      %v4940 = vadd.f32 0.0, %v4939
      %v4941 = vpop.f32.mrb[0].mxu0
      %4942 = vmatprep.mubr.bf16.mxu0 0
      %4943 = vmatmul.mubr.bf16.gmra.mrb[0].mxu0 %v4810
      %v4944 = vpop.f32.mrb[0].mxu0
      %v4945 = vadd.f32 0.0, %v4944
      %v4946 = vpop.f32.mrb[0].mxu0
      %v4947 = vpop.f32.mrb[0].mxu0
      %v4948 = vadd.f32 0.0, %v4947
      %v4949 = vpop.f32.mrb[0].mxu0
      %4950 = vmatprep.mubr.bf16.mxu0 0
      %4951 = vmatmul.mubr.bf16.gmra.mrb[0].mxu0 %v4813
      %v4952 = vpop.f32.mrb[0].mxu0
      %v4953 = vadd.f32 0.0, %v4952
      %v4954 = vpop.f32.mrb[0].mxu0
      %v4955 = vpop.f32.mrb[0].mxu0
      %v4956 = vadd.f32 0.0, %v4955
      %v4957 = vpop.f32.mrb[0].mxu0
      %4958 = vmatprep.mubr.bf16.mxu0 0
      %4959 = vmatmul.mubr.bf16.gmra.mrb[0].mxu0 %v4816
      %v4960 = vpop.f32.mrb[0].mxu0
      %v4961 = vadd.f32 0.0, %v4960
      %v4962 = vpop.f32.mrb[0].mxu0
      %v4963 = vpop.f32.mrb[0].mxu0
      %v4964 = vadd.f32 0.0, %v4963
      %v4965 = vpop.f32.mrb[0].mxu0
      %4966 = vmatprep.mubr.bf16.mxu0 0
      %4967 = vmatmul.mubr.bf16.gmra.mrb[0].mxu0 %v4819
      %v4968 = vpop.f32.mrb[0].mxu0
      %v4969 = vadd.f32 0.0, %v4968
      %v4970 = vpop.f32.mrb[0].mxu0
      %v4971 = vpop.f32.mrb[0].mxu0
      %v4972 = vadd.f32 0.0, %v4971
      %v4973 = vpop.f32.mrb[0].mxu0
      %4974 = vmatprep.mubr.bf16.mxu0 0
      %4975 = vmatmul.mubr.bf16.gmra.mrb[0].mxu0 %v4822
      %v4976 = vpop.f32.mrb[0].mxu0
      %v4977 = vadd.f32 0.0, %v4976
      %v4978 = vpop.f32.mrb[0].mxu0
      %v4979 = vpop.f32.mrb[0].mxu0
      %v4980 = vadd.f32 0.0, %v4979
      %v4981 = vpop.f32.mrb[0].mxu0
      %4982 = vmatprep.mubr.bf16.mxu0 0
      %4983 = vmatmul.mubr.bf16.gmra.mrb[0].mxu0 %v4825
      %v4984 = vpop.f32.mrb[0].mxu0
      %v4985 = vadd.f32 0.0, %v4984
      %v4986 = vpop.f32.mrb[0].mxu0
      %v4987 = vpop.f32.mrb[0].mxu0
      %v4988 = vadd.f32 0.0, %v4987
      %v4989 = vpop.f32.mrb[0].mxu0
      %4990 = vdwg.mxu0
      %v4991 = vadd.f32 %v4577, %v4865
      %v4992 = vadd.f32 %v4578, %v4868
      %v4993 = vadd.f32 %v4579, %v4873
      %v4994 = vadd.f32 %v4580, %v4876
      %v4995 = vadd.f32 %v4581, %v4881
      %v4996 = vadd.f32 %v4582, %v4884
      %v4997 = vadd.f32 %v4583, %v4889
      %v4998 = vadd.f32 %v4584, %v4892
      %v4999 = vadd.f32 %v4585, %v4897
      %v5000 = vadd.f32 %v4586, %v4900
      %v5001 = vadd.f32 %v4587, %v4905
      %v5002 = vadd.f32 %v4588, %v4908
      %v5003 = vadd.f32 %v4589, %v4913
      %v5004 = vadd.f32 %v4590, %v4916
      %v5005 = vadd.f32 %v4591, %v4921
      %v5006 = vadd.f32 %v4592, %v4924
      %v5007 = vadd.f32 %v4593, %v4929
      %v5008 = vadd.f32 %v4594, %v4932
      %v5009 = vadd.f32 %v4595, %v4937
      %v5010 = vadd.f32 %v4596, %v4940
      %v5011 = vadd.f32 %v4597, %v4945
      %v5012 = vadd.f32 %v4598, %v4948
      %v5013 = vadd.f32 %v4599, %v4953
      %v5014 = vadd.f32 %v4600, %v4956
      %v5015 = vadd.f32 %v4601, %v4961
      %v5016 = vadd.f32 %v4602, %v4964
      %v5017 = vadd.f32 %v4603, %v4969
      %v5018 = vadd.f32 %v4604, %v4972
      %v5019 = vadd.f32 %v4605, %v4977
      %v5020 = vadd.f32 %v4606, %v4980
      %v5021 = vadd.f32 %v4607, %v4985
      %v5022 = vadd.f32 %v4608, %v4988
      %v5023 = vpack.c.bf16 %v4992, %v4991
      %v5024 = vpack.c.bf16 %v4994, %v4993
      %v5025 = vpack.c.bf16 %v4996, %v4995
      %v5026 = vpack.c.bf16 %v4998, %v4997
      %v5027 = vpack.c.bf16 %v5000, %v4999
      %v5028 = vpack.c.bf16 %v5002, %v5001
      %v5029 = vpack.c.bf16 %v5004, %v5003
      %v5030 = vpack.c.bf16 %v5006, %v5005
      %v5031 = vpack.c.bf16 %v5008, %v5007
      %v5032 = vpack.c.bf16 %v5010, %v5009
      %v5033 = vpack.c.bf16 %v5012, %v5011
      %v5034 = vpack.c.bf16 %v5014, %v5013
      %v5035 = vpack.c.bf16 %v5016, %v5015
      %v5036 = vpack.c.bf16 %v5018, %v5017
      %v5037 = vpack.c.bf16 %v5020, %v5019
      %v5038 = vpack.c.bf16 %v5022, %v5021
      %v5055 = vunpack.c.l.b16 %v5023
      %v5056 = vunpack.c.h.b16 %v5023
      %v5057 = vunpack.c.l.b16 %v5024
      %v5058 = vunpack.c.h.b16 %v5024
      %v5059 = vunpack.c.l.b16 %v5025
      %v5060 = vunpack.c.h.b16 %v5025
      %v5061 = vunpack.c.l.b16 %v5026
      %v5062 = vunpack.c.h.b16 %v5026
      %v5063 = vunpack.c.l.b16 %v5027
      %v5064 = vunpack.c.h.b16 %v5027
      %v5065 = vunpack.c.l.b16 %v5028
      %v5066 = vunpack.c.h.b16 %v5028
      %v5067 = vunpack.c.l.b16 %v5029
      %v5068 = vunpack.c.h.b16 %v5029
      %v5069 = vunpack.c.l.b16 %v5030
      %v5070 = vunpack.c.h.b16 %v5030
      %v5071 = vunpack.c.l.b16 %v5031
      %v5072 = vunpack.c.h.b16 %v5031
      %v5073 = vunpack.c.l.b16 %v5032
      %v5074 = vunpack.c.h.b16 %v5032
      %v5075 = vunpack.c.l.b16 %v5033
      %v5076 = vunpack.c.h.b16 %v5033
      %v5077 = vunpack.c.l.b16 %v5034
      %v5078 = vunpack.c.h.b16 %v5034
      %v5079 = vunpack.c.l.b16 %v5035
      %v5080 = vunpack.c.h.b16 %v5035
      %v5081 = vunpack.c.l.b16 %v5036
      %v5082 = vunpack.c.h.b16 %v5036
      %v5083 = vunpack.c.l.b16 %v5037
      %v5084 = vunpack.c.h.b16 %v5037
      %v5085 = vunpack.c.l.b16 %v5038
      %v5086 = vunpack.c.h.b16 %v5038
      %v5087 = vpack.c.b16 %v5055, %v5055
      %v5088 = vpack.c.b16 %v5056, %v5056
      %v5089 = vpack.c.b16 %v5057, %v5057
      %v5090 = vpack.c.b16 %v5058, %v5058
      %v5091 = vpack.c.b16 %v5059, %v5059
      %v5092 = vpack.c.b16 %v5060, %v5060
      %v5093 = vpack.c.b16 %v5061, %v5061
      %v5094 = vpack.c.b16 %v5062, %v5062
      %v5095 = vpack.c.b16 %v5063, %v5063
      %v5096 = vpack.c.b16 %v5064, %v5064
      %v5097 = vpack.c.b16 %v5065, %v5065
      %v5098 = vpack.c.b16 %v5066, %v5066
      %v5099 = vpack.c.b16 %v5067, %v5067
      %v5100 = vpack.c.b16 %v5068, %v5068
      %v5101 = vpack.c.b16 %v5069, %v5069
      %v5102 = vpack.c.b16 %v5070, %v5070
      %v5103 = vpack.c.b16 %v5071, %v5071
      %v5104 = vpack.c.b16 %v5072, %v5072
      %v5105 = vpack.c.b16 %v5073, %v5073
      %v5106 = vpack.c.b16 %v5074, %v5074
      %v5107 = vpack.c.b16 %v5075, %v5075
      %v5108 = vpack.c.b16 %v5076, %v5076
      %v5109 = vpack.c.b16 %v5077, %v5077
      %v5110 = vpack.c.b16 %v5078, %v5078
      %v5111 = vpack.c.b16 %v5079, %v5079
      %v5112 = vpack.c.b16 %v5080, %v5080
      %v5113 = vpack.c.b16 %v5081, %v5081
      %v5114 = vpack.c.b16 %v5082, %v5082
      %v5115 = vpack.c.b16 %v5083, %v5083
      %v5116 = vpack.c.b16 %v5084, %v5084
      %v5117 = vpack.c.b16 %v5085, %v5085
      %v5118 = vpack.c.b16 %v5086, %v5086
      %5151 = vst.msk [vmem:[%s289] sm:$0xf] %vm550, %v5087
      %5152 = vst.msk [vmem:[%s289 + $0x4] sm:$0xf] %vm550, %v5088
      %5153 = vst.msk [vmem:[%s289 + $0x8] sm:$0xf] %vm550, %v5089
      %5154 = vst.msk [vmem:[%s289 + $0xc] sm:$0xf] %vm550, %v5090
      %5155 = vst.msk [vmem:[%s289 + $0x10] sm:$0xf] %vm550, %v5091
      %5156 = vst.msk [vmem:[%s289 + $0x14] sm:$0xf] %vm550, %v5092
      %5157 = vst.msk [vmem:[%s289 + $0x18] sm:$0xf] %vm550, %v5093
      %5158 = vst.msk [vmem:[%s289 + $0x1c] sm:$0xf] %vm550, %v5094
      %5159 = vst.msk [vmem:[%s289 + $0x20] sm:$0xf] %vm550, %v5095
      %5160 = vst.msk [vmem:[%s289 + $0x24] sm:$0xf] %vm550, %v5096
      %5161 = vst.msk [vmem:[%s289 + $0x28] sm:$0xf] %vm550, %v5097
      %5162 = vst.msk [vmem:[%s289 + $0x2c] sm:$0xf] %vm550, %v5098
      %5163 = vst.msk [vmem:[%s289 + $0x30] sm:$0xf] %vm550, %v5099
      %5164 = vst.msk [vmem:[%s289 + $0x34] sm:$0xf] %vm550, %v5100
      %5165 = vst.msk [vmem:[%s289 + $0x38] sm:$0xf] %vm550, %v5101
      %5166 = vst.msk [vmem:[%s289 + $0x3c] sm:$0xf] %vm550, %v5102
      %5167 = vst.msk [vmem:[%s289 + $0x40] sm:$0xf] %vm550, %v5103
      %5168 = vst.msk [vmem:[%s289 + $0x44] sm:$0xf] %vm550, %v5104
      %5169 = vst.msk [vmem:[%s289 + $0x48] sm:$0xf] %vm550, %v5105
      %5170 = vst.msk [vmem:[%s289 + $0x4c] sm:$0xf] %vm550, %v5106
      %5171 = vst.msk [vmem:[%s289 + $0x50] sm:$0xf] %vm550, %v5107
      %5172 = vst.msk [vmem:[%s289 + $0x54] sm:$0xf] %vm550, %v5108
      %5173 = vst.msk [vmem:[%s289 + $0x58] sm:$0xf] %vm550, %v5109
      %5174 = vst.msk [vmem:[%s289 + $0x5c] sm:$0xf] %vm550, %v5110
      %5175 = vst.msk [vmem:[%s289 + $0x60] sm:$0xf] %vm550, %v5111
      %5176 = vst.msk [vmem:[%s289 + $0x64] sm:$0xf] %vm550, %v5112
      %5177 = vst.msk [vmem:[%s289 + $0x68] sm:$0xf] %vm550, %v5113
      %5178 = vst.msk [vmem:[%s289 + $0x6c] sm:$0xf] %vm550, %v5114
      %5179 = vst.msk [vmem:[%s289 + $0x70] sm:$0xf] %vm550, %v5115
      %5180 = vst.msk [vmem:[%s289 + $0x74] sm:$0xf] %vm550, %v5116
      %5181 = vst.msk [vmem:[%s289 + $0x78] sm:$0xf] %vm550, %v5117
      %5182 = vst.msk [vmem:[%s289 + $0x7c] sm:$0xf] %vm550, %v5118
      %v5183 = vsel %vm448, %v4991, 0.0
      %v5184 = vsel %vm448, %v4992, 0.0
      %v5185 = vadd.f32 %v5183, %v5184
      %v5186 = vsel %vm448, %v4993, 0.0
      %v5187 = vadd.f32 %v5185, %v5186
      %v5188 = vsel %vm448, %v4994, 0.0
      %v5189 = vadd.f32 %v5187, %v5188
      %v5190 = vsel %vm448, %v4995, 0.0
      %v5191 = vadd.f32 %v5189, %v5190
      %v5192 = vsel %vm448, %v4996, 0.0
      %v5193 = vadd.f32 %v5191, %v5192
      %v5194 = vsel %vm448, %v4997, 0.0
      %v5195 = vadd.f32 %v5193, %v5194
      %v5196 = vsel %vm448, %v4998, 0.0
      %v5197 = vadd.f32 %v5195, %v5196
      %v5198 = vsel %vm448, %v4999, 0.0
      %v5199 = vadd.f32 %v5197, %v5198
      %v5200 = vsel %vm448, %v5000, 0.0
      %v5201 = vadd.f32 %v5199, %v5200
      %v5202 = vsel %vm448, %v5001, 0.0
      %v5203 = vadd.f32 %v5201, %v5202
      %v5204 = vsel %vm448, %v5002, 0.0
      %v5205 = vadd.f32 %v5203, %v5204
      %v5206 = vsel %vm448, %v5003, 0.0
      %v5207 = vadd.f32 %v5205, %v5206
      %v5208 = vsel %vm448, %v5004, 0.0
      %v5209 = vadd.f32 %v5207, %v5208
      %v5210 = vsel %vm448, %v5005, 0.0
      %v5211 = vadd.f32 %v5209, %v5210
      %v5212 = vsel %vm448, %v5006, 0.0
      %v5213 = vadd.f32 %v5211, %v5212
      %v5214 = vsel %vm448, %v5007, 0.0
      %v5215 = vadd.f32 %v5213, %v5214
      %v5216 = vsel %vm448, %v5008, 0.0
      %v5217 = vadd.f32 %v5215, %v5216
      %v5218 = vsel %vm448, %v5009, 0.0
      %v5219 = vadd.f32 %v5217, %v5218
      %v5220 = vsel %vm448, %v5010, 0.0
      %v5221 = vadd.f32 %v5219, %v5220
      %v5222 = vsel %vm448, %v5011, 0.0
      %v5223 = vadd.f32 %v5221, %v5222
      %v5224 = vsel %vm448, %v5012, 0.0
      %v5225 = vadd.f32 %v5223, %v5224
      %v5226 = vsel %vm448, %v5013, 0.0
      %v5227 = vadd.f32 %v5225, %v5226
      %v5228 = vsel %vm448, %v5014, 0.0
      %v5229 = vadd.f32 %v5227, %v5228
      %v5230 = vsel %vm448, %v5015, 0.0
      %v5231 = vadd.f32 %v5229, %v5230
      %v5232 = vsel %vm448, %v5016, 0.0
      %v5233 = vadd.f32 %v5231, %v5232
      %v5234 = vsel %vm448, %v5017, 0.0
      %v5235 = vadd.f32 %v5233, %v5234
      %v5236 = vsel %vm448, %v5018, 0.0
      %v5237 = vadd.f32 %v5235, %v5236
      %v5238 = vsel %vm448, %v5019, 0.0
      %v5239 = vadd.f32 %v5237, %v5238
      %v5240 = vsel %vm448, %v5020, 0.0
      %v5241 = vadd.f32 %v5239, %v5240
      %v5242 = vsel %vm448, %v5021, 0.0
      %v5243 = vadd.f32 %v5241, %v5242
      %v5244 = vsel %vm448, %v5022, 0.0
      %v5245 = vadd.f32 %v5243, %v5244
      %v5246 = vrot.slane %v5245, 4
      %v5247 = vadd.f32 %v5245, %v5246
      %v5248 = vrot.slane %v5247, 2
      %v5249 = vadd.f32 %v5247, %v5248
      %v5250 = vrot.slane %v5249, 1
      %v5251 = vadd.f32 %v5249, %v5250
      %vm5252 = vcmask 24576
      %5253 = vst.msk [vmem:[%s292] sm:$0x1] %vm5252, %v5251
      %v5254 = vmul.f32 %v4991, %v4991
      %v5255 = vmul.f32 %v4992, %v4992
      %v5256 = vmul.f32 %v4993, %v4993
      %v5257 = vmul.f32 %v4994, %v4994
      %v5258 = vmul.f32 %v4995, %v4995
      %v5259 = vmul.f32 %v4996, %v4996
      %v5260 = vmul.f32 %v4997, %v4997
      %v5261 = vmul.f32 %v4998, %v4998
      %v5262 = vmul.f32 %v4999, %v4999
      %v5263 = vmul.f32 %v5000, %v5000
      %v5264 = vmul.f32 %v5001, %v5001
      %v5265 = vmul.f32 %v5002, %v5002
      %v5266 = vmul.f32 %v5003, %v5003
      %v5267 = vmul.f32 %v5004, %v5004
      %v5268 = vmul.f32 %v5005, %v5005
      %v5269 = vmul.f32 %v5006, %v5006
      %v5270 = vmul.f32 %v5007, %v5007
      %v5271 = vmul.f32 %v5008, %v5008
      %v5272 = vmul.f32 %v5009, %v5009
      %v5273 = vmul.f32 %v5010, %v5010
      %v5274 = vmul.f32 %v5011, %v5011
      %v5275 = vmul.f32 %v5012, %v5012
      %v5276 = vmul.f32 %v5013, %v5013
      %v5277 = vmul.f32 %v5014, %v5014
      %v5278 = vmul.f32 %v5015, %v5015
      %v5279 = vmul.f32 %v5016, %v5016
      %v5280 = vmul.f32 %v5017, %v5017
      %v5281 = vmul.f32 %v5018, %v5018
      %v5282 = vmul.f32 %v5019, %v5019
      %v5283 = vmul.f32 %v5020, %v5020
      %v5284 = vmul.f32 %v5021, %v5021
      %v5285 = vmul.f32 %v5022, %v5022
      %v5286 = vsel %vm448, %v5254, 0.0
      %v5287 = vsel %vm448, %v5255, 0.0
      %v5288 = vadd.f32 %v5286, %v5287
      %v5289 = vsel %vm448, %v5256, 0.0
      %v5290 = vadd.f32 %v5288, %v5289
      %v5291 = vsel %vm448, %v5257, 0.0
      %v5292 = vadd.f32 %v5290, %v5291
      %v5293 = vsel %vm448, %v5258, 0.0
      %v5294 = vadd.f32 %v5292, %v5293
      %v5295 = vsel %vm448, %v5259, 0.0
      %v5296 = vadd.f32 %v5294, %v5295
      %v5297 = vsel %vm448, %v5260, 0.0
      %v5298 = vadd.f32 %v5296, %v5297
      %v5299 = vsel %vm448, %v5261, 0.0
      %v5300 = vadd.f32 %v5298, %v5299
      %v5301 = vsel %vm448, %v5262, 0.0
      %v5302 = vadd.f32 %v5300, %v5301
      %v5303 = vsel %vm448, %v5263, 0.0
      %v5304 = vadd.f32 %v5302, %v5303
      %v5305 = vsel %vm448, %v5264, 0.0
      %v5306 = vadd.f32 %v5304, %v5305
      %v5307 = vsel %vm448, %v5265, 0.0
      %v5308 = vadd.f32 %v5306, %v5307
      %v5309 = vsel %vm448, %v5266, 0.0
      %v5310 = vadd.f32 %v5308, %v5309
      %v5311 = vsel %vm448, %v5267, 0.0
      %v5312 = vadd.f32 %v5310, %v5311
      %v5313 = vsel %vm448, %v5268, 0.0
      %v5314 = vadd.f32 %v5312, %v5313
      %v5315 = vsel %vm448, %v5269, 0.0
      %v5316 = vadd.f32 %v5314, %v5315
      %v5317 = vsel %vm448, %v5270, 0.0
      %v5318 = vadd.f32 %v5316, %v5317
      %v5319 = vsel %vm448, %v5271, 0.0
      %v5320 = vadd.f32 %v5318, %v5319
      %v5321 = vsel %vm448, %v5272, 0.0
      %v5322 = vadd.f32 %v5320, %v5321
      %v5323 = vsel %vm448, %v5273, 0.0
      %v5324 = vadd.f32 %v5322, %v5323
      %v5325 = vsel %vm448, %v5274, 0.0
      %v5326 = vadd.f32 %v5324, %v5325
      %v5327 = vsel %vm448, %v5275, 0.0
      %v5328 = vadd.f32 %v5326, %v5327
      %v5329 = vsel %vm448, %v5276, 0.0
      %v5330 = vadd.f32 %v5328, %v5329
      %v5331 = vsel %vm448, %v5277, 0.0
      %v5332 = vadd.f32 %v5330, %v5331
      %v5333 = vsel %vm448, %v5278, 0.0
      %v5334 = vadd.f32 %v5332, %v5333
      %v5335 = vsel %vm448, %v5279, 0.0
      %v5336 = vadd.f32 %v5334, %v5335
      %v5337 = vsel %vm448, %v5280, 0.0
      %v5338 = vadd.f32 %v5336, %v5337
      %v5339 = vsel %vm448, %v5281, 0.0
      %v5340 = vadd.f32 %v5338, %v5339
      %v5341 = vsel %vm448, %v5282, 0.0
      %v5342 = vadd.f32 %v5340, %v5341
      %v5343 = vsel %vm448, %v5283, 0.0
      %v5344 = vadd.f32 %v5342, %v5343
      %v5345 = vsel %vm448, %v5284, 0.0
      %v5346 = vadd.f32 %v5344, %v5345
      %v5347 = vsel %vm448, %v5285, 0.0
      %v5348 = vadd.f32 %v5346, %v5347
      %v5349 = vrot.slane %v5348, 4
      %v5350 = vadd.f32 %v5348, %v5349
      %v5351 = vrot.slane %v5350, 2
      %v5352 = vadd.f32 %v5350, %v5351
      %v5353 = vrot.slane %v5352, 1
      %v5354 = vadd.f32 %v5352, %v5353
      %5355 = vst.msk [vmem:[%s295] sm:$0x1] %vm5252, %v5354
      %p5356 = scmp.lt.s32.totalorder %s19, 1
      %s5357 = scalar_select %p5356, %s19, 1
      %s5358 = smul.addr %s5357, 32
      %s5359 = smul.addr %s5358, 4
      %s5360 = scalar_lea.vmem %s5, %s5359
      %p5361 = scmp.lt.s32.totalorder %s19, 1
      %s5362 = scalar_select %p5361, %s19, 1
      %s5363 = scalar_lea.vmem %s6, %s5362
      %p5364 = scmp.lt.s32.totalorder %s19, 1
      %s5365 = scalar_select %p5364, %s19, 1
      %s5366 = scalar_lea.vmem %s7, %s5365
      // Predicated region
      $region41: #{bottleneck_forward.6} parent=39 // pred_check
        %p5367 = pneg %p147
      $region42: #{bottleneck_forward.6} parent=39 // pred_check_branch
        %5369 = sbr.rel (%p5367) target = $region44
      $region43: #{bottleneck_forward.6} parent=39 // pred_region
        _
      $region44: #{bottleneck_forward.6} parent=39 // pred_fallthru
        _
      // Predicated region
      $region45: #{bottleneck_forward.6} parent=39 // pred_check
        %p5370 = pneg %p173
      $region46: #{bottleneck_forward.6} parent=39 // pred_check_branch
        %5372 = sbr.rel (%p5370) target = $region48
      $region47: #{bottleneck_forward.6} parent=39 // pred_region
        _
      $region48: #{bottleneck_forward.6} parent=39 // pred_fallthru
        _
      // Predicated region
      $region49: #{bottleneck_forward.6} parent=39 // pred_check
        %p5373 = pneg %p199
      $region50: #{bottleneck_forward.6} parent=39 // pred_check_branch
        %5375 = sbr.rel (%p5373) target = $region52
      $region51: #{bottleneck_forward.6} parent=39 // pred_region
        _
      $region52: #{bottleneck_forward.6} parent=39 // pred_fallthru
        _
    $region40: #{bottleneck_forward.6} parent=5 // pred_fallthru
      _
    %p5376 = scmp.le.s32.totalorder 2, %s14
    // Predicated region
    $region53: #{bottleneck_forward.6} parent=5 // pred_check
      %p5377 = pneg %p5376
    $region54: #{bottleneck_forward.6} parent=5 // pred_check_branch
      %5379 = sbr.rel (%p5377) target = $region56
    $region55: #{bottleneck_forward.6} parent=5 // pred_region
      %s5380 = ssub.s32 %s14, 2
      // Predicated region
      $region57: #{bottleneck_forward.6} parent=55 // pred_check
        %p5381 = pneg %p153
      $region58: #{bottleneck_forward.6} parent=55 // pred_check_branch
        %5383 = sbr.rel (%p5381) target = $region60
      $region59: #{bottleneck_forward.6} parent=55 // pred_region
        %p5384 = scmp.lt.s32.totalorder %s20, 1
        %s5385 = scalar_select %p5384, %s20, 1
        %s5386 = smul.addr %s5385, 32
        %s5387 = smul.addr %s5386, 4
        %s5388 = scalar_lea.vmem %s5, %s5387
      $region60: #{bottleneck_forward.6} parent=55 // pred_fallthru
        _
      // Predicated region
      $region61: #{bottleneck_forward.6} parent=55 // pred_check
        %p5389 = pneg %p179
      $region62: #{bottleneck_forward.6} parent=55 // pred_check_branch
        %5391 = sbr.rel (%p5389) target = $region64
      $region63: #{bottleneck_forward.6} parent=55 // pred_region
        %p5392 = scmp.lt.s32.totalorder %s20, 1
        %s5393 = scalar_select %p5392, %s20, 1
        %s5394 = scalar_lea.vmem %s6, %s5393
      $region64: #{bottleneck_forward.6} parent=55 // pred_fallthru
        _
      // Predicated region
      $region65: #{bottleneck_forward.6} parent=55 // pred_check
        %p5395 = pneg %p205
      $region66: #{bottleneck_forward.6} parent=55 // pred_check_branch
        %5397 = sbr.rel (%p5395) target = $region68
      $region67: #{bottleneck_forward.6} parent=55 // pred_region
        %p5398 = scmp.lt.s32.totalorder %s20, 1
        %s5399 = scalar_select %p5398, %s20, 1
        %s5400 = scalar_lea.vmem %s7, %s5399
      $region68: #{bottleneck_forward.6} parent=55 // pred_fallthru
        _
    $region56: #{bottleneck_forward.6} parent=5 // pred_fallthru
      _
  $region6: #{bottleneck_forward.6} parent=0 // loop_footer
    %s18 = sadd.s32 1, %s14
  $region7: #{bottleneck_forward.6} parent=0 // loop_footer_branch
    %13 = sbr.rel target = $region3
  $region8: #{bottleneck_forward.6} parent=0 // loop_exit
    _

</llo_original>
